<compile_context>
chip_gen: v7x
topology: tpu7x:2x2x1
jax: 0.10.0
libtpu: 0.0.40
codegen_flags: <defaults>
</compile_context>

<pallas_src>
import functools

import jax
import jax.numpy as jnp
from jax.experimental import pallas as pl
from jax.experimental.pallas import tpu as pltpu

EPS = 1e-5
LANE = 128

# (name, Cin, Cout, kernel, stride, pad) for the five conv+BN+ELU blocks (c=6)
_CONV_CFG = (
    ("c1", 1, 6, 7, 1, 2),
    ("c2", 6, 12, 5, 1, 2),
    ("c3", 12, 24, 3, 2, 1),
    ("c4", 24, 36, 3, 2, 2),
    ("c5", 36, 36, 3, 1, 1),
)


def _ru(x, m):
    return (x + m - 1) // m * m


def _pad_to(a, shape):
    return jnp.pad(a, [(0, t - s) for s, t in zip(a.shape, shape)])


def _elu(v):
    # ELU(alpha=1) in f32; clamp before exp so the discarded branch stays finite.
    return jnp.where(v > 0, v, jnp.exp(jnp.minimum(v, 0.0)) - 1.0)


# ----------------------------- Pallas kernels ------------------------------

def _matmul_bn_elu_kernel(x_ref, w_ref, s_ref, b_ref, o_ref):
    # out = ELU((patches @ w) * scale + bias); bf16 operands, f32 acc/epilogue.
    acc = jnp.dot(x_ref[...], w_ref[...], preferred_element_type=jnp.float32)
    out = acc * s_ref[...] + b_ref[...]
    o_ref[...] = _elu(out).astype(o_ref.dtype)


def _head_kernel(x_ref, w6_ref, b6_ref, s_ref, bbn_ref, wl_ref, bl_ref, o_ref):
    # block_6 (1x1 conv + bias) -> BatchNorm1d -> ELU -> Linear, fully fused.
    h = jnp.dot(x_ref[...].astype(jnp.bfloat16), w6_ref[...],
                preferred_element_type=jnp.float32) + b6_ref[...]
    h = _elu(h * s_ref[...] + bbn_ref[...])
    o = jnp.dot(h.astype(jnp.bfloat16), wl_ref[...],
                preferred_element_type=jnp.float32) + bl_ref[...]
    o_ref[...] = o.astype(o_ref.dtype)


def _full_spec(shape):
    # Whole array as one block (block == full dims is exempt from (8,128)).
    return pl.BlockSpec(shape, lambda i: (0,) * len(shape))


def matmul_bn_elu(x2d, w, scale, bias):
    """x2d: (M, Kpad) bf16; w: (Kpad, 128) bf16; scale/bias: (1, 128) f32."""
    M, Kpad = x2d.shape
    Npad = w.shape[1]
    TM = 512 if M >= 512 else _ru(M, 8)
    Mpad = _ru(M, TM)
    if Mpad != M:
        x2d = jnp.pad(x2d, ((0, Mpad - M), (0, 0)))
    cost = pl.CostEstimate(
        flops=2 * Mpad * Kpad * Npad,
        transcendentals=Mpad * Npad,
        bytes_accessed=Mpad * Kpad * 2 + Kpad * Npad * 2
        + 2 * Npad * 4 + Mpad * Npad * 4)
    return pl.pallas_call(
        _matmul_bn_elu_kernel,
        grid=(Mpad // TM,),
        in_specs=[
            pl.BlockSpec((TM, Kpad), lambda i: (i, 0)),
            pl.BlockSpec((Kpad, Npad), lambda i: (0, 0)),
            pl.BlockSpec((1, Npad), lambda i: (0, 0)),
            pl.BlockSpec((1, Npad), lambda i: (0, 0)),
        ],
        out_specs=pl.BlockSpec((TM, Npad), lambda i: (i, 0)),
        out_shape=jax.ShapeDtypeStruct((Mpad, Npad), jnp.float32),
        compiler_params=pltpu.CompilerParams(
            dimension_semantics=("parallel",),
            vmem_limit_bytes=48 * 1024 * 1024),
        cost_estimate=cost,
    )(x2d, w, scale, bias)


def head_forward(xf, kp):
    """(N, 36) -> (N, 10): block_6 + BN1d + ELU + Linear in one Pallas call."""
    n, c = xf.shape
    npad = _ru(n, 8)
    xp = jnp.pad(xf, ((0, npad - n), (0, LANE - c)))
    out = pl.pallas_call(
        _head_kernel,
        grid=(1,),
        in_specs=[_full_spec((npad, LANE)), _full_spec((LANE, LANE)),
                  _full_spec((1, LANE)), _full_spec((1, LANE)),
                  _full_spec((1, LANE)), _full_spec((LANE, LANE)),
                  _full_spec((1, LANE))],
        out_specs=_full_spec((npad, LANE)),
        out_shape=jax.ShapeDtypeStruct((npad, LANE), jnp.float32),
        compiler_params=pltpu.CompilerParams(dimension_semantics=("arbitrary",)),
    )(xp, kp["c6_w"], kp["c6_b"], kp["fc_s"], kp["fc_bnb"], kp["fc_w"], kp["fc_b"])
    return out[:n, :10]


# ------------------------------- glue (JAX) --------------------------------

def _nn_idx(inn, out):
    # PyTorch nn.Upsample(mode='nearest'): src = floor(dst * in / out)
    return (jnp.arange(out) * inn) // out


def _upsample_nearest_cl(x, size):
    # TODO(synk): nearest Upsample kept as XLA gathers (pure indexing).
    for ax, s in zip((1, 2, 3), size):
        x = jnp.take(x, _nn_idx(x.shape[ax], s), axis=ax)
    return x


def _avg_pool3d_cl(x, k, stride, pad):
    # TODO(synk): AvgPool3d (count_include_pad=True) kept in XLA reduce_window;
    # a Pallas version would need a k^3-times patch materialization or strided
    # windowed reads, which costs more HBM than it saves at these sizes.
    summed = jax.lax.reduce_window(
        x, 0.0, jax.lax.add,
        (1, k, k, k, 1), (1, stride, stride, stride, 1),
        ((0, 0), (pad, pad), (pad, pad), (pad, pad), (0, 0)))
    return summed / float(k ** 3)


def _patches_3d(x, k, stride, pad):
    """k^3 / stride / symmetric-pad patch extraction, channels-last.

    (n, d, h, w, c) -> (n, do, ho, wo, k^3*c); taps ordered (kd, kh, kw) major
    with channel minor, matching the (kd, kh, kw, in, out) weight reshape.
    """
    n, d, h, w, c = x.shape
    xp = jnp.pad(x, ((0, 0), (pad, pad), (pad, pad), (pad, pad), (0, 0)))
    do = (d + 2 * pad - k) // stride + 1
    ho = (h + 2 * pad - k) // stride + 1
    wo = (w + 2 * pad - k) // stride + 1
    cols = []
    for kd in range(k):
        for kh in range(k):
            for kw in range(k):
                cols.append(xp[:, kd:kd + (do - 1) * stride + 1:stride,
                                  kh:kh + (ho - 1) * stride + 1:stride,
                                  kw:kw + (wo - 1) * stride + 1:stride, :])
    patches = jnp.stack(cols, axis=-2)                 # (n, do, ho, wo, k^3, c)
    return patches.reshape(n, do, ho, wo, k ** 3 * c), (do, ho, wo)


def conv_block(x, kp, name, cin, cout, k, stride, pad):
    """Conv3d + BatchNorm3d + ELU as one fused Pallas matmul kernel."""
    n = x.shape[0]
    patches, (do, ho, wo) = _patches_3d(x.astype(jnp.bfloat16), k, stride, pad)
    M = n * do * ho * wo
    K = cin * k ** 3
    Kpad = _ru(K, LANE)
    pf = patches.reshape(M, K)
    if Kpad != K:
        pf = jnp.pad(pf, ((0, 0), (0, Kpad - K)))      # zero cols, zero w rows
    out = matmul_bn_elu(pf, kp[name + "_w"], kp[name + "_s"], kp[name + "_b"])
    return out[:M, :cout].reshape(n, do, ho, wo, cout)


def cnn3d_forward(x_ncdhw, kp):
    """Pallas implementation of CNN3D.forward (mnist_type='single', c=6)."""
    x = jnp.transpose(x_ncdhw, (0, 2, 3, 4, 1)).astype(jnp.float32)  # -> NDHWC
    x = _upsample_nearest_cl(x, (29, 29, 29))
    x = conv_block(x, kp, *_CONV_CFG[0])               # 7^3, pad 2 -> 27^3 x 6
    x = conv_block(x, kp, *_CONV_CFG[1])               # 5^3, pad 2 -> 27^3 x 12
    x = _avg_pool3d_cl(x, 5, 2, 1)                     # -> 13^3
    x = conv_block(x, kp, *_CONV_CFG[2])               # 3^3 s2 p1 -> 7^3 x 24
    x = _avg_pool3d_cl(x, 5, 2, 1)                     # -> 3^3
    x = conv_block(x, kp, *_CONV_CFG[3])               # 3^3 s2 p2 -> 3^3 x 36
    x = conv_block(x, kp, *_CONV_CFG[4])               # 3^3 s1 p1 -> 3^3 x 36
    x = _avg_pool3d_cl(x, 3, 1, 0)                     # -> 1^3
    xf = x.reshape(x.shape[0], -1)                     # (N, 36)
    return head_forward(xf, kp)                        # (N, 10)


# ----------------------- parameter construction ----------------------------

def make_params(key):
    """Deterministic synthetic params in PyTorch layout + kernel-ready form."""
    keys = iter(jax.random.split(key, 64))

    def nrm(shape, scale=1.0):
        return (scale * jax.random.normal(next(keys), shape)).astype(jnp.float32)

    def bn_stats(cc):
        g = (1.0 + 0.1 * nrm((cc,))).astype(jnp.float32)
        b = 0.1 * nrm((cc,))
        m = 0.1 * nrm((cc,))
        v = jnp.abs(nrm((cc,), 0.3)) + 0.8
        return g, b, m, v

    raw = {}
    for name, cin, cout, k, s, p in _CONV_CFG:
        raw[name + "_w"] = nrm((cout, cin, k, k, k), (cin * k ** 3) ** -0.5)
        raw[name + "_b"] = nrm((cout,), 0.1)
        raw["bn" + name[1]] = bn_stats(cout)
    raw["c6_w"] = nrm((48, 36, 1, 1, 1), 36 ** -0.5)
    raw["c6_b"] = nrm((48,), 0.1)
    raw["bn_fc"] = bn_stats(48)
    raw["fc_w"] = nrm((10, 48), 48 ** -0.5)
    raw["fc_b"] = nrm((10,), 0.1)

    # kernel-ready: channels-last matmul weights, padded to 128 lanes, bf16
    # operands; BN folded into per-channel f32 scale/bias (conv bias folded in).
    kp = {}
    for name, cin, cout, k, s, p in _CONV_CFG:
        K = cin * k ** 3
        Kpad = _ru(K, LANE)
        w2 = jnp.transpose(raw[name + "_w"], (2, 3, 4, 1, 0)).reshape(K, cout)
        kp[name + "_w"] = _pad_to(w2, (Kpad, LANE)).astype(jnp.bfloat16)
        g, beta, m, v = raw["bn" + name[1]]
        scale = g / jnp.sqrt(v + EPS)
        bias = beta + (raw[name + "_b"] - m) * scale
        kp[name + "_s"] = _pad_to(scale[None, :], (1, LANE))
        kp[name + "_b"] = _pad_to(bias[None, :], (1, LANE))

    kp["c6_w"] = _pad_to(raw["c6_w"].reshape(48, 36).T, (LANE, LANE)).astype(jnp.bfloat16)
    kp["c6_b"] = _pad_to(raw["c6_b"][None, :], (1, LANE))
    g, beta, m, v = raw["bn_fc"]
    s_fc = g / jnp.sqrt(v + EPS)
    kp["fc_s"] = _pad_to(s_fc[None, :], (1, LANE))
    kp["fc_bnb"] = _pad_to((beta - m * s_fc)[None, :], (1, LANE))
    kp["fc_w"] = _pad_to(raw["fc_w"].T, (LANE, LANE)).astype(jnp.bfloat16)
    kp["fc_b"] = _pad_to(raw["fc_b"][None, :], (1, LANE))
    return raw, kp


# --------------------------- pure-JAX reference -----------------------------

def reference_forward(x, raw):
    # TODO(synk): training-mode BatchNorm (batch statistics) is not reproduced;
    # both reference and kernel use inference-mode (running-stat) BatchNorm.
    def conv(y, w, b, s, p):
        out = jax.lax.conv_general_dilated(
            y, w, (s, s, s), [(p, p)] * 3,
            dimension_numbers=("NCDHW", "OIDHW", "NCDHW"))
        return out + b[None, :, None, None, None]

    def bn(y, stats):
        g, bb, m, v = stats
        rs = lambda a: a[None, :, None, None, None]
        return (y - rs(m)) / jnp.sqrt(rs(v) + EPS) * rs(g) + rs(bb)

    def pool(y, k, s, p):
        summed = jax.lax.reduce_window(
            y, 0.0, jax.lax.add, (1, 1, k, k, k), (1, 1, s, s, s),
            ((0, 0), (0, 0), (p, p), (p, p), (p, p)))
        return summed / float(k ** 3)

    y = x
    for ax in (2, 3, 4):                              # nearest upsample to 29^3
        y = jnp.take(y, _nn_idx(y.shape[ax], 29), axis=ax)
    y = jax.nn.elu(bn(conv(y, raw["c1_w"], raw["c1_b"], 1, 2), raw["bn1"]))
    y = jax.nn.elu(bn(conv(y, raw["c2_w"], raw["c2_b"], 1, 2), raw["bn2"]))
    y = pool(y, 5, 2, 1)
    y = jax.nn.elu(bn(conv(y, raw["c3_w"], raw["c3_b"], 2, 1), raw["bn3"]))
    y = pool(y, 5, 2, 1)
    y = jax.nn.elu(bn(conv(y, raw["c4_w"], raw["c4_b"], 2, 2), raw["bn4"]))
    y = jax.nn.elu(bn(conv(y, raw["c5_w"], raw["c5_b"], 1, 1), raw["bn5"]))
    y = pool(y, 3, 1, 0)
    y = conv(y, raw["c6_w"], raw["c6_b"], 1, 0)
    yf = y.reshape(y.shape[0], -1)
    g, bb, m, v = raw["bn_fc"]
    yf = jax.nn.elu((yf - m) / jnp.sqrt(v + EPS) * g + bb)
    return yf @ raw["fc_w"].T + raw["fc_b"]


# --------------------------------- main -------------------------------------

if __name__ == "__main__":
    key = jax.random.PRNGKey(0)
    kx, kparams = jax.random.split(key)
    # (batch=2, channels=1, spatial=16^3) -> upsampled to 29^3 ('single' MNIST)
    x = jax.random.normal(kx, (2, 1, 16, 16, 16), dtype=jnp.float32)

    raw_params, kernel_params = make_params(kparams)

    out = jax.block_until_ready(jax.jit(cnn3d_forward)(x, kernel_params))
    ref = jax.block_until_ready(jax.jit(reference_forward)(x, raw_params))

    assert out.shape == ref.shape == (2, 10), out.shape
    # bf16 MXU operands (f32 accumulation) across 6 conv layers -> ~1% rel err.
    max_err = float(jnp.max(jnp.abs(out - ref)))
    assert jnp.allclose(out, ref, rtol=5e-2, atol=5e-2), max_err

    print("KERNEL_OK")
</pallas_src>

<mosaic_0001>
module attributes {stable_mosaic.version = 11 : i64} {
  func.func private @main(%arg0: i32) attributes {dimension_semantics = [#tpu.dimension_semantics<core_parallel>], iteration_bounds = array<i64: 2>, tpu.core_type = #tpu.core_type<sc_scalar_subcore>, window_params = []} {
    return
  }
}

module attributes {stable_mosaic.version = 11 : i64} {
  func.func private @main(%arg0: i32) attributes {dimension_semantics = [#tpu.dimension_semantics<core_parallel>], iteration_bounds = array<i64: 2>, tpu.core_type = #tpu.core_type<sc_scalar_subcore>, window_params = []} {
    return
  }
}

module attributes {stable_mosaic.version = 11 : i64} {
  func.func @_matmul_bn_elu_kernel(%arg0: i32, %arg1: memref<512x384xbf16, #tpu.memory_space<vmem>>, %arg2: memref<384x128xbf16, #tpu.memory_space<vmem>>, %arg3: memref<1x128xf32, #tpu.memory_space<vmem>>, %arg4: memref<1x128xf32, #tpu.memory_space<vmem>>, %arg5: memref<512x128xf32, #tpu.memory_space<vmem>>) attributes {dimension_semantics = [#tpu.dimension_semantics<parallel>], iteration_bounds = array<i64: 77>, scalar_prefetch = 0 : i64, scratch_operands = 0 : i64, tpu.core_type = #tpu.core_type<tc>, window_params = [{transform_indices = @transform_0, window_bounds = array<i64: 512, 384>}, {pipeline_mode = #tpu.pipeline_mode<synchronous>, transform_indices = @transform_1, window_bounds = array<i64: 384, 128>}, {pipeline_mode = #tpu.pipeline_mode<synchronous>, transform_indices = @transform_2, window_bounds = array<i64: 1, 128>}, {pipeline_mode = #tpu.pipeline_mode<synchronous>, transform_indices = @transform_3, window_bounds = array<i64: 1, 128>}, {transform_indices = @transform_4, window_bounds = array<i64: 512, 128>}]} {
    %c0 = arith.constant 0 : index
    %c0_0 = arith.constant 0 : index
    %0 = vector.load %arg1[%c0, %c0_0] : memref<512x384xbf16, #tpu.memory_space<vmem>>, vector<512x384xbf16>
    %c0_1 = arith.constant 0 : index
    %c0_2 = arith.constant 0 : index
    %1 = vector.load %arg2[%c0_1, %c0_2] : memref<384x128xbf16, #tpu.memory_space<vmem>>, vector<384x128xbf16>
    %cst = arith.constant dense<0.000000e+00> : vector<512x128xf32>
    %2 = tpu.matmul %0, %1, %cst {dimension_numbers = #tpu.dot_dimension_numbers<[1], [0], [0], [1], [0, 0, 1, 1], [], []>} : vector<512x384xbf16>, vector<384x128xbf16>, vector<512x128xf32> -> vector<512x128xf32>
    %c0_3 = arith.constant 0 : index
    %c0_4 = arith.constant 0 : index
    %3 = vector.load %arg3[%c0_3, %c0_4] : memref<1x128xf32, #tpu.memory_space<vmem>>, vector<1x128xf32>
    %4 = vector.broadcast %3 : vector<1x128xf32> to vector<512x128xf32>
    %5 = arith.mulf %2, %4 : vector<512x128xf32>
    %c0_5 = arith.constant 0 : index
    %c0_6 = arith.constant 0 : index
    %6 = vector.load %arg4[%c0_5, %c0_6] : memref<1x128xf32, #tpu.memory_space<vmem>>, vector<1x128xf32>
    %7 = vector.broadcast %6 : vector<1x128xf32> to vector<512x128xf32>
    %8 = arith.addf %5, %7 : vector<512x128xf32>
    %cst_7 = arith.constant 0.000000e+00 : f32
    %9 = vector.broadcast %cst_7 : f32 to vector<512x128xf32>
    %10 = arith.cmpf ogt, %8, %9 : vector<512x128xf32>
    %cst_8 = arith.constant 0.000000e+00 : f32
    %11 = vector.broadcast %cst_8 : f32 to vector<512x128xf32>
    %12 = arith.minimumf %8, %11 : vector<512x128xf32>
    %13 = math.exp %12 : vector<512x128xf32>
    %cst_9 = arith.constant 1.000000e+00 : f32
    %14 = vector.broadcast %cst_9 : f32 to vector<512x128xf32>
    %15 = arith.subf %13, %14 : vector<512x128xf32>
    %16 = arith.select %10, %8, %15 : vector<512x128xi1>, vector<512x128xf32>
    %c0_10 = arith.constant 0 : index
    %c0_11 = arith.constant 0 : index
    %17 = vector.load %arg5[%c0_10, %c0_11] : memref<512x128xf32, #tpu.memory_space<vmem>>, vector<512x128xf32>
    tpu.vector_store %arg5[%c0_10, %c0_11], %16 {strides = array<i32>} : memref<512x128xf32, #tpu.memory_space<vmem>>, vector<512x128xf32>,
    return
  }
  func.func @transform_0(%arg0: i32) -> (i32, i32) {
    %c0_i32 = arith.constant 0 : i32
    %c0_i32_0 = arith.constant 0 : i32
    return %arg0, %c0_i32 : i32, i32
  }
  func.func @transform_1(%arg0: i32) -> (i32, i32) {
    %c0_i32 = arith.constant 0 : i32
    %c0_i32_0 = arith.constant 0 : i32
    %c0_i32_1 = arith.constant 0 : i32
    return %c0_i32, %c0_i32_0 : i32, i32
  }
  func.func @transform_2(%arg0: i32) -> (i32, i32) {
    %c0_i32 = arith.constant 0 : i32
    %c0_i32_0 = arith.constant 0 : i32
    %c0_i32_1 = arith.constant 0 : i32
    return %c0_i32, %c0_i32_0 : i32, i32
  }
  func.func @transform_3(%arg0: i32) -> (i32, i32) {
    %c0_i32 = arith.constant 0 : i32
    %c0_i32_0 = arith.constant 0 : i32
    %c0_i32_1 = arith.constant 0 : i32
    return %c0_i32, %c0_i32_0 : i32, i32
  }
  func.func @transform_4(%arg0: i32) -> (i32, i32) {
    %c0_i32 = arith.constant 0 : i32
    %c0_i32_0 = arith.constant 0 : i32
    return %arg0, %c0_i32 : i32, i32
  }
}

module attributes {stable_mosaic.version = 11 : i64} {
  func.func @_matmul_bn_elu_kernel(%arg0: i32, %arg1: memref<512x768xbf16, #tpu.memory_space<vmem>>, %arg2: memref<768x128xbf16, #tpu.memory_space<vmem>>, %arg3: memref<1x128xf32, #tpu.memory_space<vmem>>, %arg4: memref<1x128xf32, #tpu.memory_space<vmem>>, %arg5: memref<512x128xf32, #tpu.memory_space<vmem>>) attributes {dimension_semantics = [#tpu.dimension_semantics<parallel>], iteration_bounds = array<i64: 77>, scalar_prefetch = 0 : i64, scratch_operands = 0 : i64, tpu.core_type = #tpu.core_type<tc>, window_params = [{transform_indices = @transform_0, window_bounds = array<i64: 512, 768>}, {pipeline_mode = #tpu.pipeline_mode<synchronous>, transform_indices = @transform_1, window_bounds = array<i64: 768, 128>}, {pipeline_mode = #tpu.pipeline_mode<synchronous>, transform_indices = @transform_2, window_bounds = array<i64: 1, 128>}, {pipeline_mode = #tpu.pipeline_mode<synchronous>, transform_indices = @transform_3, window_bounds = array<i64: 1, 128>}, {transform_indices = @transform_4, window_bounds = array<i64: 512, 128>}]} {
    %c0 = arith.constant 0 : index
    %c0_0 = arith.constant 0 : index
    %0 = vector.load %arg1[%c0, %c0_0] : memref<512x768xbf16, #tpu.memory_space<vmem>>, vector<512x768xbf16>
    %c0_1 = arith.constant 0 : index
    %c0_2 = arith.constant 0 : index
    %1 = vector.load %arg2[%c0_1, %c0_2] : memref<768x128xbf16, #tpu.memory_space<vmem>>, vector<768x128xbf16>
    %cst = arith.constant dense<0.000000e+00> : vector<512x128xf32>
    %2 = tpu.matmul %0, %1, %cst {dimension_numbers = #tpu.dot_dimension_numbers<[1], [0], [0], [1], [0, 0, 1, 1], [], []>} : vector<512x768xbf16>, vector<768x128xbf16>, vector<512x128xf32> -> vector<512x128xf32>
    %c0_3 = arith.constant 0 : index
    %c0_4 = arith.constant 0 : index
    %3 = vector.load %arg3[%c0_3, %c0_4] : memref<1x128xf32, #tpu.memory_space<vmem>>, vector<1x128xf32>
    %4 = vector.broadcast %3 : vector<1x128xf32> to vector<512x128xf32>
    %5 = arith.mulf %2, %4 : vector<512x128xf32>
    %c0_5 = arith.constant 0 : index
    %c0_6 = arith.constant 0 : index
    %6 = vector.load %arg4[%c0_5, %c0_6] : memref<1x128xf32, #tpu.memory_space<vmem>>, vector<1x128xf32>
    %7 = vector.broadcast %6 : vector<1x128xf32> to vector<512x128xf32>
    %8 = arith.addf %5, %7 : vector<512x128xf32>
    %cst_7 = arith.constant 0.000000e+00 : f32
    %9 = vector.broadcast %cst_7 : f32 to vector<512x128xf32>
    %10 = arith.cmpf ogt, %8, %9 : vector<512x128xf32>
    %cst_8 = arith.constant 0.000000e+00 : f32
    %11 = vector.broadcast %cst_8 : f32 to vector<512x128xf32>
    %12 = arith.minimumf %8, %11 : vector<512x128xf32>
    %13 = math.exp %12 : vector<512x128xf32>
    %cst_9 = arith.constant 1.000000e+00 : f32
    %14 = vector.broadcast %cst_9 : f32 to vector<512x128xf32>
    %15 = arith.subf %13, %14 : vector<512x128xf32>
    %16 = arith.select %10, %8, %15 : vector<512x128xi1>, vector<512x128xf32>
    %c0_10 = arith.constant 0 : index
    %c0_11 = arith.constant 0 : index
    %17 = vector.load %arg5[%c0_10, %c0_11] : memref<512x128xf32, #tpu.memory_space<vmem>>, vector<512x128xf32>
    tpu.vector_store %arg5[%c0_10, %c0_11], %16 {strides = array<i32>} : memref<512x128xf32, #tpu.memory_space<vmem>>, vector<512x128xf32>,
    return
  }
  func.func @transform_0(%arg0: i32) -> (i32, i32) {
    %c0_i32 = arith.constant 0 : i32
    %c0_i32_0 = arith.constant 0 : i32
    return %arg0, %c0_i32 : i32, i32
  }
  func.func @transform_1(%arg0: i32) -> (i32, i32) {
    %c0_i32 = arith.constant 0 : i32
    %c0_i32_0 = arith.constant 0 : i32
    %c0_i32_1 = arith.constant 0 : i32
    return %c0_i32, %c0_i32_0 : i32, i32
  }
  func.func @transform_2(%arg0: i32) -> (i32, i32) {
    %c0_i32 = arith.constant 0 : i32
    %c0_i32_0 = arith.constant 0 : i32
    %c0_i32_1 = arith.constant 0 : i32
    return %c0_i32, %c0_i32_0 : i32, i32
  }
  func.func @transform_3(%arg0: i32) -> (i32, i32) {
    %c0_i32 = arith.constant 0 : i32
    %c0_i32_0 = arith.constant 0 : i32
    %c0_i32_1 = arith.constant 0 : i32
    return %c0_i32, %c0_i32_0 : i32, i32
  }
  func.func @transform_4(%arg0: i32) -> (i32, i32) {
    %c0_i32 = arith.constant 0 : i32
    %c0_i32_0 = arith.constant 0 : i32
    return %arg0, %c0_i32 : i32, i32
  }
}

module attributes {stable_mosaic.version = 11 : i64} {
  func.func @_matmul_bn_elu_kernel(%arg0: i32, %arg1: memref<512x384xbf16, #tpu.memory_space<vmem>>, %arg2: memref<384x128xbf16, #tpu.memory_space<vmem>>, %arg3: memref<1x128xf32, #tpu.memory_space<vmem>>, %arg4: memref<1x128xf32, #tpu.memory_space<vmem>>, %arg5: memref<512x128xf32, #tpu.memory_space<vmem>>) attributes {dimension_semantics = [#tpu.dimension_semantics<parallel>], iteration_bounds = array<i64: 2>, scalar_prefetch = 0 : i64, scratch_operands = 0 : i64, tpu.core_type = #tpu.core_type<tc>, window_params = [{transform_indices = @transform_0, window_bounds = array<i64: 512, 384>}, {pipeline_mode = #tpu.pipeline_mode<synchronous>, transform_indices = @transform_1, window_bounds = array<i64: 384, 128>}, {pipeline_mode = #tpu.pipeline_mode<synchronous>, transform_indices = @transform_2, window_bounds = array<i64: 1, 128>}, {pipeline_mode = #tpu.pipeline_mode<synchronous>, transform_indices = @transform_3, window_bounds = array<i64: 1, 128>}, {transform_indices = @transform_4, window_bounds = array<i64: 512, 128>}]} {
    %c0 = arith.constant 0 : index
    %c0_0 = arith.constant 0 : index
    %0 = vector.load %arg1[%c0, %c0_0] : memref<512x384xbf16, #tpu.memory_space<vmem>>, vector<512x384xbf16>
    %c0_1 = arith.constant 0 : index
    %c0_2 = arith.constant 0 : index
    %1 = vector.load %arg2[%c0_1, %c0_2] : memref<384x128xbf16, #tpu.memory_space<vmem>>, vector<384x128xbf16>
    %cst = arith.constant dense<0.000000e+00> : vector<512x128xf32>
    %2 = tpu.matmul %0, %1, %cst {dimension_numbers = #tpu.dot_dimension_numbers<[1], [0], [0], [1], [0, 0, 1, 1], [], []>} : vector<512x384xbf16>, vector<384x128xbf16>, vector<512x128xf32> -> vector<512x128xf32>
    %c0_3 = arith.constant 0 : index
    %c0_4 = arith.constant 0 : index
    %3 = vector.load %arg3[%c0_3, %c0_4] : memref<1x128xf32, #tpu.memory_space<vmem>>, vector<1x128xf32>
    %4 = vector.broadcast %3 : vector<1x128xf32> to vector<512x128xf32>
    %5 = arith.mulf %2, %4 : vector<512x128xf32>
    %c0_5 = arith.constant 0 : index
    %c0_6 = arith.constant 0 : index
    %6 = vector.load %arg4[%c0_5, %c0_6] : memref<1x128xf32, #tpu.memory_space<vmem>>, vector<1x128xf32>
    %7 = vector.broadcast %6 : vector<1x128xf32> to vector<512x128xf32>
    %8 = arith.addf %5, %7 : vector<512x128xf32>
    %cst_7 = arith.constant 0.000000e+00 : f32
    %9 = vector.broadcast %cst_7 : f32 to vector<512x128xf32>
    %10 = arith.cmpf ogt, %8, %9 : vector<512x128xf32>
    %cst_8 = arith.constant 0.000000e+00 : f32
    %11 = vector.broadcast %cst_8 : f32 to vector<512x128xf32>
    %12 = arith.minimumf %8, %11 : vector<512x128xf32>
    %13 = math.exp %12 : vector<512x128xf32>
    %cst_9 = arith.constant 1.000000e+00 : f32
    %14 = vector.broadcast %cst_9 : f32 to vector<512x128xf32>
    %15 = arith.subf %13, %14 : vector<512x128xf32>
    %16 = arith.select %10, %8, %15 : vector<512x128xi1>, vector<512x128xf32>
    %c0_10 = arith.constant 0 : index
    %c0_11 = arith.constant 0 : index
    %17 = vector.load %arg5[%c0_10, %c0_11] : memref<512x128xf32, #tpu.memory_space<vmem>>, vector<512x128xf32>
    tpu.vector_store %arg5[%c0_10, %c0_11], %16 {strides = array<i32>} : memref<512x128xf32, #tpu.memory_space<vmem>>, vector<512x128xf32>,
    return
  }
  func.func @transform_0(%arg0: i32) -> (i32, i32) {
    %c0_i32 = arith.constant 0 : i32
    %c0_i32_0 = arith.constant 0 : i32
    return %arg0, %c0_i32 : i32, i32
  }
  func.func @transform_1(%arg0: i32) -> (i32, i32) {
    %c0_i32 = arith.constant 0 : i32
    %c0_i32_0 = arith.constant 0 : i32
    %c0_i32_1 = arith.constant 0 : i32
    return %c0_i32, %c0_i32_0 : i32, i32
  }
  func.func @transform_2(%arg0: i32) -> (i32, i32) {
    %c0_i32 = arith.constant 0 : i32
    %c0_i32_0 = arith.constant 0 : i32
    %c0_i32_1 = arith.constant 0 : i32
    return %c0_i32, %c0_i32_0 : i32, i32
  }
  func.func @transform_3(%arg0: i32) -> (i32, i32) {
    %c0_i32 = arith.constant 0 : i32
    %c0_i32_0 = arith.constant 0 : i32
    %c0_i32_1 = arith.constant 0 : i32
    return %c0_i32, %c0_i32_0 : i32, i32
  }
  func.func @transform_4(%arg0: i32) -> (i32, i32) {
    %c0_i32 = arith.constant 0 : i32
    %c0_i32_0 = arith.constant 0 : i32
    return %arg0, %c0_i32 : i32, i32
  }
}

module attributes {stable_mosaic.version = 11 : i64} {
  func.func @_matmul_bn_elu_kernel(%arg0: i32, %arg1: memref<56x768xbf16, #tpu.memory_space<vmem>>, %arg2: memref<768x128xbf16, #tpu.memory_space<vmem>>, %arg3: memref<1x128xf32, #tpu.memory_space<vmem>>, %arg4: memref<1x128xf32, #tpu.memory_space<vmem>>, %arg5: memref<56x128xf32, #tpu.memory_space<vmem>>) attributes {dimension_semantics = [#tpu.dimension_semantics<parallel>], iteration_bounds = array<i64: 1>, scalar_prefetch = 0 : i64, scratch_operands = 0 : i64, tpu.core_type = #tpu.core_type<tc>, window_params = [{transform_indices = @transform_0, window_bounds = array<i64: 56, 768>}, {pipeline_mode = #tpu.pipeline_mode<synchronous>, transform_indices = @transform_1, window_bounds = array<i64: 768, 128>}, {pipeline_mode = #tpu.pipeline_mode<synchronous>, transform_indices = @transform_2, window_bounds = array<i64: 1, 128>}, {pipeline_mode = #tpu.pipeline_mode<synchronous>, transform_indices = @transform_3, window_bounds = array<i64: 1, 128>}, {transform_indices = @transform_4, window_bounds = array<i64: 56, 128>}]} {
    %c0 = arith.constant 0 : index
    %c0_0 = arith.constant 0 : index
    %0 = vector.load %arg1[%c0, %c0_0] : memref<56x768xbf16, #tpu.memory_space<vmem>>, vector<56x768xbf16>
    %c0_1 = arith.constant 0 : index
    %c0_2 = arith.constant 0 : index
    %1 = vector.load %arg2[%c0_1, %c0_2] : memref<768x128xbf16, #tpu.memory_space<vmem>>, vector<768x128xbf16>
    %cst = arith.constant dense<0.000000e+00> : vector<56x128xf32>
    %2 = tpu.matmul %0, %1, %cst {dimension_numbers = #tpu.dot_dimension_numbers<[1], [0], [0], [1], [0, 0, 1, 1], [], []>} : vector<56x768xbf16>, vector<768x128xbf16>, vector<56x128xf32> -> vector<56x128xf32>
    %c0_3 = arith.constant 0 : index
    %c0_4 = arith.constant 0 : index
    %3 = vector.load %arg3[%c0_3, %c0_4] : memref<1x128xf32, #tpu.memory_space<vmem>>, vector<1x128xf32>
    %4 = vector.broadcast %3 : vector<1x128xf32> to vector<56x128xf32>
    %5 = arith.mulf %2, %4 : vector<56x128xf32>
    %c0_5 = arith.constant 0 : index
    %c0_6 = arith.constant 0 : index
    %6 = vector.load %arg4[%c0_5, %c0_6] : memref<1x128xf32, #tpu.memory_space<vmem>>, vector<1x128xf32>
    %7 = vector.broadcast %6 : vector<1x128xf32> to vector<56x128xf32>
    %8 = arith.addf %5, %7 : vector<56x128xf32>
    %cst_7 = arith.constant 0.000000e+00 : f32
    %9 = vector.broadcast %cst_7 : f32 to vector<56x128xf32>
    %10 = arith.cmpf ogt, %8, %9 : vector<56x128xf32>
    %cst_8 = arith.constant 0.000000e+00 : f32
    %11 = vector.broadcast %cst_8 : f32 to vector<56x128xf32>
    %12 = arith.minimumf %8, %11 : vector<56x128xf32>
    %13 = math.exp %12 : vector<56x128xf32>
    %cst_9 = arith.constant 1.000000e+00 : f32
    %14 = vector.broadcast %cst_9 : f32 to vector<56x128xf32>
    %15 = arith.subf %13, %14 : vector<56x128xf32>
    %16 = arith.select %10, %8, %15 : vector<56x128xi1>, vector<56x128xf32>
    %c0_10 = arith.constant 0 : index
    %c0_11 = arith.constant 0 : index
    %17 = vector.load %arg5[%c0_10, %c0_11] : memref<56x128xf32, #tpu.memory_space<vmem>>, vector<56x128xf32>
    tpu.vector_store %arg5[%c0_10, %c0_11], %16 {strides = array<i32>} : memref<56x128xf32, #tpu.memory_space<vmem>>, vector<56x128xf32>,
    return
  }
  func.func @transform_0(%arg0: i32) -> (i32, i32) {
    %c0_i32 = arith.constant 0 : i32
    %c0_i32_0 = arith.constant 0 : i32
    return %arg0, %c0_i32 : i32, i32
  }
  func.func @transform_1(%arg0: i32) -> (i32, i32) {
    %c0_i32 = arith.constant 0 : i32
    %c0_i32_0 = arith.constant 0 : i32
    %c0_i32_1 = arith.constant 0 : i32
    return %c0_i32, %c0_i32_0 : i32, i32
  }
  func.func @transform_2(%arg0: i32) -> (i32, i32) {
    %c0_i32 = arith.constant 0 : i32
    %c0_i32_0 = arith.constant 0 : i32
    %c0_i32_1 = arith.constant 0 : i32
    return %c0_i32, %c0_i32_0 : i32, i32
  }
  func.func @transform_3(%arg0: i32) -> (i32, i32) {
    %c0_i32 = arith.constant 0 : i32
    %c0_i32_0 = arith.constant 0 : i32
    %c0_i32_1 = arith.constant 0 : i32
    return %c0_i32, %c0_i32_0 : i32, i32
  }
  func.func @transform_4(%arg0: i32) -> (i32, i32) {
    %c0_i32 = arith.constant 0 : i32
    %c0_i32_0 = arith.constant 0 : i32
    return %arg0, %c0_i32 : i32, i32
  }
}

module attributes {stable_mosaic.version = 11 : i64} {
  func.func @_matmul_bn_elu_kernel(%arg0: i32, %arg1: memref<56x1024xbf16, #tpu.memory_space<vmem>>, %arg2: memref<1024x128xbf16, #tpu.memory_space<vmem>>, %arg3: memref<1x128xf32, #tpu.memory_space<vmem>>, %arg4: memref<1x128xf32, #tpu.memory_space<vmem>>, %arg5: memref<56x128xf32, #tpu.memory_space<vmem>>) attributes {dimension_semantics = [#tpu.dimension_semantics<parallel>], iteration_bounds = array<i64: 1>, scalar_prefetch = 0 : i64, scratch_operands = 0 : i64, tpu.core_type = #tpu.core_type<tc>, window_params = [{transform_indices = @transform_0, window_bounds = array<i64: 56, 1024>}, {pipeline_mode = #tpu.pipeline_mode<synchronous>, transform_indices = @transform_1, window_bounds = array<i64: 1024, 128>}, {pipeline_mode = #tpu.pipeline_mode<synchronous>, transform_indices = @transform_2, window_bounds = array<i64: 1, 128>}, {pipeline_mode = #tpu.pipeline_mode<synchronous>, transform_indices = @transform_3, window_bounds = array<i64: 1, 128>}, {transform_indices = @transform_4, window_bounds = array<i64: 56, 128>}]} {
    %c0 = arith.constant 0 : index
    %c0_0 = arith.constant 0 : index
    %0 = vector.load %arg1[%c0, %c0_0] : memref<56x1024xbf16, #tpu.memory_space<vmem>>, vector<56x1024xbf16>
    %c0_1 = arith.constant 0 : index
    %c0_2 = arith.constant 0 : index
    %1 = vector.load %arg2[%c0_1, %c0_2] : memref<1024x128xbf16, #tpu.memory_space<vmem>>, vector<1024x128xbf16>
    %cst = arith.constant dense<0.000000e+00> : vector<56x128xf32>
    %2 = tpu.matmul %0, %1, %cst {dimension_numbers = #tpu.dot_dimension_numbers<[1], [0], [0], [1], [0, 0, 1, 1], [], []>} : vector<56x1024xbf16>, vector<1024x128xbf16>, vector<56x128xf32> -> vector<56x128xf32>
    %c0_3 = arith.constant 0 : index
    %c0_4 = arith.constant 0 : index
    %3 = vector.load %arg3[%c0_3, %c0_4] : memref<1x128xf32, #tpu.memory_space<vmem>>, vector<1x128xf32>
    %4 = vector.broadcast %3 : vector<1x128xf32> to vector<56x128xf32>
    %5 = arith.mulf %2, %4 : vector<56x128xf32>
    %c0_5 = arith.constant 0 : index
    %c0_6 = arith.constant 0 : index
    %6 = vector.load %arg4[%c0_5, %c0_6] : memref<1x128xf32, #tpu.memory_space<vmem>>, vector<1x128xf32>
    %7 = vector.broadcast %6 : vector<1x128xf32> to vector<56x128xf32>
    %8 = arith.addf %5, %7 : vector<56x128xf32>
    %cst_7 = arith.constant 0.000000e+00 : f32
    %9 = vector.broadcast %cst_7 : f32 to vector<56x128xf32>
    %10 = arith.cmpf ogt, %8, %9 : vector<56x128xf32>
    %cst_8 = arith.constant 0.000000e+00 : f32
    %11 = vector.broadcast %cst_8 : f32 to vector<56x128xf32>
    %12 = arith.minimumf %8, %11 : vector<56x128xf32>
    %13 = math.exp %12 : vector<56x128xf32>
    %cst_9 = arith.constant 1.000000e+00 : f32
    %14 = vector.broadcast %cst_9 : f32 to vector<56x128xf32>
    %15 = arith.subf %13, %14 : vector<56x128xf32>
    %16 = arith.select %10, %8, %15 : vector<56x128xi1>, vector<56x128xf32>
    %c0_10 = arith.constant 0 : index
    %c0_11 = arith.constant 0 : index
    %17 = vector.load %arg5[%c0_10, %c0_11] : memref<56x128xf32, #tpu.memory_space<vmem>>, vector<56x128xf32>
    tpu.vector_store %arg5[%c0_10, %c0_11], %16 {strides = array<i32>} : memref<56x128xf32, #tpu.memory_space<vmem>>, vector<56x128xf32>,
    return
  }
  func.func @transform_0(%arg0: i32) -> (i32, i32) {
    %c0_i32 = arith.constant 0 : i32
    %c0_i32_0 = arith.constant 0 : i32
    return %arg0, %c0_i32 : i32, i32
  }
  func.func @transform_1(%arg0: i32) -> (i32, i32) {
    %c0_i32 = arith.constant 0 : i32
    %c0_i32_0 = arith.constant 0 : i32
    %c0_i32_1 = arith.constant 0 : i32
    return %c0_i32, %c0_i32_0 : i32, i32
  }
  func.func @transform_2(%arg0: i32) -> (i32, i32) {
    %c0_i32 = arith.constant 0 : i32
    %c0_i32_0 = arith.constant 0 : i32
    %c0_i32_1 = arith.constant 0 : i32
    return %c0_i32, %c0_i32_0 : i32, i32
  }
  func.func @transform_3(%arg0: i32) -> (i32, i32) {
    %c0_i32 = arith.constant 0 : i32
    %c0_i32_0 = arith.constant 0 : i32
    %c0_i32_1 = arith.constant 0 : i32
    return %c0_i32, %c0_i32_0 : i32, i32
  }
  func.func @transform_4(%arg0: i32) -> (i32, i32) {
    %c0_i32 = arith.constant 0 : i32
    %c0_i32_0 = arith.constant 0 : i32
    return %arg0, %c0_i32 : i32, i32
  }
}

module attributes {stable_mosaic.version = 11 : i64} {
  func.func @_head_kernel(%arg0: i32, %arg1: memref<8x128xf32, #tpu.memory_space<vmem>>, %arg2: memref<128x128xbf16, #tpu.memory_space<vmem>>, %arg3: memref<1x128xf32, #tpu.memory_space<vmem>>, %arg4: memref<1x128xf32, #tpu.memory_space<vmem>>, %arg5: memref<1x128xf32, #tpu.memory_space<vmem>>, %arg6: memref<128x128xbf16, #tpu.memory_space<vmem>>, %arg7: memref<1x128xf32, #tpu.memory_space<vmem>>, %arg8: memref<8x128xf32, #tpu.memory_space<vmem>>) attributes {dimension_semantics = [#tpu.dimension_semantics<arbitrary>], iteration_bounds = array<i64: 1>, scalar_prefetch = 0 : i64, scratch_operands = 0 : i64, tpu.core_type = #tpu.core_type<tc>, window_params = [{pipeline_mode = #tpu.pipeline_mode<synchronous>, transform_indices = @transform_0, window_bounds = array<i64: 8, 128>}, {pipeline_mode = #tpu.pipeline_mode<synchronous>, transform_indices = @transform_1, window_bounds = array<i64: 128, 128>}, {pipeline_mode = #tpu.pipeline_mode<synchronous>, transform_indices = @transform_2, window_bounds = array<i64: 1, 128>}, {pipeline_mode = #tpu.pipeline_mode<synchronous>, transform_indices = @transform_3, window_bounds = array<i64: 1, 128>}, {pipeline_mode = #tpu.pipeline_mode<synchronous>, transform_indices = @transform_4, window_bounds = array<i64: 1, 128>}, {pipeline_mode = #tpu.pipeline_mode<synchronous>, transform_indices = @transform_5, window_bounds = array<i64: 128, 128>}, {pipeline_mode = #tpu.pipeline_mode<synchronous>, transform_indices = @transform_6, window_bounds = array<i64: 1, 128>}, {pipeline_mode = #tpu.pipeline_mode<synchronous>, transform_indices = @transform_7, window_bounds = array<i64: 8, 128>}]} {
    %c0 = arith.constant 0 : index
    %c0_0 = arith.constant 0 : index
    %0 = vector.load %arg1[%c0, %c0_0] : memref<8x128xf32, #tpu.memory_space<vmem>>, vector<8x128xf32>
    %1 = arith.truncf %0 : vector<8x128xf32> to vector<8x128xbf16>
    %c0_1 = arith.constant 0 : index
    %c0_2 = arith.constant 0 : index
    %2 = vector.load %arg2[%c0_1, %c0_2] : memref<128x128xbf16, #tpu.memory_space<vmem>>, vector<128x128xbf16>
    %cst = arith.constant dense<0.000000e+00> : vector<8x128xf32>
    %3 = tpu.matmul %1, %2, %cst {dimension_numbers = #tpu.dot_dimension_numbers<[1], [0], [0], [1], [0, 0, 1, 1], [], []>} : vector<8x128xbf16>, vector<128x128xbf16>, vector<8x128xf32> -> vector<8x128xf32>
    %c0_3 = arith.constant 0 : index
    %c0_4 = arith.constant 0 : index
    %4 = vector.load %arg3[%c0_3, %c0_4] : memref<1x128xf32, #tpu.memory_space<vmem>>, vector<1x128xf32>
    %5 = vector.broadcast %4 : vector<1x128xf32> to vector<8x128xf32>
    %6 = arith.addf %3, %5 : vector<8x128xf32>
    %c0_5 = arith.constant 0 : index
    %c0_6 = arith.constant 0 : index
    %7 = vector.load %arg4[%c0_5, %c0_6] : memref<1x128xf32, #tpu.memory_space<vmem>>, vector<1x128xf32>
    %8 = vector.broadcast %7 : vector<1x128xf32> to vector<8x128xf32>
    %9 = arith.mulf %6, %8 : vector<8x128xf32>
    %c0_7 = arith.constant 0 : index
    %c0_8 = arith.constant 0 : index
    %10 = vector.load %arg5[%c0_7, %c0_8] : memref<1x128xf32, #tpu.memory_space<vmem>>, vector<1x128xf32>
    %11 = vector.broadcast %10 : vector<1x128xf32> to vector<8x128xf32>
    %12 = arith.addf %9, %11 : vector<8x128xf32>
    %cst_9 = arith.constant 0.000000e+00 : f32
    %13 = vector.broadcast %cst_9 : f32 to vector<8x128xf32>
    %14 = arith.cmpf ogt, %12, %13 : vector<8x128xf32>
    %cst_10 = arith.constant 0.000000e+00 : f32
    %15 = vector.broadcast %cst_10 : f32 to vector<8x128xf32>
    %16 = arith.minimumf %12, %15 : vector<8x128xf32>
    %17 = math.exp %16 : vector<8x128xf32>
    %cst_11 = arith.constant 1.000000e+00 : f32
    %18 = vector.broadcast %cst_11 : f32 to vector<8x128xf32>
    %19 = arith.subf %17, %18 : vector<8x128xf32>
    %20 = arith.select %14, %12, %19 : vector<8x128xi1>, vector<8x128xf32>
    %21 = arith.truncf %20 : vector<8x128xf32> to vector<8x128xbf16>
    %c0_12 = arith.constant 0 : index
    %c0_13 = arith.constant 0 : index
    %22 = vector.load %arg6[%c0_12, %c0_13] : memref<128x128xbf16, #tpu.memory_space<vmem>>, vector<128x128xbf16>
    %cst_14 = arith.constant dense<0.000000e+00> : vector<8x128xf32>
    %23 = tpu.matmul %21, %22, %cst_14 {dimension_numbers = #tpu.dot_dimension_numbers<[1], [0], [0], [1], [0, 0, 1, 1], [], []>} : vector<8x128xbf16>, vector<128x128xbf16>, vector<8x128xf32> -> vector<8x128xf32>
    %c0_15 = arith.constant 0 : index
    %c0_16 = arith.constant 0 : index
    %24 = vector.load %arg7[%c0_15, %c0_16] : memref<1x128xf32, #tpu.memory_space<vmem>>, vector<1x128xf32>
    %25 = vector.broadcast %24 : vector<1x128xf32> to vector<8x128xf32>
    %26 = arith.addf %23, %25 : vector<8x128xf32>
    %c0_17 = arith.constant 0 : index
    %c0_18 = arith.constant 0 : index
    %27 = vector.load %arg8[%c0_17, %c0_18] : memref<8x128xf32, #tpu.memory_space<vmem>>, vector<8x128xf32>
    tpu.vector_store %arg8[%c0_17, %c0_18], %26 {strides = array<i32>} : memref<8x128xf32, #tpu.memory_space<vmem>>, vector<8x128xf32>,
    return
  }
  func.func @transform_0(%arg0: i32) -> (i32, i32) {
    %c0_i32 = arith.constant 0 : i32
    %c0_i32_0 = arith.constant 0 : i32
    %c0_i32_1 = arith.constant 0 : i32
    return %c0_i32, %c0_i32_0 : i32, i32
  }
  func.func @transform_1(%arg0: i32) -> (i32, i32) {
    %c0_i32 = arith.constant 0 : i32
    %c0_i32_0 = arith.constant 0 : i32
    %c0_i32_1 = arith.constant 0 : i32
    return %c0_i32, %c0_i32_0 : i32, i32
  }
  func.func @transform_2(%arg0: i32) -> (i32, i32) {
    %c0_i32 = arith.constant 0 : i32
    %c0_i32_0 = arith.constant 0 : i32
    %c0_i32_1 = arith.constant 0 : i32
    return %c0_i32, %c0_i32_0 : i32, i32
  }
  func.func @transform_3(%arg0: i32) -> (i32, i32) {
    %c0_i32 = arith.constant 0 : i32
    %c0_i32_0 = arith.constant 0 : i32
    %c0_i32_1 = arith.constant 0 : i32
    return %c0_i32, %c0_i32_0 : i32, i32
  }
  func.func @transform_4(%arg0: i32) -> (i32, i32) {
    %c0_i32 = arith.constant 0 : i32
    %c0_i32_0 = arith.constant 0 : i32
    %c0_i32_1 = arith.constant 0 : i32
    return %c0_i32, %c0_i32_0 : i32, i32
  }
  func.func @transform_5(%arg0: i32) -> (i32, i32) {
    %c0_i32 = arith.constant 0 : i32
    %c0_i32_0 = arith.constant 0 : i32
    %c0_i32_1 = arith.constant 0 : i32
    return %c0_i32, %c0_i32_0 : i32, i32
  }
  func.func @transform_6(%arg0: i32) -> (i32, i32) {
    %c0_i32 = arith.constant 0 : i32
    %c0_i32_0 = arith.constant 0 : i32
    %c0_i32_1 = arith.constant 0 : i32
    return %c0_i32, %c0_i32_0 : i32, i32
  }
  func.func @transform_7(%arg0: i32) -> (i32, i32) {
    %c0_i32 = arith.constant 0 : i32
    %c0_i32_0 = arith.constant 0 : i32
    %c0_i32_1 = arith.constant 0 : i32
    return %c0_i32, %c0_i32_0 : i32, i32
  }
}

</mosaic_0001>

<llo_original>
// kernel: cnn3d_forward.6
$region0: #{cnn3d_forward.6}
  #allocation0 [shape = 'u32[]', space=smem, size = 0x4, offset = 0x4, fixed_abs, tag = 'smem constant byte address 0x4 - core index']
  #allocation1 [shape = 'u32[144,128]{1,0:T(1,128)}', space=vmem, size = 0x12000, scoped, tag = 'internal scratch']
  %s0 = inlined_call_operand.hbm [shape: bf16[39424,384], index: 0, kind: input, shape index: {}]
  %s1 = inlined_call_operand.vmem [shape: bf16[384,128], index: 1, kind: input, shape index: {}]
  %s2 = inlined_call_operand.vmem [shape: f32[1,128], index: 2, kind: input, shape index: {}]
  %s3 = inlined_call_operand.vmem [shape: f32[1,128], index: 3, kind: input, shape index: {}]
  %s4 = inlined_call_operand.hbm [shape: f32[39424,128], index: 4, kind: output, shape index: {}]
  %s5 = sld [smem:[#allocation0]]
  $region53: #{cnn3d_forward.6} parent=0
    _
  %s7 = ssub.s32 1, %s5
  %s8 = scalar_select 0, %s7, %s5
  $region1: #{cnn3d_forward.6} parent=0
    #allocation2 [shape = 'u8[786432]{0}', space=vmem, size = 0xc0000, scoped, tag = 'input window, operand 0']
    #allocation3 [shape = 's32[2]{0}', space=sflag, size = 0x8, scoped, tag = 'scoped memory for cnn3d_forward.6']
    #allocation4 [shape = 's32[2]{0}', space=sflag, size = 0x8, scoped, tag = 'scoped memory for cnn3d_forward.6']
    #allocation5 [shape = 'u8[524288]{0}', space=vmem, size = 0x80000, scoped, tag = 'output window, operand 0']
    %9 = vsyncpa [#allocation3], 0
    %s10 = scalar_lea.sflag [#allocation3], 1
    %11 = vsyncpa %s10, 0
    %12 = vsyncpa [#allocation4], 0
    %s13 = scalar_lea.sflag [#allocation4], 1
    %14 = vsyncpa %s13, 0
    loop: start=0, step=1, limit=79
    $region2: #{cnn3d_forward.6} parent=1 // loop_pre_header
      _
    $region3: #{cnn3d_forward.6} parent=1 // loop_header
      %s16 = sphi 0, %s20
      %p17 = scmp.ge.s32.totalorder %s16, 79
      %s26 = sphi 0, %s28
      %s29 = sphi 0, %s26
      %s30 = sphi 0, %s29
      %s46 = sphi 0, %s30
      %s50 = sphi 0, %s50
      %s52 = sphi 0, %s50
      %s53 = sphi 0, %s52
      %s67 = sphi 0, %s53
      %s71 = sphi 0, %s71
      %s73 = sphi 0, %s71
      %s74 = sphi 0, %s73
      %s88 = sphi 0, %s74
      %s92 = sphi 0, %s92
      %s94 = sphi 0, %s92
      %s95 = sphi 0, %s94
      %s109 = sphi 0, %s95
      %s115 = sphi 0, %s117
      %s118 = sphi 0, %s115
      %s119 = sphi 0, %s118
      %s135 = sphi 0, %s119
    $region4: #{cnn3d_forward.6} parent=1 // loop_header_branch
      %19 = sbr.rel (%p17) target = $region8
    $region5: #{cnn3d_forward.6} parent=1 // loop_body
      %s21 = ssub.s32 %s16, 1
      %s22 = ssub.s32 %s16, 2
      %s23 = sadd.s32 %s16, 1
      %s24 = ssub.s32 %s16, %s23
      %p25 = scmp.eq.s32.totalorder %s24, 0
      %s27 = sadd.s32 %s26, 1
      %s28 = scalar_select %p25, %s26, %s27
      %p31 = pneg %p25
      %p32 = scmp.eq.s32.totalorder %s16, 76
      %p33 = por %p31, %p32
      %p34 = scmp.ne.s32.totalorder %s26, %s29
      %p35 = scmp.eq.s32.totalorder %s16, 0
      %p36 = por %p34, %p35
      %p37 = scmp.ne.s32.totalorder %s26, %s29
      %p38 = scmp.eq.s32.totalorder %s21, 76
      %p39 = por %p37, %p38
      %p40 = scmp.ne.s32.totalorder %s29, %s30
      %p41 = scmp.eq.s32.totalorder %s21, 0
      %p42 = por %p40, %p41
      %p43 = scmp.ne.s32.totalorder %s29, %s30
      %p44 = scmp.eq.s32.totalorder %s22, 76
      %p45 = por %p43, %p44
      %p47 = scmp.ne.s32.totalorder %s30, %s46
      %p48 = scmp.eq.s32.totalorder %s22, 0
      %p49 = por %p47, %p48
      %s51 = sadd.s32 %s50, 1
      %p54 = scmp.eq.s32.totalorder %s16, 76
      %p55 = scmp.ne.s32.totalorder %s50, %s52
      %p56 = scmp.eq.s32.totalorder %s16, 0
      %p57 = por %p55, %p56
      %p58 = scmp.ne.s32.totalorder %s50, %s52
      %p59 = scmp.eq.s32.totalorder %s21, 76
      %p60 = por %p58, %p59
      %p61 = scmp.ne.s32.totalorder %s52, %s53
      %p62 = scmp.eq.s32.totalorder %s21, 0
      %p63 = por %p61, %p62
      %p64 = scmp.ne.s32.totalorder %s52, %s53
      %p65 = scmp.eq.s32.totalorder %s22, 76
      %p66 = por %p64, %p65
      %p68 = scmp.ne.s32.totalorder %s53, %s67
      %p69 = scmp.eq.s32.totalorder %s22, 0
      %p70 = por %p68, %p69
      %s72 = sadd.s32 %s71, 1
      %p75 = scmp.eq.s32.totalorder %s16, 76
      %p76 = scmp.ne.s32.totalorder %s71, %s73
      %p77 = scmp.eq.s32.totalorder %s16, 0
      %p78 = por %p76, %p77
      %p79 = scmp.ne.s32.totalorder %s71, %s73
      %p80 = scmp.eq.s32.totalorder %s21, 76
      %p81 = por %p79, %p80
      %p82 = scmp.ne.s32.totalorder %s73, %s74
      %p83 = scmp.eq.s32.totalorder %s21, 0
      %p84 = por %p82, %p83
      %p85 = scmp.ne.s32.totalorder %s73, %s74
      %p86 = scmp.eq.s32.totalorder %s22, 76
      %p87 = por %p85, %p86
      %p89 = scmp.ne.s32.totalorder %s74, %s88
      %p90 = scmp.eq.s32.totalorder %s22, 0
      %p91 = por %p89, %p90
      %s93 = sadd.s32 %s92, 1
      %p96 = scmp.eq.s32.totalorder %s16, 76
      %p97 = scmp.ne.s32.totalorder %s92, %s94
      %p98 = scmp.eq.s32.totalorder %s16, 0
      %p99 = por %p97, %p98
      %p100 = scmp.ne.s32.totalorder %s92, %s94
      %p101 = scmp.eq.s32.totalorder %s21, 76
      %p102 = por %p100, %p101
      %p103 = scmp.ne.s32.totalorder %s94, %s95
      %p104 = scmp.eq.s32.totalorder %s21, 0
      %p105 = por %p103, %p104
      %p106 = scmp.ne.s32.totalorder %s94, %s95
      %p107 = scmp.eq.s32.totalorder %s22, 76
      %p108 = por %p106, %p107
      %p110 = scmp.ne.s32.totalorder %s95, %s109
      %p111 = scmp.eq.s32.totalorder %s22, 0
      %p112 = por %p110, %p111
      %s113 = ssub.s32 %s16, %s23
      %p114 = scmp.eq.s32.totalorder %s113, 0
      %s116 = sadd.s32 %s115, 1
      %s117 = scalar_select %p114, %s115, %s116
      %p120 = pneg %p114
      %p121 = scmp.eq.s32.totalorder %s16, 76
      %p122 = por %p120, %p121
      %p123 = scmp.ne.s32.totalorder %s115, %s118
      %p124 = scmp.eq.s32.totalorder %s16, 0
      %p125 = por %p123, %p124
      %p126 = scmp.ne.s32.totalorder %s115, %s118
      %p127 = scmp.eq.s32.totalorder %s21, 76
      %p128 = por %p126, %p127
      %p129 = scmp.ne.s32.totalorder %s118, %s119
      %p130 = scmp.eq.s32.totalorder %s21, 0
      %p131 = por %p129, %p130
      %p132 = scmp.ne.s32.totalorder %s118, %s119
      %p133 = scmp.eq.s32.totalorder %s22, 76
      %p134 = por %p132, %p133
      %p136 = scmp.ne.s32.totalorder %s119, %s135
      %p137 = scmp.eq.s32.totalorder %s22, 0
      %p138 = por %p136, %p137
      %p139 = scmp.le.s32.totalorder 1, %s16
      %p140 = scmp.lt.s32.totalorder %s16, 78
      %p141 = pnand %p139, %p140
      %p142 = pneg %p141
      // Predicated region
      $region9: #{cnn3d_forward.6} parent=5 // pred_check
        _
      $region10: #{cnn3d_forward.6} parent=5 // pred_check_branch
        %144 = sbr.rel (%p141) target = $region12
      $region11: #{cnn3d_forward.6} parent=5 // pred_region
        %s145 = ssub.s32 %s16, 1
        // Predicated region
        $region13: #{cnn3d_forward.6} parent=11 // pred_check
          %p146 = pneg %p63
        $region14: #{cnn3d_forward.6} parent=11 // pred_check_branch
          %148 = sbr.rel (%p146) target = $region16
        $region15: #{cnn3d_forward.6} parent=11 // pred_region
          _
        $region16: #{cnn3d_forward.6} parent=11 // pred_fallthru
          _
        // Predicated region
        $region17: #{cnn3d_forward.6} parent=11 // pred_check
          %p149 = pneg %p84
        $region18: #{cnn3d_forward.6} parent=11 // pred_check_branch
          %151 = sbr.rel (%p149) target = $region20
        $region19: #{cnn3d_forward.6} parent=11 // pred_region
          _
        $region20: #{cnn3d_forward.6} parent=11 // pred_fallthru
          _
        // Predicated region
        $region21: #{cnn3d_forward.6} parent=11 // pred_check
          %p152 = pneg %p105
        $region22: #{cnn3d_forward.6} parent=11 // pred_check_branch
          %154 = sbr.rel (%p152) target = $region24
        $region23: #{cnn3d_forward.6} parent=11 // pred_region
          _
        $region24: #{cnn3d_forward.6} parent=11 // pred_fallthru
          _
      $region12: #{cnn3d_forward.6} parent=5 // pred_fallthru
        _
      %p155 = scmp.lt.s32.totalorder %s16, 77
      // Predicated region
      $region25: #{cnn3d_forward.6} parent=5 // pred_check
        %p156 = pneg %p155
      $region26: #{cnn3d_forward.6} parent=5 // pred_check_branch
        %158 = sbr.rel (%p156) target = $region28
      $region27: #{cnn3d_forward.6} parent=5 // pred_region
        // Predicated region
        $region29: #{cnn3d_forward.6} parent=27 // pred_check
          %p159 = pneg %p36
        $region30: #{cnn3d_forward.6} parent=27 // pred_check_branch
          %161 = sbr.rel (%p159) target = $region32
        $region31: #{cnn3d_forward.6} parent=27 // pred_region
          %s162 = sand.u32 %s26, 1
          %s163 = scalar_lea.sflag [#allocation3], %s162
          %s164 = sand.u32 %s26, 1
          %s165 = smul.addr %s164, 768
          %s166 = scalar_lea.vmem [#allocation2], %s165
          %s167 = smul.u32 64, %s16
          %s169 = ssub.s32 12288, 12288
          %170 = vsyncadd %s163, %s169
          %s171 = smul.addr %s167, 3
          %s172 = smul.addr %s171, 64
          %s173 = scalar_lea.hbm %s0, %s172
          %s174 = sshll.u32 %s166, 4
          %s175 = int_to_ptr.vmem [resolvable:$true] %s174
          %180 = dma.hbm_to_vmem [thread:$0]  %s173, 12288, %s175, %s163, 192, 192, 12
        $region32: #{cnn3d_forward.6} parent=27 // pred_fallthru
          _
      $region28: #{cnn3d_forward.6} parent=5 // pred_fallthru
        _
      %p181 = scmp.le.s32.totalorder 1, %s16
      %p182 = scmp.lt.s32.totalorder %s16, 78
      %p183 = pnand %p181, %p182
      %p184 = pneg %p183
      // Predicated region
      $region33: #{cnn3d_forward.6} parent=5 // pred_check
        _
      $region34: #{cnn3d_forward.6} parent=5 // pred_check_branch
        %186 = sbr.rel (%p183) target = $region36
      $region35: #{cnn3d_forward.6} parent=5 // pred_region
        %s187 = ssub.s32 %s16, 1
        %s188 = sand.u32 %s29, 1
        %s189 = scalar_lea.sflag [#allocation3], %s188
        %s190 = sand.u32 %s29, 1
        %s191 = smul.addr %s190, 768
        %s192 = scalar_lea.vmem [#allocation2], %s191
        // Predicated region
        $region37: #{cnn3d_forward.6} parent=35 // pred_check
          %p193 = pneg %p42
        $region38: #{cnn3d_forward.6} parent=35 // pred_check_branch
          %195 = sbr.rel (%p193) target = $region40
        $region39: #{cnn3d_forward.6} parent=35 // pred_region
          %196 = dma.done %s189, 12288
        $region40: #{cnn3d_forward.6} parent=35 // pred_fallthru
          _
        %s197 = sand.u32 %s29, 1
        %s198 = scalar_lea.sflag [#allocation3], %s197
        %s199 = sand.u32 %s29, 1
        %s200 = smul.addr %s199, 768
        %s201 = scalar_lea.vmem [#allocation2], %s200
        %p202 = pneg %p42
        %p203 = pneg %p39
        %p204 = pneg %p63
        %p205 = pneg %p60
        %p206 = pneg %p84
        %p207 = pneg %p81
        %p208 = pneg %p105
        %p209 = pneg %p102
        %p210 = pneg %p131
        %p211 = pneg %p128
        %s212 = sand.u32 %s118, 1
        %s213 = scalar_lea.sflag [#allocation4], %s212
        %s214 = sand.u32 %s118, 1
        %s215 = smul.addr %s214, 512
        %s216 = scalar_lea.vmem [#allocation5], %s215
        %s217 = smul.u32 64, %s21
        %s218 = smul.u32 64, %s21
        %v220 = vld [vmem:[%s192] sm:$0xff]
        %v221 = vld [vmem:[%s192 + $0x8] sm:$0xf]
        %v222 = vld [vmem:[%s192 + $0xc] sm:$0xff]
        %v223 = vld [vmem:[%s192 + $0x14] sm:$0xf]
        %v224 = vld [vmem:[%s192 + $0x18] sm:$0xff]
        %v225 = vld [vmem:[%s192 + $0x20] sm:$0xf]
        %v226 = vld [vmem:[%s192 + $0x24] sm:$0xff]
        %v227 = vld [vmem:[%s192 + $0x2c] sm:$0xf]
        %v228 = vld [vmem:[%s192 + $0x30] sm:$0xff]
        %v229 = vld [vmem:[%s192 + $0x38] sm:$0xf]
        %v230 = vld [vmem:[%s192 + $0x3c] sm:$0xff]
        %v231 = vld [vmem:[%s192 + $0x44] sm:$0xf]
        %v232 = vld [vmem:[%s192 + $0x48] sm:$0xff]
        %v233 = vld [vmem:[%s192 + $0x50] sm:$0xf]
        %v234 = vld [vmem:[%s192 + $0x54] sm:$0xff]
        %v235 = vld [vmem:[%s192 + $0x5c] sm:$0xf]
        %v236 = vld [vmem:[%s192 + $0x60] sm:$0xff]
        %v237 = vld [vmem:[%s192 + $0x68] sm:$0xf]
        %v238 = vld [vmem:[%s192 + $0x6c] sm:$0xff]
        %v239 = vld [vmem:[%s192 + $0x74] sm:$0xf]
        %v240 = vld [vmem:[%s192 + $0x78] sm:$0xff]
        %v241 = vld [vmem:[%s192 + $0x80] sm:$0xf]
        %v242 = vld [vmem:[%s192 + $0x84] sm:$0xff]
        %v243 = vld [vmem:[%s192 + $0x8c] sm:$0xf]
        %v244 = vld [vmem:[%s192 + $0x90] sm:$0xff]
        %v245 = vld [vmem:[%s192 + $0x98] sm:$0xf]
        %v246 = vld [vmem:[%s192 + $0x9c] sm:$0xff]
        %v247 = vld [vmem:[%s192 + $0xa4] sm:$0xf]
        %v248 = vld [vmem:[%s192 + $0xa8] sm:$0xff]
        %v249 = vld [vmem:[%s192 + $0xb0] sm:$0xf]
        %v250 = vld [vmem:[%s192 + $0xb4] sm:$0xff]
        %v251 = vld [vmem:[%s192 + $0xbc] sm:$0xf]
        %v252 = vld [vmem:[%s192 + $0xc0] sm:$0xff]
        %v253 = vld [vmem:[%s192 + $0xc8] sm:$0xf]
        %v254 = vld [vmem:[%s192 + $0xcc] sm:$0xff]
        %v255 = vld [vmem:[%s192 + $0xd4] sm:$0xf]
        %v256 = vld [vmem:[%s192 + $0xd8] sm:$0xff]
        %v257 = vld [vmem:[%s192 + $0xe0] sm:$0xf]
        %v258 = vld [vmem:[%s192 + $0xe4] sm:$0xff]
        %v259 = vld [vmem:[%s192 + $0xec] sm:$0xf]
        %v260 = vld [vmem:[%s192 + $0xf0] sm:$0xff]
        %v261 = vld [vmem:[%s192 + $0xf8] sm:$0xf]
        %v262 = vld [vmem:[%s192 + $0xfc] sm:$0xff]
        %v263 = vld [vmem:[%s192 + $0x104] sm:$0xf]
        %v264 = vld [vmem:[%s192 + $0x108] sm:$0xff]
        %v265 = vld [vmem:[%s192 + $0x110] sm:$0xf]
        %v266 = vld [vmem:[%s192 + $0x114] sm:$0xff]
        %v267 = vld [vmem:[%s192 + $0x11c] sm:$0xf]
        %v268 = vld [vmem:[%s192 + $0x120] sm:$0xff]
        %v269 = vld [vmem:[%s192 + $0x128] sm:$0xf]
        %v270 = vld [vmem:[%s192 + $0x12c] sm:$0xff]
        %v271 = vld [vmem:[%s192 + $0x134] sm:$0xf]
        %v272 = vld [vmem:[%s192 + $0x138] sm:$0xff]
        %v273 = vld [vmem:[%s192 + $0x140] sm:$0xf]
        %v274 = vld [vmem:[%s192 + $0x144] sm:$0xff]
        %v275 = vld [vmem:[%s192 + $0x14c] sm:$0xf]
        %v276 = vld [vmem:[%s192 + $0x150] sm:$0xff]
        %v277 = vld [vmem:[%s192 + $0x158] sm:$0xf]
        %v278 = vld [vmem:[%s192 + $0x15c] sm:$0xff]
        %v279 = vld [vmem:[%s192 + $0x164] sm:$0xf]
        %v280 = vld [vmem:[%s192 + $0x168] sm:$0xff]
        %v281 = vld [vmem:[%s192 + $0x170] sm:$0xf]
        %v282 = vld [vmem:[%s192 + $0x174] sm:$0xff]
        %v283 = vld [vmem:[%s192 + $0x17c] sm:$0xf]
        %v284 = vld [vmem:[%s192 + $0x180] sm:$0xff]
        %v285 = vld [vmem:[%s192 + $0x188] sm:$0xf]
        %v286 = vld [vmem:[%s192 + $0x18c] sm:$0xff]
        %v287 = vld [vmem:[%s192 + $0x194] sm:$0xf]
        %v288 = vld [vmem:[%s192 + $0x198] sm:$0xff]
        %v289 = vld [vmem:[%s192 + $0x1a0] sm:$0xf]
        %v290 = vld [vmem:[%s192 + $0x1a4] sm:$0xff]
        %v291 = vld [vmem:[%s192 + $0x1ac] sm:$0xf]
        %v292 = vld [vmem:[%s192 + $0x1b0] sm:$0xff]
        %v293 = vld [vmem:[%s192 + $0x1b8] sm:$0xf]
        %v294 = vld [vmem:[%s192 + $0x1bc] sm:$0xff]
        %v295 = vld [vmem:[%s192 + $0x1c4] sm:$0xf]
        %v296 = vld [vmem:[%s192 + $0x1c8] sm:$0xff]
        %v297 = vld [vmem:[%s192 + $0x1d0] sm:$0xf]
        %v298 = vld [vmem:[%s192 + $0x1d4] sm:$0xff]
        %v299 = vld [vmem:[%s192 + $0x1dc] sm:$0xf]
        %v300 = vld [vmem:[%s192 + $0x1e0] sm:$0xff]
        %v301 = vld [vmem:[%s192 + $0x1e8] sm:$0xf]
        %v302 = vld [vmem:[%s192 + $0x1ec] sm:$0xff]
        %v303 = vld [vmem:[%s192 + $0x1f4] sm:$0xf]
        %v304 = vld [vmem:[%s192 + $0x1f8] sm:$0xff]
        %v305 = vld [vmem:[%s192 + $0x200] sm:$0xf]
        %v306 = vld [vmem:[%s192 + $0x204] sm:$0xff]
        %v307 = vld [vmem:[%s192 + $0x20c] sm:$0xf]
        %v308 = vld [vmem:[%s192 + $0x210] sm:$0xff]
        %v309 = vld [vmem:[%s192 + $0x218] sm:$0xf]
        %v310 = vld [vmem:[%s192 + $0x21c] sm:$0xff]
        %v311 = vld [vmem:[%s192 + $0x224] sm:$0xf]
        %v312 = vld [vmem:[%s192 + $0x228] sm:$0xff]
        %v313 = vld [vmem:[%s192 + $0x230] sm:$0xf]
        %v314 = vld [vmem:[%s192 + $0x234] sm:$0xff]
        %v315 = vld [vmem:[%s192 + $0x23c] sm:$0xf]
        %v316 = vld [vmem:[%s192 + $0x240] sm:$0xff]
        %v317 = vld [vmem:[%s192 + $0x248] sm:$0xf]
        %v318 = vld [vmem:[%s192 + $0x24c] sm:$0xff]
        %v319 = vld [vmem:[%s192 + $0x254] sm:$0xf]
        %v320 = vld [vmem:[%s192 + $0x258] sm:$0xff]
        %v321 = vld [vmem:[%s192 + $0x260] sm:$0xf]
        %v322 = vld [vmem:[%s192 + $0x264] sm:$0xff]
        %v323 = vld [vmem:[%s192 + $0x26c] sm:$0xf]
        %v324 = vld [vmem:[%s192 + $0x270] sm:$0xff]
        %v325 = vld [vmem:[%s192 + $0x278] sm:$0xf]
        %v326 = vld [vmem:[%s192 + $0x27c] sm:$0xff]
        %v327 = vld [vmem:[%s192 + $0x284] sm:$0xf]
        %v328 = vld [vmem:[%s192 + $0x288] sm:$0xff]
        %v329 = vld [vmem:[%s192 + $0x290] sm:$0xf]
        %v330 = vld [vmem:[%s192 + $0x294] sm:$0xff]
        %v331 = vld [vmem:[%s192 + $0x29c] sm:$0xf]
        %v332 = vld [vmem:[%s192 + $0x2a0] sm:$0xff]
        %v333 = vld [vmem:[%s192 + $0x2a8] sm:$0xf]
        %v334 = vld [vmem:[%s192 + $0x2ac] sm:$0xff]
        %v335 = vld [vmem:[%s192 + $0x2b4] sm:$0xf]
        %v336 = vld [vmem:[%s192 + $0x2b8] sm:$0xff]
        %v337 = vld [vmem:[%s192 + $0x2c0] sm:$0xf]
        %v338 = vld [vmem:[%s192 + $0x2c4] sm:$0xff]
        %v339 = vld [vmem:[%s192 + $0x2cc] sm:$0xf]
        %v340 = vld [vmem:[%s192 + $0x2d0] sm:$0xff]
        %v341 = vld [vmem:[%s192 + $0x2d8] sm:$0xf]
        %v342 = vld [vmem:[%s192 + $0x2dc] sm:$0xff]
        %v343 = vld [vmem:[%s192 + $0x2e4] sm:$0xf]
        %v344 = vld [vmem:[%s192 + $0x2e8] sm:$0xff]
        %v345 = vld [vmem:[%s192 + $0x2f0] sm:$0xf]
        %v346 = vld [vmem:[%s192 + $0x2f4] sm:$0xff]
        %v347 = vld [vmem:[%s192 + $0x2fc] sm:$0xf]
        %v348 = vld [vmem:[%s1] sm:$0xf]
        %v349 = vld [vmem:[%s1 + $0x4] sm:$0xf]
        %v350 = vld [vmem:[%s1 + $0x8] sm:$0xf]
        %v351 = vld [vmem:[%s1 + $0xc] sm:$0xf]
        %v352 = vld [vmem:[%s1 + $0x10] sm:$0xf]
        %v353 = vld [vmem:[%s1 + $0x14] sm:$0xf]
        %v354 = vld [vmem:[%s1 + $0x18] sm:$0xf]
        %v355 = vld [vmem:[%s1 + $0x1c] sm:$0xf]
        %v356 = vld [vmem:[%s1 + $0x20] sm:$0xf]
        %v357 = vld [vmem:[%s1 + $0x24] sm:$0xf]
        %v358 = vld [vmem:[%s1 + $0x28] sm:$0xf]
        %v359 = vld [vmem:[%s1 + $0x2c] sm:$0xf]
        %v360 = vld [vmem:[%s1 + $0x30] sm:$0xf]
        %v361 = vld [vmem:[%s1 + $0x34] sm:$0xf]
        %v362 = vld [vmem:[%s1 + $0x38] sm:$0xf]
        %v363 = vld [vmem:[%s1 + $0x3c] sm:$0xf]
        %v364 = vld [vmem:[%s1 + $0x40] sm:$0xf]
        %v365 = vld [vmem:[%s1 + $0x44] sm:$0xf]
        %v366 = vld [vmem:[%s1 + $0x48] sm:$0xf]
        %v367 = vld [vmem:[%s1 + $0x4c] sm:$0xf]
        %v368 = vld [vmem:[%s1 + $0x50] sm:$0xf]
        %v369 = vld [vmem:[%s1 + $0x54] sm:$0xf]
        %v370 = vld [vmem:[%s1 + $0x58] sm:$0xf]
        %v371 = vld [vmem:[%s1 + $0x5c] sm:$0xf]
        %v372 = vld [vmem:[%s1 + $0x60] sm:$0xf]
        %v373 = vld [vmem:[%s1 + $0x64] sm:$0xf]
        %v374 = vld [vmem:[%s1 + $0x68] sm:$0xf]
        %v375 = vld [vmem:[%s1 + $0x6c] sm:$0xf]
        %v376 = vld [vmem:[%s1 + $0x70] sm:$0xf]
        %v377 = vld [vmem:[%s1 + $0x74] sm:$0xf]
        %v378 = vld [vmem:[%s1 + $0x78] sm:$0xf]
        %v379 = vld [vmem:[%s1 + $0x7c] sm:$0xf]
        %v380 = vld [vmem:[%s1 + $0x80] sm:$0xf]
        %v381 = vld [vmem:[%s1 + $0x84] sm:$0xf]
        %v382 = vld [vmem:[%s1 + $0x88] sm:$0xf]
        %v383 = vld [vmem:[%s1 + $0x8c] sm:$0xf]
        %v384 = vld [vmem:[%s1 + $0x90] sm:$0xf]
        %v385 = vld [vmem:[%s1 + $0x94] sm:$0xf]
        %v386 = vld [vmem:[%s1 + $0x98] sm:$0xf]
        %v387 = vld [vmem:[%s1 + $0x9c] sm:$0xf]
        %v388 = vld [vmem:[%s1 + $0xa0] sm:$0xf]
        %v389 = vld [vmem:[%s1 + $0xa4] sm:$0xf]
        %v390 = vld [vmem:[%s1 + $0xa8] sm:$0xf]
        %v391 = vld [vmem:[%s1 + $0xac] sm:$0xf]
        %v392 = vld [vmem:[%s1 + $0xb0] sm:$0xf]
        %v393 = vld [vmem:[%s1 + $0xb4] sm:$0xf]
        %v394 = vld [vmem:[%s1 + $0xb8] sm:$0xf]
        %v395 = vld [vmem:[%s1 + $0xbc] sm:$0xf]
        %v524 = vunpack.c.l.b16 %v220
        %v525 = vunpack.c.h.b16 %v220
        %v526 = vunpack.c.l.b16 %v221
        %v527 = vunpack.c.l.b16 %v222
        %v528 = vunpack.c.h.b16 %v222
        %v529 = vunpack.c.l.b16 %v223
        %v530 = vunpack.c.l.b16 %v224
        %v531 = vunpack.c.h.b16 %v224
        %v532 = vunpack.c.l.b16 %v225
        %v533 = vunpack.c.l.b16 %v226
        %v534 = vunpack.c.h.b16 %v226
        %v535 = vunpack.c.l.b16 %v227
        %v536 = vunpack.c.l.b16 %v228
        %v537 = vunpack.c.h.b16 %v228
        %v538 = vunpack.c.l.b16 %v229
        %v539 = vunpack.c.l.b16 %v230
        %v540 = vunpack.c.h.b16 %v230
        %v541 = vunpack.c.l.b16 %v231
        %v542 = vunpack.c.l.b16 %v232
        %v543 = vunpack.c.h.b16 %v232
        %v544 = vunpack.c.l.b16 %v233
        %v545 = vunpack.c.l.b16 %v234
        %v546 = vunpack.c.h.b16 %v234
        %v547 = vunpack.c.l.b16 %v235
        %v548 = vunpack.c.l.b16 %v236
        %v549 = vunpack.c.h.b16 %v236
        %v550 = vunpack.c.l.b16 %v237
        %v551 = vunpack.c.l.b16 %v238
        %v552 = vunpack.c.h.b16 %v238
        %v553 = vunpack.c.l.b16 %v239
        %v554 = vunpack.c.l.b16 %v240
        %v555 = vunpack.c.h.b16 %v240
        %v556 = vunpack.c.l.b16 %v241
        %v557 = vunpack.c.l.b16 %v242
        %v558 = vunpack.c.h.b16 %v242
        %v559 = vunpack.c.l.b16 %v243
        %v560 = vunpack.c.l.b16 %v244
        %v561 = vunpack.c.h.b16 %v244
        %v562 = vunpack.c.l.b16 %v245
        %v563 = vunpack.c.l.b16 %v246
        %v564 = vunpack.c.h.b16 %v246
        %v565 = vunpack.c.l.b16 %v247
        %v566 = vunpack.c.l.b16 %v248
        %v567 = vunpack.c.h.b16 %v248
        %v568 = vunpack.c.l.b16 %v249
        %v569 = vunpack.c.l.b16 %v250
        %v570 = vunpack.c.h.b16 %v250
        %v571 = vunpack.c.l.b16 %v251
        %v572 = vunpack.c.l.b16 %v252
        %v573 = vunpack.c.h.b16 %v252
        %v574 = vunpack.c.l.b16 %v253
        %v575 = vunpack.c.l.b16 %v254
        %v576 = vunpack.c.h.b16 %v254
        %v577 = vunpack.c.l.b16 %v255
        %v578 = vunpack.c.l.b16 %v256
        %v579 = vunpack.c.h.b16 %v256
        %v580 = vunpack.c.l.b16 %v257
        %v581 = vunpack.c.l.b16 %v258
        %v582 = vunpack.c.h.b16 %v258
        %v583 = vunpack.c.l.b16 %v259
        %v584 = vunpack.c.l.b16 %v260
        %v585 = vunpack.c.h.b16 %v260
        %v586 = vunpack.c.l.b16 %v261
        %v587 = vunpack.c.l.b16 %v262
        %v588 = vunpack.c.h.b16 %v262
        %v589 = vunpack.c.l.b16 %v263
        %v590 = vunpack.c.l.b16 %v264
        %v591 = vunpack.c.h.b16 %v264
        %v592 = vunpack.c.l.b16 %v265
        %v593 = vunpack.c.l.b16 %v266
        %v594 = vunpack.c.h.b16 %v266
        %v595 = vunpack.c.l.b16 %v267
        %v596 = vunpack.c.l.b16 %v268
        %v597 = vunpack.c.h.b16 %v268
        %v598 = vunpack.c.l.b16 %v269
        %v599 = vunpack.c.l.b16 %v270
        %v600 = vunpack.c.h.b16 %v270
        %v601 = vunpack.c.l.b16 %v271
        %v602 = vunpack.c.l.b16 %v272
        %v603 = vunpack.c.h.b16 %v272
        %v604 = vunpack.c.l.b16 %v273
        %v605 = vunpack.c.l.b16 %v274
        %v606 = vunpack.c.h.b16 %v274
        %v607 = vunpack.c.l.b16 %v275
        %v608 = vunpack.c.l.b16 %v276
        %v609 = vunpack.c.h.b16 %v276
        %v610 = vunpack.c.l.b16 %v277
        %v611 = vunpack.c.l.b16 %v278
        %v612 = vunpack.c.h.b16 %v278
        %v613 = vunpack.c.l.b16 %v279
        %v614 = vunpack.c.l.b16 %v280
        %v615 = vunpack.c.h.b16 %v280
        %v616 = vunpack.c.l.b16 %v281
        %v617 = vunpack.c.l.b16 %v282
        %v618 = vunpack.c.h.b16 %v282
        %v619 = vunpack.c.l.b16 %v283
        %v620 = vunpack.c.l.b16 %v284
        %v621 = vunpack.c.h.b16 %v284
        %v622 = vunpack.c.l.b16 %v285
        %v623 = vunpack.c.l.b16 %v286
        %v624 = vunpack.c.h.b16 %v286
        %v625 = vunpack.c.l.b16 %v287
        %v626 = vunpack.c.l.b16 %v288
        %v627 = vunpack.c.h.b16 %v288
        %v628 = vunpack.c.l.b16 %v289
        %v629 = vunpack.c.l.b16 %v290
        %v630 = vunpack.c.h.b16 %v290
        %v631 = vunpack.c.l.b16 %v291
        %v632 = vunpack.c.l.b16 %v292
        %v633 = vunpack.c.h.b16 %v292
        %v634 = vunpack.c.l.b16 %v293
        %v635 = vunpack.c.l.b16 %v294
        %v636 = vunpack.c.h.b16 %v294
        %v637 = vunpack.c.l.b16 %v295
        %v638 = vunpack.c.l.b16 %v296
        %v639 = vunpack.c.h.b16 %v296
        %v640 = vunpack.c.l.b16 %v297
        %v641 = vunpack.c.l.b16 %v298
        %v642 = vunpack.c.h.b16 %v298
        %v643 = vunpack.c.l.b16 %v299
        %v644 = vunpack.c.l.b16 %v300
        %v645 = vunpack.c.h.b16 %v300
        %v646 = vunpack.c.l.b16 %v301
        %v647 = vunpack.c.l.b16 %v302
        %v648 = vunpack.c.h.b16 %v302
        %v649 = vunpack.c.l.b16 %v303
        %v650 = vunpack.c.l.b16 %v304
        %v651 = vunpack.c.h.b16 %v304
        %v652 = vunpack.c.l.b16 %v305
        %v653 = vunpack.c.l.b16 %v306
        %v654 = vunpack.c.h.b16 %v306
        %v655 = vunpack.c.l.b16 %v307
        %v656 = vunpack.c.l.b16 %v308
        %v657 = vunpack.c.h.b16 %v308
        %v658 = vunpack.c.l.b16 %v309
        %v659 = vunpack.c.l.b16 %v310
        %v660 = vunpack.c.h.b16 %v310
        %v661 = vunpack.c.l.b16 %v311
        %v662 = vunpack.c.l.b16 %v312
        %v663 = vunpack.c.h.b16 %v312
        %v664 = vunpack.c.l.b16 %v313
        %v665 = vunpack.c.l.b16 %v314
        %v666 = vunpack.c.h.b16 %v314
        %v667 = vunpack.c.l.b16 %v315
        %v668 = vunpack.c.l.b16 %v316
        %v669 = vunpack.c.h.b16 %v316
        %v670 = vunpack.c.l.b16 %v317
        %v671 = vunpack.c.l.b16 %v318
        %v672 = vunpack.c.h.b16 %v318
        %v673 = vunpack.c.l.b16 %v319
        %v674 = vunpack.c.l.b16 %v320
        %v675 = vunpack.c.h.b16 %v320
        %v676 = vunpack.c.l.b16 %v321
        %v677 = vunpack.c.l.b16 %v322
        %v678 = vunpack.c.h.b16 %v322
        %v679 = vunpack.c.l.b16 %v323
        %v680 = vunpack.c.l.b16 %v324
        %v681 = vunpack.c.h.b16 %v324
        %v682 = vunpack.c.l.b16 %v325
        %v683 = vunpack.c.l.b16 %v326
        %v684 = vunpack.c.h.b16 %v326
        %v685 = vunpack.c.l.b16 %v327
        %v686 = vunpack.c.l.b16 %v328
        %v687 = vunpack.c.h.b16 %v328
        %v688 = vunpack.c.l.b16 %v329
        %v689 = vunpack.c.l.b16 %v330
        %v690 = vunpack.c.h.b16 %v330
        %v691 = vunpack.c.l.b16 %v331
        %v692 = vunpack.c.l.b16 %v332
        %v693 = vunpack.c.h.b16 %v332
        %v694 = vunpack.c.l.b16 %v333
        %v695 = vunpack.c.l.b16 %v334
        %v696 = vunpack.c.h.b16 %v334
        %v697 = vunpack.c.l.b16 %v335
        %v698 = vunpack.c.l.b16 %v336
        %v699 = vunpack.c.h.b16 %v336
        %v700 = vunpack.c.l.b16 %v337
        %v701 = vunpack.c.l.b16 %v338
        %v702 = vunpack.c.h.b16 %v338
        %v703 = vunpack.c.l.b16 %v339
        %v704 = vunpack.c.l.b16 %v340
        %v705 = vunpack.c.h.b16 %v340
        %v706 = vunpack.c.l.b16 %v341
        %v707 = vunpack.c.l.b16 %v342
        %v708 = vunpack.c.h.b16 %v342
        %v709 = vunpack.c.l.b16 %v343
        %v710 = vunpack.c.l.b16 %v344
        %v711 = vunpack.c.h.b16 %v344
        %v712 = vunpack.c.l.b16 %v345
        %v713 = vunpack.c.l.b16 %v346
        %v714 = vunpack.c.h.b16 %v346
        %v715 = vunpack.c.l.b16 %v347
        %v716 = vpack.c.b16 %v527, %v524
        %v717 = vpack.c.b16 %v528, %v525
        %v718 = vpack.c.b16 %v529, %v526
        %v719 = vpack.c.b16 %v533, %v530
        %v720 = vpack.c.b16 %v534, %v531
        %v721 = vpack.c.b16 %v535, %v532
        %v722 = vpack.c.b16 %v539, %v536
        %v723 = vpack.c.b16 %v540, %v537
        %v724 = vpack.c.b16 %v541, %v538
        %v725 = vpack.c.b16 %v545, %v542
        %v726 = vpack.c.b16 %v546, %v543
        %v727 = vpack.c.b16 %v547, %v544
        %v728 = vpack.c.b16 %v551, %v548
        %v729 = vpack.c.b16 %v552, %v549
        %v730 = vpack.c.b16 %v553, %v550
        %v731 = vpack.c.b16 %v557, %v554
        %v732 = vpack.c.b16 %v558, %v555
        %v733 = vpack.c.b16 %v559, %v556
        %v734 = vpack.c.b16 %v563, %v560
        %v735 = vpack.c.b16 %v564, %v561
        %v736 = vpack.c.b16 %v565, %v562
        %v737 = vpack.c.b16 %v569, %v566
        %v738 = vpack.c.b16 %v570, %v567
        %v739 = vpack.c.b16 %v571, %v568
        %v740 = vpack.c.b16 %v575, %v572
        %v741 = vpack.c.b16 %v576, %v573
        %v742 = vpack.c.b16 %v577, %v574
        %v743 = vpack.c.b16 %v581, %v578
        %v744 = vpack.c.b16 %v582, %v579
        %v745 = vpack.c.b16 %v583, %v580
        %v746 = vpack.c.b16 %v587, %v584
        %v747 = vpack.c.b16 %v588, %v585
        %v748 = vpack.c.b16 %v589, %v586
        %v749 = vpack.c.b16 %v593, %v590
        %v750 = vpack.c.b16 %v594, %v591
        %v751 = vpack.c.b16 %v595, %v592
        %v752 = vpack.c.b16 %v599, %v596
        %v753 = vpack.c.b16 %v600, %v597
        %v754 = vpack.c.b16 %v601, %v598
        %v755 = vpack.c.b16 %v605, %v602
        %v756 = vpack.c.b16 %v606, %v603
        %v757 = vpack.c.b16 %v607, %v604
        %v758 = vpack.c.b16 %v611, %v608
        %v759 = vpack.c.b16 %v612, %v609
        %v760 = vpack.c.b16 %v613, %v610
        %v761 = vpack.c.b16 %v617, %v614
        %v762 = vpack.c.b16 %v618, %v615
        %v763 = vpack.c.b16 %v619, %v616
        %v764 = vpack.c.b16 %v623, %v620
        %v765 = vpack.c.b16 %v624, %v621
        %v766 = vpack.c.b16 %v625, %v622
        %v767 = vpack.c.b16 %v629, %v626
        %v768 = vpack.c.b16 %v630, %v627
        %v769 = vpack.c.b16 %v631, %v628
        %v770 = vpack.c.b16 %v635, %v632
        %v771 = vpack.c.b16 %v636, %v633
        %v772 = vpack.c.b16 %v637, %v634
        %v773 = vpack.c.b16 %v641, %v638
        %v774 = vpack.c.b16 %v642, %v639
        %v775 = vpack.c.b16 %v643, %v640
        %v776 = vpack.c.b16 %v647, %v644
        %v777 = vpack.c.b16 %v648, %v645
        %v778 = vpack.c.b16 %v649, %v646
        %v779 = vpack.c.b16 %v653, %v650
        %v780 = vpack.c.b16 %v654, %v651
        %v781 = vpack.c.b16 %v655, %v652
        %v782 = vpack.c.b16 %v659, %v656
        %v783 = vpack.c.b16 %v660, %v657
        %v784 = vpack.c.b16 %v661, %v658
        %v785 = vpack.c.b16 %v665, %v662
        %v786 = vpack.c.b16 %v666, %v663
        %v787 = vpack.c.b16 %v667, %v664
        %v788 = vpack.c.b16 %v671, %v668
        %v789 = vpack.c.b16 %v672, %v669
        %v790 = vpack.c.b16 %v673, %v670
        %v791 = vpack.c.b16 %v677, %v674
        %v792 = vpack.c.b16 %v678, %v675
        %v793 = vpack.c.b16 %v679, %v676
        %v794 = vpack.c.b16 %v683, %v680
        %v795 = vpack.c.b16 %v684, %v681
        %v796 = vpack.c.b16 %v685, %v682
        %v797 = vpack.c.b16 %v689, %v686
        %v798 = vpack.c.b16 %v690, %v687
        %v799 = vpack.c.b16 %v691, %v688
        %v800 = vpack.c.b16 %v695, %v692
        %v801 = vpack.c.b16 %v696, %v693
        %v802 = vpack.c.b16 %v697, %v694
        %v803 = vpack.c.b16 %v701, %v698
        %v804 = vpack.c.b16 %v702, %v699
        %v805 = vpack.c.b16 %v703, %v700
        %v806 = vpack.c.b16 %v707, %v704
        %v807 = vpack.c.b16 %v708, %v705
        %v808 = vpack.c.b16 %v709, %v706
        %v809 = vpack.c.b16 %v713, %v710
        %v810 = vpack.c.b16 %v714, %v711
        %v811 = vpack.c.b16 %v715, %v712
        %v956 = vunpack.c.l.b16 %v348
        %v957 = vunpack.c.l.b16 %v349
        %v958 = vunpack.c.l.b16 %v350
        %v959 = vunpack.c.l.b16 %v351
        %v960 = vunpack.c.l.b16 %v352
        %v961 = vunpack.c.l.b16 %v353
        %v962 = vunpack.c.l.b16 %v354
        %v963 = vunpack.c.l.b16 %v355
        %v964 = vunpack.c.l.b16 %v356
        %v965 = vunpack.c.l.b16 %v357
        %v966 = vunpack.c.l.b16 %v358
        %v967 = vunpack.c.l.b16 %v359
        %v968 = vunpack.c.l.b16 %v360
        %v969 = vunpack.c.l.b16 %v361
        %v970 = vunpack.c.l.b16 %v362
        %v971 = vunpack.c.l.b16 %v363
        %v972 = vunpack.c.l.b16 %v364
        %v973 = vunpack.c.l.b16 %v365
        %v974 = vunpack.c.l.b16 %v366
        %v975 = vunpack.c.l.b16 %v367
        %v976 = vunpack.c.l.b16 %v368
        %v977 = vunpack.c.l.b16 %v369
        %v978 = vunpack.c.l.b16 %v370
        %v979 = vunpack.c.l.b16 %v371
        %v980 = vunpack.c.l.b16 %v372
        %v981 = vunpack.c.l.b16 %v373
        %v982 = vunpack.c.l.b16 %v374
        %v983 = vunpack.c.l.b16 %v375
        %v984 = vunpack.c.l.b16 %v376
        %v985 = vunpack.c.l.b16 %v377
        %v986 = vunpack.c.l.b16 %v378
        %v987 = vunpack.c.l.b16 %v379
        %v988 = vunpack.c.l.b16 %v380
        %v989 = vunpack.c.l.b16 %v381
        %v990 = vunpack.c.l.b16 %v382
        %v991 = vunpack.c.l.b16 %v383
        %v992 = vunpack.c.l.b16 %v384
        %v993 = vunpack.c.l.b16 %v385
        %v994 = vunpack.c.l.b16 %v386
        %v995 = vunpack.c.l.b16 %v387
        %v996 = vunpack.c.l.b16 %v388
        %v997 = vunpack.c.l.b16 %v389
        %v998 = vunpack.c.l.b16 %v390
        %v999 = vunpack.c.l.b16 %v391
        %v1000 = vunpack.c.l.b16 %v392
        %v1001 = vunpack.c.l.b16 %v393
        %v1002 = vunpack.c.l.b16 %v394
        %v1003 = vunpack.c.l.b16 %v395
        %v1004 = vpack.c.b16 %v957, %v956
        %v1005 = vpack.c.b16 %v959, %v958
        %v1006 = vpack.c.b16 %v961, %v960
        %v1007 = vpack.c.b16 %v963, %v962
        %v1008 = vpack.c.b16 %v965, %v964
        %v1009 = vpack.c.b16 %v967, %v966
        %v1010 = vpack.c.b16 %v969, %v968
        %v1011 = vpack.c.b16 %v971, %v970
        %v1012 = vpack.c.b16 %v973, %v972
        %v1013 = vpack.c.b16 %v975, %v974
        %v1014 = vpack.c.b16 %v977, %v976
        %v1015 = vpack.c.b16 %v979, %v978
        %v1016 = vpack.c.b16 %v981, %v980
        %v1017 = vpack.c.b16 %v983, %v982
        %v1018 = vpack.c.b16 %v985, %v984
        %v1019 = vpack.c.b16 %v987, %v986
        %v1020 = vpack.c.b16 %v989, %v988
        %v1021 = vpack.c.b16 %v991, %v990
        %v1022 = vpack.c.b16 %v993, %v992
        %v1023 = vpack.c.b16 %v995, %v994
        %v1024 = vpack.c.b16 %v997, %v996
        %v1025 = vpack.c.b16 %v999, %v998
        %v1026 = vpack.c.b16 %v1001, %v1000
        %v1027 = vpack.c.b16 %v1003, %v1002
        %1052 = vmatprep.subr.bf16.mxu0 0
        %1053 = vmatpush1.bf16.msra.mxu0 %v1004
        %1054 = vmatprep.subr.bf16.mxu0 0
        %1055 = vmatpush1.bf16.msra.mxu0 %v1005
        %1056 = vmatprep.subr.bf16.mxu0 0
        %1057 = vmatpush1.bf16.msra.mxu0 %v1006
        %1058 = vmatprep.subr.bf16.mxu0 0
        %1059 = vmatpush1.bf16.msra.mxu0 %v1007
        %1060 = vmatprep.subr.bf16.mxu0 0
        %1061 = vmatpush1.bf16.msra.mxu0 %v1008
        %1062 = vmatprep.subr.bf16.mxu0 0
        %1063 = vmatpush1.bf16.msra.mxu0 %v1009
        %1064 = vmatprep.subr.bf16.mxu0 0
        %1065 = vmatpush1.bf16.msra.mxu0 %v1010
        %1066 = vmatprep.subr.bf16.mxu0 0
        %1067 = vmatpush1.bf16.msra.mxu0 %v1011
        %1068 = vmatprep.subr.bf16.mxu0 0
        %1069 = vmatpush1.bf16.msra.mxu0 %v1012
        %1070 = vmatprep.subr.bf16.mxu0 0
        %1071 = vmatpush1.bf16.msra.mxu0 %v1013
        %1072 = vmatprep.subr.bf16.mxu0 0
        %1073 = vmatpush1.bf16.msra.mxu0 %v1014
        %1074 = vmatprep.subr.bf16.mxu0 0
        %1075 = vmatpush1.bf16.msra.mxu0 %v1015
        %1076 = vmatprep.subr.bf16.mxu0 0
        %1077 = vmatpush1.bf16.msra.mxu0 %v1016
        %1078 = vmatprep.subr.bf16.mxu0 0
        %1079 = vmatpush1.bf16.msra.mxu0 %v1017
        %1080 = vmatprep.subr.bf16.mxu0 0
        %1081 = vmatpush1.bf16.msra.mxu0 %v1018
        %1082 = vmatprep.subr.bf16.mxu0 0
        %1083 = vmatpush1.bf16.msra.mxu0 %v1019
        %1084 = vmatprep.mubr.bf16.mxu0 %v717
        %1085 = vmatmul.mubr.bf16.gmra.mrb[0].mxu0 %v716
        %v1086 = vpop.f32.mrb[0].mxu0
        %v1087 = vadd.f32 0.0, %v1086
        %v1088 = vpop.f32.mrb[0].mxu0
        %v1089 = vpop.f32.mrb[0].mxu0
        %v1090 = vadd.f32 0.0, %v1089
        %v1091 = vpop.f32.mrb[0].mxu0
        %1092 = vmatprep.mubr.bf16.mxu0 %v720
        %1093 = vmatmul.mubr.bf16.gmra.mrb[0].mxu0 %v719
        %v1094 = vpop.f32.mrb[0].mxu0
        %v1095 = vadd.f32 0.0, %v1094
        %v1096 = vpop.f32.mrb[0].mxu0
        %v1097 = vpop.f32.mrb[0].mxu0
        %v1098 = vadd.f32 0.0, %v1097
        %v1099 = vpop.f32.mrb[0].mxu0
        %1100 = vmatprep.mubr.bf16.mxu0 %v723
        %1101 = vmatmul.mubr.bf16.gmra.mrb[0].mxu0 %v722
        %v1102 = vpop.f32.mrb[0].mxu0
        %v1103 = vadd.f32 0.0, %v1102
        %v1104 = vpop.f32.mrb[0].mxu0
        %v1105 = vpop.f32.mrb[0].mxu0
        %v1106 = vadd.f32 0.0, %v1105
        %v1107 = vpop.f32.mrb[0].mxu0
        %1108 = vmatprep.mubr.bf16.mxu0 %v726
        %1109 = vmatmul.mubr.bf16.gmra.mrb[0].mxu0 %v725
        %v1110 = vpop.f32.mrb[0].mxu0
        %v1111 = vadd.f32 0.0, %v1110
        %v1112 = vpop.f32.mrb[0].mxu0
        %v1113 = vpop.f32.mrb[0].mxu0
        %v1114 = vadd.f32 0.0, %v1113
        %v1115 = vpop.f32.mrb[0].mxu0
        %1116 = vmatprep.mubr.bf16.mxu0 %v729
        %1117 = vmatmul.mubr.bf16.gmra.mrb[0].mxu0 %v728
        %v1118 = vpop.f32.mrb[0].mxu0
        %v1119 = vadd.f32 0.0, %v1118
        %v1120 = vpop.f32.mrb[0].mxu0
        %v1121 = vpop.f32.mrb[0].mxu0
        %v1122 = vadd.f32 0.0, %v1121
        %v1123 = vpop.f32.mrb[0].mxu0
        %1124 = vmatprep.mubr.bf16.mxu0 %v732
        %1125 = vmatmul.mubr.bf16.gmra.mrb[0].mxu0 %v731
        %v1126 = vpop.f32.mrb[0].mxu0
        %v1127 = vadd.f32 0.0, %v1126
        %v1128 = vpop.f32.mrb[0].mxu0
        %v1129 = vpop.f32.mrb[0].mxu0
        %v1130 = vadd.f32 0.0, %v1129
        %v1131 = vpop.f32.mrb[0].mxu0
        %1132 = vmatprep.mubr.bf16.mxu0 %v735
        %1133 = vmatmul.mubr.bf16.gmra.mrb[0].mxu0 %v734
        %v1134 = vpop.f32.mrb[0].mxu0
        %v1135 = vadd.f32 0.0, %v1134
        %v1136 = vpop.f32.mrb[0].mxu0
        %v1137 = vpop.f32.mrb[0].mxu0
        %v1138 = vadd.f32 0.0, %v1137
        %v1139 = vpop.f32.mrb[0].mxu0
        %1140 = vmatprep.mubr.bf16.mxu0 %v738
        %1141 = vmatmul.mubr.bf16.gmra.mrb[0].mxu0 %v737
        %v1142 = vpop.f32.mrb[0].mxu0
        %v1143 = vadd.f32 0.0, %v1142
        %v1144 = vpop.f32.mrb[0].mxu0
        %v1145 = vpop.f32.mrb[0].mxu0
        %v1146 = vadd.f32 0.0, %v1145
        %v1147 = vpop.f32.mrb[0].mxu0
        %1148 = vmatprep.mubr.bf16.mxu0 %v741
        %1149 = vmatmul.mubr.bf16.gmra.mrb[0].mxu0 %v740
        %v1150 = vpop.f32.mrb[0].mxu0
        %v1151 = vadd.f32 0.0, %v1150
        %v1152 = vpop.f32.mrb[0].mxu0
        %v1153 = vpop.f32.mrb[0].mxu0
        %v1154 = vadd.f32 0.0, %v1153
        %v1155 = vpop.f32.mrb[0].mxu0
        %1156 = vmatprep.mubr.bf16.mxu0 %v744
        %1157 = vmatmul.mubr.bf16.gmra.mrb[0].mxu0 %v743
        %v1158 = vpop.f32.mrb[0].mxu0
        %v1159 = vadd.f32 0.0, %v1158
        %v1160 = vpop.f32.mrb[0].mxu0
        %v1161 = vpop.f32.mrb[0].mxu0
        %v1162 = vadd.f32 0.0, %v1161
        %v1163 = vpop.f32.mrb[0].mxu0
        %1164 = vmatprep.mubr.bf16.mxu0 %v747
        %1165 = vmatmul.mubr.bf16.gmra.mrb[0].mxu0 %v746
        %v1166 = vpop.f32.mrb[0].mxu0
        %v1167 = vadd.f32 0.0, %v1166
        %v1168 = vpop.f32.mrb[0].mxu0
        %v1169 = vpop.f32.mrb[0].mxu0
        %v1170 = vadd.f32 0.0, %v1169
        %v1171 = vpop.f32.mrb[0].mxu0
        %1172 = vmatprep.mubr.bf16.mxu0 %v750
        %1173 = vmatmul.mubr.bf16.gmra.mrb[0].mxu0 %v749
        %v1174 = vpop.f32.mrb[0].mxu0
        %v1175 = vadd.f32 0.0, %v1174
        %v1176 = vpop.f32.mrb[0].mxu0
        %v1177 = vpop.f32.mrb[0].mxu0
        %v1178 = vadd.f32 0.0, %v1177
        %v1179 = vpop.f32.mrb[0].mxu0
        %1180 = vmatprep.mubr.bf16.mxu0 %v753
        %1181 = vmatmul.mubr.bf16.gmra.mrb[0].mxu0 %v752
        %v1182 = vpop.f32.mrb[0].mxu0
        %v1183 = vadd.f32 0.0, %v1182
        %v1184 = vpop.f32.mrb[0].mxu0
        %v1185 = vpop.f32.mrb[0].mxu0
        %v1186 = vadd.f32 0.0, %v1185
        %v1187 = vpop.f32.mrb[0].mxu0
        %1188 = vmatprep.mubr.bf16.mxu0 %v756
        %1189 = vmatmul.mubr.bf16.gmra.mrb[0].mxu0 %v755
        %v1190 = vpop.f32.mrb[0].mxu0
        %v1191 = vadd.f32 0.0, %v1190
        %v1192 = vpop.f32.mrb[0].mxu0
        %v1193 = vpop.f32.mrb[0].mxu0
        %v1194 = vadd.f32 0.0, %v1193
        %v1195 = vpop.f32.mrb[0].mxu0
        %1196 = vmatprep.mubr.bf16.mxu0 %v759
        %1197 = vmatmul.mubr.bf16.gmra.mrb[0].mxu0 %v758
        %v1198 = vpop.f32.mrb[0].mxu0
        %v1199 = vadd.f32 0.0, %v1198
        %v1200 = vpop.f32.mrb[0].mxu0
        %v1201 = vpop.f32.mrb[0].mxu0
        %v1202 = vadd.f32 0.0, %v1201
        %v1203 = vpop.f32.mrb[0].mxu0
        %1204 = vmatprep.mubr.bf16.mxu0 %v762
        %1205 = vmatmul.mubr.bf16.gmra.mrb[0].mxu0 %v761
        %v1206 = vpop.f32.mrb[0].mxu0
        %v1207 = vadd.f32 0.0, %v1206
        %v1208 = vpop.f32.mrb[0].mxu0
        %v1209 = vpop.f32.mrb[0].mxu0
        %v1210 = vadd.f32 0.0, %v1209
        %v1211 = vpop.f32.mrb[0].mxu0
        %1212 = vmatprep.mubr.bf16.mxu0 %v765
        %1213 = vmatmul.mubr.bf16.gmra.mrb[0].mxu0 %v764
        %v1214 = vpop.f32.mrb[0].mxu0
        %v1215 = vadd.f32 0.0, %v1214
        %v1216 = vpop.f32.mrb[0].mxu0
        %v1217 = vpop.f32.mrb[0].mxu0
        %v1218 = vadd.f32 0.0, %v1217
        %v1219 = vpop.f32.mrb[0].mxu0
        %1220 = vmatprep.mubr.bf16.mxu0 %v768
        %1221 = vmatmul.mubr.bf16.gmra.mrb[0].mxu0 %v767
        %v1222 = vpop.f32.mrb[0].mxu0
        %v1223 = vadd.f32 0.0, %v1222
        %v1224 = vpop.f32.mrb[0].mxu0
        %v1225 = vpop.f32.mrb[0].mxu0
        %v1226 = vadd.f32 0.0, %v1225
        %v1227 = vpop.f32.mrb[0].mxu0
        %1228 = vmatprep.mubr.bf16.mxu0 %v771
        %1229 = vmatmul.mubr.bf16.gmra.mrb[0].mxu0 %v770
        %v1230 = vpop.f32.mrb[0].mxu0
        %v1231 = vadd.f32 0.0, %v1230
        %v1232 = vpop.f32.mrb[0].mxu0
        %v1233 = vpop.f32.mrb[0].mxu0
        %v1234 = vadd.f32 0.0, %v1233
        %v1235 = vpop.f32.mrb[0].mxu0
        %1236 = vmatprep.mubr.bf16.mxu0 %v774
        %1237 = vmatmul.mubr.bf16.gmra.mrb[0].mxu0 %v773
        %v1238 = vpop.f32.mrb[0].mxu0
        %v1239 = vadd.f32 0.0, %v1238
        %v1240 = vpop.f32.mrb[0].mxu0
        %v1241 = vpop.f32.mrb[0].mxu0
        %v1242 = vadd.f32 0.0, %v1241
        %v1243 = vpop.f32.mrb[0].mxu0
        %1244 = vmatprep.mubr.bf16.mxu0 %v777
        %1245 = vmatmul.mubr.bf16.gmra.mrb[0].mxu0 %v776
        %v1246 = vpop.f32.mrb[0].mxu0
        %v1247 = vadd.f32 0.0, %v1246
        %v1248 = vpop.f32.mrb[0].mxu0
        %v1249 = vpop.f32.mrb[0].mxu0
        %v1250 = vadd.f32 0.0, %v1249
        %v1251 = vpop.f32.mrb[0].mxu0
        %1252 = vmatprep.mubr.bf16.mxu0 %v780
        %1253 = vmatmul.mubr.bf16.gmra.mrb[0].mxu0 %v779
        %v1254 = vpop.f32.mrb[0].mxu0
        %v1255 = vadd.f32 0.0, %v1254
        %v1256 = vpop.f32.mrb[0].mxu0
        %v1257 = vpop.f32.mrb[0].mxu0
        %v1258 = vadd.f32 0.0, %v1257
        %v1259 = vpop.f32.mrb[0].mxu0
        %1260 = vmatprep.mubr.bf16.mxu0 %v783
        %1261 = vmatmul.mubr.bf16.gmra.mrb[0].mxu0 %v782
        %v1262 = vpop.f32.mrb[0].mxu0
        %v1263 = vadd.f32 0.0, %v1262
        %v1264 = vpop.f32.mrb[0].mxu0
        %v1265 = vpop.f32.mrb[0].mxu0
        %v1266 = vadd.f32 0.0, %v1265
        %v1267 = vpop.f32.mrb[0].mxu0
        %1268 = vmatprep.mubr.bf16.mxu0 %v786
        %1269 = vmatmul.mubr.bf16.gmra.mrb[0].mxu0 %v785
        %v1270 = vpop.f32.mrb[0].mxu0
        %v1271 = vadd.f32 0.0, %v1270
        %v1272 = vpop.f32.mrb[0].mxu0
        %v1273 = vpop.f32.mrb[0].mxu0
        %v1274 = vadd.f32 0.0, %v1273
        %v1275 = vpop.f32.mrb[0].mxu0
        %1276 = vmatprep.mubr.bf16.mxu0 %v789
        %1277 = vmatmul.mubr.bf16.gmra.mrb[0].mxu0 %v788
        %v1278 = vpop.f32.mrb[0].mxu0
        %v1279 = vadd.f32 0.0, %v1278
        %v1280 = vpop.f32.mrb[0].mxu0
        %v1281 = vpop.f32.mrb[0].mxu0
        %v1282 = vadd.f32 0.0, %v1281
        %v1283 = vpop.f32.mrb[0].mxu0
        %1284 = vmatprep.mubr.bf16.mxu0 %v792
        %1285 = vmatmul.mubr.bf16.gmra.mrb[0].mxu0 %v791
        %v1286 = vpop.f32.mrb[0].mxu0
        %v1287 = vadd.f32 0.0, %v1286
        %v1288 = vpop.f32.mrb[0].mxu0
        %v1289 = vpop.f32.mrb[0].mxu0
        %v1290 = vadd.f32 0.0, %v1289
        %v1291 = vpop.f32.mrb[0].mxu0
        %1292 = vmatprep.mubr.bf16.mxu0 %v795
        %1293 = vmatmul.mubr.bf16.gmra.mrb[0].mxu0 %v794
        %v1294 = vpop.f32.mrb[0].mxu0
        %v1295 = vadd.f32 0.0, %v1294
        %v1296 = vpop.f32.mrb[0].mxu0
        %v1297 = vpop.f32.mrb[0].mxu0
        %v1298 = vadd.f32 0.0, %v1297
        %v1299 = vpop.f32.mrb[0].mxu0
        %1300 = vmatprep.mubr.bf16.mxu0 %v798
        %1301 = vmatmul.mubr.bf16.gmra.mrb[0].mxu0 %v797
        %v1302 = vpop.f32.mrb[0].mxu0
        %v1303 = vadd.f32 0.0, %v1302
        %v1304 = vpop.f32.mrb[0].mxu0
        %v1305 = vpop.f32.mrb[0].mxu0
        %v1306 = vadd.f32 0.0, %v1305
        %v1307 = vpop.f32.mrb[0].mxu0
        %1308 = vmatprep.mubr.bf16.mxu0 %v801
        %1309 = vmatmul.mubr.bf16.gmra.mrb[0].mxu0 %v800
        %v1310 = vpop.f32.mrb[0].mxu0
        %v1311 = vadd.f32 0.0, %v1310
        %v1312 = vpop.f32.mrb[0].mxu0
        %v1313 = vpop.f32.mrb[0].mxu0
        %v1314 = vadd.f32 0.0, %v1313
        %v1315 = vpop.f32.mrb[0].mxu0
        %1316 = vmatprep.mubr.bf16.mxu0 %v804
        %1317 = vmatmul.mubr.bf16.gmra.mrb[0].mxu0 %v803
        %v1318 = vpop.f32.mrb[0].mxu0
        %v1319 = vadd.f32 0.0, %v1318
        %v1320 = vpop.f32.mrb[0].mxu0
        %v1321 = vpop.f32.mrb[0].mxu0
        %v1322 = vadd.f32 0.0, %v1321
        %v1323 = vpop.f32.mrb[0].mxu0
        %1324 = vmatprep.mubr.bf16.mxu0 %v807
        %1325 = vmatmul.mubr.bf16.gmra.mrb[0].mxu0 %v806
        %v1326 = vpop.f32.mrb[0].mxu0
        %v1327 = vadd.f32 0.0, %v1326
        %v1328 = vpop.f32.mrb[0].mxu0
        %v1329 = vpop.f32.mrb[0].mxu0
        %v1330 = vadd.f32 0.0, %v1329
        %v1331 = vpop.f32.mrb[0].mxu0
        %1332 = vmatprep.mubr.bf16.mxu0 %v810
        %1333 = vmatmul.mubr.bf16.gmra.mrb[0].mxu0 %v809
        %v1334 = vpop.f32.mrb[0].mxu0
        %v1335 = vadd.f32 0.0, %v1334
        %v1336 = vpop.f32.mrb[0].mxu0
        %v1337 = vpop.f32.mrb[0].mxu0
        %v1338 = vadd.f32 0.0, %v1337
        %v1339 = vpop.f32.mrb[0].mxu0
        %1340 = vdwg.mxu0
        %1341 = vmatprep.subr.bf16.mxu0 0
        %1342 = vmatpush1.bf16.msra.mxu0 %v1020
        %1343 = vmatprep.subr.bf16.mxu0 0
        %1344 = vmatpush1.bf16.msra.mxu0 %v1021
        %1345 = vmatprep.subr.bf16.mxu0 0
        %1346 = vmatpush1.bf16.msra.mxu0 %v1022
        %1347 = vmatprep.subr.bf16.mxu0 0
        %1348 = vmatpush1.bf16.msra.mxu0 %v1023
        %1349 = vmatprep.subr.bf16.mxu0 0
        %1350 = vmatpush1.bf16.msra.mxu0 %v1024
        %1351 = vmatprep.subr.bf16.mxu0 0
        %1352 = vmatpush1.bf16.msra.mxu0 %v1025
        %1353 = vmatprep.subr.bf16.mxu0 0
        %1354 = vmatpush1.bf16.msra.mxu0 %v1026
        %1355 = vmatprep.subr.bf16.mxu0 0
        %1356 = vmatpush1.bf16.msra.mxu0 %v1027
        %1357 = vmatprep.subr.bf16.mxu0 0
        %1358 = vmatpush1.bf16.msra.mxu0 0
        %1359 = vmatprep.subr.bf16.mxu0 0
        %1360 = vmatpush1.bf16.msra.mxu0 0
        %1361 = vmatprep.subr.bf16.mxu0 0
        %1362 = vmatpush1.bf16.msra.mxu0 0
        %1363 = vmatprep.subr.bf16.mxu0 0
        %1364 = vmatpush1.bf16.msra.mxu0 0
        %1365 = vmatprep.subr.bf16.mxu0 0
        %1366 = vmatpush1.bf16.msra.mxu0 0
        %1367 = vmatprep.subr.bf16.mxu0 0
        %1368 = vmatpush1.bf16.msra.mxu0 0
        %1369 = vmatprep.subr.bf16.mxu0 0
        %1370 = vmatpush1.bf16.msra.mxu0 0
        %1371 = vmatprep.subr.bf16.mxu0 0
        %1372 = vmatpush1.bf16.msra.mxu0 0
        %1373 = vmatprep.mubr.bf16.mxu0 0
        %1374 = vmatmul.mubr.bf16.gmra.mrb[0].mxu0 %v718
        %v1375 = vpop.f32.mrb[0].mxu0
        %v1376 = vadd.f32 %v1087, %v1375
        %v1377 = vpop.f32.mrb[0].mxu0
        %v1378 = vpop.f32.mrb[0].mxu0
        %v1379 = vadd.f32 %v1090, %v1378
        %v1380 = vpop.f32.mrb[0].mxu0
        %1381 = vmatprep.mubr.bf16.mxu0 0
        %1382 = vmatmul.mubr.bf16.gmra.mrb[0].mxu0 %v721
        %v1383 = vpop.f32.mrb[0].mxu0
        %v1384 = vadd.f32 %v1095, %v1383
        %v1385 = vpop.f32.mrb[0].mxu0
        %v1386 = vpop.f32.mrb[0].mxu0
        %v1387 = vadd.f32 %v1098, %v1386
        %v1388 = vpop.f32.mrb[0].mxu0
        %1389 = vmatprep.mubr.bf16.mxu0 0
        %1390 = vmatmul.mubr.bf16.gmra.mrb[0].mxu0 %v724
        %v1391 = vpop.f32.mrb[0].mxu0
        %v1392 = vadd.f32 %v1103, %v1391
        %v1393 = vpop.f32.mrb[0].mxu0
        %v1394 = vpop.f32.mrb[0].mxu0
        %v1395 = vadd.f32 %v1106, %v1394
        %v1396 = vpop.f32.mrb[0].mxu0
        %1397 = vmatprep.mubr.bf16.mxu0 0
        %1398 = vmatmul.mubr.bf16.gmra.mrb[0].mxu0 %v727
        %v1399 = vpop.f32.mrb[0].mxu0
        %v1400 = vadd.f32 %v1111, %v1399
        %v1401 = vpop.f32.mrb[0].mxu0
        %v1402 = vpop.f32.mrb[0].mxu0
        %v1403 = vadd.f32 %v1114, %v1402
        %v1404 = vpop.f32.mrb[0].mxu0
        %1405 = vmatprep.mubr.bf16.mxu0 0
        %1406 = vmatmul.mubr.bf16.gmra.mrb[0].mxu0 %v730
        %v1407 = vpop.f32.mrb[0].mxu0
        %v1408 = vadd.f32 %v1119, %v1407
        %v1409 = vpop.f32.mrb[0].mxu0
        %v1410 = vpop.f32.mrb[0].mxu0
        %v1411 = vadd.f32 %v1122, %v1410
        %v1412 = vpop.f32.mrb[0].mxu0
        %1413 = vmatprep.mubr.bf16.mxu0 0
        %1414 = vmatmul.mubr.bf16.gmra.mrb[0].mxu0 %v733
        %v1415 = vpop.f32.mrb[0].mxu0
        %v1416 = vadd.f32 %v1127, %v1415
        %v1417 = vpop.f32.mrb[0].mxu0
        %v1418 = vpop.f32.mrb[0].mxu0
        %v1419 = vadd.f32 %v1130, %v1418
        %v1420 = vpop.f32.mrb[0].mxu0
        %1421 = vmatprep.mubr.bf16.mxu0 0
        %1422 = vmatmul.mubr.bf16.gmra.mrb[0].mxu0 %v736
        %v1423 = vpop.f32.mrb[0].mxu0
        %v1424 = vadd.f32 %v1135, %v1423
        %v1425 = vpop.f32.mrb[0].mxu0
        %v1426 = vpop.f32.mrb[0].mxu0
        %v1427 = vadd.f32 %v1138, %v1426
        %v1428 = vpop.f32.mrb[0].mxu0
        %1429 = vmatprep.mubr.bf16.mxu0 0
        %1430 = vmatmul.mubr.bf16.gmra.mrb[0].mxu0 %v739
        %v1431 = vpop.f32.mrb[0].mxu0
        %v1432 = vadd.f32 %v1143, %v1431
        %v1433 = vpop.f32.mrb[0].mxu0
        %v1434 = vpop.f32.mrb[0].mxu0
        %v1435 = vadd.f32 %v1146, %v1434
        %v1436 = vpop.f32.mrb[0].mxu0
        %1437 = vmatprep.mubr.bf16.mxu0 0
        %1438 = vmatmul.mubr.bf16.gmra.mrb[0].mxu0 %v742
        %v1439 = vpop.f32.mrb[0].mxu0
        %v1440 = vadd.f32 %v1151, %v1439
        %v1441 = vpop.f32.mrb[0].mxu0
        %v1442 = vpop.f32.mrb[0].mxu0
        %v1443 = vadd.f32 %v1154, %v1442
        %v1444 = vpop.f32.mrb[0].mxu0
        %1445 = vmatprep.mubr.bf16.mxu0 0
        %1446 = vmatmul.mubr.bf16.gmra.mrb[0].mxu0 %v745
        %v1447 = vpop.f32.mrb[0].mxu0
        %v1448 = vadd.f32 %v1159, %v1447
        %v1449 = vpop.f32.mrb[0].mxu0
        %v1450 = vpop.f32.mrb[0].mxu0
        %v1451 = vadd.f32 %v1162, %v1450
        %v1452 = vpop.f32.mrb[0].mxu0
        %1453 = vmatprep.mubr.bf16.mxu0 0
        %1454 = vmatmul.mubr.bf16.gmra.mrb[0].mxu0 %v748
        %v1455 = vpop.f32.mrb[0].mxu0
        %v1456 = vadd.f32 %v1167, %v1455
        %v1457 = vpop.f32.mrb[0].mxu0
        %v1458 = vpop.f32.mrb[0].mxu0
        %v1459 = vadd.f32 %v1170, %v1458
        %v1460 = vpop.f32.mrb[0].mxu0
        %1461 = vmatprep.mubr.bf16.mxu0 0
        %1462 = vmatmul.mubr.bf16.gmra.mrb[0].mxu0 %v751
        %v1463 = vpop.f32.mrb[0].mxu0
        %v1464 = vadd.f32 %v1175, %v1463
        %v1465 = vpop.f32.mrb[0].mxu0
        %v1466 = vpop.f32.mrb[0].mxu0
        %v1467 = vadd.f32 %v1178, %v1466
        %v1468 = vpop.f32.mrb[0].mxu0
        %1469 = vmatprep.mubr.bf16.mxu0 0
        %1470 = vmatmul.mubr.bf16.gmra.mrb[0].mxu0 %v754
        %v1471 = vpop.f32.mrb[0].mxu0
        %v1472 = vadd.f32 %v1183, %v1471
        %v1473 = vpop.f32.mrb[0].mxu0
        %v1474 = vpop.f32.mrb[0].mxu0
        %v1475 = vadd.f32 %v1186, %v1474
        %v1476 = vpop.f32.mrb[0].mxu0
        %1477 = vmatprep.mubr.bf16.mxu0 0
        %1478 = vmatmul.mubr.bf16.gmra.mrb[0].mxu0 %v757
        %v1479 = vpop.f32.mrb[0].mxu0
        %v1480 = vadd.f32 %v1191, %v1479
        %v1481 = vpop.f32.mrb[0].mxu0
        %v1482 = vpop.f32.mrb[0].mxu0
        %v1483 = vadd.f32 %v1194, %v1482
        %v1484 = vpop.f32.mrb[0].mxu0
        %1485 = vmatprep.mubr.bf16.mxu0 0
        %1486 = vmatmul.mubr.bf16.gmra.mrb[0].mxu0 %v760
        %v1487 = vpop.f32.mrb[0].mxu0
        %v1488 = vadd.f32 %v1199, %v1487
        %v1489 = vpop.f32.mrb[0].mxu0
        %v1490 = vpop.f32.mrb[0].mxu0
        %v1491 = vadd.f32 %v1202, %v1490
        %v1492 = vpop.f32.mrb[0].mxu0
        %1493 = vmatprep.mubr.bf16.mxu0 0
        %1494 = vmatmul.mubr.bf16.gmra.mrb[0].mxu0 %v763
        %v1495 = vpop.f32.mrb[0].mxu0
        %v1496 = vadd.f32 %v1207, %v1495
        %v1497 = vpop.f32.mrb[0].mxu0
        %v1498 = vpop.f32.mrb[0].mxu0
        %v1499 = vadd.f32 %v1210, %v1498
        %v1500 = vpop.f32.mrb[0].mxu0
        %1501 = vmatprep.mubr.bf16.mxu0 0
        %1502 = vmatmul.mubr.bf16.gmra.mrb[0].mxu0 %v766
        %v1503 = vpop.f32.mrb[0].mxu0
        %v1504 = vadd.f32 %v1215, %v1503
        %v1505 = vpop.f32.mrb[0].mxu0
        %v1506 = vpop.f32.mrb[0].mxu0
        %v1507 = vadd.f32 %v1218, %v1506
        %v1508 = vpop.f32.mrb[0].mxu0
        %1509 = vmatprep.mubr.bf16.mxu0 0
        %1510 = vmatmul.mubr.bf16.gmra.mrb[0].mxu0 %v769
        %v1511 = vpop.f32.mrb[0].mxu0
        %v1512 = vadd.f32 %v1223, %v1511
        %v1513 = vpop.f32.mrb[0].mxu0
        %v1514 = vpop.f32.mrb[0].mxu0
        %v1515 = vadd.f32 %v1226, %v1514
        %v1516 = vpop.f32.mrb[0].mxu0
        %1517 = vmatprep.mubr.bf16.mxu0 0
        %1518 = vmatmul.mubr.bf16.gmra.mrb[0].mxu0 %v772
        %v1519 = vpop.f32.mrb[0].mxu0
        %v1520 = vadd.f32 %v1231, %v1519
        %v1521 = vpop.f32.mrb[0].mxu0
        %v1522 = vpop.f32.mrb[0].mxu0
        %v1523 = vadd.f32 %v1234, %v1522
        %v1524 = vpop.f32.mrb[0].mxu0
        %1525 = vmatprep.mubr.bf16.mxu0 0
        %1526 = vmatmul.mubr.bf16.gmra.mrb[0].mxu0 %v775
        %v1527 = vpop.f32.mrb[0].mxu0
        %v1528 = vadd.f32 %v1239, %v1527
        %v1529 = vpop.f32.mrb[0].mxu0
        %v1530 = vpop.f32.mrb[0].mxu0
        %v1531 = vadd.f32 %v1242, %v1530
        %v1532 = vpop.f32.mrb[0].mxu0
        %1533 = vmatprep.mubr.bf16.mxu0 0
        %1534 = vmatmul.mubr.bf16.gmra.mrb[0].mxu0 %v778
        %v1535 = vpop.f32.mrb[0].mxu0
        %v1536 = vadd.f32 %v1247, %v1535
        %v1537 = vpop.f32.mrb[0].mxu0
        %v1538 = vpop.f32.mrb[0].mxu0
        %v1539 = vadd.f32 %v1250, %v1538
        %v1540 = vpop.f32.mrb[0].mxu0
        %1541 = vmatprep.mubr.bf16.mxu0 0
        %1542 = vmatmul.mubr.bf16.gmra.mrb[0].mxu0 %v781
        %v1543 = vpop.f32.mrb[0].mxu0
        %v1544 = vadd.f32 %v1255, %v1543
        %v1545 = vpop.f32.mrb[0].mxu0
        %v1546 = vpop.f32.mrb[0].mxu0
        %v1547 = vadd.f32 %v1258, %v1546
        %v1548 = vpop.f32.mrb[0].mxu0
        %1549 = vmatprep.mubr.bf16.mxu0 0
        %1550 = vmatmul.mubr.bf16.gmra.mrb[0].mxu0 %v784
        %v1551 = vpop.f32.mrb[0].mxu0
        %v1552 = vadd.f32 %v1263, %v1551
        %v1553 = vpop.f32.mrb[0].mxu0
        %v1554 = vpop.f32.mrb[0].mxu0
        %v1555 = vadd.f32 %v1266, %v1554
        %v1556 = vpop.f32.mrb[0].mxu0
        %1557 = vmatprep.mubr.bf16.mxu0 0
        %1558 = vmatmul.mubr.bf16.gmra.mrb[0].mxu0 %v787
        %v1559 = vpop.f32.mrb[0].mxu0
        %v1560 = vadd.f32 %v1271, %v1559
        %v1561 = vpop.f32.mrb[0].mxu0
        %v1562 = vpop.f32.mrb[0].mxu0
        %v1563 = vadd.f32 %v1274, %v1562
        %v1564 = vpop.f32.mrb[0].mxu0
        %1565 = vmatprep.mubr.bf16.mxu0 0
        %1566 = vmatmul.mubr.bf16.gmra.mrb[0].mxu0 %v790
        %v1567 = vpop.f32.mrb[0].mxu0
        %v1568 = vadd.f32 %v1279, %v1567
        %v1569 = vpop.f32.mrb[0].mxu0
        %v1570 = vpop.f32.mrb[0].mxu0
        %v1571 = vadd.f32 %v1282, %v1570
        %v1572 = vpop.f32.mrb[0].mxu0
        %1573 = vmatprep.mubr.bf16.mxu0 0
        %1574 = vmatmul.mubr.bf16.gmra.mrb[0].mxu0 %v793
        %v1575 = vpop.f32.mrb[0].mxu0
        %v1576 = vadd.f32 %v1287, %v1575
        %v1577 = vpop.f32.mrb[0].mxu0
        %v1578 = vpop.f32.mrb[0].mxu0
        %v1579 = vadd.f32 %v1290, %v1578
        %v1580 = vpop.f32.mrb[0].mxu0
        %1581 = vmatprep.mubr.bf16.mxu0 0
        %1582 = vmatmul.mubr.bf16.gmra.mrb[0].mxu0 %v796
        %v1583 = vpop.f32.mrb[0].mxu0
        %v1584 = vadd.f32 %v1295, %v1583
        %v1585 = vpop.f32.mrb[0].mxu0
        %v1586 = vpop.f32.mrb[0].mxu0
        %v1587 = vadd.f32 %v1298, %v1586
        %v1588 = vpop.f32.mrb[0].mxu0
        %1589 = vmatprep.mubr.bf16.mxu0 0
        %1590 = vmatmul.mubr.bf16.gmra.mrb[0].mxu0 %v799
        %v1591 = vpop.f32.mrb[0].mxu0
        %v1592 = vadd.f32 %v1303, %v1591
        %v1593 = vpop.f32.mrb[0].mxu0
        %v1594 = vpop.f32.mrb[0].mxu0
        %v1595 = vadd.f32 %v1306, %v1594
        %v1596 = vpop.f32.mrb[0].mxu0
        %1597 = vmatprep.mubr.bf16.mxu0 0
        %1598 = vmatmul.mubr.bf16.gmra.mrb[0].mxu0 %v802
        %v1599 = vpop.f32.mrb[0].mxu0
        %v1600 = vadd.f32 %v1311, %v1599
        %v1601 = vpop.f32.mrb[0].mxu0
        %v1602 = vpop.f32.mrb[0].mxu0
        %v1603 = vadd.f32 %v1314, %v1602
        %v1604 = vpop.f32.mrb[0].mxu0
        %1605 = vmatprep.mubr.bf16.mxu0 0
        %1606 = vmatmul.mubr.bf16.gmra.mrb[0].mxu0 %v805
        %v1607 = vpop.f32.mrb[0].mxu0
        %v1608 = vadd.f32 %v1319, %v1607
        %v1609 = vpop.f32.mrb[0].mxu0
        %v1610 = vpop.f32.mrb[0].mxu0
        %v1611 = vadd.f32 %v1322, %v1610
        %v1612 = vpop.f32.mrb[0].mxu0
        %1613 = vmatprep.mubr.bf16.mxu0 0
        %1614 = vmatmul.mubr.bf16.gmra.mrb[0].mxu0 %v808
        %v1615 = vpop.f32.mrb[0].mxu0
        %v1616 = vadd.f32 %v1327, %v1615
        %v1617 = vpop.f32.mrb[0].mxu0
        %v1618 = vpop.f32.mrb[0].mxu0
        %v1619 = vadd.f32 %v1330, %v1618
        %v1620 = vpop.f32.mrb[0].mxu0
        %1621 = vmatprep.mubr.bf16.mxu0 0
        %1622 = vmatmul.mubr.bf16.gmra.mrb[0].mxu0 %v811
        %v1623 = vpop.f32.mrb[0].mxu0
        %v1624 = vadd.f32 %v1335, %v1623
        %v1625 = vpop.f32.mrb[0].mxu0
        %v1626 = vpop.f32.mrb[0].mxu0
        %v1627 = vadd.f32 %v1338, %v1626
        %v1628 = vpop.f32.mrb[0].mxu0
        %1629 = vdwg.mxu0
        %v1630 = vld [vmem:[%s2] sm:$0x1]
        %v1632 = vlaneseq
        %v1633 = vshrl.u32 %v1632, 7
        %v1634 = vsub.s32 0, %v1633
        %v1635 = vrot.slane %v1630, %v1634
        %v1637 = vmul.f32 %v1376, %v1635
        %v1638 = vmul.f32 %v1379, %v1635
        %v1639 = vmul.f32 %v1384, %v1635
        %v1640 = vmul.f32 %v1387, %v1635
        %v1641 = vmul.f32 %v1392, %v1635
        %v1642 = vmul.f32 %v1395, %v1635
        %v1643 = vmul.f32 %v1400, %v1635
        %v1644 = vmul.f32 %v1403, %v1635
        %v1645 = vmul.f32 %v1408, %v1635
        %v1646 = vmul.f32 %v1411, %v1635
        %v1647 = vmul.f32 %v1416, %v1635
        %v1648 = vmul.f32 %v1419, %v1635
        %v1649 = vmul.f32 %v1424, %v1635
        %v1650 = vmul.f32 %v1427, %v1635
        %v1651 = vmul.f32 %v1432, %v1635
        %v1652 = vmul.f32 %v1435, %v1635
        %v1653 = vmul.f32 %v1440, %v1635
        %v1654 = vmul.f32 %v1443, %v1635
        %v1655 = vmul.f32 %v1448, %v1635
        %v1656 = vmul.f32 %v1451, %v1635
        %v1657 = vmul.f32 %v1456, %v1635
        %v1658 = vmul.f32 %v1459, %v1635
        %v1659 = vmul.f32 %v1464, %v1635
        %v1660 = vmul.f32 %v1467, %v1635
        %v1661 = vmul.f32 %v1472, %v1635
        %v1662 = vmul.f32 %v1475, %v1635
        %v1663 = vmul.f32 %v1480, %v1635
        %v1664 = vmul.f32 %v1483, %v1635
        %v1665 = vmul.f32 %v1488, %v1635
        %v1666 = vmul.f32 %v1491, %v1635
        %v1667 = vmul.f32 %v1496, %v1635
        %v1668 = vmul.f32 %v1499, %v1635
        %v1669 = vmul.f32 %v1504, %v1635
        %v1670 = vmul.f32 %v1507, %v1635
        %v1671 = vmul.f32 %v1512, %v1635
        %v1672 = vmul.f32 %v1515, %v1635
        %v1673 = vmul.f32 %v1520, %v1635
        %v1674 = vmul.f32 %v1523, %v1635
        %v1675 = vmul.f32 %v1528, %v1635
        %v1676 = vmul.f32 %v1531, %v1635
        %v1677 = vmul.f32 %v1536, %v1635
        %v1678 = vmul.f32 %v1539, %v1635
        %v1679 = vmul.f32 %v1544, %v1635
        %v1680 = vmul.f32 %v1547, %v1635
        %v1681 = vmul.f32 %v1552, %v1635
        %v1682 = vmul.f32 %v1555, %v1635
        %v1683 = vmul.f32 %v1560, %v1635
        %v1684 = vmul.f32 %v1563, %v1635
        %v1685 = vmul.f32 %v1568, %v1635
        %v1686 = vmul.f32 %v1571, %v1635
        %v1687 = vmul.f32 %v1576, %v1635
        %v1688 = vmul.f32 %v1579, %v1635
        %v1689 = vmul.f32 %v1584, %v1635
        %v1690 = vmul.f32 %v1587, %v1635
        %v1691 = vmul.f32 %v1592, %v1635
        %v1692 = vmul.f32 %v1595, %v1635
        %v1693 = vmul.f32 %v1600, %v1635
        %v1694 = vmul.f32 %v1603, %v1635
        %v1695 = vmul.f32 %v1608, %v1635
        %v1696 = vmul.f32 %v1611, %v1635
        %v1697 = vmul.f32 %v1616, %v1635
        %v1698 = vmul.f32 %v1619, %v1635
        %v1699 = vmul.f32 %v1624, %v1635
        %v1700 = vmul.f32 %v1627, %v1635
        %v1701 = vld [vmem:[%s3] sm:$0x1]
        %v1703 = vlaneseq
        %v1704 = vshrl.u32 %v1703, 7
        %v1705 = vsub.s32 0, %v1704
        %v1706 = vrot.slane %v1701, %v1705
        %v1708 = vadd.f32 %v1637, %v1706
        %v1709 = vadd.f32 %v1638, %v1706
        %v1710 = vadd.f32 %v1639, %v1706
        %v1711 = vadd.f32 %v1640, %v1706
        %v1712 = vadd.f32 %v1641, %v1706
        %v1713 = vadd.f32 %v1642, %v1706
        %v1714 = vadd.f32 %v1643, %v1706
        %v1715 = vadd.f32 %v1644, %v1706
        %v1716 = vadd.f32 %v1645, %v1706
        %v1717 = vadd.f32 %v1646, %v1706
        %v1718 = vadd.f32 %v1647, %v1706
        %v1719 = vadd.f32 %v1648, %v1706
        %v1720 = vadd.f32 %v1649, %v1706
        %v1721 = vadd.f32 %v1650, %v1706
        %v1722 = vadd.f32 %v1651, %v1706
        %v1723 = vadd.f32 %v1652, %v1706
        %v1724 = vadd.f32 %v1653, %v1706
        %v1725 = vadd.f32 %v1654, %v1706
        %v1726 = vadd.f32 %v1655, %v1706
        %v1727 = vadd.f32 %v1656, %v1706
        %v1728 = vadd.f32 %v1657, %v1706
        %v1729 = vadd.f32 %v1658, %v1706
        %v1730 = vadd.f32 %v1659, %v1706
        %v1731 = vadd.f32 %v1660, %v1706
        %v1732 = vadd.f32 %v1661, %v1706
        %v1733 = vadd.f32 %v1662, %v1706
        %v1734 = vadd.f32 %v1663, %v1706
        %v1735 = vadd.f32 %v1664, %v1706
        %v1736 = vadd.f32 %v1665, %v1706
        %v1737 = vadd.f32 %v1666, %v1706
        %v1738 = vadd.f32 %v1667, %v1706
        %v1739 = vadd.f32 %v1668, %v1706
        %v1740 = vadd.f32 %v1669, %v1706
        %v1741 = vadd.f32 %v1670, %v1706
        %v1742 = vadd.f32 %v1671, %v1706
        %v1743 = vadd.f32 %v1672, %v1706
        %v1744 = vadd.f32 %v1673, %v1706
        %v1745 = vadd.f32 %v1674, %v1706
        %v1746 = vadd.f32 %v1675, %v1706
        %v1747 = vadd.f32 %v1676, %v1706
        %v1748 = vadd.f32 %v1677, %v1706
        %v1749 = vadd.f32 %v1678, %v1706
        %v1750 = vadd.f32 %v1679, %v1706
        %v1751 = vadd.f32 %v1680, %v1706
        %v1752 = vadd.f32 %v1681, %v1706
        %v1753 = vadd.f32 %v1682, %v1706
        %v1754 = vadd.f32 %v1683, %v1706
        %v1755 = vadd.f32 %v1684, %v1706
        %v1756 = vadd.f32 %v1685, %v1706
        %v1757 = vadd.f32 %v1686, %v1706
        %v1758 = vadd.f32 %v1687, %v1706
        %v1759 = vadd.f32 %v1688, %v1706
        %v1760 = vadd.f32 %v1689, %v1706
        %v1761 = vadd.f32 %v1690, %v1706
        %v1762 = vadd.f32 %v1691, %v1706
        %v1763 = vadd.f32 %v1692, %v1706
        %v1764 = vadd.f32 %v1693, %v1706
        %v1765 = vadd.f32 %v1694, %v1706
        %v1766 = vadd.f32 %v1695, %v1706
        %v1767 = vadd.f32 %v1696, %v1706
        %v1768 = vadd.f32 %v1697, %v1706
        %v1769 = vadd.f32 %v1698, %v1706
        %v1770 = vadd.f32 %v1699, %v1706
        %v1771 = vadd.f32 %v1700, %v1706
        %vm1772 = vcmp.gt.f32.partialorder %v1708, 0.0
        %vm1773 = vcmp.gt.f32.partialorder %v1709, 0.0
        %vm1774 = vcmp.gt.f32.partialorder %v1710, 0.0
        %vm1775 = vcmp.gt.f32.partialorder %v1711, 0.0
        %vm1776 = vcmp.gt.f32.partialorder %v1712, 0.0
        %vm1777 = vcmp.gt.f32.partialorder %v1713, 0.0
        %vm1778 = vcmp.gt.f32.partialorder %v1714, 0.0
        %vm1779 = vcmp.gt.f32.partialorder %v1715, 0.0
        %vm1780 = vcmp.gt.f32.partialorder %v1716, 0.0
        %vm1781 = vcmp.gt.f32.partialorder %v1717, 0.0
        %vm1782 = vcmp.gt.f32.partialorder %v1718, 0.0
        %vm1783 = vcmp.gt.f32.partialorder %v1719, 0.0
        %vm1784 = vcmp.gt.f32.partialorder %v1720, 0.0
        %vm1785 = vcmp.gt.f32.partialorder %v1721, 0.0
        %vm1786 = vcmp.gt.f32.partialorder %v1722, 0.0
        %vm1787 = vcmp.gt.f32.partialorder %v1723, 0.0
        %vm1788 = vcmp.gt.f32.partialorder %v1724, 0.0
        %vm1789 = vcmp.gt.f32.partialorder %v1725, 0.0
        %vm1790 = vcmp.gt.f32.partialorder %v1726, 0.0
        %vm1791 = vcmp.gt.f32.partialorder %v1727, 0.0
        %vm1792 = vcmp.gt.f32.partialorder %v1728, 0.0
        %vm1793 = vcmp.gt.f32.partialorder %v1729, 0.0
        %vm1794 = vcmp.gt.f32.partialorder %v1730, 0.0
        %vm1795 = vcmp.gt.f32.partialorder %v1731, 0.0
        %vm1796 = vcmp.gt.f32.partialorder %v1732, 0.0
        %vm1797 = vcmp.gt.f32.partialorder %v1733, 0.0
        %vm1798 = vcmp.gt.f32.partialorder %v1734, 0.0
        %vm1799 = vcmp.gt.f32.partialorder %v1735, 0.0
        %vm1800 = vcmp.gt.f32.partialorder %v1736, 0.0
        %vm1801 = vcmp.gt.f32.partialorder %v1737, 0.0
        %vm1802 = vcmp.gt.f32.partialorder %v1738, 0.0
        %vm1803 = vcmp.gt.f32.partialorder %v1739, 0.0
        %vm1804 = vcmp.gt.f32.partialorder %v1740, 0.0
        %vm1805 = vcmp.gt.f32.partialorder %v1741, 0.0
        %vm1806 = vcmp.gt.f32.partialorder %v1742, 0.0
        %vm1807 = vcmp.gt.f32.partialorder %v1743, 0.0
        %vm1808 = vcmp.gt.f32.partialorder %v1744, 0.0
        %vm1809 = vcmp.gt.f32.partialorder %v1745, 0.0
        %vm1810 = vcmp.gt.f32.partialorder %v1746, 0.0
        %vm1811 = vcmp.gt.f32.partialorder %v1747, 0.0
        %vm1812 = vcmp.gt.f32.partialorder %v1748, 0.0
        %vm1813 = vcmp.gt.f32.partialorder %v1749, 0.0
        %vm1814 = vcmp.gt.f32.partialorder %v1750, 0.0
        %vm1815 = vcmp.gt.f32.partialorder %v1751, 0.0
        %vm1816 = vcmp.gt.f32.partialorder %v1752, 0.0
        %vm1817 = vcmp.gt.f32.partialorder %v1753, 0.0
        %vm1818 = vcmp.gt.f32.partialorder %v1754, 0.0
        %vm1819 = vcmp.gt.f32.partialorder %v1755, 0.0
        %vm1820 = vcmp.gt.f32.partialorder %v1756, 0.0
        %vm1821 = vcmp.gt.f32.partialorder %v1757, 0.0
        %vm1822 = vcmp.gt.f32.partialorder %v1758, 0.0
        %vm1823 = vcmp.gt.f32.partialorder %v1759, 0.0
        %vm1824 = vcmp.gt.f32.partialorder %v1760, 0.0
        %vm1825 = vcmp.gt.f32.partialorder %v1761, 0.0
        %vm1826 = vcmp.gt.f32.partialorder %v1762, 0.0
        %vm1827 = vcmp.gt.f32.partialorder %v1763, 0.0
        %vm1828 = vcmp.gt.f32.partialorder %v1764, 0.0
        %vm1829 = vcmp.gt.f32.partialorder %v1765, 0.0
        %vm1830 = vcmp.gt.f32.partialorder %v1766, 0.0
        %vm1831 = vcmp.gt.f32.partialorder %v1767, 0.0
        %vm1832 = vcmp.gt.f32.partialorder %v1768, 0.0
        %vm1833 = vcmp.gt.f32.partialorder %v1769, 0.0
        %vm1834 = vcmp.gt.f32.partialorder %v1770, 0.0
        %vm1835 = vcmp.gt.f32.partialorder %v1771, 0.0
        %v1836 = vmin.f32 %v1708, 0.0
        %v1837 = vmin.f32 %v1709, 0.0
        %v1838 = vmin.f32 %v1710, 0.0
        %v1839 = vmin.f32 %v1711, 0.0
        %v1840 = vmin.f32 %v1712, 0.0
        %v1841 = vmin.f32 %v1713, 0.0
        %v1842 = vmin.f32 %v1714, 0.0
        %v1843 = vmin.f32 %v1715, 0.0
        %v1844 = vmin.f32 %v1716, 0.0
        %v1845 = vmin.f32 %v1717, 0.0
        %v1846 = vmin.f32 %v1718, 0.0
        %v1847 = vmin.f32 %v1719, 0.0
        %v1848 = vmin.f32 %v1720, 0.0
        %v1849 = vmin.f32 %v1721, 0.0
        %v1850 = vmin.f32 %v1722, 0.0
        %v1851 = vmin.f32 %v1723, 0.0
        %v1852 = vmin.f32 %v1724, 0.0
        %v1853 = vmin.f32 %v1725, 0.0
        %v1854 = vmin.f32 %v1726, 0.0
        %v1855 = vmin.f32 %v1727, 0.0
        %v1856 = vmin.f32 %v1728, 0.0
        %v1857 = vmin.f32 %v1729, 0.0
        %v1858 = vmin.f32 %v1730, 0.0
        %v1859 = vmin.f32 %v1731, 0.0
        %v1860 = vmin.f32 %v1732, 0.0
        %v1861 = vmin.f32 %v1733, 0.0
        %v1862 = vmin.f32 %v1734, 0.0
        %v1863 = vmin.f32 %v1735, 0.0
        %v1864 = vmin.f32 %v1736, 0.0
        %v1865 = vmin.f32 %v1737, 0.0
        %v1866 = vmin.f32 %v1738, 0.0
        %v1867 = vmin.f32 %v1739, 0.0
        %v1868 = vmin.f32 %v1740, 0.0
        %v1869 = vmin.f32 %v1741, 0.0
        %v1870 = vmin.f32 %v1742, 0.0
        %v1871 = vmin.f32 %v1743, 0.0
        %v1872 = vmin.f32 %v1744, 0.0
        %v1873 = vmin.f32 %v1745, 0.0
        %v1874 = vmin.f32 %v1746, 0.0
        %v1875 = vmin.f32 %v1747, 0.0
        %v1876 = vmin.f32 %v1748, 0.0
        %v1877 = vmin.f32 %v1749, 0.0
        %v1878 = vmin.f32 %v1750, 0.0
        %v1879 = vmin.f32 %v1751, 0.0
        %v1880 = vmin.f32 %v1752, 0.0
        %v1881 = vmin.f32 %v1753, 0.0
        %v1882 = vmin.f32 %v1754, 0.0
        %v1883 = vmin.f32 %v1755, 0.0
        %v1884 = vmin.f32 %v1756, 0.0
        %v1885 = vmin.f32 %v1757, 0.0
        %v1886 = vmin.f32 %v1758, 0.0
        %v1887 = vmin.f32 %v1759, 0.0
        %v1888 = vmin.f32 %v1760, 0.0
        %v1889 = vmin.f32 %v1761, 0.0
        %v1890 = vmin.f32 %v1762, 0.0
        %v1891 = vmin.f32 %v1763, 0.0
        %v1892 = vmin.f32 %v1764, 0.0
        %v1893 = vmin.f32 %v1765, 0.0
        %v1894 = vmin.f32 %v1766, 0.0
        %v1895 = vmin.f32 %v1767, 0.0
        %v1896 = vmin.f32 %v1768, 0.0
        %v1897 = vmin.f32 %v1769, 0.0
        %v1898 = vmin.f32 %v1770, 0.0
        %v1899 = vmin.f32 %v1771, 0.0
        %v1900 = vmul.f32 %v1836, 1.442695
        %v1901 = vpow.pop %v1900
        %v1902 = vmul.f32 %v1837, 1.442695
        %v1903 = vpow.pop %v1902
        %v1904 = vmul.f32 %v1838, 1.442695
        %v1905 = vpow.pop %v1904
        %v1906 = vmul.f32 %v1839, 1.442695
        %v1907 = vpow.pop %v1906
        %v1908 = vmul.f32 %v1840, 1.442695
        %v1909 = vpow.pop %v1908
        %v1910 = vmul.f32 %v1841, 1.442695
        %v1911 = vpow.pop %v1910
        %v1912 = vmul.f32 %v1842, 1.442695
        %v1913 = vpow.pop %v1912
        %v1914 = vmul.f32 %v1843, 1.442695
        %v1915 = vpow.pop %v1914
        %v1916 = vmul.f32 %v1844, 1.442695
        %v1917 = vpow.pop %v1916
        %v1918 = vmul.f32 %v1845, 1.442695
        %v1919 = vpow.pop %v1918
        %v1920 = vmul.f32 %v1846, 1.442695
        %v1921 = vpow.pop %v1920
        %v1922 = vmul.f32 %v1847, 1.442695
        %v1923 = vpow.pop %v1922
        %v1924 = vmul.f32 %v1848, 1.442695
        %v1925 = vpow.pop %v1924
        %v1926 = vmul.f32 %v1849, 1.442695
        %v1927 = vpow.pop %v1926
        %v1928 = vmul.f32 %v1850, 1.442695
        %v1929 = vpow.pop %v1928
        %v1930 = vmul.f32 %v1851, 1.442695
        %v1931 = vpow.pop %v1930
        %v1932 = vmul.f32 %v1852, 1.442695
        %v1933 = vpow.pop %v1932
        %v1934 = vmul.f32 %v1853, 1.442695
        %v1935 = vpow.pop %v1934
        %v1936 = vmul.f32 %v1854, 1.442695
        %v1937 = vpow.pop %v1936
        %v1938 = vmul.f32 %v1855, 1.442695
        %v1939 = vpow.pop %v1938
        %v1940 = vmul.f32 %v1856, 1.442695
        %v1941 = vpow.pop %v1940
        %v1942 = vmul.f32 %v1857, 1.442695
        %v1943 = vpow.pop %v1942
        %v1944 = vmul.f32 %v1858, 1.442695
        %v1945 = vpow.pop %v1944
        %v1946 = vmul.f32 %v1859, 1.442695
        %v1947 = vpow.pop %v1946
        %v1948 = vmul.f32 %v1860, 1.442695
        %v1949 = vpow.pop %v1948
        %v1950 = vmul.f32 %v1861, 1.442695
        %v1951 = vpow.pop %v1950
        %v1952 = vmul.f32 %v1862, 1.442695
        %v1953 = vpow.pop %v1952
        %v1954 = vmul.f32 %v1863, 1.442695
        %v1955 = vpow.pop %v1954
        %v1956 = vmul.f32 %v1864, 1.442695
        %v1957 = vpow.pop %v1956
        %v1958 = vmul.f32 %v1865, 1.442695
        %v1959 = vpow.pop %v1958
        %v1960 = vmul.f32 %v1866, 1.442695
        %v1961 = vpow.pop %v1960
        %v1962 = vmul.f32 %v1867, 1.442695
        %v1963 = vpow.pop %v1962
        %v1964 = vmul.f32 %v1868, 1.442695
        %v1965 = vpow.pop %v1964
        %v1966 = vmul.f32 %v1869, 1.442695
        %v1967 = vpow.pop %v1966
        %v1968 = vmul.f32 %v1870, 1.442695
        %v1969 = vpow.pop %v1968
        %v1970 = vmul.f32 %v1871, 1.442695
        %v1971 = vpow.pop %v1970
        %v1972 = vmul.f32 %v1872, 1.442695
        %v1973 = vpow.pop %v1972
        %v1974 = vmul.f32 %v1873, 1.442695
        %v1975 = vpow.pop %v1974
        %v1976 = vmul.f32 %v1874, 1.442695
        %v1977 = vpow.pop %v1976
        %v1978 = vmul.f32 %v1875, 1.442695
        %v1979 = vpow.pop %v1978
        %v1980 = vmul.f32 %v1876, 1.442695
        %v1981 = vpow.pop %v1980
        %v1982 = vmul.f32 %v1877, 1.442695
        %v1983 = vpow.pop %v1982
        %v1984 = vmul.f32 %v1878, 1.442695
        %v1985 = vpow.pop %v1984
        %v1986 = vmul.f32 %v1879, 1.442695
        %v1987 = vpow.pop %v1986
        %v1988 = vmul.f32 %v1880, 1.442695
        %v1989 = vpow.pop %v1988
        %v1990 = vmul.f32 %v1881, 1.442695
        %v1991 = vpow.pop %v1990
        %v1992 = vmul.f32 %v1882, 1.442695
        %v1993 = vpow.pop %v1992
        %v1994 = vmul.f32 %v1883, 1.442695
        %v1995 = vpow.pop %v1994
        %v1996 = vmul.f32 %v1884, 1.442695
        %v1997 = vpow.pop %v1996
        %v1998 = vmul.f32 %v1885, 1.442695
        %v1999 = vpow.pop %v1998
        %v2000 = vmul.f32 %v1886, 1.442695
        %v2001 = vpow.pop %v2000
        %v2002 = vmul.f32 %v1887, 1.442695
        %v2003 = vpow.pop %v2002
        %v2004 = vmul.f32 %v1888, 1.442695
        %v2005 = vpow.pop %v2004
        %v2006 = vmul.f32 %v1889, 1.442695
        %v2007 = vpow.pop %v2006
        %v2008 = vmul.f32 %v1890, 1.442695
        %v2009 = vpow.pop %v2008
        %v2010 = vmul.f32 %v1891, 1.442695
        %v2011 = vpow.pop %v2010
        %v2012 = vmul.f32 %v1892, 1.442695
        %v2013 = vpow.pop %v2012
        %v2014 = vmul.f32 %v1893, 1.442695
        %v2015 = vpow.pop %v2014
        %v2016 = vmul.f32 %v1894, 1.442695
        %v2017 = vpow.pop %v2016
        %v2018 = vmul.f32 %v1895, 1.442695
        %v2019 = vpow.pop %v2018
        %v2020 = vmul.f32 %v1896, 1.442695
        %v2021 = vpow.pop %v2020
        %v2022 = vmul.f32 %v1897, 1.442695
        %v2023 = vpow.pop %v2022
        %v2024 = vmul.f32 %v1898, 1.442695
        %v2025 = vpow.pop %v2024
        %v2026 = vmul.f32 %v1899, 1.442695
        %v2027 = vpow.pop %v2026
        %v2028 = vsub.f32 %v1901, 1.0
        %v2029 = vsub.f32 %v1903, 1.0
        %v2030 = vsub.f32 %v1905, 1.0
        %v2031 = vsub.f32 %v1907, 1.0
        %v2032 = vsub.f32 %v1909, 1.0
        %v2033 = vsub.f32 %v1911, 1.0
        %v2034 = vsub.f32 %v1913, 1.0
        %v2035 = vsub.f32 %v1915, 1.0
        %v2036 = vsub.f32 %v1917, 1.0
        %v2037 = vsub.f32 %v1919, 1.0
        %v2038 = vsub.f32 %v1921, 1.0
        %v2039 = vsub.f32 %v1923, 1.0
        %v2040 = vsub.f32 %v1925, 1.0
        %v2041 = vsub.f32 %v1927, 1.0
        %v2042 = vsub.f32 %v1929, 1.0
        %v2043 = vsub.f32 %v1931, 1.0
        %v2044 = vsub.f32 %v1933, 1.0
        %v2045 = vsub.f32 %v1935, 1.0
        %v2046 = vsub.f32 %v1937, 1.0
        %v2047 = vsub.f32 %v1939, 1.0
        %v2048 = vsub.f32 %v1941, 1.0
        %v2049 = vsub.f32 %v1943, 1.0
        %v2050 = vsub.f32 %v1945, 1.0
        %v2051 = vsub.f32 %v1947, 1.0
        %v2052 = vsub.f32 %v1949, 1.0
        %v2053 = vsub.f32 %v1951, 1.0
        %v2054 = vsub.f32 %v1953, 1.0
        %v2055 = vsub.f32 %v1955, 1.0
        %v2056 = vsub.f32 %v1957, 1.0
        %v2057 = vsub.f32 %v1959, 1.0
        %v2058 = vsub.f32 %v1961, 1.0
        %v2059 = vsub.f32 %v1963, 1.0
        %v2060 = vsub.f32 %v1965, 1.0
        %v2061 = vsub.f32 %v1967, 1.0
        %v2062 = vsub.f32 %v1969, 1.0
        %v2063 = vsub.f32 %v1971, 1.0
        %v2064 = vsub.f32 %v1973, 1.0
        %v2065 = vsub.f32 %v1975, 1.0
        %v2066 = vsub.f32 %v1977, 1.0
        %v2067 = vsub.f32 %v1979, 1.0
        %v2068 = vsub.f32 %v1981, 1.0
        %v2069 = vsub.f32 %v1983, 1.0
        %v2070 = vsub.f32 %v1985, 1.0
        %v2071 = vsub.f32 %v1987, 1.0
        %v2072 = vsub.f32 %v1989, 1.0
        %v2073 = vsub.f32 %v1991, 1.0
        %v2074 = vsub.f32 %v1993, 1.0
        %v2075 = vsub.f32 %v1995, 1.0
        %v2076 = vsub.f32 %v1997, 1.0
        %v2077 = vsub.f32 %v1999, 1.0
        %v2078 = vsub.f32 %v2001, 1.0
        %v2079 = vsub.f32 %v2003, 1.0
        %v2080 = vsub.f32 %v2005, 1.0
        %v2081 = vsub.f32 %v2007, 1.0
        %v2082 = vsub.f32 %v2009, 1.0
        %v2083 = vsub.f32 %v2011, 1.0
        %v2084 = vsub.f32 %v2013, 1.0
        %v2085 = vsub.f32 %v2015, 1.0
        %v2086 = vsub.f32 %v2017, 1.0
        %v2087 = vsub.f32 %v2019, 1.0
        %v2088 = vsub.f32 %v2021, 1.0
        %v2089 = vsub.f32 %v2023, 1.0
        %v2090 = vsub.f32 %v2025, 1.0
        %v2091 = vsub.f32 %v2027, 1.0
        %v2092 = vsel %vm1772, %v1708, %v2028
        %v2093 = vsel %vm1773, %v1709, %v2029
        %v2094 = vsel %vm1774, %v1710, %v2030
        %v2095 = vsel %vm1775, %v1711, %v2031
        %v2096 = vsel %vm1776, %v1712, %v2032
        %v2097 = vsel %vm1777, %v1713, %v2033
        %v2098 = vsel %vm1778, %v1714, %v2034
        %v2099 = vsel %vm1779, %v1715, %v2035
        %v2100 = vsel %vm1780, %v1716, %v2036
        %v2101 = vsel %vm1781, %v1717, %v2037
        %v2102 = vsel %vm1782, %v1718, %v2038
        %v2103 = vsel %vm1783, %v1719, %v2039
        %v2104 = vsel %vm1784, %v1720, %v2040
        %v2105 = vsel %vm1785, %v1721, %v2041
        %v2106 = vsel %vm1786, %v1722, %v2042
        %v2107 = vsel %vm1787, %v1723, %v2043
        %v2108 = vsel %vm1788, %v1724, %v2044
        %v2109 = vsel %vm1789, %v1725, %v2045
        %v2110 = vsel %vm1790, %v1726, %v2046
        %v2111 = vsel %vm1791, %v1727, %v2047
        %v2112 = vsel %vm1792, %v1728, %v2048
        %v2113 = vsel %vm1793, %v1729, %v2049
        %v2114 = vsel %vm1794, %v1730, %v2050
        %v2115 = vsel %vm1795, %v1731, %v2051
        %v2116 = vsel %vm1796, %v1732, %v2052
        %v2117 = vsel %vm1797, %v1733, %v2053
        %v2118 = vsel %vm1798, %v1734, %v2054
        %v2119 = vsel %vm1799, %v1735, %v2055
        %v2120 = vsel %vm1800, %v1736, %v2056
        %v2121 = vsel %vm1801, %v1737, %v2057
        %v2122 = vsel %vm1802, %v1738, %v2058
        %v2123 = vsel %vm1803, %v1739, %v2059
        %v2124 = vsel %vm1804, %v1740, %v2060
        %v2125 = vsel %vm1805, %v1741, %v2061
        %v2126 = vsel %vm1806, %v1742, %v2062
        %v2127 = vsel %vm1807, %v1743, %v2063
        %v2128 = vsel %vm1808, %v1744, %v2064
        %v2129 = vsel %vm1809, %v1745, %v2065
        %v2130 = vsel %vm1810, %v1746, %v2066
        %v2131 = vsel %vm1811, %v1747, %v2067
        %v2132 = vsel %vm1812, %v1748, %v2068
        %v2133 = vsel %vm1813, %v1749, %v2069
        %v2134 = vsel %vm1814, %v1750, %v2070
        %v2135 = vsel %vm1815, %v1751, %v2071
        %v2136 = vsel %vm1816, %v1752, %v2072
        %v2137 = vsel %vm1817, %v1753, %v2073
        %v2138 = vsel %vm1818, %v1754, %v2074
        %v2139 = vsel %vm1819, %v1755, %v2075
        %v2140 = vsel %vm1820, %v1756, %v2076
        %v2141 = vsel %vm1821, %v1757, %v2077
        %v2142 = vsel %vm1822, %v1758, %v2078
        %v2143 = vsel %vm1823, %v1759, %v2079
        %v2144 = vsel %vm1824, %v1760, %v2080
        %v2145 = vsel %vm1825, %v1761, %v2081
        %v2146 = vsel %vm1826, %v1762, %v2082
        %v2147 = vsel %vm1827, %v1763, %v2083
        %v2148 = vsel %vm1828, %v1764, %v2084
        %v2149 = vsel %vm1829, %v1765, %v2085
        %v2150 = vsel %vm1830, %v1766, %v2086
        %v2151 = vsel %vm1831, %v1767, %v2087
        %v2152 = vsel %vm1832, %v1768, %v2088
        %v2153 = vsel %vm1833, %v1769, %v2089
        %v2154 = vsel %vm1834, %v1770, %v2090
        %v2155 = vsel %vm1835, %v1771, %v2091
        %2156 = vst [vmem:[%s216] sm:$0xff] %v2092
        %2157 = vst [vmem:[%s216 + $0x8] sm:$0xff] %v2093
        %2158 = vst [vmem:[%s216 + $0x10] sm:$0xff] %v2094
        %2159 = vst [vmem:[%s216 + $0x18] sm:$0xff] %v2095
        %2160 = vst [vmem:[%s216 + $0x20] sm:$0xff] %v2096
        %2161 = vst [vmem:[%s216 + $0x28] sm:$0xff] %v2097
        %2162 = vst [vmem:[%s216 + $0x30] sm:$0xff] %v2098
        %2163 = vst [vmem:[%s216 + $0x38] sm:$0xff] %v2099
        %2164 = vst [vmem:[%s216 + $0x40] sm:$0xff] %v2100
        %2165 = vst [vmem:[%s216 + $0x48] sm:$0xff] %v2101
        %2166 = vst [vmem:[%s216 + $0x50] sm:$0xff] %v2102
        %2167 = vst [vmem:[%s216 + $0x58] sm:$0xff] %v2103
        %2168 = vst [vmem:[%s216 + $0x60] sm:$0xff] %v2104
        %2169 = vst [vmem:[%s216 + $0x68] sm:$0xff] %v2105
        %2170 = vst [vmem:[%s216 + $0x70] sm:$0xff] %v2106
        %2171 = vst [vmem:[%s216 + $0x78] sm:$0xff] %v2107
        %2172 = vst [vmem:[%s216 + $0x80] sm:$0xff] %v2108
        %2173 = vst [vmem:[%s216 + $0x88] sm:$0xff] %v2109
        %2174 = vst [vmem:[%s216 + $0x90] sm:$0xff] %v2110
        %2175 = vst [vmem:[%s216 + $0x98] sm:$0xff] %v2111
        %2176 = vst [vmem:[%s216 + $0xa0] sm:$0xff] %v2112
        %2177 = vst [vmem:[%s216 + $0xa8] sm:$0xff] %v2113
        %2178 = vst [vmem:[%s216 + $0xb0] sm:$0xff] %v2114
        %2179 = vst [vmem:[%s216 + $0xb8] sm:$0xff] %v2115
        %2180 = vst [vmem:[%s216 + $0xc0] sm:$0xff] %v2116
        %2181 = vst [vmem:[%s216 + $0xc8] sm:$0xff] %v2117
        %2182 = vst [vmem:[%s216 + $0xd0] sm:$0xff] %v2118
        %2183 = vst [vmem:[%s216 + $0xd8] sm:$0xff] %v2119
        %2184 = vst [vmem:[%s216 + $0xe0] sm:$0xff] %v2120
        %2185 = vst [vmem:[%s216 + $0xe8] sm:$0xff] %v2121
        %2186 = vst [vmem:[%s216 + $0xf0] sm:$0xff] %v2122
        %2187 = vst [vmem:[%s216 + $0xf8] sm:$0xff] %v2123
        %2188 = vst [vmem:[%s216 + $0x100] sm:$0xff] %v2124
        %2189 = vst [vmem:[%s216 + $0x108] sm:$0xff] %v2125
        %2190 = vst [vmem:[%s216 + $0x110] sm:$0xff] %v2126
        %2191 = vst [vmem:[%s216 + $0x118] sm:$0xff] %v2127
        %2192 = vst [vmem:[%s216 + $0x120] sm:$0xff] %v2128
        %2193 = vst [vmem:[%s216 + $0x128] sm:$0xff] %v2129
        %2194 = vst [vmem:[%s216 + $0x130] sm:$0xff] %v2130
        %2195 = vst [vmem:[%s216 + $0x138] sm:$0xff] %v2131
        %2196 = vst [vmem:[%s216 + $0x140] sm:$0xff] %v2132
        %2197 = vst [vmem:[%s216 + $0x148] sm:$0xff] %v2133
        %2198 = vst [vmem:[%s216 + $0x150] sm:$0xff] %v2134
        %2199 = vst [vmem:[%s216 + $0x158] sm:$0xff] %v2135
        %2200 = vst [vmem:[%s216 + $0x160] sm:$0xff] %v2136
        %2201 = vst [vmem:[%s216 + $0x168] sm:$0xff] %v2137
        %2202 = vst [vmem:[%s216 + $0x170] sm:$0xff] %v2138
        %2203 = vst [vmem:[%s216 + $0x178] sm:$0xff] %v2139
        %2204 = vst [vmem:[%s216 + $0x180] sm:$0xff] %v2140
        %2205 = vst [vmem:[%s216 + $0x188] sm:$0xff] %v2141
        %2206 = vst [vmem:[%s216 + $0x190] sm:$0xff] %v2142
        %2207 = vst [vmem:[%s216 + $0x198] sm:$0xff] %v2143
        %2208 = vst [vmem:[%s216 + $0x1a0] sm:$0xff] %v2144
        %2209 = vst [vmem:[%s216 + $0x1a8] sm:$0xff] %v2145
        %2210 = vst [vmem:[%s216 + $0x1b0] sm:$0xff] %v2146
        %2211 = vst [vmem:[%s216 + $0x1b8] sm:$0xff] %v2147
        %2212 = vst [vmem:[%s216 + $0x1c0] sm:$0xff] %v2148
        %2213 = vst [vmem:[%s216 + $0x1c8] sm:$0xff] %v2149
        %2214 = vst [vmem:[%s216 + $0x1d0] sm:$0xff] %v2150
        %2215 = vst [vmem:[%s216 + $0x1d8] sm:$0xff] %v2151
        %2216 = vst [vmem:[%s216 + $0x1e0] sm:$0xff] %v2152
        %2217 = vst [vmem:[%s216 + $0x1e8] sm:$0xff] %v2153
        %2218 = vst [vmem:[%s216 + $0x1f0] sm:$0xff] %v2154
        %2219 = vst [vmem:[%s216 + $0x1f8] sm:$0xff] %v2155
        %s2220 = sand.u32 %s118, 1
        %s2221 = scalar_lea.sflag [#allocation4], %s2220
        %s2222 = sand.u32 %s118, 1
        %s2223 = smul.addr %s2222, 512
        %s2224 = scalar_lea.vmem [#allocation5], %s2223
        // Predicated region
        $region41: #{cnn3d_forward.6} parent=35 // pred_check
          %p2225 = pneg %p128
        $region42: #{cnn3d_forward.6} parent=35 // pred_check_branch
          %2227 = sbr.rel (%p2225) target = $region44
        $region43: #{cnn3d_forward.6} parent=35 // pred_region
          %s2228 = smul.u32 64, %s21
          %s2230 = ssub.s32 8192, 8192
          %2231 = vsyncadd %s2221, %s2230
          %s2232 = smul.addr %s2228, 128
          %s2233 = scalar_lea.hbm %s4, %s2232
          %s2234 = sshll.u32 %s2224, 4
          %s2235 = int_to_ptr.vmem [resolvable:$true] %s2234
          %2240 = dma.vmem_to_hbm [thread:$0]  %s2235, 8192, %s2233, %s2221, 128, 128, 8
        $region44: #{cnn3d_forward.6} parent=35 // pred_fallthru
          _
      $region36: #{cnn3d_forward.6} parent=5 // pred_fallthru
        _
      %p2241 = scmp.le.s32.totalorder 2, %s16
      // Predicated region
      $region45: #{cnn3d_forward.6} parent=5 // pred_check
        %p2242 = pneg %p2241
      $region46: #{cnn3d_forward.6} parent=5 // pred_check_branch
        %2244 = sbr.rel (%p2242) target = $region48
      $region47: #{cnn3d_forward.6} parent=5 // pred_region
        %s2245 = ssub.s32 %s16, 2
        // Predicated region
        $region49: #{cnn3d_forward.6} parent=47 // pred_check
          %p2246 = pneg %p134
        $region50: #{cnn3d_forward.6} parent=47 // pred_check_branch
          %2248 = sbr.rel (%p2246) target = $region52
        $region51: #{cnn3d_forward.6} parent=47 // pred_region
          %s2249 = sand.u32 %s119, 1
          %s2250 = scalar_lea.sflag [#allocation4], %s2249
          %s2251 = sand.u32 %s119, 1
          %s2252 = smul.addr %s2251, 512
          %s2253 = scalar_lea.vmem [#allocation5], %s2252
          %2254 = dma.done %s2250, 8192
        $region52: #{cnn3d_forward.6} parent=47 // pred_fallthru
          _
      $region48: #{cnn3d_forward.6} parent=5 // pred_fallthru
        _
    $region6: #{cnn3d_forward.6} parent=1 // loop_footer
      %s20 = sadd.s32 1, %s16
    $region7: #{cnn3d_forward.6} parent=1 // loop_footer_branch
      %15 = sbr.rel target = $region3
    $region8: #{cnn3d_forward.6} parent=1 // loop_exit
      _
    %2255 = vsyncpa [#allocation3], 1
    %s2256 = scalar_lea.sflag [#allocation3], 1
    %2257 = vsyncpa %s2256, 1
    %2258 = vsyncpa [#allocation4], 1
    %s2259 = scalar_lea.sflag [#allocation4], 1
    %2260 = vsyncpa %s2259, 1

// kernel: cnn3d_forward.7
$region0: #{cnn3d_forward.7}
  #allocation0 [shape = 'u32[]', space=smem, size = 0x4, offset = 0x4, fixed_abs, tag = 'smem constant byte address 0x4 - core index']
  #allocation1 [shape = 'u32[144,128]{1,0:T(1,128)}', space=vmem, size = 0x12000, scoped, tag = 'internal scratch']
  %s0 = inlined_call_operand.hbm [shape: bf16[39424,768], index: 0, kind: input, shape index: {}]
  %s1 = inlined_call_operand.vmem [shape: bf16[768,128], index: 1, kind: input, shape index: {}]
  %s2 = inlined_call_operand.vmem [shape: f32[1,128], index: 2, kind: input, shape index: {}]
  %s3 = inlined_call_operand.vmem [shape: f32[1,128], index: 3, kind: input, shape index: {}]
  %s4 = inlined_call_operand.hbm [shape: f32[39424,128], index: 4, kind: output, shape index: {}]
  %s5 = sld [smem:[#allocation0]]
  $region53: #{cnn3d_forward.7} parent=0
    _
  %s7 = ssub.s32 1, %s5
  %s8 = scalar_select 0, %s7, %s5
  $region1: #{cnn3d_forward.7} parent=0
    #allocation2 [shape = 'u8[1572864]{0}', space=vmem, size = 0x180000, scoped, tag = 'input window, operand 0']
    #allocation3 [shape = 's32[2]{0}', space=sflag, size = 0x8, scoped, tag = 'scoped memory for cnn3d_forward.7']
    #allocation4 [shape = 's32[2]{0}', space=sflag, size = 0x8, scoped, tag = 'scoped memory for cnn3d_forward.7']
    #allocation5 [shape = 'u8[524288]{0}', space=vmem, size = 0x80000, scoped, tag = 'output window, operand 0']
    %9 = vsyncpa [#allocation3], 0
    %s10 = scalar_lea.sflag [#allocation3], 1
    %11 = vsyncpa %s10, 0
    %12 = vsyncpa [#allocation4], 0
    %s13 = scalar_lea.sflag [#allocation4], 1
    %14 = vsyncpa %s13, 0
    loop: start=0, step=1, limit=79
    $region2: #{cnn3d_forward.7} parent=1 // loop_pre_header
      _
    $region3: #{cnn3d_forward.7} parent=1 // loop_header
      %s16 = sphi 0, %s20
      %p17 = scmp.ge.s32.totalorder %s16, 79
      %s26 = sphi 0, %s28
      %s29 = sphi 0, %s26
      %s30 = sphi 0, %s29
      %s46 = sphi 0, %s30
      %s50 = sphi 0, %s50
      %s52 = sphi 0, %s50
      %s53 = sphi 0, %s52
      %s67 = sphi 0, %s53
      %s71 = sphi 0, %s71
      %s73 = sphi 0, %s71
      %s74 = sphi 0, %s73
      %s88 = sphi 0, %s74
      %s92 = sphi 0, %s92
      %s94 = sphi 0, %s92
      %s95 = sphi 0, %s94
      %s109 = sphi 0, %s95
      %s115 = sphi 0, %s117
      %s118 = sphi 0, %s115
      %s119 = sphi 0, %s118
      %s135 = sphi 0, %s119
    $region4: #{cnn3d_forward.7} parent=1 // loop_header_branch
      %19 = sbr.rel (%p17) target = $region8
    $region5: #{cnn3d_forward.7} parent=1 // loop_body
      %s21 = ssub.s32 %s16, 1
      %s22 = ssub.s32 %s16, 2
      %s23 = sadd.s32 %s16, 1
      %s24 = ssub.s32 %s16, %s23
      %p25 = scmp.eq.s32.totalorder %s24, 0
      %s27 = sadd.s32 %s26, 1
      %s28 = scalar_select %p25, %s26, %s27
      %p31 = pneg %p25
      %p32 = scmp.eq.s32.totalorder %s16, 76
      %p33 = por %p31, %p32
      %p34 = scmp.ne.s32.totalorder %s26, %s29
      %p35 = scmp.eq.s32.totalorder %s16, 0
      %p36 = por %p34, %p35
      %p37 = scmp.ne.s32.totalorder %s26, %s29
      %p38 = scmp.eq.s32.totalorder %s21, 76
      %p39 = por %p37, %p38
      %p40 = scmp.ne.s32.totalorder %s29, %s30
      %p41 = scmp.eq.s32.totalorder %s21, 0
      %p42 = por %p40, %p41
      %p43 = scmp.ne.s32.totalorder %s29, %s30
      %p44 = scmp.eq.s32.totalorder %s22, 76
      %p45 = por %p43, %p44
      %p47 = scmp.ne.s32.totalorder %s30, %s46
      %p48 = scmp.eq.s32.totalorder %s22, 0
      %p49 = por %p47, %p48
      %s51 = sadd.s32 %s50, 1
      %p54 = scmp.eq.s32.totalorder %s16, 76
      %p55 = scmp.ne.s32.totalorder %s50, %s52
      %p56 = scmp.eq.s32.totalorder %s16, 0
      %p57 = por %p55, %p56
      %p58 = scmp.ne.s32.totalorder %s50, %s52
      %p59 = scmp.eq.s32.totalorder %s21, 76
      %p60 = por %p58, %p59
      %p61 = scmp.ne.s32.totalorder %s52, %s53
      %p62 = scmp.eq.s32.totalorder %s21, 0
      %p63 = por %p61, %p62
      %p64 = scmp.ne.s32.totalorder %s52, %s53
      %p65 = scmp.eq.s32.totalorder %s22, 76
      %p66 = por %p64, %p65
      %p68 = scmp.ne.s32.totalorder %s53, %s67
      %p69 = scmp.eq.s32.totalorder %s22, 0
      %p70 = por %p68, %p69
      %s72 = sadd.s32 %s71, 1
      %p75 = scmp.eq.s32.totalorder %s16, 76
      %p76 = scmp.ne.s32.totalorder %s71, %s73
      %p77 = scmp.eq.s32.totalorder %s16, 0
      %p78 = por %p76, %p77
      %p79 = scmp.ne.s32.totalorder %s71, %s73
      %p80 = scmp.eq.s32.totalorder %s21, 76
      %p81 = por %p79, %p80
      %p82 = scmp.ne.s32.totalorder %s73, %s74
      %p83 = scmp.eq.s32.totalorder %s21, 0
      %p84 = por %p82, %p83
      %p85 = scmp.ne.s32.totalorder %s73, %s74
      %p86 = scmp.eq.s32.totalorder %s22, 76
      %p87 = por %p85, %p86
      %p89 = scmp.ne.s32.totalorder %s74, %s88
      %p90 = scmp.eq.s32.totalorder %s22, 0
      %p91 = por %p89, %p90
      %s93 = sadd.s32 %s92, 1
      %p96 = scmp.eq.s32.totalorder %s16, 76
      %p97 = scmp.ne.s32.totalorder %s92, %s94
      %p98 = scmp.eq.s32.totalorder %s16, 0
      %p99 = por %p97, %p98
      %p100 = scmp.ne.s32.totalorder %s92, %s94
      %p101 = scmp.eq.s32.totalorder %s21, 76
      %p102 = por %p100, %p101
      %p103 = scmp.ne.s32.totalorder %s94, %s95
      %p104 = scmp.eq.s32.totalorder %s21, 0
      %p105 = por %p103, %p104
      %p106 = scmp.ne.s32.totalorder %s94, %s95
      %p107 = scmp.eq.s32.totalorder %s22, 76
      %p108 = por %p106, %p107
      %p110 = scmp.ne.s32.totalorder %s95, %s109
      %p111 = scmp.eq.s32.totalorder %s22, 0
      %p112 = por %p110, %p111
      %s113 = ssub.s32 %s16, %s23
      %p114 = scmp.eq.s32.totalorder %s113, 0
      %s116 = sadd.s32 %s115, 1
      %s117 = scalar_select %p114, %s115, %s116
      %p120 = pneg %p114
      %p121 = scmp.eq.s32.totalorder %s16, 76
      %p122 = por %p120, %p121
      %p123 = scmp.ne.s32.totalorder %s115, %s118
      %p124 = scmp.eq.s32.totalorder %s16, 0
      %p125 = por %p123, %p124
      %p126 = scmp.ne.s32.totalorder %s115, %s118
      %p127 = scmp.eq.s32.totalorder %s21, 76
      %p128 = por %p126, %p127
      %p129 = scmp.ne.s32.totalorder %s118, %s119
      %p130 = scmp.eq.s32.totalorder %s21, 0
      %p131 = por %p129, %p130
      %p132 = scmp.ne.s32.totalorder %s118, %s119
      %p133 = scmp.eq.s32.totalorder %s22, 76
      %p134 = por %p132, %p133
      %p136 = scmp.ne.s32.totalorder %s119, %s135
      %p137 = scmp.eq.s32.totalorder %s22, 0
      %p138 = por %p136, %p137
      %p139 = scmp.le.s32.totalorder 1, %s16
      %p140 = scmp.lt.s32.totalorder %s16, 78
      %p141 = pnand %p139, %p140
      %p142 = pneg %p141
      // Predicated region
      $region9: #{cnn3d_forward.7} parent=5 // pred_check
        _
      $region10: #{cnn3d_forward.7} parent=5 // pred_check_branch
        %144 = sbr.rel (%p141) target = $region12
      $region11: #{cnn3d_forward.7} parent=5 // pred_region
        %s145 = ssub.s32 %s16, 1
        // Predicated region
        $region13: #{cnn3d_forward.7} parent=11 // pred_check
          %p146 = pneg %p63
        $region14: #{cnn3d_forward.7} parent=11 // pred_check_branch
          %148 = sbr.rel (%p146) target = $region16
        $region15: #{cnn3d_forward.7} parent=11 // pred_region
          _
        $region16: #{cnn3d_forward.7} parent=11 // pred_fallthru
          _
        // Predicated region
        $region17: #{cnn3d_forward.7} parent=11 // pred_check
          %p149 = pneg %p84
        $region18: #{cnn3d_forward.7} parent=11 // pred_check_branch
          %151 = sbr.rel (%p149) target = $region20
        $region19: #{cnn3d_forward.7} parent=11 // pred_region
          _
        $region20: #{cnn3d_forward.7} parent=11 // pred_fallthru
          _
        // Predicated region
        $region21: #{cnn3d_forward.7} parent=11 // pred_check
          %p152 = pneg %p105
        $region22: #{cnn3d_forward.7} parent=11 // pred_check_branch
          %154 = sbr.rel (%p152) target = $region24
        $region23: #{cnn3d_forward.7} parent=11 // pred_region
          _
        $region24: #{cnn3d_forward.7} parent=11 // pred_fallthru
          _
      $region12: #{cnn3d_forward.7} parent=5 // pred_fallthru
        _
      %p155 = scmp.lt.s32.totalorder %s16, 77
      // Predicated region
      $region25: #{cnn3d_forward.7} parent=5 // pred_check
        %p156 = pneg %p155
      $region26: #{cnn3d_forward.7} parent=5 // pred_check_branch
        %158 = sbr.rel (%p156) target = $region28
      $region27: #{cnn3d_forward.7} parent=5 // pred_region
        // Predicated region
        $region29: #{cnn3d_forward.7} parent=27 // pred_check
          %p159 = pneg %p36
        $region30: #{cnn3d_forward.7} parent=27 // pred_check_branch
          %161 = sbr.rel (%p159) target = $region32
        $region31: #{cnn3d_forward.7} parent=27 // pred_region
          %s162 = sand.u32 %s26, 1
          %s163 = scalar_lea.sflag [#allocation3], %s162
          %s164 = sand.u32 %s26, 1
          %s165 = smul.addr %s164, 1536
          %s166 = scalar_lea.vmem [#allocation2], %s165
          %s167 = smul.u32 64, %s16
          %s169 = ssub.s32 24576, 24576
          %170 = vsyncadd %s163, %s169
          %s171 = smul.addr %s167, 6
          %s172 = smul.addr %s171, 64
          %s173 = scalar_lea.hbm %s0, %s172
          %s174 = sshll.u32 %s166, 4
          %s175 = int_to_ptr.vmem [resolvable:$true] %s174
          %180 = dma.hbm_to_vmem [thread:$0]  %s173, 24576, %s175, %s163, 384, 384, 24
        $region32: #{cnn3d_forward.7} parent=27 // pred_fallthru
          _
      $region28: #{cnn3d_forward.7} parent=5 // pred_fallthru
        _
      %p181 = scmp.le.s32.totalorder 1, %s16
      %p182 = scmp.lt.s32.totalorder %s16, 78
      %p183 = pnand %p181, %p182
      %p184 = pneg %p183
      // Predicated region
      $region33: #{cnn3d_forward.7} parent=5 // pred_check
        _
      $region34: #{cnn3d_forward.7} parent=5 // pred_check_branch
        %186 = sbr.rel (%p183) target = $region36
      $region35: #{cnn3d_forward.7} parent=5 // pred_region
        %s187 = ssub.s32 %s16, 1
        %s188 = sand.u32 %s29, 1
        %s189 = scalar_lea.sflag [#allocation3], %s188
        %s190 = sand.u32 %s29, 1
        %s191 = smul.addr %s190, 1536
        %s192 = scalar_lea.vmem [#allocation2], %s191
        // Predicated region
        $region37: #{cnn3d_forward.7} parent=35 // pred_check
          %p193 = pneg %p42
        $region38: #{cnn3d_forward.7} parent=35 // pred_check_branch
          %195 = sbr.rel (%p193) target = $region40
        $region39: #{cnn3d_forward.7} parent=35 // pred_region
          %196 = dma.done %s189, 24576
        $region40: #{cnn3d_forward.7} parent=35 // pred_fallthru
          _
        %s197 = sand.u32 %s29, 1
        %s198 = scalar_lea.sflag [#allocation3], %s197
        %s199 = sand.u32 %s29, 1
        %s200 = smul.addr %s199, 1536
        %s201 = scalar_lea.vmem [#allocation2], %s200
        %p202 = pneg %p42
        %p203 = pneg %p39
        %p204 = pneg %p63
        %p205 = pneg %p60
        %p206 = pneg %p84
        %p207 = pneg %p81
        %p208 = pneg %p105
        %p209 = pneg %p102
        %p210 = pneg %p131
        %p211 = pneg %p128
        %s212 = sand.u32 %s118, 1
        %s213 = scalar_lea.sflag [#allocation4], %s212
        %s214 = sand.u32 %s118, 1
        %s215 = smul.addr %s214, 512
        %s216 = scalar_lea.vmem [#allocation5], %s215
        %s217 = smul.u32 64, %s21
        %s218 = smul.u32 64, %s21
        %v220 = vld [vmem:[%s192] sm:$0xff]
        %v221 = vld [vmem:[%s192 + $0x8] sm:$0xff]
        %v222 = vld [vmem:[%s192 + $0x10] sm:$0xff]
        %v223 = vld [vmem:[%s192 + $0x18] sm:$0xff]
        %v224 = vld [vmem:[%s192 + $0x20] sm:$0xff]
        %v225 = vld [vmem:[%s192 + $0x28] sm:$0xff]
        %v226 = vld [vmem:[%s192 + $0x30] sm:$0xff]
        %v227 = vld [vmem:[%s192 + $0x38] sm:$0xff]
        %v228 = vld [vmem:[%s192 + $0x40] sm:$0xff]
        %v229 = vld [vmem:[%s192 + $0x48] sm:$0xff]
        %v230 = vld [vmem:[%s192 + $0x50] sm:$0xff]
        %v231 = vld [vmem:[%s192 + $0x58] sm:$0xff]
        %v232 = vld [vmem:[%s192 + $0x60] sm:$0xff]
        %v233 = vld [vmem:[%s192 + $0x68] sm:$0xff]
        %v234 = vld [vmem:[%s192 + $0x70] sm:$0xff]
        %v235 = vld [vmem:[%s192 + $0x78] sm:$0xff]
        %v236 = vld [vmem:[%s192 + $0x80] sm:$0xff]
        %v237 = vld [vmem:[%s192 + $0x88] sm:$0xff]
        %v238 = vld [vmem:[%s192 + $0x90] sm:$0xff]
        %v239 = vld [vmem:[%s192 + $0x98] sm:$0xff]
        %v240 = vld [vmem:[%s192 + $0xa0] sm:$0xff]
        %v241 = vld [vmem:[%s192 + $0xa8] sm:$0xff]
        %v242 = vld [vmem:[%s192 + $0xb0] sm:$0xff]
        %v243 = vld [vmem:[%s192 + $0xb8] sm:$0xff]
        %v244 = vld [vmem:[%s192 + $0xc0] sm:$0xff]
        %v245 = vld [vmem:[%s192 + $0xc8] sm:$0xff]
        %v246 = vld [vmem:[%s192 + $0xd0] sm:$0xff]
        %v247 = vld [vmem:[%s192 + $0xd8] sm:$0xff]
        %v248 = vld [vmem:[%s192 + $0xe0] sm:$0xff]
        %v249 = vld [vmem:[%s192 + $0xe8] sm:$0xff]
        %v250 = vld [vmem:[%s192 + $0xf0] sm:$0xff]
        %v251 = vld [vmem:[%s192 + $0xf8] sm:$0xff]
        %v252 = vld [vmem:[%s192 + $0x100] sm:$0xff]
        %v253 = vld [vmem:[%s192 + $0x108] sm:$0xff]
        %v254 = vld [vmem:[%s192 + $0x110] sm:$0xff]
        %v255 = vld [vmem:[%s192 + $0x118] sm:$0xff]
        %v256 = vld [vmem:[%s192 + $0x120] sm:$0xff]
        %v257 = vld [vmem:[%s192 + $0x128] sm:$0xff]
        %v258 = vld [vmem:[%s192 + $0x130] sm:$0xff]
        %v259 = vld [vmem:[%s192 + $0x138] sm:$0xff]
        %v260 = vld [vmem:[%s192 + $0x140] sm:$0xff]
        %v261 = vld [vmem:[%s192 + $0x148] sm:$0xff]
        %v262 = vld [vmem:[%s192 + $0x150] sm:$0xff]
        %v263 = vld [vmem:[%s192 + $0x158] sm:$0xff]
        %v264 = vld [vmem:[%s192 + $0x160] sm:$0xff]
        %v265 = vld [vmem:[%s192 + $0x168] sm:$0xff]
        %v266 = vld [vmem:[%s192 + $0x170] sm:$0xff]
        %v267 = vld [vmem:[%s192 + $0x178] sm:$0xff]
        %v268 = vld [vmem:[%s192 + $0x180] sm:$0xff]
        %v269 = vld [vmem:[%s192 + $0x188] sm:$0xff]
        %v270 = vld [vmem:[%s192 + $0x190] sm:$0xff]
        %v271 = vld [vmem:[%s192 + $0x198] sm:$0xff]
        %v272 = vld [vmem:[%s192 + $0x1a0] sm:$0xff]
        %v273 = vld [vmem:[%s192 + $0x1a8] sm:$0xff]
        %v274 = vld [vmem:[%s192 + $0x1b0] sm:$0xff]
        %v275 = vld [vmem:[%s192 + $0x1b8] sm:$0xff]
        %v276 = vld [vmem:[%s192 + $0x1c0] sm:$0xff]
        %v277 = vld [vmem:[%s192 + $0x1c8] sm:$0xff]
        %v278 = vld [vmem:[%s192 + $0x1d0] sm:$0xff]
        %v279 = vld [vmem:[%s192 + $0x1d8] sm:$0xff]
        %v280 = vld [vmem:[%s192 + $0x1e0] sm:$0xff]
        %v281 = vld [vmem:[%s192 + $0x1e8] sm:$0xff]
        %v282 = vld [vmem:[%s192 + $0x1f0] sm:$0xff]
        %v283 = vld [vmem:[%s192 + $0x1f8] sm:$0xff]
        %v284 = vld [vmem:[%s192 + $0x200] sm:$0xff]
        %v285 = vld [vmem:[%s192 + $0x208] sm:$0xff]
        %v286 = vld [vmem:[%s192 + $0x210] sm:$0xff]
        %v287 = vld [vmem:[%s192 + $0x218] sm:$0xff]
        %v288 = vld [vmem:[%s192 + $0x220] sm:$0xff]
        %v289 = vld [vmem:[%s192 + $0x228] sm:$0xff]
        %v290 = vld [vmem:[%s192 + $0x230] sm:$0xff]
        %v291 = vld [vmem:[%s192 + $0x238] sm:$0xff]
        %v292 = vld [vmem:[%s192 + $0x240] sm:$0xff]
        %v293 = vld [vmem:[%s192 + $0x248] sm:$0xff]
        %v294 = vld [vmem:[%s192 + $0x250] sm:$0xff]
        %v295 = vld [vmem:[%s192 + $0x258] sm:$0xff]
        %v296 = vld [vmem:[%s192 + $0x260] sm:$0xff]
        %v297 = vld [vmem:[%s192 + $0x268] sm:$0xff]
        %v298 = vld [vmem:[%s192 + $0x270] sm:$0xff]
        %v299 = vld [vmem:[%s192 + $0x278] sm:$0xff]
        %v300 = vld [vmem:[%s192 + $0x280] sm:$0xff]
        %v301 = vld [vmem:[%s192 + $0x288] sm:$0xff]
        %v302 = vld [vmem:[%s192 + $0x290] sm:$0xff]
        %v303 = vld [vmem:[%s192 + $0x298] sm:$0xff]
        %v304 = vld [vmem:[%s192 + $0x2a0] sm:$0xff]
        %v305 = vld [vmem:[%s192 + $0x2a8] sm:$0xff]
        %v306 = vld [vmem:[%s192 + $0x2b0] sm:$0xff]
        %v307 = vld [vmem:[%s192 + $0x2b8] sm:$0xff]
        %v308 = vld [vmem:[%s192 + $0x2c0] sm:$0xff]
        %v309 = vld [vmem:[%s192 + $0x2c8] sm:$0xff]
        %v310 = vld [vmem:[%s192 + $0x2d0] sm:$0xff]
        %v311 = vld [vmem:[%s192 + $0x2d8] sm:$0xff]
        %v312 = vld [vmem:[%s192 + $0x2e0] sm:$0xff]
        %v313 = vld [vmem:[%s192 + $0x2e8] sm:$0xff]
        %v314 = vld [vmem:[%s192 + $0x2f0] sm:$0xff]
        %v315 = vld [vmem:[%s192 + $0x2f8] sm:$0xff]
        %v316 = vld [vmem:[%s192 + $0x300] sm:$0xff]
        %v317 = vld [vmem:[%s192 + $0x308] sm:$0xff]
        %v318 = vld [vmem:[%s192 + $0x310] sm:$0xff]
        %v319 = vld [vmem:[%s192 + $0x318] sm:$0xff]
        %v320 = vld [vmem:[%s192 + $0x320] sm:$0xff]
        %v321 = vld [vmem:[%s192 + $0x328] sm:$0xff]
        %v322 = vld [vmem:[%s192 + $0x330] sm:$0xff]
        %v323 = vld [vmem:[%s192 + $0x338] sm:$0xff]
        %v324 = vld [vmem:[%s192 + $0x340] sm:$0xff]
        %v325 = vld [vmem:[%s192 + $0x348] sm:$0xff]
        %v326 = vld [vmem:[%s192 + $0x350] sm:$0xff]
        %v327 = vld [vmem:[%s192 + $0x358] sm:$0xff]
        %v328 = vld [vmem:[%s192 + $0x360] sm:$0xff]
        %v329 = vld [vmem:[%s192 + $0x368] sm:$0xff]
        %v330 = vld [vmem:[%s192 + $0x370] sm:$0xff]
        %v331 = vld [vmem:[%s192 + $0x378] sm:$0xff]
        %v332 = vld [vmem:[%s192 + $0x380] sm:$0xff]
        %v333 = vld [vmem:[%s192 + $0x388] sm:$0xff]
        %v334 = vld [vmem:[%s192 + $0x390] sm:$0xff]
        %v335 = vld [vmem:[%s192 + $0x398] sm:$0xff]
        %v336 = vld [vmem:[%s192 + $0x3a0] sm:$0xff]
        %v337 = vld [vmem:[%s192 + $0x3a8] sm:$0xff]
        %v338 = vld [vmem:[%s192 + $0x3b0] sm:$0xff]
        %v339 = vld [vmem:[%s192 + $0x3b8] sm:$0xff]
        %v340 = vld [vmem:[%s192 + $0x3c0] sm:$0xff]
        %v341 = vld [vmem:[%s192 + $0x3c8] sm:$0xff]
        %v342 = vld [vmem:[%s192 + $0x3d0] sm:$0xff]
        %v343 = vld [vmem:[%s192 + $0x3d8] sm:$0xff]
        %v344 = vld [vmem:[%s192 + $0x3e0] sm:$0xff]
        %v345 = vld [vmem:[%s192 + $0x3e8] sm:$0xff]
        %v346 = vld [vmem:[%s192 + $0x3f0] sm:$0xff]
        %v347 = vld [vmem:[%s192 + $0x3f8] sm:$0xff]
        %v348 = vld [vmem:[%s192 + $0x400] sm:$0xff]
        %v349 = vld [vmem:[%s192 + $0x408] sm:$0xff]
        %v350 = vld [vmem:[%s192 + $0x410] sm:$0xff]
        %v351 = vld [vmem:[%s192 + $0x418] sm:$0xff]
        %v352 = vld [vmem:[%s192 + $0x420] sm:$0xff]
        %v353 = vld [vmem:[%s192 + $0x428] sm:$0xff]
        %v354 = vld [vmem:[%s192 + $0x430] sm:$0xff]
        %v355 = vld [vmem:[%s192 + $0x438] sm:$0xff]
        %v356 = vld [vmem:[%s192 + $0x440] sm:$0xff]
        %v357 = vld [vmem:[%s192 + $0x448] sm:$0xff]
        %v358 = vld [vmem:[%s192 + $0x450] sm:$0xff]
        %v359 = vld [vmem:[%s192 + $0x458] sm:$0xff]
        %v360 = vld [vmem:[%s192 + $0x460] sm:$0xff]
        %v361 = vld [vmem:[%s192 + $0x468] sm:$0xff]
        %v362 = vld [vmem:[%s192 + $0x470] sm:$0xff]
        %v363 = vld [vmem:[%s192 + $0x478] sm:$0xff]
        %v364 = vld [vmem:[%s192 + $0x480] sm:$0xff]
        %v365 = vld [vmem:[%s192 + $0x488] sm:$0xff]
        %v366 = vld [vmem:[%s192 + $0x490] sm:$0xff]
        %v367 = vld [vmem:[%s192 + $0x498] sm:$0xff]
        %v368 = vld [vmem:[%s192 + $0x4a0] sm:$0xff]
        %v369 = vld [vmem:[%s192 + $0x4a8] sm:$0xff]
        %v370 = vld [vmem:[%s192 + $0x4b0] sm:$0xff]
        %v371 = vld [vmem:[%s192 + $0x4b8] sm:$0xff]
        %v372 = vld [vmem:[%s192 + $0x4c0] sm:$0xff]
        %v373 = vld [vmem:[%s192 + $0x4c8] sm:$0xff]
        %v374 = vld [vmem:[%s192 + $0x4d0] sm:$0xff]
        %v375 = vld [vmem:[%s192 + $0x4d8] sm:$0xff]
        %v376 = vld [vmem:[%s192 + $0x4e0] sm:$0xff]
        %v377 = vld [vmem:[%s192 + $0x4e8] sm:$0xff]
        %v378 = vld [vmem:[%s192 + $0x4f0] sm:$0xff]
        %v379 = vld [vmem:[%s192 + $0x4f8] sm:$0xff]
        %v380 = vld [vmem:[%s192 + $0x500] sm:$0xff]
        %v381 = vld [vmem:[%s192 + $0x508] sm:$0xff]
        %v382 = vld [vmem:[%s192 + $0x510] sm:$0xff]
        %v383 = vld [vmem:[%s192 + $0x518] sm:$0xff]
        %v384 = vld [vmem:[%s192 + $0x520] sm:$0xff]
        %v385 = vld [vmem:[%s192 + $0x528] sm:$0xff]
        %v386 = vld [vmem:[%s192 + $0x530] sm:$0xff]
        %v387 = vld [vmem:[%s192 + $0x538] sm:$0xff]
        %v388 = vld [vmem:[%s192 + $0x540] sm:$0xff]
        %v389 = vld [vmem:[%s192 + $0x548] sm:$0xff]
        %v390 = vld [vmem:[%s192 + $0x550] sm:$0xff]
        %v391 = vld [vmem:[%s192 + $0x558] sm:$0xff]
        %v392 = vld [vmem:[%s192 + $0x560] sm:$0xff]
        %v393 = vld [vmem:[%s192 + $0x568] sm:$0xff]
        %v394 = vld [vmem:[%s192 + $0x570] sm:$0xff]
        %v395 = vld [vmem:[%s192 + $0x578] sm:$0xff]
        %v396 = vld [vmem:[%s192 + $0x580] sm:$0xff]
        %v397 = vld [vmem:[%s192 + $0x588] sm:$0xff]
        %v398 = vld [vmem:[%s192 + $0x590] sm:$0xff]
        %v399 = vld [vmem:[%s192 + $0x598] sm:$0xff]
        %v400 = vld [vmem:[%s192 + $0x5a0] sm:$0xff]
        %v401 = vld [vmem:[%s192 + $0x5a8] sm:$0xff]
        %v402 = vld [vmem:[%s192 + $0x5b0] sm:$0xff]
        %v403 = vld [vmem:[%s192 + $0x5b8] sm:$0xff]
        %v404 = vld [vmem:[%s192 + $0x5c0] sm:$0xff]
        %v405 = vld [vmem:[%s192 + $0x5c8] sm:$0xff]
        %v406 = vld [vmem:[%s192 + $0x5d0] sm:$0xff]
        %v407 = vld [vmem:[%s192 + $0x5d8] sm:$0xff]
        %v408 = vld [vmem:[%s192 + $0x5e0] sm:$0xff]
        %v409 = vld [vmem:[%s192 + $0x5e8] sm:$0xff]
        %v410 = vld [vmem:[%s192 + $0x5f0] sm:$0xff]
        %v411 = vld [vmem:[%s192 + $0x5f8] sm:$0xff]
        %v412 = vld [vmem:[%s1] sm:$0xf]
        %v413 = vld [vmem:[%s1 + $0x4] sm:$0xf]
        %v414 = vld [vmem:[%s1 + $0x8] sm:$0xf]
        %v415 = vld [vmem:[%s1 + $0xc] sm:$0xf]
        %v416 = vld [vmem:[%s1 + $0x10] sm:$0xf]
        %v417 = vld [vmem:[%s1 + $0x14] sm:$0xf]
        %v418 = vld [vmem:[%s1 + $0x18] sm:$0xf]
        %v419 = vld [vmem:[%s1 + $0x1c] sm:$0xf]
        %v420 = vld [vmem:[%s1 + $0x20] sm:$0xf]
        %v421 = vld [vmem:[%s1 + $0x24] sm:$0xf]
        %v422 = vld [vmem:[%s1 + $0x28] sm:$0xf]
        %v423 = vld [vmem:[%s1 + $0x2c] sm:$0xf]
        %v424 = vld [vmem:[%s1 + $0x30] sm:$0xf]
        %v425 = vld [vmem:[%s1 + $0x34] sm:$0xf]
        %v426 = vld [vmem:[%s1 + $0x38] sm:$0xf]
        %v427 = vld [vmem:[%s1 + $0x3c] sm:$0xf]
        %v428 = vld [vmem:[%s1 + $0x40] sm:$0xf]
        %v429 = vld [vmem:[%s1 + $0x44] sm:$0xf]
        %v430 = vld [vmem:[%s1 + $0x48] sm:$0xf]
        %v431 = vld [vmem:[%s1 + $0x4c] sm:$0xf]
        %v432 = vld [vmem:[%s1 + $0x50] sm:$0xf]
        %v433 = vld [vmem:[%s1 + $0x54] sm:$0xf]
        %v434 = vld [vmem:[%s1 + $0x58] sm:$0xf]
        %v435 = vld [vmem:[%s1 + $0x5c] sm:$0xf]
        %v436 = vld [vmem:[%s1 + $0x60] sm:$0xf]
        %v437 = vld [vmem:[%s1 + $0x64] sm:$0xf]
        %v438 = vld [vmem:[%s1 + $0x68] sm:$0xf]
        %v439 = vld [vmem:[%s1 + $0x6c] sm:$0xf]
        %v440 = vld [vmem:[%s1 + $0x70] sm:$0xf]
        %v441 = vld [vmem:[%s1 + $0x74] sm:$0xf]
        %v442 = vld [vmem:[%s1 + $0x78] sm:$0xf]
        %v443 = vld [vmem:[%s1 + $0x7c] sm:$0xf]
        %v444 = vld [vmem:[%s1 + $0x80] sm:$0xf]
        %v445 = vld [vmem:[%s1 + $0x84] sm:$0xf]
        %v446 = vld [vmem:[%s1 + $0x88] sm:$0xf]
        %v447 = vld [vmem:[%s1 + $0x8c] sm:$0xf]
        %v448 = vld [vmem:[%s1 + $0x90] sm:$0xf]
        %v449 = vld [vmem:[%s1 + $0x94] sm:$0xf]
        %v450 = vld [vmem:[%s1 + $0x98] sm:$0xf]
        %v451 = vld [vmem:[%s1 + $0x9c] sm:$0xf]
        %v452 = vld [vmem:[%s1 + $0xa0] sm:$0xf]
        %v453 = vld [vmem:[%s1 + $0xa4] sm:$0xf]
        %v454 = vld [vmem:[%s1 + $0xa8] sm:$0xf]
        %v455 = vld [vmem:[%s1 + $0xac] sm:$0xf]
        %v456 = vld [vmem:[%s1 + $0xb0] sm:$0xf]
        %v457 = vld [vmem:[%s1 + $0xb4] sm:$0xf]
        %v458 = vld [vmem:[%s1 + $0xb8] sm:$0xf]
        %v459 = vld [vmem:[%s1 + $0xbc] sm:$0xf]
        %v460 = vld [vmem:[%s1 + $0xc0] sm:$0xf]
        %v461 = vld [vmem:[%s1 + $0xc4] sm:$0xf]
        %v462 = vld [vmem:[%s1 + $0xc8] sm:$0xf]
        %v463 = vld [vmem:[%s1 + $0xcc] sm:$0xf]
        %v464 = vld [vmem:[%s1 + $0xd0] sm:$0xf]
        %v465 = vld [vmem:[%s1 + $0xd4] sm:$0xf]
        %v466 = vld [vmem:[%s1 + $0xd8] sm:$0xf]
        %v467 = vld [vmem:[%s1 + $0xdc] sm:$0xf]
        %v468 = vld [vmem:[%s1 + $0xe0] sm:$0xf]
        %v469 = vld [vmem:[%s1 + $0xe4] sm:$0xf]
        %v470 = vld [vmem:[%s1 + $0xe8] sm:$0xf]
        %v471 = vld [vmem:[%s1 + $0xec] sm:$0xf]
        %v472 = vld [vmem:[%s1 + $0xf0] sm:$0xf]
        %v473 = vld [vmem:[%s1 + $0xf4] sm:$0xf]
        %v474 = vld [vmem:[%s1 + $0xf8] sm:$0xf]
        %v475 = vld [vmem:[%s1 + $0xfc] sm:$0xf]
        %v476 = vld [vmem:[%s1 + $0x100] sm:$0xf]
        %v477 = vld [vmem:[%s1 + $0x104] sm:$0xf]
        %v478 = vld [vmem:[%s1 + $0x108] sm:$0xf]
        %v479 = vld [vmem:[%s1 + $0x10c] sm:$0xf]
        %v480 = vld [vmem:[%s1 + $0x110] sm:$0xf]
        %v481 = vld [vmem:[%s1 + $0x114] sm:$0xf]
        %v482 = vld [vmem:[%s1 + $0x118] sm:$0xf]
        %v483 = vld [vmem:[%s1 + $0x11c] sm:$0xf]
        %v484 = vld [vmem:[%s1 + $0x120] sm:$0xf]
        %v485 = vld [vmem:[%s1 + $0x124] sm:$0xf]
        %v486 = vld [vmem:[%s1 + $0x128] sm:$0xf]
        %v487 = vld [vmem:[%s1 + $0x12c] sm:$0xf]
        %v488 = vld [vmem:[%s1 + $0x130] sm:$0xf]
        %v489 = vld [vmem:[%s1 + $0x134] sm:$0xf]
        %v490 = vld [vmem:[%s1 + $0x138] sm:$0xf]
        %v491 = vld [vmem:[%s1 + $0x13c] sm:$0xf]
        %v492 = vld [vmem:[%s1 + $0x140] sm:$0xf]
        %v493 = vld [vmem:[%s1 + $0x144] sm:$0xf]
        %v494 = vld [vmem:[%s1 + $0x148] sm:$0xf]
        %v495 = vld [vmem:[%s1 + $0x14c] sm:$0xf]
        %v496 = vld [vmem:[%s1 + $0x150] sm:$0xf]
        %v497 = vld [vmem:[%s1 + $0x154] sm:$0xf]
        %v498 = vld [vmem:[%s1 + $0x158] sm:$0xf]
        %v499 = vld [vmem:[%s1 + $0x15c] sm:$0xf]
        %v500 = vld [vmem:[%s1 + $0x160] sm:$0xf]
        %v501 = vld [vmem:[%s1 + $0x164] sm:$0xf]
        %v502 = vld [vmem:[%s1 + $0x168] sm:$0xf]
        %v503 = vld [vmem:[%s1 + $0x16c] sm:$0xf]
        %v504 = vld [vmem:[%s1 + $0x170] sm:$0xf]
        %v505 = vld [vmem:[%s1 + $0x174] sm:$0xf]
        %v506 = vld [vmem:[%s1 + $0x178] sm:$0xf]
        %v507 = vld [vmem:[%s1 + $0x17c] sm:$0xf]
        %v700 = vunpack.c.l.b16 %v220
        %v701 = vunpack.c.h.b16 %v220
        %v702 = vunpack.c.l.b16 %v221
        %v703 = vunpack.c.h.b16 %v221
        %v704 = vunpack.c.l.b16 %v222
        %v705 = vunpack.c.h.b16 %v222
        %v706 = vunpack.c.l.b16 %v223
        %v707 = vunpack.c.h.b16 %v223
        %v708 = vunpack.c.l.b16 %v224
        %v709 = vunpack.c.h.b16 %v224
        %v710 = vunpack.c.l.b16 %v225
        %v711 = vunpack.c.h.b16 %v225
        %v712 = vunpack.c.l.b16 %v226
        %v713 = vunpack.c.h.b16 %v226
        %v714 = vunpack.c.l.b16 %v227
        %v715 = vunpack.c.h.b16 %v227
        %v716 = vunpack.c.l.b16 %v228
        %v717 = vunpack.c.h.b16 %v228
        %v718 = vunpack.c.l.b16 %v229
        %v719 = vunpack.c.h.b16 %v229
        %v720 = vunpack.c.l.b16 %v230
        %v721 = vunpack.c.h.b16 %v230
        %v722 = vunpack.c.l.b16 %v231
        %v723 = vunpack.c.h.b16 %v231
        %v724 = vunpack.c.l.b16 %v232
        %v725 = vunpack.c.h.b16 %v232
        %v726 = vunpack.c.l.b16 %v233
        %v727 = vunpack.c.h.b16 %v233
        %v728 = vunpack.c.l.b16 %v234
        %v729 = vunpack.c.h.b16 %v234
        %v730 = vunpack.c.l.b16 %v235
        %v731 = vunpack.c.h.b16 %v235
        %v732 = vunpack.c.l.b16 %v236
        %v733 = vunpack.c.h.b16 %v236
        %v734 = vunpack.c.l.b16 %v237
        %v735 = vunpack.c.h.b16 %v237
        %v736 = vunpack.c.l.b16 %v238
        %v737 = vunpack.c.h.b16 %v238
        %v738 = vunpack.c.l.b16 %v239
        %v739 = vunpack.c.h.b16 %v239
        %v740 = vunpack.c.l.b16 %v240
        %v741 = vunpack.c.h.b16 %v240
        %v742 = vunpack.c.l.b16 %v241
        %v743 = vunpack.c.h.b16 %v241
        %v744 = vunpack.c.l.b16 %v242
        %v745 = vunpack.c.h.b16 %v242
        %v746 = vunpack.c.l.b16 %v243
        %v747 = vunpack.c.h.b16 %v243
        %v748 = vunpack.c.l.b16 %v244
        %v749 = vunpack.c.h.b16 %v244
        %v750 = vunpack.c.l.b16 %v245
        %v751 = vunpack.c.h.b16 %v245
        %v752 = vunpack.c.l.b16 %v246
        %v753 = vunpack.c.h.b16 %v246
        %v754 = vunpack.c.l.b16 %v247
        %v755 = vunpack.c.h.b16 %v247
        %v756 = vunpack.c.l.b16 %v248
        %v757 = vunpack.c.h.b16 %v248
        %v758 = vunpack.c.l.b16 %v249
        %v759 = vunpack.c.h.b16 %v249
        %v760 = vunpack.c.l.b16 %v250
        %v761 = vunpack.c.h.b16 %v250
        %v762 = vunpack.c.l.b16 %v251
        %v763 = vunpack.c.h.b16 %v251
        %v764 = vunpack.c.l.b16 %v252
        %v765 = vunpack.c.h.b16 %v252
        %v766 = vunpack.c.l.b16 %v253
        %v767 = vunpack.c.h.b16 %v253
        %v768 = vunpack.c.l.b16 %v254
        %v769 = vunpack.c.h.b16 %v254
        %v770 = vunpack.c.l.b16 %v255
        %v771 = vunpack.c.h.b16 %v255
        %v772 = vunpack.c.l.b16 %v256
        %v773 = vunpack.c.h.b16 %v256
        %v774 = vunpack.c.l.b16 %v257
        %v775 = vunpack.c.h.b16 %v257
        %v776 = vunpack.c.l.b16 %v258
        %v777 = vunpack.c.h.b16 %v258
        %v778 = vunpack.c.l.b16 %v259
        %v779 = vunpack.c.h.b16 %v259
        %v780 = vunpack.c.l.b16 %v260
        %v781 = vunpack.c.h.b16 %v260
        %v782 = vunpack.c.l.b16 %v261
        %v783 = vunpack.c.h.b16 %v261
        %v784 = vunpack.c.l.b16 %v262
        %v785 = vunpack.c.h.b16 %v262
        %v786 = vunpack.c.l.b16 %v263
        %v787 = vunpack.c.h.b16 %v263
        %v788 = vunpack.c.l.b16 %v264
        %v789 = vunpack.c.h.b16 %v264
        %v790 = vunpack.c.l.b16 %v265
        %v791 = vunpack.c.h.b16 %v265
        %v792 = vunpack.c.l.b16 %v266
        %v793 = vunpack.c.h.b16 %v266
        %v794 = vunpack.c.l.b16 %v267
        %v795 = vunpack.c.h.b16 %v267
        %v796 = vunpack.c.l.b16 %v268
        %v797 = vunpack.c.h.b16 %v268
        %v798 = vunpack.c.l.b16 %v269
        %v799 = vunpack.c.h.b16 %v269
        %v800 = vunpack.c.l.b16 %v270
        %v801 = vunpack.c.h.b16 %v270
        %v802 = vunpack.c.l.b16 %v271
        %v803 = vunpack.c.h.b16 %v271
        %v804 = vunpack.c.l.b16 %v272
        %v805 = vunpack.c.h.b16 %v272
        %v806 = vunpack.c.l.b16 %v273
        %v807 = vunpack.c.h.b16 %v273
        %v808 = vunpack.c.l.b16 %v274
        %v809 = vunpack.c.h.b16 %v274
        %v810 = vunpack.c.l.b16 %v275
        %v811 = vunpack.c.h.b16 %v275
        %v812 = vunpack.c.l.b16 %v276
        %v813 = vunpack.c.h.b16 %v276
        %v814 = vunpack.c.l.b16 %v277
        %v815 = vunpack.c.h.b16 %v277
        %v816 = vunpack.c.l.b16 %v278
        %v817 = vunpack.c.h.b16 %v278
        %v818 = vunpack.c.l.b16 %v279
        %v819 = vunpack.c.h.b16 %v279
        %v820 = vunpack.c.l.b16 %v280
        %v821 = vunpack.c.h.b16 %v280
        %v822 = vunpack.c.l.b16 %v281
        %v823 = vunpack.c.h.b16 %v281
        %v824 = vunpack.c.l.b16 %v282
        %v825 = vunpack.c.h.b16 %v282
        %v826 = vunpack.c.l.b16 %v283
        %v827 = vunpack.c.h.b16 %v283
        %v828 = vunpack.c.l.b16 %v284
        %v829 = vunpack.c.h.b16 %v284
        %v830 = vunpack.c.l.b16 %v285
        %v831 = vunpack.c.h.b16 %v285
        %v832 = vunpack.c.l.b16 %v286
        %v833 = vunpack.c.h.b16 %v286
        %v834 = vunpack.c.l.b16 %v287
        %v835 = vunpack.c.h.b16 %v287
        %v836 = vunpack.c.l.b16 %v288
        %v837 = vunpack.c.h.b16 %v288
        %v838 = vunpack.c.l.b16 %v289
        %v839 = vunpack.c.h.b16 %v289
        %v840 = vunpack.c.l.b16 %v290
        %v841 = vunpack.c.h.b16 %v290
        %v842 = vunpack.c.l.b16 %v291
        %v843 = vunpack.c.h.b16 %v291
        %v844 = vunpack.c.l.b16 %v292
        %v845 = vunpack.c.h.b16 %v292
        %v846 = vunpack.c.l.b16 %v293
        %v847 = vunpack.c.h.b16 %v293
        %v848 = vunpack.c.l.b16 %v294
        %v849 = vunpack.c.h.b16 %v294
        %v850 = vunpack.c.l.b16 %v295
        %v851 = vunpack.c.h.b16 %v295
        %v852 = vunpack.c.l.b16 %v296
        %v853 = vunpack.c.h.b16 %v296
        %v854 = vunpack.c.l.b16 %v297
        %v855 = vunpack.c.h.b16 %v297
        %v856 = vunpack.c.l.b16 %v298
        %v857 = vunpack.c.h.b16 %v298
        %v858 = vunpack.c.l.b16 %v299
        %v859 = vunpack.c.h.b16 %v299
        %v860 = vunpack.c.l.b16 %v300
        %v861 = vunpack.c.h.b16 %v300
        %v862 = vunpack.c.l.b16 %v301
        %v863 = vunpack.c.h.b16 %v301
        %v864 = vunpack.c.l.b16 %v302
        %v865 = vunpack.c.h.b16 %v302
        %v866 = vunpack.c.l.b16 %v303
        %v867 = vunpack.c.h.b16 %v303
        %v868 = vunpack.c.l.b16 %v304
        %v869 = vunpack.c.h.b16 %v304
        %v870 = vunpack.c.l.b16 %v305
        %v871 = vunpack.c.h.b16 %v305
        %v872 = vunpack.c.l.b16 %v306
        %v873 = vunpack.c.h.b16 %v306
        %v874 = vunpack.c.l.b16 %v307
        %v875 = vunpack.c.h.b16 %v307
        %v876 = vunpack.c.l.b16 %v308
        %v877 = vunpack.c.h.b16 %v308
        %v878 = vunpack.c.l.b16 %v309
        %v879 = vunpack.c.h.b16 %v309
        %v880 = vunpack.c.l.b16 %v310
        %v881 = vunpack.c.h.b16 %v310
        %v882 = vunpack.c.l.b16 %v311
        %v883 = vunpack.c.h.b16 %v311
        %v884 = vunpack.c.l.b16 %v312
        %v885 = vunpack.c.h.b16 %v312
        %v886 = vunpack.c.l.b16 %v313
        %v887 = vunpack.c.h.b16 %v313
        %v888 = vunpack.c.l.b16 %v314
        %v889 = vunpack.c.h.b16 %v314
        %v890 = vunpack.c.l.b16 %v315
        %v891 = vunpack.c.h.b16 %v315
        %v892 = vunpack.c.l.b16 %v316
        %v893 = vunpack.c.h.b16 %v316
        %v894 = vunpack.c.l.b16 %v317
        %v895 = vunpack.c.h.b16 %v317
        %v896 = vunpack.c.l.b16 %v318
        %v897 = vunpack.c.h.b16 %v318
        %v898 = vunpack.c.l.b16 %v319
        %v899 = vunpack.c.h.b16 %v319
        %v900 = vunpack.c.l.b16 %v320
        %v901 = vunpack.c.h.b16 %v320
        %v902 = vunpack.c.l.b16 %v321
        %v903 = vunpack.c.h.b16 %v321
        %v904 = vunpack.c.l.b16 %v322
        %v905 = vunpack.c.h.b16 %v322
        %v906 = vunpack.c.l.b16 %v323
        %v907 = vunpack.c.h.b16 %v323
        %v908 = vunpack.c.l.b16 %v324
        %v909 = vunpack.c.h.b16 %v324
        %v910 = vunpack.c.l.b16 %v325
        %v911 = vunpack.c.h.b16 %v325
        %v912 = vunpack.c.l.b16 %v326
        %v913 = vunpack.c.h.b16 %v326
        %v914 = vunpack.c.l.b16 %v327
        %v915 = vunpack.c.h.b16 %v327
        %v916 = vunpack.c.l.b16 %v328
        %v917 = vunpack.c.h.b16 %v328
        %v918 = vunpack.c.l.b16 %v329
        %v919 = vunpack.c.h.b16 %v329
        %v920 = vunpack.c.l.b16 %v330
        %v921 = vunpack.c.h.b16 %v330
        %v922 = vunpack.c.l.b16 %v331
        %v923 = vunpack.c.h.b16 %v331
        %v924 = vunpack.c.l.b16 %v332
        %v925 = vunpack.c.h.b16 %v332
        %v926 = vunpack.c.l.b16 %v333
        %v927 = vunpack.c.h.b16 %v333
        %v928 = vunpack.c.l.b16 %v334
        %v929 = vunpack.c.h.b16 %v334
        %v930 = vunpack.c.l.b16 %v335
        %v931 = vunpack.c.h.b16 %v335
        %v932 = vunpack.c.l.b16 %v336
        %v933 = vunpack.c.h.b16 %v336
        %v934 = vunpack.c.l.b16 %v337
        %v935 = vunpack.c.h.b16 %v337
        %v936 = vunpack.c.l.b16 %v338
        %v937 = vunpack.c.h.b16 %v338
        %v938 = vunpack.c.l.b16 %v339
        %v939 = vunpack.c.h.b16 %v339
        %v940 = vunpack.c.l.b16 %v340
        %v941 = vunpack.c.h.b16 %v340
        %v942 = vunpack.c.l.b16 %v341
        %v943 = vunpack.c.h.b16 %v341
        %v944 = vunpack.c.l.b16 %v342
        %v945 = vunpack.c.h.b16 %v342
        %v946 = vunpack.c.l.b16 %v343
        %v947 = vunpack.c.h.b16 %v343
        %v948 = vunpack.c.l.b16 %v344
        %v949 = vunpack.c.h.b16 %v344
        %v950 = vunpack.c.l.b16 %v345
        %v951 = vunpack.c.h.b16 %v345
        %v952 = vunpack.c.l.b16 %v346
        %v953 = vunpack.c.h.b16 %v346
        %v954 = vunpack.c.l.b16 %v347
        %v955 = vunpack.c.h.b16 %v347
        %v956 = vunpack.c.l.b16 %v348
        %v957 = vunpack.c.h.b16 %v348
        %v958 = vunpack.c.l.b16 %v349
        %v959 = vunpack.c.h.b16 %v349
        %v960 = vunpack.c.l.b16 %v350
        %v961 = vunpack.c.h.b16 %v350
        %v962 = vunpack.c.l.b16 %v351
        %v963 = vunpack.c.h.b16 %v351
        %v964 = vunpack.c.l.b16 %v352
        %v965 = vunpack.c.h.b16 %v352
        %v966 = vunpack.c.l.b16 %v353
        %v967 = vunpack.c.h.b16 %v353
        %v968 = vunpack.c.l.b16 %v354
        %v969 = vunpack.c.h.b16 %v354
        %v970 = vunpack.c.l.b16 %v355
        %v971 = vunpack.c.h.b16 %v355
        %v972 = vunpack.c.l.b16 %v356
        %v973 = vunpack.c.h.b16 %v356
        %v974 = vunpack.c.l.b16 %v357
        %v975 = vunpack.c.h.b16 %v357
        %v976 = vunpack.c.l.b16 %v358
        %v977 = vunpack.c.h.b16 %v358
        %v978 = vunpack.c.l.b16 %v359
        %v979 = vunpack.c.h.b16 %v359
        %v980 = vunpack.c.l.b16 %v360
        %v981 = vunpack.c.h.b16 %v360
        %v982 = vunpack.c.l.b16 %v361
        %v983 = vunpack.c.h.b16 %v361
        %v984 = vunpack.c.l.b16 %v362
        %v985 = vunpack.c.h.b16 %v362
        %v986 = vunpack.c.l.b16 %v363
        %v987 = vunpack.c.h.b16 %v363
        %v988 = vunpack.c.l.b16 %v364
        %v989 = vunpack.c.h.b16 %v364
        %v990 = vunpack.c.l.b16 %v365
        %v991 = vunpack.c.h.b16 %v365
        %v992 = vunpack.c.l.b16 %v366
        %v993 = vunpack.c.h.b16 %v366
        %v994 = vunpack.c.l.b16 %v367
        %v995 = vunpack.c.h.b16 %v367
        %v996 = vunpack.c.l.b16 %v368
        %v997 = vunpack.c.h.b16 %v368
        %v998 = vunpack.c.l.b16 %v369
        %v999 = vunpack.c.h.b16 %v369
        %v1000 = vunpack.c.l.b16 %v370
        %v1001 = vunpack.c.h.b16 %v370
        %v1002 = vunpack.c.l.b16 %v371
        %v1003 = vunpack.c.h.b16 %v371
        %v1004 = vunpack.c.l.b16 %v372
        %v1005 = vunpack.c.h.b16 %v372
        %v1006 = vunpack.c.l.b16 %v373
        %v1007 = vunpack.c.h.b16 %v373
        %v1008 = vunpack.c.l.b16 %v374
        %v1009 = vunpack.c.h.b16 %v374
        %v1010 = vunpack.c.l.b16 %v375
        %v1011 = vunpack.c.h.b16 %v375
        %v1012 = vunpack.c.l.b16 %v376
        %v1013 = vunpack.c.h.b16 %v376
        %v1014 = vunpack.c.l.b16 %v377
        %v1015 = vunpack.c.h.b16 %v377
        %v1016 = vunpack.c.l.b16 %v378
        %v1017 = vunpack.c.h.b16 %v378
        %v1018 = vunpack.c.l.b16 %v379
        %v1019 = vunpack.c.h.b16 %v379
        %v1020 = vunpack.c.l.b16 %v380
        %v1021 = vunpack.c.h.b16 %v380
        %v1022 = vunpack.c.l.b16 %v381
        %v1023 = vunpack.c.h.b16 %v381
        %v1024 = vunpack.c.l.b16 %v382
        %v1025 = vunpack.c.h.b16 %v382
        %v1026 = vunpack.c.l.b16 %v383
        %v1027 = vunpack.c.h.b16 %v383
        %v1028 = vunpack.c.l.b16 %v384
        %v1029 = vunpack.c.h.b16 %v384
        %v1030 = vunpack.c.l.b16 %v385
        %v1031 = vunpack.c.h.b16 %v385
        %v1032 = vunpack.c.l.b16 %v386
        %v1033 = vunpack.c.h.b16 %v386
        %v1034 = vunpack.c.l.b16 %v387
        %v1035 = vunpack.c.h.b16 %v387
        %v1036 = vunpack.c.l.b16 %v388
        %v1037 = vunpack.c.h.b16 %v388
        %v1038 = vunpack.c.l.b16 %v389
        %v1039 = vunpack.c.h.b16 %v389
        %v1040 = vunpack.c.l.b16 %v390
        %v1041 = vunpack.c.h.b16 %v390
        %v1042 = vunpack.c.l.b16 %v391
        %v1043 = vunpack.c.h.b16 %v391
        %v1044 = vunpack.c.l.b16 %v392
        %v1045 = vunpack.c.h.b16 %v392
        %v1046 = vunpack.c.l.b16 %v393
        %v1047 = vunpack.c.h.b16 %v393
        %v1048 = vunpack.c.l.b16 %v394
        %v1049 = vunpack.c.h.b16 %v394
        %v1050 = vunpack.c.l.b16 %v395
        %v1051 = vunpack.c.h.b16 %v395
        %v1052 = vunpack.c.l.b16 %v396
        %v1053 = vunpack.c.h.b16 %v396
        %v1054 = vunpack.c.l.b16 %v397
        %v1055 = vunpack.c.h.b16 %v397
        %v1056 = vunpack.c.l.b16 %v398
        %v1057 = vunpack.c.h.b16 %v398
        %v1058 = vunpack.c.l.b16 %v399
        %v1059 = vunpack.c.h.b16 %v399
        %v1060 = vunpack.c.l.b16 %v400
        %v1061 = vunpack.c.h.b16 %v400
        %v1062 = vunpack.c.l.b16 %v401
        %v1063 = vunpack.c.h.b16 %v401
        %v1064 = vunpack.c.l.b16 %v402
        %v1065 = vunpack.c.h.b16 %v402
        %v1066 = vunpack.c.l.b16 %v403
        %v1067 = vunpack.c.h.b16 %v403
        %v1068 = vunpack.c.l.b16 %v404
        %v1069 = vunpack.c.h.b16 %v404
        %v1070 = vunpack.c.l.b16 %v405
        %v1071 = vunpack.c.h.b16 %v405
        %v1072 = vunpack.c.l.b16 %v406
        %v1073 = vunpack.c.h.b16 %v406
        %v1074 = vunpack.c.l.b16 %v407
        %v1075 = vunpack.c.h.b16 %v407
        %v1076 = vunpack.c.l.b16 %v408
        %v1077 = vunpack.c.h.b16 %v408
        %v1078 = vunpack.c.l.b16 %v409
        %v1079 = vunpack.c.h.b16 %v409
        %v1080 = vunpack.c.l.b16 %v410
        %v1081 = vunpack.c.h.b16 %v410
        %v1082 = vunpack.c.l.b16 %v411
        %v1083 = vunpack.c.h.b16 %v411
        %v1084 = vpack.c.b16 %v706, %v700
        %v1085 = vpack.c.b16 %v707, %v701
        %v1086 = vpack.c.b16 %v708, %v702
        %v1087 = vpack.c.b16 %v709, %v703
        %v1088 = vpack.c.b16 %v710, %v704
        %v1089 = vpack.c.b16 %v711, %v705
        %v1090 = vpack.c.b16 %v718, %v712
        %v1091 = vpack.c.b16 %v719, %v713
        %v1092 = vpack.c.b16 %v720, %v714
        %v1093 = vpack.c.b16 %v721, %v715
        %v1094 = vpack.c.b16 %v722, %v716
        %v1095 = vpack.c.b16 %v723, %v717
        %v1096 = vpack.c.b16 %v730, %v724
        %v1097 = vpack.c.b16 %v731, %v725
        %v1098 = vpack.c.b16 %v732, %v726
        %v1099 = vpack.c.b16 %v733, %v727
        %v1100 = vpack.c.b16 %v734, %v728
        %v1101 = vpack.c.b16 %v735, %v729
        %v1102 = vpack.c.b16 %v742, %v736
        %v1103 = vpack.c.b16 %v743, %v737
        %v1104 = vpack.c.b16 %v744, %v738
        %v1105 = vpack.c.b16 %v745, %v739
        %v1106 = vpack.c.b16 %v746, %v740
        %v1107 = vpack.c.b16 %v747, %v741
        %v1108 = vpack.c.b16 %v754, %v748
        %v1109 = vpack.c.b16 %v755, %v749
        %v1110 = vpack.c.b16 %v756, %v750
        %v1111 = vpack.c.b16 %v757, %v751
        %v1112 = vpack.c.b16 %v758, %v752
        %v1113 = vpack.c.b16 %v759, %v753
        %v1114 = vpack.c.b16 %v766, %v760
        %v1115 = vpack.c.b16 %v767, %v761
        %v1116 = vpack.c.b16 %v768, %v762
        %v1117 = vpack.c.b16 %v769, %v763
        %v1118 = vpack.c.b16 %v770, %v764
        %v1119 = vpack.c.b16 %v771, %v765
        %v1120 = vpack.c.b16 %v778, %v772
        %v1121 = vpack.c.b16 %v779, %v773
        %v1122 = vpack.c.b16 %v780, %v774
        %v1123 = vpack.c.b16 %v781, %v775
        %v1124 = vpack.c.b16 %v782, %v776
        %v1125 = vpack.c.b16 %v783, %v777
        %v1126 = vpack.c.b16 %v790, %v784
        %v1127 = vpack.c.b16 %v791, %v785
        %v1128 = vpack.c.b16 %v792, %v786
        %v1129 = vpack.c.b16 %v793, %v787
        %v1130 = vpack.c.b16 %v794, %v788
        %v1131 = vpack.c.b16 %v795, %v789
        %v1132 = vpack.c.b16 %v802, %v796
        %v1133 = vpack.c.b16 %v803, %v797
        %v1134 = vpack.c.b16 %v804, %v798
        %v1135 = vpack.c.b16 %v805, %v799
        %v1136 = vpack.c.b16 %v806, %v800
        %v1137 = vpack.c.b16 %v807, %v801
        %v1138 = vpack.c.b16 %v814, %v808
        %v1139 = vpack.c.b16 %v815, %v809
        %v1140 = vpack.c.b16 %v816, %v810
        %v1141 = vpack.c.b16 %v817, %v811
        %v1142 = vpack.c.b16 %v818, %v812
        %v1143 = vpack.c.b16 %v819, %v813
        %v1144 = vpack.c.b16 %v826, %v820
        %v1145 = vpack.c.b16 %v827, %v821
        %v1146 = vpack.c.b16 %v828, %v822
        %v1147 = vpack.c.b16 %v829, %v823
        %v1148 = vpack.c.b16 %v830, %v824
        %v1149 = vpack.c.b16 %v831, %v825
        %v1150 = vpack.c.b16 %v838, %v832
        %v1151 = vpack.c.b16 %v839, %v833
        %v1152 = vpack.c.b16 %v840, %v834
        %v1153 = vpack.c.b16 %v841, %v835
        %v1154 = vpack.c.b16 %v842, %v836
        %v1155 = vpack.c.b16 %v843, %v837
        %v1156 = vpack.c.b16 %v850, %v844
        %v1157 = vpack.c.b16 %v851, %v845
        %v1158 = vpack.c.b16 %v852, %v846
        %v1159 = vpack.c.b16 %v853, %v847
        %v1160 = vpack.c.b16 %v854, %v848
        %v1161 = vpack.c.b16 %v855, %v849
        %v1162 = vpack.c.b16 %v862, %v856
        %v1163 = vpack.c.b16 %v863, %v857
        %v1164 = vpack.c.b16 %v864, %v858
        %v1165 = vpack.c.b16 %v865, %v859
        %v1166 = vpack.c.b16 %v866, %v860
        %v1167 = vpack.c.b16 %v867, %v861
        %v1168 = vpack.c.b16 %v874, %v868
        %v1169 = vpack.c.b16 %v875, %v869
        %v1170 = vpack.c.b16 %v876, %v870
        %v1171 = vpack.c.b16 %v877, %v871
        %v1172 = vpack.c.b16 %v878, %v872
        %v1173 = vpack.c.b16 %v879, %v873
        %v1174 = vpack.c.b16 %v886, %v880
        %v1175 = vpack.c.b16 %v887, %v881
        %v1176 = vpack.c.b16 %v888, %v882
        %v1177 = vpack.c.b16 %v889, %v883
        %v1178 = vpack.c.b16 %v890, %v884
        %v1179 = vpack.c.b16 %v891, %v885
        %v1180 = vpack.c.b16 %v898, %v892
        %v1181 = vpack.c.b16 %v899, %v893
        %v1182 = vpack.c.b16 %v900, %v894
        %v1183 = vpack.c.b16 %v901, %v895
        %v1184 = vpack.c.b16 %v902, %v896
        %v1185 = vpack.c.b16 %v903, %v897
        %v1186 = vpack.c.b16 %v910, %v904
        %v1187 = vpack.c.b16 %v911, %v905
        %v1188 = vpack.c.b16 %v912, %v906
        %v1189 = vpack.c.b16 %v913, %v907
        %v1190 = vpack.c.b16 %v914, %v908
        %v1191 = vpack.c.b16 %v915, %v909
        %v1192 = vpack.c.b16 %v922, %v916
        %v1193 = vpack.c.b16 %v923, %v917
        %v1194 = vpack.c.b16 %v924, %v918
        %v1195 = vpack.c.b16 %v925, %v919
        %v1196 = vpack.c.b16 %v926, %v920
        %v1197 = vpack.c.b16 %v927, %v921
        %v1198 = vpack.c.b16 %v934, %v928
        %v1199 = vpack.c.b16 %v935, %v929
        %v1200 = vpack.c.b16 %v936, %v930
        %v1201 = vpack.c.b16 %v937, %v931
        %v1202 = vpack.c.b16 %v938, %v932
        %v1203 = vpack.c.b16 %v939, %v933
        %v1204 = vpack.c.b16 %v946, %v940
        %v1205 = vpack.c.b16 %v947, %v941
        %v1206 = vpack.c.b16 %v948, %v942
        %v1207 = vpack.c.b16 %v949, %v943
        %v1208 = vpack.c.b16 %v950, %v944
        %v1209 = vpack.c.b16 %v951, %v945
        %v1210 = vpack.c.b16 %v958, %v952
        %v1211 = vpack.c.b16 %v959, %v953
        %v1212 = vpack.c.b16 %v960, %v954
        %v1213 = vpack.c.b16 %v961, %v955
        %v1214 = vpack.c.b16 %v962, %v956
        %v1215 = vpack.c.b16 %v963, %v957
        %v1216 = vpack.c.b16 %v970, %v964
        %v1217 = vpack.c.b16 %v971, %v965
        %v1218 = vpack.c.b16 %v972, %v966
        %v1219 = vpack.c.b16 %v973, %v967
        %v1220 = vpack.c.b16 %v974, %v968
        %v1221 = vpack.c.b16 %v975, %v969
        %v1222 = vpack.c.b16 %v982, %v976
        %v1223 = vpack.c.b16 %v983, %v977
        %v1224 = vpack.c.b16 %v984, %v978
        %v1225 = vpack.c.b16 %v985, %v979
        %v1226 = vpack.c.b16 %v986, %v980
        %v1227 = vpack.c.b16 %v987, %v981
        %v1228 = vpack.c.b16 %v994, %v988
        %v1229 = vpack.c.b16 %v995, %v989
        %v1230 = vpack.c.b16 %v996, %v990
        %v1231 = vpack.c.b16 %v997, %v991
        %v1232 = vpack.c.b16 %v998, %v992
        %v1233 = vpack.c.b16 %v999, %v993
        %v1234 = vpack.c.b16 %v1006, %v1000
        %v1235 = vpack.c.b16 %v1007, %v1001
        %v1236 = vpack.c.b16 %v1008, %v1002
        %v1237 = vpack.c.b16 %v1009, %v1003
        %v1238 = vpack.c.b16 %v1010, %v1004
        %v1239 = vpack.c.b16 %v1011, %v1005
        %v1240 = vpack.c.b16 %v1018, %v1012
        %v1241 = vpack.c.b16 %v1019, %v1013
        %v1242 = vpack.c.b16 %v1020, %v1014
        %v1243 = vpack.c.b16 %v1021, %v1015
        %v1244 = vpack.c.b16 %v1022, %v1016
        %v1245 = vpack.c.b16 %v1023, %v1017
        %v1246 = vpack.c.b16 %v1030, %v1024
        %v1247 = vpack.c.b16 %v1031, %v1025
        %v1248 = vpack.c.b16 %v1032, %v1026
        %v1249 = vpack.c.b16 %v1033, %v1027
        %v1250 = vpack.c.b16 %v1034, %v1028
        %v1251 = vpack.c.b16 %v1035, %v1029
        %v1252 = vpack.c.b16 %v1042, %v1036
        %v1253 = vpack.c.b16 %v1043, %v1037
        %v1254 = vpack.c.b16 %v1044, %v1038
        %v1255 = vpack.c.b16 %v1045, %v1039
        %v1256 = vpack.c.b16 %v1046, %v1040
        %v1257 = vpack.c.b16 %v1047, %v1041
        %v1258 = vpack.c.b16 %v1054, %v1048
        %v1259 = vpack.c.b16 %v1055, %v1049
        %v1260 = vpack.c.b16 %v1056, %v1050
        %v1261 = vpack.c.b16 %v1057, %v1051
        %v1262 = vpack.c.b16 %v1058, %v1052
        %v1263 = vpack.c.b16 %v1059, %v1053
        %v1264 = vpack.c.b16 %v1066, %v1060
        %v1265 = vpack.c.b16 %v1067, %v1061
        %v1266 = vpack.c.b16 %v1068, %v1062
        %v1267 = vpack.c.b16 %v1069, %v1063
        %v1268 = vpack.c.b16 %v1070, %v1064
        %v1269 = vpack.c.b16 %v1071, %v1065
        %v1270 = vpack.c.b16 %v1078, %v1072
        %v1271 = vpack.c.b16 %v1079, %v1073
        %v1272 = vpack.c.b16 %v1080, %v1074
        %v1273 = vpack.c.b16 %v1081, %v1075
        %v1274 = vpack.c.b16 %v1082, %v1076
        %v1275 = vpack.c.b16 %v1083, %v1077
        %v1564 = vunpack.c.l.b16 %v412
        %v1565 = vunpack.c.l.b16 %v413
        %v1566 = vunpack.c.l.b16 %v414
        %v1567 = vunpack.c.l.b16 %v415
        %v1568 = vunpack.c.l.b16 %v416
        %v1569 = vunpack.c.l.b16 %v417
        %v1570 = vunpack.c.l.b16 %v418
        %v1571 = vunpack.c.l.b16 %v419
        %v1572 = vunpack.c.l.b16 %v420
        %v1573 = vunpack.c.l.b16 %v421
        %v1574 = vunpack.c.l.b16 %v422
        %v1575 = vunpack.c.l.b16 %v423
        %v1576 = vunpack.c.l.b16 %v424
        %v1577 = vunpack.c.l.b16 %v425
        %v1578 = vunpack.c.l.b16 %v426
        %v1579 = vunpack.c.l.b16 %v427
        %v1580 = vunpack.c.l.b16 %v428
        %v1581 = vunpack.c.l.b16 %v429
        %v1582 = vunpack.c.l.b16 %v430
        %v1583 = vunpack.c.l.b16 %v431
        %v1584 = vunpack.c.l.b16 %v432
        %v1585 = vunpack.c.l.b16 %v433
        %v1586 = vunpack.c.l.b16 %v434
        %v1587 = vunpack.c.l.b16 %v435
        %v1588 = vunpack.c.l.b16 %v436
        %v1589 = vunpack.c.l.b16 %v437
        %v1590 = vunpack.c.l.b16 %v438
        %v1591 = vunpack.c.l.b16 %v439
        %v1592 = vunpack.c.l.b16 %v440
        %v1593 = vunpack.c.l.b16 %v441
        %v1594 = vunpack.c.l.b16 %v442
        %v1595 = vunpack.c.l.b16 %v443
        %v1596 = vunpack.c.l.b16 %v444
        %v1597 = vunpack.c.l.b16 %v445
        %v1598 = vunpack.c.l.b16 %v446
        %v1599 = vunpack.c.l.b16 %v447
        %v1600 = vunpack.c.l.b16 %v448
        %v1601 = vunpack.c.l.b16 %v449
        %v1602 = vunpack.c.l.b16 %v450
        %v1603 = vunpack.c.l.b16 %v451
        %v1604 = vunpack.c.l.b16 %v452
        %v1605 = vunpack.c.l.b16 %v453
        %v1606 = vunpack.c.l.b16 %v454
        %v1607 = vunpack.c.l.b16 %v455
        %v1608 = vunpack.c.l.b16 %v456
        %v1609 = vunpack.c.l.b16 %v457
        %v1610 = vunpack.c.l.b16 %v458
        %v1611 = vunpack.c.l.b16 %v459
        %v1612 = vunpack.c.l.b16 %v460
        %v1613 = vunpack.c.l.b16 %v461
        %v1614 = vunpack.c.l.b16 %v462
        %v1615 = vunpack.c.l.b16 %v463
        %v1616 = vunpack.c.l.b16 %v464
        %v1617 = vunpack.c.l.b16 %v465
        %v1618 = vunpack.c.l.b16 %v466
        %v1619 = vunpack.c.l.b16 %v467
        %v1620 = vunpack.c.l.b16 %v468
        %v1621 = vunpack.c.l.b16 %v469
        %v1622 = vunpack.c.l.b16 %v470
        %v1623 = vunpack.c.l.b16 %v471
        %v1624 = vunpack.c.l.b16 %v472
        %v1625 = vunpack.c.l.b16 %v473
        %v1626 = vunpack.c.l.b16 %v474
        %v1627 = vunpack.c.l.b16 %v475
        %v1628 = vunpack.c.l.b16 %v476
        %v1629 = vunpack.c.l.b16 %v477
        %v1630 = vunpack.c.l.b16 %v478
        %v1631 = vunpack.c.l.b16 %v479
        %v1632 = vunpack.c.l.b16 %v480
        %v1633 = vunpack.c.l.b16 %v481
        %v1634 = vunpack.c.l.b16 %v482
        %v1635 = vunpack.c.l.b16 %v483
        %v1636 = vunpack.c.l.b16 %v484
        %v1637 = vunpack.c.l.b16 %v485
        %v1638 = vunpack.c.l.b16 %v486
        %v1639 = vunpack.c.l.b16 %v487
        %v1640 = vunpack.c.l.b16 %v488
        %v1641 = vunpack.c.l.b16 %v489
        %v1642 = vunpack.c.l.b16 %v490
        %v1643 = vunpack.c.l.b16 %v491
        %v1644 = vunpack.c.l.b16 %v492
        %v1645 = vunpack.c.l.b16 %v493
        %v1646 = vunpack.c.l.b16 %v494
        %v1647 = vunpack.c.l.b16 %v495
        %v1648 = vunpack.c.l.b16 %v496
        %v1649 = vunpack.c.l.b16 %v497
        %v1650 = vunpack.c.l.b16 %v498
        %v1651 = vunpack.c.l.b16 %v499
        %v1652 = vunpack.c.l.b16 %v500
        %v1653 = vunpack.c.l.b16 %v501
        %v1654 = vunpack.c.l.b16 %v502
        %v1655 = vunpack.c.l.b16 %v503
        %v1656 = vunpack.c.l.b16 %v504
        %v1657 = vunpack.c.l.b16 %v505
        %v1658 = vunpack.c.l.b16 %v506
        %v1659 = vunpack.c.l.b16 %v507
        %v1660 = vpack.c.b16 %v1565, %v1564
        %v1661 = vpack.c.b16 %v1567, %v1566
        %v1662 = vpack.c.b16 %v1569, %v1568
        %v1663 = vpack.c.b16 %v1571, %v1570
        %v1664 = vpack.c.b16 %v1573, %v1572
        %v1665 = vpack.c.b16 %v1575, %v1574
        %v1666 = vpack.c.b16 %v1577, %v1576
        %v1667 = vpack.c.b16 %v1579, %v1578
        %v1668 = vpack.c.b16 %v1581, %v1580
        %v1669 = vpack.c.b16 %v1583, %v1582
        %v1670 = vpack.c.b16 %v1585, %v1584
        %v1671 = vpack.c.b16 %v1587, %v1586
        %v1672 = vpack.c.b16 %v1589, %v1588
        %v1673 = vpack.c.b16 %v1591, %v1590
        %v1674 = vpack.c.b16 %v1593, %v1592
        %v1675 = vpack.c.b16 %v1595, %v1594
        %v1676 = vpack.c.b16 %v1597, %v1596
        %v1677 = vpack.c.b16 %v1599, %v1598
        %v1678 = vpack.c.b16 %v1601, %v1600
        %v1679 = vpack.c.b16 %v1603, %v1602
        %v1680 = vpack.c.b16 %v1605, %v1604
        %v1681 = vpack.c.b16 %v1607, %v1606
        %v1682 = vpack.c.b16 %v1609, %v1608
        %v1683 = vpack.c.b16 %v1611, %v1610
        %v1684 = vpack.c.b16 %v1613, %v1612
        %v1685 = vpack.c.b16 %v1615, %v1614
        %v1686 = vpack.c.b16 %v1617, %v1616
        %v1687 = vpack.c.b16 %v1619, %v1618
        %v1688 = vpack.c.b16 %v1621, %v1620
        %v1689 = vpack.c.b16 %v1623, %v1622
        %v1690 = vpack.c.b16 %v1625, %v1624
        %v1691 = vpack.c.b16 %v1627, %v1626
        %v1692 = vpack.c.b16 %v1629, %v1628
        %v1693 = vpack.c.b16 %v1631, %v1630
        %v1694 = vpack.c.b16 %v1633, %v1632
        %v1695 = vpack.c.b16 %v1635, %v1634
        %v1696 = vpack.c.b16 %v1637, %v1636
        %v1697 = vpack.c.b16 %v1639, %v1638
        %v1698 = vpack.c.b16 %v1641, %v1640
        %v1699 = vpack.c.b16 %v1643, %v1642
        %v1700 = vpack.c.b16 %v1645, %v1644
        %v1701 = vpack.c.b16 %v1647, %v1646
        %v1702 = vpack.c.b16 %v1649, %v1648
        %v1703 = vpack.c.b16 %v1651, %v1650
        %v1704 = vpack.c.b16 %v1653, %v1652
        %v1705 = vpack.c.b16 %v1655, %v1654
        %v1706 = vpack.c.b16 %v1657, %v1656
        %v1707 = vpack.c.b16 %v1659, %v1658
        %1756 = vmatprep.subr.bf16.mxu0 0
        %1757 = vmatpush1.bf16.msra.mxu0 %v1660
        %1758 = vmatprep.subr.bf16.mxu0 0
        %1759 = vmatpush1.bf16.msra.mxu0 %v1661
        %1760 = vmatprep.subr.bf16.mxu0 0
        %1761 = vmatpush1.bf16.msra.mxu0 %v1662
        %1762 = vmatprep.subr.bf16.mxu0 0
        %1763 = vmatpush1.bf16.msra.mxu0 %v1663
        %1764 = vmatprep.subr.bf16.mxu0 0
        %1765 = vmatpush1.bf16.msra.mxu0 %v1664
        %1766 = vmatprep.subr.bf16.mxu0 0
        %1767 = vmatpush1.bf16.msra.mxu0 %v1665
        %1768 = vmatprep.subr.bf16.mxu0 0
        %1769 = vmatpush1.bf16.msra.mxu0 %v1666
        %1770 = vmatprep.subr.bf16.mxu0 0
        %1771 = vmatpush1.bf16.msra.mxu0 %v1667
        %1772 = vmatprep.subr.bf16.mxu0 0
        %1773 = vmatpush1.bf16.msra.mxu0 %v1668
        %1774 = vmatprep.subr.bf16.mxu0 0
        %1775 = vmatpush1.bf16.msra.mxu0 %v1669
        %1776 = vmatprep.subr.bf16.mxu0 0
        %1777 = vmatpush1.bf16.msra.mxu0 %v1670
        %1778 = vmatprep.subr.bf16.mxu0 0
        %1779 = vmatpush1.bf16.msra.mxu0 %v1671
        %1780 = vmatprep.subr.bf16.mxu0 0
        %1781 = vmatpush1.bf16.msra.mxu0 %v1672
        %1782 = vmatprep.subr.bf16.mxu0 0
        %1783 = vmatpush1.bf16.msra.mxu0 %v1673
        %1784 = vmatprep.subr.bf16.mxu0 0
        %1785 = vmatpush1.bf16.msra.mxu0 %v1674
        %1786 = vmatprep.subr.bf16.mxu0 0
        %1787 = vmatpush1.bf16.msra.mxu0 %v1675
        %1788 = vmatprep.mubr.bf16.mxu0 %v1085
        %1789 = vmatmul.mubr.bf16.gmra.mrb[0].mxu0 %v1084
        %v1790 = vpop.f32.mrb[0].mxu0
        %v1791 = vadd.f32 0.0, %v1790
        %v1792 = vpop.f32.mrb[0].mxu0
        %v1793 = vpop.f32.mrb[0].mxu0
        %v1794 = vadd.f32 0.0, %v1793
        %v1795 = vpop.f32.mrb[0].mxu0
        %1796 = vmatprep.mubr.bf16.mxu0 %v1091
        %1797 = vmatmul.mubr.bf16.gmra.mrb[0].mxu0 %v1090
        %v1798 = vpop.f32.mrb[0].mxu0
        %v1799 = vadd.f32 0.0, %v1798
        %v1800 = vpop.f32.mrb[0].mxu0
        %v1801 = vpop.f32.mrb[0].mxu0
        %v1802 = vadd.f32 0.0, %v1801
        %v1803 = vpop.f32.mrb[0].mxu0
        %1804 = vmatprep.mubr.bf16.mxu0 %v1097
        %1805 = vmatmul.mubr.bf16.gmra.mrb[0].mxu0 %v1096
        %v1806 = vpop.f32.mrb[0].mxu0
        %v1807 = vadd.f32 0.0, %v1806
        %v1808 = vpop.f32.mrb[0].mxu0
        %v1809 = vpop.f32.mrb[0].mxu0
        %v1810 = vadd.f32 0.0, %v1809
        %v1811 = vpop.f32.mrb[0].mxu0
        %1812 = vmatprep.mubr.bf16.mxu0 %v1103
        %1813 = vmatmul.mubr.bf16.gmra.mrb[0].mxu0 %v1102
        %v1814 = vpop.f32.mrb[0].mxu0
        %v1815 = vadd.f32 0.0, %v1814
        %v1816 = vpop.f32.mrb[0].mxu0
        %v1817 = vpop.f32.mrb[0].mxu0
        %v1818 = vadd.f32 0.0, %v1817
        %v1819 = vpop.f32.mrb[0].mxu0
        %1820 = vmatprep.mubr.bf16.mxu0 %v1109
        %1821 = vmatmul.mubr.bf16.gmra.mrb[0].mxu0 %v1108
        %v1822 = vpop.f32.mrb[0].mxu0
        %v1823 = vadd.f32 0.0, %v1822
        %v1824 = vpop.f32.mrb[0].mxu0
        %v1825 = vpop.f32.mrb[0].mxu0
        %v1826 = vadd.f32 0.0, %v1825
        %v1827 = vpop.f32.mrb[0].mxu0
        %1828 = vmatprep.mubr.bf16.mxu0 %v1115
        %1829 = vmatmul.mubr.bf16.gmra.mrb[0].mxu0 %v1114
        %v1830 = vpop.f32.mrb[0].mxu0
        %v1831 = vadd.f32 0.0, %v1830
        %v1832 = vpop.f32.mrb[0].mxu0
        %v1833 = vpop.f32.mrb[0].mxu0
        %v1834 = vadd.f32 0.0, %v1833
        %v1835 = vpop.f32.mrb[0].mxu0
        %1836 = vmatprep.mubr.bf16.mxu0 %v1121
        %1837 = vmatmul.mubr.bf16.gmra.mrb[0].mxu0 %v1120
        %v1838 = vpop.f32.mrb[0].mxu0
        %v1839 = vadd.f32 0.0, %v1838
        %v1840 = vpop.f32.mrb[0].mxu0
        %v1841 = vpop.f32.mrb[0].mxu0
        %v1842 = vadd.f32 0.0, %v1841
        %v1843 = vpop.f32.mrb[0].mxu0
        %1844 = vmatprep.mubr.bf16.mxu0 %v1127
        %1845 = vmatmul.mubr.bf16.gmra.mrb[0].mxu0 %v1126
        %v1846 = vpop.f32.mrb[0].mxu0
        %v1847 = vadd.f32 0.0, %v1846
        %v1848 = vpop.f32.mrb[0].mxu0
        %v1849 = vpop.f32.mrb[0].mxu0
        %v1850 = vadd.f32 0.0, %v1849
        %v1851 = vpop.f32.mrb[0].mxu0
        %1852 = vmatprep.mubr.bf16.mxu0 %v1133
        %1853 = vmatmul.mubr.bf16.gmra.mrb[0].mxu0 %v1132
        %v1854 = vpop.f32.mrb[0].mxu0
        %v1855 = vadd.f32 0.0, %v1854
        %v1856 = vpop.f32.mrb[0].mxu0
        %v1857 = vpop.f32.mrb[0].mxu0
        %v1858 = vadd.f32 0.0, %v1857
        %v1859 = vpop.f32.mrb[0].mxu0
        %1860 = vmatprep.mubr.bf16.mxu0 %v1139
        %1861 = vmatmul.mubr.bf16.gmra.mrb[0].mxu0 %v1138
        %v1862 = vpop.f32.mrb[0].mxu0
        %v1863 = vadd.f32 0.0, %v1862
        %v1864 = vpop.f32.mrb[0].mxu0
        %v1865 = vpop.f32.mrb[0].mxu0
        %v1866 = vadd.f32 0.0, %v1865
        %v1867 = vpop.f32.mrb[0].mxu0
        %1868 = vmatprep.mubr.bf16.mxu0 %v1145
        %1869 = vmatmul.mubr.bf16.gmra.mrb[0].mxu0 %v1144
        %v1870 = vpop.f32.mrb[0].mxu0
        %v1871 = vadd.f32 0.0, %v1870
        %v1872 = vpop.f32.mrb[0].mxu0
        %v1873 = vpop.f32.mrb[0].mxu0
        %v1874 = vadd.f32 0.0, %v1873
        %v1875 = vpop.f32.mrb[0].mxu0
        %1876 = vmatprep.mubr.bf16.mxu0 %v1151
        %1877 = vmatmul.mubr.bf16.gmra.mrb[0].mxu0 %v1150
        %v1878 = vpop.f32.mrb[0].mxu0
        %v1879 = vadd.f32 0.0, %v1878
        %v1880 = vpop.f32.mrb[0].mxu0
        %v1881 = vpop.f32.mrb[0].mxu0
        %v1882 = vadd.f32 0.0, %v1881
        %v1883 = vpop.f32.mrb[0].mxu0
        %1884 = vmatprep.mubr.bf16.mxu0 %v1157
        %1885 = vmatmul.mubr.bf16.gmra.mrb[0].mxu0 %v1156
        %v1886 = vpop.f32.mrb[0].mxu0
        %v1887 = vadd.f32 0.0, %v1886
        %v1888 = vpop.f32.mrb[0].mxu0
        %v1889 = vpop.f32.mrb[0].mxu0
        %v1890 = vadd.f32 0.0, %v1889
        %v1891 = vpop.f32.mrb[0].mxu0
        %1892 = vmatprep.mubr.bf16.mxu0 %v1163
        %1893 = vmatmul.mubr.bf16.gmra.mrb[0].mxu0 %v1162
        %v1894 = vpop.f32.mrb[0].mxu0
        %v1895 = vadd.f32 0.0, %v1894
        %v1896 = vpop.f32.mrb[0].mxu0
        %v1897 = vpop.f32.mrb[0].mxu0
        %v1898 = vadd.f32 0.0, %v1897
        %v1899 = vpop.f32.mrb[0].mxu0
        %1900 = vmatprep.mubr.bf16.mxu0 %v1169
        %1901 = vmatmul.mubr.bf16.gmra.mrb[0].mxu0 %v1168
        %v1902 = vpop.f32.mrb[0].mxu0
        %v1903 = vadd.f32 0.0, %v1902
        %v1904 = vpop.f32.mrb[0].mxu0
        %v1905 = vpop.f32.mrb[0].mxu0
        %v1906 = vadd.f32 0.0, %v1905
        %v1907 = vpop.f32.mrb[0].mxu0
        %1908 = vmatprep.mubr.bf16.mxu0 %v1175
        %1909 = vmatmul.mubr.bf16.gmra.mrb[0].mxu0 %v1174
        %v1910 = vpop.f32.mrb[0].mxu0
        %v1911 = vadd.f32 0.0, %v1910
        %v1912 = vpop.f32.mrb[0].mxu0
        %v1913 = vpop.f32.mrb[0].mxu0
        %v1914 = vadd.f32 0.0, %v1913
        %v1915 = vpop.f32.mrb[0].mxu0
        %1916 = vmatprep.mubr.bf16.mxu0 %v1181
        %1917 = vmatmul.mubr.bf16.gmra.mrb[0].mxu0 %v1180
        %v1918 = vpop.f32.mrb[0].mxu0
        %v1919 = vadd.f32 0.0, %v1918
        %v1920 = vpop.f32.mrb[0].mxu0
        %v1921 = vpop.f32.mrb[0].mxu0
        %v1922 = vadd.f32 0.0, %v1921
        %v1923 = vpop.f32.mrb[0].mxu0
        %1924 = vmatprep.mubr.bf16.mxu0 %v1187
        %1925 = vmatmul.mubr.bf16.gmra.mrb[0].mxu0 %v1186
        %v1926 = vpop.f32.mrb[0].mxu0
        %v1927 = vadd.f32 0.0, %v1926
        %v1928 = vpop.f32.mrb[0].mxu0
        %v1929 = vpop.f32.mrb[0].mxu0
        %v1930 = vadd.f32 0.0, %v1929
        %v1931 = vpop.f32.mrb[0].mxu0
        %1932 = vmatprep.mubr.bf16.mxu0 %v1193
        %1933 = vmatmul.mubr.bf16.gmra.mrb[0].mxu0 %v1192
        %v1934 = vpop.f32.mrb[0].mxu0
        %v1935 = vadd.f32 0.0, %v1934
        %v1936 = vpop.f32.mrb[0].mxu0
        %v1937 = vpop.f32.mrb[0].mxu0
        %v1938 = vadd.f32 0.0, %v1937
        %v1939 = vpop.f32.mrb[0].mxu0
        %1940 = vmatprep.mubr.bf16.mxu0 %v1199
        %1941 = vmatmul.mubr.bf16.gmra.mrb[0].mxu0 %v1198
        %v1942 = vpop.f32.mrb[0].mxu0
        %v1943 = vadd.f32 0.0, %v1942
        %v1944 = vpop.f32.mrb[0].mxu0
        %v1945 = vpop.f32.mrb[0].mxu0
        %v1946 = vadd.f32 0.0, %v1945
        %v1947 = vpop.f32.mrb[0].mxu0
        %1948 = vmatprep.mubr.bf16.mxu0 %v1205
        %1949 = vmatmul.mubr.bf16.gmra.mrb[0].mxu0 %v1204
        %v1950 = vpop.f32.mrb[0].mxu0
        %v1951 = vadd.f32 0.0, %v1950
        %v1952 = vpop.f32.mrb[0].mxu0
        %v1953 = vpop.f32.mrb[0].mxu0
        %v1954 = vadd.f32 0.0, %v1953
        %v1955 = vpop.f32.mrb[0].mxu0
        %1956 = vmatprep.mubr.bf16.mxu0 %v1211
        %1957 = vmatmul.mubr.bf16.gmra.mrb[0].mxu0 %v1210
        %v1958 = vpop.f32.mrb[0].mxu0
        %v1959 = vadd.f32 0.0, %v1958
        %v1960 = vpop.f32.mrb[0].mxu0
        %v1961 = vpop.f32.mrb[0].mxu0
        %v1962 = vadd.f32 0.0, %v1961
        %v1963 = vpop.f32.mrb[0].mxu0
        %1964 = vmatprep.mubr.bf16.mxu0 %v1217
        %1965 = vmatmul.mubr.bf16.gmra.mrb[0].mxu0 %v1216
        %v1966 = vpop.f32.mrb[0].mxu0
        %v1967 = vadd.f32 0.0, %v1966
        %v1968 = vpop.f32.mrb[0].mxu0
        %v1969 = vpop.f32.mrb[0].mxu0
        %v1970 = vadd.f32 0.0, %v1969
        %v1971 = vpop.f32.mrb[0].mxu0
        %1972 = vmatprep.mubr.bf16.mxu0 %v1223
        %1973 = vmatmul.mubr.bf16.gmra.mrb[0].mxu0 %v1222
        %v1974 = vpop.f32.mrb[0].mxu0
        %v1975 = vadd.f32 0.0, %v1974
        %v1976 = vpop.f32.mrb[0].mxu0
        %v1977 = vpop.f32.mrb[0].mxu0
        %v1978 = vadd.f32 0.0, %v1977
        %v1979 = vpop.f32.mrb[0].mxu0
        %1980 = vmatprep.mubr.bf16.mxu0 %v1229
        %1981 = vmatmul.mubr.bf16.gmra.mrb[0].mxu0 %v1228
        %v1982 = vpop.f32.mrb[0].mxu0
        %v1983 = vadd.f32 0.0, %v1982
        %v1984 = vpop.f32.mrb[0].mxu0
        %v1985 = vpop.f32.mrb[0].mxu0
        %v1986 = vadd.f32 0.0, %v1985
        %v1987 = vpop.f32.mrb[0].mxu0
        %1988 = vmatprep.mubr.bf16.mxu0 %v1235
        %1989 = vmatmul.mubr.bf16.gmra.mrb[0].mxu0 %v1234
        %v1990 = vpop.f32.mrb[0].mxu0
        %v1991 = vadd.f32 0.0, %v1990
        %v1992 = vpop.f32.mrb[0].mxu0
        %v1993 = vpop.f32.mrb[0].mxu0
        %v1994 = vadd.f32 0.0, %v1993
        %v1995 = vpop.f32.mrb[0].mxu0
        %1996 = vmatprep.mubr.bf16.mxu0 %v1241
        %1997 = vmatmul.mubr.bf16.gmra.mrb[0].mxu0 %v1240
        %v1998 = vpop.f32.mrb[0].mxu0
        %v1999 = vadd.f32 0.0, %v1998
        %v2000 = vpop.f32.mrb[0].mxu0
        %v2001 = vpop.f32.mrb[0].mxu0
        %v2002 = vadd.f32 0.0, %v2001
        %v2003 = vpop.f32.mrb[0].mxu0
        %2004 = vmatprep.mubr.bf16.mxu0 %v1247
        %2005 = vmatmul.mubr.bf16.gmra.mrb[0].mxu0 %v1246
        %v2006 = vpop.f32.mrb[0].mxu0
        %v2007 = vadd.f32 0.0, %v2006
        %v2008 = vpop.f32.mrb[0].mxu0
        %v2009 = vpop.f32.mrb[0].mxu0
        %v2010 = vadd.f32 0.0, %v2009
        %v2011 = vpop.f32.mrb[0].mxu0
        %2012 = vmatprep.mubr.bf16.mxu0 %v1253
        %2013 = vmatmul.mubr.bf16.gmra.mrb[0].mxu0 %v1252
        %v2014 = vpop.f32.mrb[0].mxu0
        %v2015 = vadd.f32 0.0, %v2014
        %v2016 = vpop.f32.mrb[0].mxu0
        %v2017 = vpop.f32.mrb[0].mxu0
        %v2018 = vadd.f32 0.0, %v2017
        %v2019 = vpop.f32.mrb[0].mxu0
        %2020 = vmatprep.mubr.bf16.mxu0 %v1259
        %2021 = vmatmul.mubr.bf16.gmra.mrb[0].mxu0 %v1258
        %v2022 = vpop.f32.mrb[0].mxu0
        %v2023 = vadd.f32 0.0, %v2022
        %v2024 = vpop.f32.mrb[0].mxu0
        %v2025 = vpop.f32.mrb[0].mxu0
        %v2026 = vadd.f32 0.0, %v2025
        %v2027 = vpop.f32.mrb[0].mxu0
        %2028 = vmatprep.mubr.bf16.mxu0 %v1265
        %2029 = vmatmul.mubr.bf16.gmra.mrb[0].mxu0 %v1264
        %v2030 = vpop.f32.mrb[0].mxu0
        %v2031 = vadd.f32 0.0, %v2030
        %v2032 = vpop.f32.mrb[0].mxu0
        %v2033 = vpop.f32.mrb[0].mxu0
        %v2034 = vadd.f32 0.0, %v2033
        %v2035 = vpop.f32.mrb[0].mxu0
        %2036 = vmatprep.mubr.bf16.mxu0 %v1271
        %2037 = vmatmul.mubr.bf16.gmra.mrb[0].mxu0 %v1270
        %v2038 = vpop.f32.mrb[0].mxu0
        %v2039 = vadd.f32 0.0, %v2038
        %v2040 = vpop.f32.mrb[0].mxu0
        %v2041 = vpop.f32.mrb[0].mxu0
        %v2042 = vadd.f32 0.0, %v2041
        %v2043 = vpop.f32.mrb[0].mxu0
        %2044 = vdwg.mxu0
        %2045 = vmatprep.subr.bf16.mxu0 0
        %2046 = vmatpush1.bf16.msra.mxu0 %v1676
        %2047 = vmatprep.subr.bf16.mxu0 0
        %2048 = vmatpush1.bf16.msra.mxu0 %v1677
        %2049 = vmatprep.subr.bf16.mxu0 0
        %2050 = vmatpush1.bf16.msra.mxu0 %v1678
        %2051 = vmatprep.subr.bf16.mxu0 0
        %2052 = vmatpush1.bf16.msra.mxu0 %v1679
        %2053 = vmatprep.subr.bf16.mxu0 0
        %2054 = vmatpush1.bf16.msra.mxu0 %v1680
        %2055 = vmatprep.subr.bf16.mxu0 0
        %2056 = vmatpush1.bf16.msra.mxu0 %v1681
        %2057 = vmatprep.subr.bf16.mxu0 0
        %2058 = vmatpush1.bf16.msra.mxu0 %v1682
        %2059 = vmatprep.subr.bf16.mxu0 0
        %2060 = vmatpush1.bf16.msra.mxu0 %v1683
        %2061 = vmatprep.subr.bf16.mxu0 0
        %2062 = vmatpush1.bf16.msra.mxu0 %v1684
        %2063 = vmatprep.subr.bf16.mxu0 0
        %2064 = vmatpush1.bf16.msra.mxu0 %v1685
        %2065 = vmatprep.subr.bf16.mxu0 0
        %2066 = vmatpush1.bf16.msra.mxu0 %v1686
        %2067 = vmatprep.subr.bf16.mxu0 0
        %2068 = vmatpush1.bf16.msra.mxu0 %v1687
        %2069 = vmatprep.subr.bf16.mxu0 0
        %2070 = vmatpush1.bf16.msra.mxu0 %v1688
        %2071 = vmatprep.subr.bf16.mxu0 0
        %2072 = vmatpush1.bf16.msra.mxu0 %v1689
        %2073 = vmatprep.subr.bf16.mxu0 0
        %2074 = vmatpush1.bf16.msra.mxu0 %v1690
        %2075 = vmatprep.subr.bf16.mxu0 0
        %2076 = vmatpush1.bf16.msra.mxu0 %v1691
        %2077 = vmatprep.mubr.bf16.mxu0 %v1087
        %2078 = vmatmul.mubr.bf16.gmra.mrb[0].mxu0 %v1086
        %v2079 = vpop.f32.mrb[0].mxu0
        %v2080 = vadd.f32 %v1791, %v2079
        %v2081 = vpop.f32.mrb[0].mxu0
        %v2082 = vpop.f32.mrb[0].mxu0
        %v2083 = vadd.f32 %v1794, %v2082
        %v2084 = vpop.f32.mrb[0].mxu0
        %2085 = vmatprep.mubr.bf16.mxu0 %v1093
        %2086 = vmatmul.mubr.bf16.gmra.mrb[0].mxu0 %v1092
        %v2087 = vpop.f32.mrb[0].mxu0
        %v2088 = vadd.f32 %v1799, %v2087
        %v2089 = vpop.f32.mrb[0].mxu0
        %v2090 = vpop.f32.mrb[0].mxu0
        %v2091 = vadd.f32 %v1802, %v2090
        %v2092 = vpop.f32.mrb[0].mxu0
        %2093 = vmatprep.mubr.bf16.mxu0 %v1099
        %2094 = vmatmul.mubr.bf16.gmra.mrb[0].mxu0 %v1098
        %v2095 = vpop.f32.mrb[0].mxu0
        %v2096 = vadd.f32 %v1807, %v2095
        %v2097 = vpop.f32.mrb[0].mxu0
        %v2098 = vpop.f32.mrb[0].mxu0
        %v2099 = vadd.f32 %v1810, %v2098
        %v2100 = vpop.f32.mrb[0].mxu0
        %2101 = vmatprep.mubr.bf16.mxu0 %v1105
        %2102 = vmatmul.mubr.bf16.gmra.mrb[0].mxu0 %v1104
        %v2103 = vpop.f32.mrb[0].mxu0
        %v2104 = vadd.f32 %v1815, %v2103
        %v2105 = vpop.f32.mrb[0].mxu0
        %v2106 = vpop.f32.mrb[0].mxu0
        %v2107 = vadd.f32 %v1818, %v2106
        %v2108 = vpop.f32.mrb[0].mxu0
        %2109 = vmatprep.mubr.bf16.mxu0 %v1111
        %2110 = vmatmul.mubr.bf16.gmra.mrb[0].mxu0 %v1110
        %v2111 = vpop.f32.mrb[0].mxu0
        %v2112 = vadd.f32 %v1823, %v2111
        %v2113 = vpop.f32.mrb[0].mxu0
        %v2114 = vpop.f32.mrb[0].mxu0
        %v2115 = vadd.f32 %v1826, %v2114
        %v2116 = vpop.f32.mrb[0].mxu0
        %2117 = vmatprep.mubr.bf16.mxu0 %v1117
        %2118 = vmatmul.mubr.bf16.gmra.mrb[0].mxu0 %v1116
        %v2119 = vpop.f32.mrb[0].mxu0
        %v2120 = vadd.f32 %v1831, %v2119
        %v2121 = vpop.f32.mrb[0].mxu0
        %v2122 = vpop.f32.mrb[0].mxu0
        %v2123 = vadd.f32 %v1834, %v2122
        %v2124 = vpop.f32.mrb[0].mxu0
        %2125 = vmatprep.mubr.bf16.mxu0 %v1123
        %2126 = vmatmul.mubr.bf16.gmra.mrb[0].mxu0 %v1122
        %v2127 = vpop.f32.mrb[0].mxu0
        %v2128 = vadd.f32 %v1839, %v2127
        %v2129 = vpop.f32.mrb[0].mxu0
        %v2130 = vpop.f32.mrb[0].mxu0
        %v2131 = vadd.f32 %v1842, %v2130
        %v2132 = vpop.f32.mrb[0].mxu0
        %2133 = vmatprep.mubr.bf16.mxu0 %v1129
        %2134 = vmatmul.mubr.bf16.gmra.mrb[0].mxu0 %v1128
        %v2135 = vpop.f32.mrb[0].mxu0
        %v2136 = vadd.f32 %v1847, %v2135
        %v2137 = vpop.f32.mrb[0].mxu0
        %v2138 = vpop.f32.mrb[0].mxu0
        %v2139 = vadd.f32 %v1850, %v2138
        %v2140 = vpop.f32.mrb[0].mxu0
        %2141 = vmatprep.mubr.bf16.mxu0 %v1135
        %2142 = vmatmul.mubr.bf16.gmra.mrb[0].mxu0 %v1134
        %v2143 = vpop.f32.mrb[0].mxu0
        %v2144 = vadd.f32 %v1855, %v2143
        %v2145 = vpop.f32.mrb[0].mxu0
        %v2146 = vpop.f32.mrb[0].mxu0
        %v2147 = vadd.f32 %v1858, %v2146
        %v2148 = vpop.f32.mrb[0].mxu0
        %2149 = vmatprep.mubr.bf16.mxu0 %v1141
        %2150 = vmatmul.mubr.bf16.gmra.mrb[0].mxu0 %v1140
        %v2151 = vpop.f32.mrb[0].mxu0
        %v2152 = vadd.f32 %v1863, %v2151
        %v2153 = vpop.f32.mrb[0].mxu0
        %v2154 = vpop.f32.mrb[0].mxu0
        %v2155 = vadd.f32 %v1866, %v2154
        %v2156 = vpop.f32.mrb[0].mxu0
        %2157 = vmatprep.mubr.bf16.mxu0 %v1147
        %2158 = vmatmul.mubr.bf16.gmra.mrb[0].mxu0 %v1146
        %v2159 = vpop.f32.mrb[0].mxu0
        %v2160 = vadd.f32 %v1871, %v2159
        %v2161 = vpop.f32.mrb[0].mxu0
        %v2162 = vpop.f32.mrb[0].mxu0
        %v2163 = vadd.f32 %v1874, %v2162
        %v2164 = vpop.f32.mrb[0].mxu0
        %2165 = vmatprep.mubr.bf16.mxu0 %v1153
        %2166 = vmatmul.mubr.bf16.gmra.mrb[0].mxu0 %v1152
        %v2167 = vpop.f32.mrb[0].mxu0
        %v2168 = vadd.f32 %v1879, %v2167
        %v2169 = vpop.f32.mrb[0].mxu0
        %v2170 = vpop.f32.mrb[0].mxu0
        %v2171 = vadd.f32 %v1882, %v2170
        %v2172 = vpop.f32.mrb[0].mxu0
        %2173 = vmatprep.mubr.bf16.mxu0 %v1159
        %2174 = vmatmul.mubr.bf16.gmra.mrb[0].mxu0 %v1158
        %v2175 = vpop.f32.mrb[0].mxu0
        %v2176 = vadd.f32 %v1887, %v2175
        %v2177 = vpop.f32.mrb[0].mxu0
        %v2178 = vpop.f32.mrb[0].mxu0
        %v2179 = vadd.f32 %v1890, %v2178
        %v2180 = vpop.f32.mrb[0].mxu0
        %2181 = vmatprep.mubr.bf16.mxu0 %v1165
        %2182 = vmatmul.mubr.bf16.gmra.mrb[0].mxu0 %v1164
        %v2183 = vpop.f32.mrb[0].mxu0
        %v2184 = vadd.f32 %v1895, %v2183
        %v2185 = vpop.f32.mrb[0].mxu0
        %v2186 = vpop.f32.mrb[0].mxu0
        %v2187 = vadd.f32 %v1898, %v2186
        %v2188 = vpop.f32.mrb[0].mxu0
        %2189 = vmatprep.mubr.bf16.mxu0 %v1171
        %2190 = vmatmul.mubr.bf16.gmra.mrb[0].mxu0 %v1170
        %v2191 = vpop.f32.mrb[0].mxu0
        %v2192 = vadd.f32 %v1903, %v2191
        %v2193 = vpop.f32.mrb[0].mxu0
        %v2194 = vpop.f32.mrb[0].mxu0
        %v2195 = vadd.f32 %v1906, %v2194
        %v2196 = vpop.f32.mrb[0].mxu0
        %2197 = vmatprep.mubr.bf16.mxu0 %v1177
        %2198 = vmatmul.mubr.bf16.gmra.mrb[0].mxu0 %v1176
        %v2199 = vpop.f32.mrb[0].mxu0
        %v2200 = vadd.f32 %v1911, %v2199
        %v2201 = vpop.f32.mrb[0].mxu0
        %v2202 = vpop.f32.mrb[0].mxu0
        %v2203 = vadd.f32 %v1914, %v2202
        %v2204 = vpop.f32.mrb[0].mxu0
        %2205 = vmatprep.mubr.bf16.mxu0 %v1183
        %2206 = vmatmul.mubr.bf16.gmra.mrb[0].mxu0 %v1182
        %v2207 = vpop.f32.mrb[0].mxu0
        %v2208 = vadd.f32 %v1919, %v2207
        %v2209 = vpop.f32.mrb[0].mxu0
        %v2210 = vpop.f32.mrb[0].mxu0
        %v2211 = vadd.f32 %v1922, %v2210
        %v2212 = vpop.f32.mrb[0].mxu0
        %2213 = vmatprep.mubr.bf16.mxu0 %v1189
        %2214 = vmatmul.mubr.bf16.gmra.mrb[0].mxu0 %v1188
        %v2215 = vpop.f32.mrb[0].mxu0
        %v2216 = vadd.f32 %v1927, %v2215
        %v2217 = vpop.f32.mrb[0].mxu0
        %v2218 = vpop.f32.mrb[0].mxu0
        %v2219 = vadd.f32 %v1930, %v2218
        %v2220 = vpop.f32.mrb[0].mxu0
        %2221 = vmatprep.mubr.bf16.mxu0 %v1195
        %2222 = vmatmul.mubr.bf16.gmra.mrb[0].mxu0 %v1194
        %v2223 = vpop.f32.mrb[0].mxu0
        %v2224 = vadd.f32 %v1935, %v2223
        %v2225 = vpop.f32.mrb[0].mxu0
        %v2226 = vpop.f32.mrb[0].mxu0
        %v2227 = vadd.f32 %v1938, %v2226
        %v2228 = vpop.f32.mrb[0].mxu0
        %2229 = vmatprep.mubr.bf16.mxu0 %v1201
        %2230 = vmatmul.mubr.bf16.gmra.mrb[0].mxu0 %v1200
        %v2231 = vpop.f32.mrb[0].mxu0
        %v2232 = vadd.f32 %v1943, %v2231
        %v2233 = vpop.f32.mrb[0].mxu0
        %v2234 = vpop.f32.mrb[0].mxu0
        %v2235 = vadd.f32 %v1946, %v2234
        %v2236 = vpop.f32.mrb[0].mxu0
        %2237 = vmatprep.mubr.bf16.mxu0 %v1207
        %2238 = vmatmul.mubr.bf16.gmra.mrb[0].mxu0 %v1206
        %v2239 = vpop.f32.mrb[0].mxu0
        %v2240 = vadd.f32 %v1951, %v2239
        %v2241 = vpop.f32.mrb[0].mxu0
        %v2242 = vpop.f32.mrb[0].mxu0
        %v2243 = vadd.f32 %v1954, %v2242
        %v2244 = vpop.f32.mrb[0].mxu0
        %2245 = vmatprep.mubr.bf16.mxu0 %v1213
        %2246 = vmatmul.mubr.bf16.gmra.mrb[0].mxu0 %v1212
        %v2247 = vpop.f32.mrb[0].mxu0
        %v2248 = vadd.f32 %v1959, %v2247
        %v2249 = vpop.f32.mrb[0].mxu0
        %v2250 = vpop.f32.mrb[0].mxu0
        %v2251 = vadd.f32 %v1962, %v2250
        %v2252 = vpop.f32.mrb[0].mxu0
        %2253 = vmatprep.mubr.bf16.mxu0 %v1219
        %2254 = vmatmul.mubr.bf16.gmra.mrb[0].mxu0 %v1218
        %v2255 = vpop.f32.mrb[0].mxu0
        %v2256 = vadd.f32 %v1967, %v2255
        %v2257 = vpop.f32.mrb[0].mxu0
        %v2258 = vpop.f32.mrb[0].mxu0
        %v2259 = vadd.f32 %v1970, %v2258
        %v2260 = vpop.f32.mrb[0].mxu0
        %2261 = vmatprep.mubr.bf16.mxu0 %v1225
        %2262 = vmatmul.mubr.bf16.gmra.mrb[0].mxu0 %v1224
        %v2263 = vpop.f32.mrb[0].mxu0
        %v2264 = vadd.f32 %v1975, %v2263
        %v2265 = vpop.f32.mrb[0].mxu0
        %v2266 = vpop.f32.mrb[0].mxu0
        %v2267 = vadd.f32 %v1978, %v2266
        %v2268 = vpop.f32.mrb[0].mxu0
        %2269 = vmatprep.mubr.bf16.mxu0 %v1231
        %2270 = vmatmul.mubr.bf16.gmra.mrb[0].mxu0 %v1230
        %v2271 = vpop.f32.mrb[0].mxu0
        %v2272 = vadd.f32 %v1983, %v2271
        %v2273 = vpop.f32.mrb[0].mxu0
        %v2274 = vpop.f32.mrb[0].mxu0
        %v2275 = vadd.f32 %v1986, %v2274
        %v2276 = vpop.f32.mrb[0].mxu0
        %2277 = vmatprep.mubr.bf16.mxu0 %v1237
        %2278 = vmatmul.mubr.bf16.gmra.mrb[0].mxu0 %v1236
        %v2279 = vpop.f32.mrb[0].mxu0
        %v2280 = vadd.f32 %v1991, %v2279
        %v2281 = vpop.f32.mrb[0].mxu0
        %v2282 = vpop.f32.mrb[0].mxu0
        %v2283 = vadd.f32 %v1994, %v2282
        %v2284 = vpop.f32.mrb[0].mxu0
        %2285 = vmatprep.mubr.bf16.mxu0 %v1243
        %2286 = vmatmul.mubr.bf16.gmra.mrb[0].mxu0 %v1242
        %v2287 = vpop.f32.mrb[0].mxu0
        %v2288 = vadd.f32 %v1999, %v2287
        %v2289 = vpop.f32.mrb[0].mxu0
        %v2290 = vpop.f32.mrb[0].mxu0
        %v2291 = vadd.f32 %v2002, %v2290
        %v2292 = vpop.f32.mrb[0].mxu0
        %2293 = vmatprep.mubr.bf16.mxu0 %v1249
        %2294 = vmatmul.mubr.bf16.gmra.mrb[0].mxu0 %v1248
        %v2295 = vpop.f32.mrb[0].mxu0
        %v2296 = vadd.f32 %v2007, %v2295
        %v2297 = vpop.f32.mrb[0].mxu0
        %v2298 = vpop.f32.mrb[0].mxu0
        %v2299 = vadd.f32 %v2010, %v2298
        %v2300 = vpop.f32.mrb[0].mxu0
        %2301 = vmatprep.mubr.bf16.mxu0 %v1255
        %2302 = vmatmul.mubr.bf16.gmra.mrb[0].mxu0 %v1254
        %v2303 = vpop.f32.mrb[0].mxu0
        %v2304 = vadd.f32 %v2015, %v2303
        %v2305 = vpop.f32.mrb[0].mxu0
        %v2306 = vpop.f32.mrb[0].mxu0
        %v2307 = vadd.f32 %v2018, %v2306
        %v2308 = vpop.f32.mrb[0].mxu0
        %2309 = vmatprep.mubr.bf16.mxu0 %v1261
        %2310 = vmatmul.mubr.bf16.gmra.mrb[0].mxu0 %v1260
        %v2311 = vpop.f32.mrb[0].mxu0
        %v2312 = vadd.f32 %v2023, %v2311
        %v2313 = vpop.f32.mrb[0].mxu0
        %v2314 = vpop.f32.mrb[0].mxu0
        %v2315 = vadd.f32 %v2026, %v2314
        %v2316 = vpop.f32.mrb[0].mxu0
        %2317 = vmatprep.mubr.bf16.mxu0 %v1267
        %2318 = vmatmul.mubr.bf16.gmra.mrb[0].mxu0 %v1266
        %v2319 = vpop.f32.mrb[0].mxu0
        %v2320 = vadd.f32 %v2031, %v2319
        %v2321 = vpop.f32.mrb[0].mxu0
        %v2322 = vpop.f32.mrb[0].mxu0
        %v2323 = vadd.f32 %v2034, %v2322
        %v2324 = vpop.f32.mrb[0].mxu0
        %2325 = vmatprep.mubr.bf16.mxu0 %v1273
        %2326 = vmatmul.mubr.bf16.gmra.mrb[0].mxu0 %v1272
        %v2327 = vpop.f32.mrb[0].mxu0
        %v2328 = vadd.f32 %v2039, %v2327
        %v2329 = vpop.f32.mrb[0].mxu0
        %v2330 = vpop.f32.mrb[0].mxu0
        %v2331 = vadd.f32 %v2042, %v2330
        %v2332 = vpop.f32.mrb[0].mxu0
        %2333 = vdwg.mxu0
        %2334 = vmatprep.subr.bf16.mxu0 0
        %2335 = vmatpush1.bf16.msra.mxu0 %v1692
        %2336 = vmatprep.subr.bf16.mxu0 0
        %2337 = vmatpush1.bf16.msra.mxu0 %v1693
        %2338 = vmatprep.subr.bf16.mxu0 0
        %2339 = vmatpush1.bf16.msra.mxu0 %v1694
        %2340 = vmatprep.subr.bf16.mxu0 0
        %2341 = vmatpush1.bf16.msra.mxu0 %v1695
        %2342 = vmatprep.subr.bf16.mxu0 0
        %2343 = vmatpush1.bf16.msra.mxu0 %v1696
        %2344 = vmatprep.subr.bf16.mxu0 0
        %2345 = vmatpush1.bf16.msra.mxu0 %v1697
        %2346 = vmatprep.subr.bf16.mxu0 0
        %2347 = vmatpush1.bf16.msra.mxu0 %v1698
        %2348 = vmatprep.subr.bf16.mxu0 0
        %2349 = vmatpush1.bf16.msra.mxu0 %v1699
        %2350 = vmatprep.subr.bf16.mxu0 0
        %2351 = vmatpush1.bf16.msra.mxu0 %v1700
        %2352 = vmatprep.subr.bf16.mxu0 0
        %2353 = vmatpush1.bf16.msra.mxu0 %v1701
        %2354 = vmatprep.subr.bf16.mxu0 0
        %2355 = vmatpush1.bf16.msra.mxu0 %v1702
        %2356 = vmatprep.subr.bf16.mxu0 0
        %2357 = vmatpush1.bf16.msra.mxu0 %v1703
        %2358 = vmatprep.subr.bf16.mxu0 0
        %2359 = vmatpush1.bf16.msra.mxu0 %v1704
        %2360 = vmatprep.subr.bf16.mxu0 0
        %2361 = vmatpush1.bf16.msra.mxu0 %v1705
        %2362 = vmatprep.subr.bf16.mxu0 0
        %2363 = vmatpush1.bf16.msra.mxu0 %v1706
        %2364 = vmatprep.subr.bf16.mxu0 0
        %2365 = vmatpush1.bf16.msra.mxu0 %v1707
        %2366 = vmatprep.mubr.bf16.mxu0 %v1089
        %2367 = vmatmul.mubr.bf16.gmra.mrb[0].mxu0 %v1088
        %v2368 = vpop.f32.mrb[0].mxu0
        %v2369 = vadd.f32 %v2080, %v2368
        %v2370 = vpop.f32.mrb[0].mxu0
        %v2371 = vpop.f32.mrb[0].mxu0
        %v2372 = vadd.f32 %v2083, %v2371
        %v2373 = vpop.f32.mrb[0].mxu0
        %2374 = vmatprep.mubr.bf16.mxu0 %v1095
        %2375 = vmatmul.mubr.bf16.gmra.mrb[0].mxu0 %v1094
        %v2376 = vpop.f32.mrb[0].mxu0
        %v2377 = vadd.f32 %v2088, %v2376
        %v2378 = vpop.f32.mrb[0].mxu0
        %v2379 = vpop.f32.mrb[0].mxu0
        %v2380 = vadd.f32 %v2091, %v2379
        %v2381 = vpop.f32.mrb[0].mxu0
        %2382 = vmatprep.mubr.bf16.mxu0 %v1101
        %2383 = vmatmul.mubr.bf16.gmra.mrb[0].mxu0 %v1100
        %v2384 = vpop.f32.mrb[0].mxu0
        %v2385 = vadd.f32 %v2096, %v2384
        %v2386 = vpop.f32.mrb[0].mxu0
        %v2387 = vpop.f32.mrb[0].mxu0
        %v2388 = vadd.f32 %v2099, %v2387
        %v2389 = vpop.f32.mrb[0].mxu0
        %2390 = vmatprep.mubr.bf16.mxu0 %v1107
        %2391 = vmatmul.mubr.bf16.gmra.mrb[0].mxu0 %v1106
        %v2392 = vpop.f32.mrb[0].mxu0
        %v2393 = vadd.f32 %v2104, %v2392
        %v2394 = vpop.f32.mrb[0].mxu0
        %v2395 = vpop.f32.mrb[0].mxu0
        %v2396 = vadd.f32 %v2107, %v2395
        %v2397 = vpop.f32.mrb[0].mxu0
        %2398 = vmatprep.mubr.bf16.mxu0 %v1113
        %2399 = vmatmul.mubr.bf16.gmra.mrb[0].mxu0 %v1112
        %v2400 = vpop.f32.mrb[0].mxu0
        %v2401 = vadd.f32 %v2112, %v2400
        %v2402 = vpop.f32.mrb[0].mxu0
        %v2403 = vpop.f32.mrb[0].mxu0
        %v2404 = vadd.f32 %v2115, %v2403
        %v2405 = vpop.f32.mrb[0].mxu0
        %2406 = vmatprep.mubr.bf16.mxu0 %v1119
        %2407 = vmatmul.mubr.bf16.gmra.mrb[0].mxu0 %v1118
        %v2408 = vpop.f32.mrb[0].mxu0
        %v2409 = vadd.f32 %v2120, %v2408
        %v2410 = vpop.f32.mrb[0].mxu0
        %v2411 = vpop.f32.mrb[0].mxu0
        %v2412 = vadd.f32 %v2123, %v2411
        %v2413 = vpop.f32.mrb[0].mxu0
        %2414 = vmatprep.mubr.bf16.mxu0 %v1125
        %2415 = vmatmul.mubr.bf16.gmra.mrb[0].mxu0 %v1124
        %v2416 = vpop.f32.mrb[0].mxu0
        %v2417 = vadd.f32 %v2128, %v2416
        %v2418 = vpop.f32.mrb[0].mxu0
        %v2419 = vpop.f32.mrb[0].mxu0
        %v2420 = vadd.f32 %v2131, %v2419
        %v2421 = vpop.f32.mrb[0].mxu0
        %2422 = vmatprep.mubr.bf16.mxu0 %v1131
        %2423 = vmatmul.mubr.bf16.gmra.mrb[0].mxu0 %v1130
        %v2424 = vpop.f32.mrb[0].mxu0
        %v2425 = vadd.f32 %v2136, %v2424
        %v2426 = vpop.f32.mrb[0].mxu0
        %v2427 = vpop.f32.mrb[0].mxu0
        %v2428 = vadd.f32 %v2139, %v2427
        %v2429 = vpop.f32.mrb[0].mxu0
        %2430 = vmatprep.mubr.bf16.mxu0 %v1137
        %2431 = vmatmul.mubr.bf16.gmra.mrb[0].mxu0 %v1136
        %v2432 = vpop.f32.mrb[0].mxu0
        %v2433 = vadd.f32 %v2144, %v2432
        %v2434 = vpop.f32.mrb[0].mxu0
        %v2435 = vpop.f32.mrb[0].mxu0
        %v2436 = vadd.f32 %v2147, %v2435
        %v2437 = vpop.f32.mrb[0].mxu0
        %2438 = vmatprep.mubr.bf16.mxu0 %v1143
        %2439 = vmatmul.mubr.bf16.gmra.mrb[0].mxu0 %v1142
        %v2440 = vpop.f32.mrb[0].mxu0
        %v2441 = vadd.f32 %v2152, %v2440
        %v2442 = vpop.f32.mrb[0].mxu0
        %v2443 = vpop.f32.mrb[0].mxu0
        %v2444 = vadd.f32 %v2155, %v2443
        %v2445 = vpop.f32.mrb[0].mxu0
        %2446 = vmatprep.mubr.bf16.mxu0 %v1149
        %2447 = vmatmul.mubr.bf16.gmra.mrb[0].mxu0 %v1148
        %v2448 = vpop.f32.mrb[0].mxu0
        %v2449 = vadd.f32 %v2160, %v2448
        %v2450 = vpop.f32.mrb[0].mxu0
        %v2451 = vpop.f32.mrb[0].mxu0
        %v2452 = vadd.f32 %v2163, %v2451
        %v2453 = vpop.f32.mrb[0].mxu0
        %2454 = vmatprep.mubr.bf16.mxu0 %v1155
        %2455 = vmatmul.mubr.bf16.gmra.mrb[0].mxu0 %v1154
        %v2456 = vpop.f32.mrb[0].mxu0
        %v2457 = vadd.f32 %v2168, %v2456
        %v2458 = vpop.f32.mrb[0].mxu0
        %v2459 = vpop.f32.mrb[0].mxu0
        %v2460 = vadd.f32 %v2171, %v2459
        %v2461 = vpop.f32.mrb[0].mxu0
        %2462 = vmatprep.mubr.bf16.mxu0 %v1161
        %2463 = vmatmul.mubr.bf16.gmra.mrb[0].mxu0 %v1160
        %v2464 = vpop.f32.mrb[0].mxu0
        %v2465 = vadd.f32 %v2176, %v2464
        %v2466 = vpop.f32.mrb[0].mxu0
        %v2467 = vpop.f32.mrb[0].mxu0
        %v2468 = vadd.f32 %v2179, %v2467
        %v2469 = vpop.f32.mrb[0].mxu0
        %2470 = vmatprep.mubr.bf16.mxu0 %v1167
        %2471 = vmatmul.mubr.bf16.gmra.mrb[0].mxu0 %v1166
        %v2472 = vpop.f32.mrb[0].mxu0
        %v2473 = vadd.f32 %v2184, %v2472
        %v2474 = vpop.f32.mrb[0].mxu0
        %v2475 = vpop.f32.mrb[0].mxu0
        %v2476 = vadd.f32 %v2187, %v2475
        %v2477 = vpop.f32.mrb[0].mxu0
        %2478 = vmatprep.mubr.bf16.mxu0 %v1173
        %2479 = vmatmul.mubr.bf16.gmra.mrb[0].mxu0 %v1172
        %v2480 = vpop.f32.mrb[0].mxu0
        %v2481 = vadd.f32 %v2192, %v2480
        %v2482 = vpop.f32.mrb[0].mxu0
        %v2483 = vpop.f32.mrb[0].mxu0
        %v2484 = vadd.f32 %v2195, %v2483
        %v2485 = vpop.f32.mrb[0].mxu0
        %2486 = vmatprep.mubr.bf16.mxu0 %v1179
        %2487 = vmatmul.mubr.bf16.gmra.mrb[0].mxu0 %v1178
        %v2488 = vpop.f32.mrb[0].mxu0
        %v2489 = vadd.f32 %v2200, %v2488
        %v2490 = vpop.f32.mrb[0].mxu0
        %v2491 = vpop.f32.mrb[0].mxu0
        %v2492 = vadd.f32 %v2203, %v2491
        %v2493 = vpop.f32.mrb[0].mxu0
        %2494 = vmatprep.mubr.bf16.mxu0 %v1185
        %2495 = vmatmul.mubr.bf16.gmra.mrb[0].mxu0 %v1184
        %v2496 = vpop.f32.mrb[0].mxu0
        %v2497 = vadd.f32 %v2208, %v2496
        %v2498 = vpop.f32.mrb[0].mxu0
        %v2499 = vpop.f32.mrb[0].mxu0
        %v2500 = vadd.f32 %v2211, %v2499
        %v2501 = vpop.f32.mrb[0].mxu0
        %2502 = vmatprep.mubr.bf16.mxu0 %v1191
        %2503 = vmatmul.mubr.bf16.gmra.mrb[0].mxu0 %v1190
        %v2504 = vpop.f32.mrb[0].mxu0
        %v2505 = vadd.f32 %v2216, %v2504
        %v2506 = vpop.f32.mrb[0].mxu0
        %v2507 = vpop.f32.mrb[0].mxu0
        %v2508 = vadd.f32 %v2219, %v2507
        %v2509 = vpop.f32.mrb[0].mxu0
        %2510 = vmatprep.mubr.bf16.mxu0 %v1197
        %2511 = vmatmul.mubr.bf16.gmra.mrb[0].mxu0 %v1196
        %v2512 = vpop.f32.mrb[0].mxu0
        %v2513 = vadd.f32 %v2224, %v2512
        %v2514 = vpop.f32.mrb[0].mxu0
        %v2515 = vpop.f32.mrb[0].mxu0
        %v2516 = vadd.f32 %v2227, %v2515
        %v2517 = vpop.f32.mrb[0].mxu0
        %2518 = vmatprep.mubr.bf16.mxu0 %v1203
        %2519 = vmatmul.mubr.bf16.gmra.mrb[0].mxu0 %v1202
        %v2520 = vpop.f32.mrb[0].mxu0
        %v2521 = vadd.f32 %v2232, %v2520
        %v2522 = vpop.f32.mrb[0].mxu0
        %v2523 = vpop.f32.mrb[0].mxu0
        %v2524 = vadd.f32 %v2235, %v2523
        %v2525 = vpop.f32.mrb[0].mxu0
        %2526 = vmatprep.mubr.bf16.mxu0 %v1209
        %2527 = vmatmul.mubr.bf16.gmra.mrb[0].mxu0 %v1208
        %v2528 = vpop.f32.mrb[0].mxu0
        %v2529 = vadd.f32 %v2240, %v2528
        %v2530 = vpop.f32.mrb[0].mxu0
        %v2531 = vpop.f32.mrb[0].mxu0
        %v2532 = vadd.f32 %v2243, %v2531
        %v2533 = vpop.f32.mrb[0].mxu0
        %2534 = vmatprep.mubr.bf16.mxu0 %v1215
        %2535 = vmatmul.mubr.bf16.gmra.mrb[0].mxu0 %v1214
        %v2536 = vpop.f32.mrb[0].mxu0
        %v2537 = vadd.f32 %v2248, %v2536
        %v2538 = vpop.f32.mrb[0].mxu0
        %v2539 = vpop.f32.mrb[0].mxu0
        %v2540 = vadd.f32 %v2251, %v2539
        %v2541 = vpop.f32.mrb[0].mxu0
        %2542 = vmatprep.mubr.bf16.mxu0 %v1221
        %2543 = vmatmul.mubr.bf16.gmra.mrb[0].mxu0 %v1220
        %v2544 = vpop.f32.mrb[0].mxu0
        %v2545 = vadd.f32 %v2256, %v2544
        %v2546 = vpop.f32.mrb[0].mxu0
        %v2547 = vpop.f32.mrb[0].mxu0
        %v2548 = vadd.f32 %v2259, %v2547
        %v2549 = vpop.f32.mrb[0].mxu0
        %2550 = vmatprep.mubr.bf16.mxu0 %v1227
        %2551 = vmatmul.mubr.bf16.gmra.mrb[0].mxu0 %v1226
        %v2552 = vpop.f32.mrb[0].mxu0
        %v2553 = vadd.f32 %v2264, %v2552
        %v2554 = vpop.f32.mrb[0].mxu0
        %v2555 = vpop.f32.mrb[0].mxu0
        %v2556 = vadd.f32 %v2267, %v2555
        %v2557 = vpop.f32.mrb[0].mxu0
        %2558 = vmatprep.mubr.bf16.mxu0 %v1233
        %2559 = vmatmul.mubr.bf16.gmra.mrb[0].mxu0 %v1232
        %v2560 = vpop.f32.mrb[0].mxu0
        %v2561 = vadd.f32 %v2272, %v2560
        %v2562 = vpop.f32.mrb[0].mxu0
        %v2563 = vpop.f32.mrb[0].mxu0
        %v2564 = vadd.f32 %v2275, %v2563
        %v2565 = vpop.f32.mrb[0].mxu0
        %2566 = vmatprep.mubr.bf16.mxu0 %v1239
        %2567 = vmatmul.mubr.bf16.gmra.mrb[0].mxu0 %v1238
        %v2568 = vpop.f32.mrb[0].mxu0
        %v2569 = vadd.f32 %v2280, %v2568
        %v2570 = vpop.f32.mrb[0].mxu0
        %v2571 = vpop.f32.mrb[0].mxu0
        %v2572 = vadd.f32 %v2283, %v2571
        %v2573 = vpop.f32.mrb[0].mxu0
        %2574 = vmatprep.mubr.bf16.mxu0 %v1245
        %2575 = vmatmul.mubr.bf16.gmra.mrb[0].mxu0 %v1244
        %v2576 = vpop.f32.mrb[0].mxu0
        %v2577 = vadd.f32 %v2288, %v2576
        %v2578 = vpop.f32.mrb[0].mxu0
        %v2579 = vpop.f32.mrb[0].mxu0
        %v2580 = vadd.f32 %v2291, %v2579
        %v2581 = vpop.f32.mrb[0].mxu0
        %2582 = vmatprep.mubr.bf16.mxu0 %v1251
        %2583 = vmatmul.mubr.bf16.gmra.mrb[0].mxu0 %v1250
        %v2584 = vpop.f32.mrb[0].mxu0
        %v2585 = vadd.f32 %v2296, %v2584
        %v2586 = vpop.f32.mrb[0].mxu0
        %v2587 = vpop.f32.mrb[0].mxu0
        %v2588 = vadd.f32 %v2299, %v2587
        %v2589 = vpop.f32.mrb[0].mxu0
        %2590 = vmatprep.mubr.bf16.mxu0 %v1257
        %2591 = vmatmul.mubr.bf16.gmra.mrb[0].mxu0 %v1256
        %v2592 = vpop.f32.mrb[0].mxu0
        %v2593 = vadd.f32 %v2304, %v2592
        %v2594 = vpop.f32.mrb[0].mxu0
        %v2595 = vpop.f32.mrb[0].mxu0
        %v2596 = vadd.f32 %v2307, %v2595
        %v2597 = vpop.f32.mrb[0].mxu0
        %2598 = vmatprep.mubr.bf16.mxu0 %v1263
        %2599 = vmatmul.mubr.bf16.gmra.mrb[0].mxu0 %v1262
        %v2600 = vpop.f32.mrb[0].mxu0
        %v2601 = vadd.f32 %v2312, %v2600
        %v2602 = vpop.f32.mrb[0].mxu0
        %v2603 = vpop.f32.mrb[0].mxu0
        %v2604 = vadd.f32 %v2315, %v2603
        %v2605 = vpop.f32.mrb[0].mxu0
        %2606 = vmatprep.mubr.bf16.mxu0 %v1269
        %2607 = vmatmul.mubr.bf16.gmra.mrb[0].mxu0 %v1268
        %v2608 = vpop.f32.mrb[0].mxu0
        %v2609 = vadd.f32 %v2320, %v2608
        %v2610 = vpop.f32.mrb[0].mxu0
        %v2611 = vpop.f32.mrb[0].mxu0
        %v2612 = vadd.f32 %v2323, %v2611
        %v2613 = vpop.f32.mrb[0].mxu0
        %2614 = vmatprep.mubr.bf16.mxu0 %v1275
        %2615 = vmatmul.mubr.bf16.gmra.mrb[0].mxu0 %v1274
        %v2616 = vpop.f32.mrb[0].mxu0
        %v2617 = vadd.f32 %v2328, %v2616
        %v2618 = vpop.f32.mrb[0].mxu0
        %v2619 = vpop.f32.mrb[0].mxu0
        %v2620 = vadd.f32 %v2331, %v2619
        %v2621 = vpop.f32.mrb[0].mxu0
        %2622 = vdwg.mxu0
        %v2623 = vld [vmem:[%s2] sm:$0x1]
        %v2625 = vlaneseq
        %v2626 = vshrl.u32 %v2625, 7
        %v2627 = vsub.s32 0, %v2626
        %v2628 = vrot.slane %v2623, %v2627
        %v2630 = vmul.f32 %v2369, %v2628
        %v2631 = vmul.f32 %v2372, %v2628
        %v2632 = vmul.f32 %v2377, %v2628
        %v2633 = vmul.f32 %v2380, %v2628
        %v2634 = vmul.f32 %v2385, %v2628
        %v2635 = vmul.f32 %v2388, %v2628
        %v2636 = vmul.f32 %v2393, %v2628
        %v2637 = vmul.f32 %v2396, %v2628
        %v2638 = vmul.f32 %v2401, %v2628
        %v2639 = vmul.f32 %v2404, %v2628
        %v2640 = vmul.f32 %v2409, %v2628
        %v2641 = vmul.f32 %v2412, %v2628
        %v2642 = vmul.f32 %v2417, %v2628
        %v2643 = vmul.f32 %v2420, %v2628
        %v2644 = vmul.f32 %v2425, %v2628
        %v2645 = vmul.f32 %v2428, %v2628
        %v2646 = vmul.f32 %v2433, %v2628
        %v2647 = vmul.f32 %v2436, %v2628
        %v2648 = vmul.f32 %v2441, %v2628
        %v2649 = vmul.f32 %v2444, %v2628
        %v2650 = vmul.f32 %v2449, %v2628
        %v2651 = vmul.f32 %v2452, %v2628
        %v2652 = vmul.f32 %v2457, %v2628
        %v2653 = vmul.f32 %v2460, %v2628
        %v2654 = vmul.f32 %v2465, %v2628
        %v2655 = vmul.f32 %v2468, %v2628
        %v2656 = vmul.f32 %v2473, %v2628
        %v2657 = vmul.f32 %v2476, %v2628
        %v2658 = vmul.f32 %v2481, %v2628
        %v2659 = vmul.f32 %v2484, %v2628
        %v2660 = vmul.f32 %v2489, %v2628
        %v2661 = vmul.f32 %v2492, %v2628
        %v2662 = vmul.f32 %v2497, %v2628
        %v2663 = vmul.f32 %v2500, %v2628
        %v2664 = vmul.f32 %v2505, %v2628
        %v2665 = vmul.f32 %v2508, %v2628
        %v2666 = vmul.f32 %v2513, %v2628
        %v2667 = vmul.f32 %v2516, %v2628
        %v2668 = vmul.f32 %v2521, %v2628
        %v2669 = vmul.f32 %v2524, %v2628
        %v2670 = vmul.f32 %v2529, %v2628
        %v2671 = vmul.f32 %v2532, %v2628
        %v2672 = vmul.f32 %v2537, %v2628
        %v2673 = vmul.f32 %v2540, %v2628
        %v2674 = vmul.f32 %v2545, %v2628
        %v2675 = vmul.f32 %v2548, %v2628
        %v2676 = vmul.f32 %v2553, %v2628
        %v2677 = vmul.f32 %v2556, %v2628
        %v2678 = vmul.f32 %v2561, %v2628
        %v2679 = vmul.f32 %v2564, %v2628
        %v2680 = vmul.f32 %v2569, %v2628
        %v2681 = vmul.f32 %v2572, %v2628
        %v2682 = vmul.f32 %v2577, %v2628
        %v2683 = vmul.f32 %v2580, %v2628
        %v2684 = vmul.f32 %v2585, %v2628
        %v2685 = vmul.f32 %v2588, %v2628
        %v2686 = vmul.f32 %v2593, %v2628
        %v2687 = vmul.f32 %v2596, %v2628
        %v2688 = vmul.f32 %v2601, %v2628
        %v2689 = vmul.f32 %v2604, %v2628
        %v2690 = vmul.f32 %v2609, %v2628
        %v2691 = vmul.f32 %v2612, %v2628
        %v2692 = vmul.f32 %v2617, %v2628
        %v2693 = vmul.f32 %v2620, %v2628
        %v2694 = vld [vmem:[%s3] sm:$0x1]
        %v2696 = vlaneseq
        %v2697 = vshrl.u32 %v2696, 7
        %v2698 = vsub.s32 0, %v2697
        %v2699 = vrot.slane %v2694, %v2698
        %v2701 = vadd.f32 %v2630, %v2699
        %v2702 = vadd.f32 %v2631, %v2699
        %v2703 = vadd.f32 %v2632, %v2699
        %v2704 = vadd.f32 %v2633, %v2699
        %v2705 = vadd.f32 %v2634, %v2699
        %v2706 = vadd.f32 %v2635, %v2699
        %v2707 = vadd.f32 %v2636, %v2699
        %v2708 = vadd.f32 %v2637, %v2699
        %v2709 = vadd.f32 %v2638, %v2699
        %v2710 = vadd.f32 %v2639, %v2699
        %v2711 = vadd.f32 %v2640, %v2699
        %v2712 = vadd.f32 %v2641, %v2699
        %v2713 = vadd.f32 %v2642, %v2699
        %v2714 = vadd.f32 %v2643, %v2699
        %v2715 = vadd.f32 %v2644, %v2699
        %v2716 = vadd.f32 %v2645, %v2699
        %v2717 = vadd.f32 %v2646, %v2699
        %v2718 = vadd.f32 %v2647, %v2699
        %v2719 = vadd.f32 %v2648, %v2699
        %v2720 = vadd.f32 %v2649, %v2699
        %v2721 = vadd.f32 %v2650, %v2699
        %v2722 = vadd.f32 %v2651, %v2699
        %v2723 = vadd.f32 %v2652, %v2699
        %v2724 = vadd.f32 %v2653, %v2699
        %v2725 = vadd.f32 %v2654, %v2699
        %v2726 = vadd.f32 %v2655, %v2699
        %v2727 = vadd.f32 %v2656, %v2699
        %v2728 = vadd.f32 %v2657, %v2699
        %v2729 = vadd.f32 %v2658, %v2699
        %v2730 = vadd.f32 %v2659, %v2699
        %v2731 = vadd.f32 %v2660, %v2699
        %v2732 = vadd.f32 %v2661, %v2699
        %v2733 = vadd.f32 %v2662, %v2699
        %v2734 = vadd.f32 %v2663, %v2699
        %v2735 = vadd.f32 %v2664, %v2699
        %v2736 = vadd.f32 %v2665, %v2699
        %v2737 = vadd.f32 %v2666, %v2699
        %v2738 = vadd.f32 %v2667, %v2699
        %v2739 = vadd.f32 %v2668, %v2699
        %v2740 = vadd.f32 %v2669, %v2699
        %v2741 = vadd.f32 %v2670, %v2699
        %v2742 = vadd.f32 %v2671, %v2699
        %v2743 = vadd.f32 %v2672, %v2699
        %v2744 = vadd.f32 %v2673, %v2699
        %v2745 = vadd.f32 %v2674, %v2699
        %v2746 = vadd.f32 %v2675, %v2699
        %v2747 = vadd.f32 %v2676, %v2699
        %v2748 = vadd.f32 %v2677, %v2699
        %v2749 = vadd.f32 %v2678, %v2699
        %v2750 = vadd.f32 %v2679, %v2699
        %v2751 = vadd.f32 %v2680, %v2699
        %v2752 = vadd.f32 %v2681, %v2699
        %v2753 = vadd.f32 %v2682, %v2699
        %v2754 = vadd.f32 %v2683, %v2699
        %v2755 = vadd.f32 %v2684, %v2699
        %v2756 = vadd.f32 %v2685, %v2699
        %v2757 = vadd.f32 %v2686, %v2699
        %v2758 = vadd.f32 %v2687, %v2699
        %v2759 = vadd.f32 %v2688, %v2699
        %v2760 = vadd.f32 %v2689, %v2699
        %v2761 = vadd.f32 %v2690, %v2699
        %v2762 = vadd.f32 %v2691, %v2699
        %v2763 = vadd.f32 %v2692, %v2699
        %v2764 = vadd.f32 %v2693, %v2699
        %vm2765 = vcmp.gt.f32.partialorder %v2701, 0.0
        %vm2766 = vcmp.gt.f32.partialorder %v2702, 0.0
        %vm2767 = vcmp.gt.f32.partialorder %v2703, 0.0
        %vm2768 = vcmp.gt.f32.partialorder %v2704, 0.0
        %vm2769 = vcmp.gt.f32.partialorder %v2705, 0.0
        %vm2770 = vcmp.gt.f32.partialorder %v2706, 0.0
        %vm2771 = vcmp.gt.f32.partialorder %v2707, 0.0
        %vm2772 = vcmp.gt.f32.partialorder %v2708, 0.0
        %vm2773 = vcmp.gt.f32.partialorder %v2709, 0.0
        %vm2774 = vcmp.gt.f32.partialorder %v2710, 0.0
        %vm2775 = vcmp.gt.f32.partialorder %v2711, 0.0
        %vm2776 = vcmp.gt.f32.partialorder %v2712, 0.0
        %vm2777 = vcmp.gt.f32.partialorder %v2713, 0.0
        %vm2778 = vcmp.gt.f32.partialorder %v2714, 0.0
        %vm2779 = vcmp.gt.f32.partialorder %v2715, 0.0
        %vm2780 = vcmp.gt.f32.partialorder %v2716, 0.0
        %vm2781 = vcmp.gt.f32.partialorder %v2717, 0.0
        %vm2782 = vcmp.gt.f32.partialorder %v2718, 0.0
        %vm2783 = vcmp.gt.f32.partialorder %v2719, 0.0
        %vm2784 = vcmp.gt.f32.partialorder %v2720, 0.0
        %vm2785 = vcmp.gt.f32.partialorder %v2721, 0.0
        %vm2786 = vcmp.gt.f32.partialorder %v2722, 0.0
        %vm2787 = vcmp.gt.f32.partialorder %v2723, 0.0
        %vm2788 = vcmp.gt.f32.partialorder %v2724, 0.0
        %vm2789 = vcmp.gt.f32.partialorder %v2725, 0.0
        %vm2790 = vcmp.gt.f32.partialorder %v2726, 0.0
        %vm2791 = vcmp.gt.f32.partialorder %v2727, 0.0
        %vm2792 = vcmp.gt.f32.partialorder %v2728, 0.0
        %vm2793 = vcmp.gt.f32.partialorder %v2729, 0.0
        %vm2794 = vcmp.gt.f32.partialorder %v2730, 0.0
        %vm2795 = vcmp.gt.f32.partialorder %v2731, 0.0
        %vm2796 = vcmp.gt.f32.partialorder %v2732, 0.0
        %vm2797 = vcmp.gt.f32.partialorder %v2733, 0.0
        %vm2798 = vcmp.gt.f32.partialorder %v2734, 0.0
        %vm2799 = vcmp.gt.f32.partialorder %v2735, 0.0
        %vm2800 = vcmp.gt.f32.partialorder %v2736, 0.0
        %vm2801 = vcmp.gt.f32.partialorder %v2737, 0.0
        %vm2802 = vcmp.gt.f32.partialorder %v2738, 0.0
        %vm2803 = vcmp.gt.f32.partialorder %v2739, 0.0
        %vm2804 = vcmp.gt.f32.partialorder %v2740, 0.0
        %vm2805 = vcmp.gt.f32.partialorder %v2741, 0.0
        %vm2806 = vcmp.gt.f32.partialorder %v2742, 0.0
        %vm2807 = vcmp.gt.f32.partialorder %v2743, 0.0
        %vm2808 = vcmp.gt.f32.partialorder %v2744, 0.0
        %vm2809 = vcmp.gt.f32.partialorder %v2745, 0.0
        %vm2810 = vcmp.gt.f32.partialorder %v2746, 0.0
        %vm2811 = vcmp.gt.f32.partialorder %v2747, 0.0
        %vm2812 = vcmp.gt.f32.partialorder %v2748, 0.0
        %vm2813 = vcmp.gt.f32.partialorder %v2749, 0.0
        %vm2814 = vcmp.gt.f32.partialorder %v2750, 0.0
        %vm2815 = vcmp.gt.f32.partialorder %v2751, 0.0
        %vm2816 = vcmp.gt.f32.partialorder %v2752, 0.0
        %vm2817 = vcmp.gt.f32.partialorder %v2753, 0.0
        %vm2818 = vcmp.gt.f32.partialorder %v2754, 0.0
        %vm2819 = vcmp.gt.f32.partialorder %v2755, 0.0
        %vm2820 = vcmp.gt.f32.partialorder %v2756, 0.0
        %vm2821 = vcmp.gt.f32.partialorder %v2757, 0.0
        %vm2822 = vcmp.gt.f32.partialorder %v2758, 0.0
        %vm2823 = vcmp.gt.f32.partialorder %v2759, 0.0
        %vm2824 = vcmp.gt.f32.partialorder %v2760, 0.0
        %vm2825 = vcmp.gt.f32.partialorder %v2761, 0.0
        %vm2826 = vcmp.gt.f32.partialorder %v2762, 0.0
        %vm2827 = vcmp.gt.f32.partialorder %v2763, 0.0
        %vm2828 = vcmp.gt.f32.partialorder %v2764, 0.0
        %v2829 = vmin.f32 %v2701, 0.0
        %v2830 = vmin.f32 %v2702, 0.0
        %v2831 = vmin.f32 %v2703, 0.0
        %v2832 = vmin.f32 %v2704, 0.0
        %v2833 = vmin.f32 %v2705, 0.0
        %v2834 = vmin.f32 %v2706, 0.0
        %v2835 = vmin.f32 %v2707, 0.0
        %v2836 = vmin.f32 %v2708, 0.0
        %v2837 = vmin.f32 %v2709, 0.0
        %v2838 = vmin.f32 %v2710, 0.0
        %v2839 = vmin.f32 %v2711, 0.0
        %v2840 = vmin.f32 %v2712, 0.0
        %v2841 = vmin.f32 %v2713, 0.0
        %v2842 = vmin.f32 %v2714, 0.0
        %v2843 = vmin.f32 %v2715, 0.0
        %v2844 = vmin.f32 %v2716, 0.0
        %v2845 = vmin.f32 %v2717, 0.0
        %v2846 = vmin.f32 %v2718, 0.0
        %v2847 = vmin.f32 %v2719, 0.0
        %v2848 = vmin.f32 %v2720, 0.0
        %v2849 = vmin.f32 %v2721, 0.0
        %v2850 = vmin.f32 %v2722, 0.0
        %v2851 = vmin.f32 %v2723, 0.0
        %v2852 = vmin.f32 %v2724, 0.0
        %v2853 = vmin.f32 %v2725, 0.0
        %v2854 = vmin.f32 %v2726, 0.0
        %v2855 = vmin.f32 %v2727, 0.0
        %v2856 = vmin.f32 %v2728, 0.0
        %v2857 = vmin.f32 %v2729, 0.0
        %v2858 = vmin.f32 %v2730, 0.0
        %v2859 = vmin.f32 %v2731, 0.0
        %v2860 = vmin.f32 %v2732, 0.0
        %v2861 = vmin.f32 %v2733, 0.0
        %v2862 = vmin.f32 %v2734, 0.0
        %v2863 = vmin.f32 %v2735, 0.0
        %v2864 = vmin.f32 %v2736, 0.0
        %v2865 = vmin.f32 %v2737, 0.0
        %v2866 = vmin.f32 %v2738, 0.0
        %v2867 = vmin.f32 %v2739, 0.0
        %v2868 = vmin.f32 %v2740, 0.0
        %v2869 = vmin.f32 %v2741, 0.0
        %v2870 = vmin.f32 %v2742, 0.0
        %v2871 = vmin.f32 %v2743, 0.0
        %v2872 = vmin.f32 %v2744, 0.0
        %v2873 = vmin.f32 %v2745, 0.0
        %v2874 = vmin.f32 %v2746, 0.0
        %v2875 = vmin.f32 %v2747, 0.0
        %v2876 = vmin.f32 %v2748, 0.0
        %v2877 = vmin.f32 %v2749, 0.0
        %v2878 = vmin.f32 %v2750, 0.0
        %v2879 = vmin.f32 %v2751, 0.0
        %v2880 = vmin.f32 %v2752, 0.0
        %v2881 = vmin.f32 %v2753, 0.0
        %v2882 = vmin.f32 %v2754, 0.0
        %v2883 = vmin.f32 %v2755, 0.0
        %v2884 = vmin.f32 %v2756, 0.0
        %v2885 = vmin.f32 %v2757, 0.0
        %v2886 = vmin.f32 %v2758, 0.0
        %v2887 = vmin.f32 %v2759, 0.0
        %v2888 = vmin.f32 %v2760, 0.0
        %v2889 = vmin.f32 %v2761, 0.0
        %v2890 = vmin.f32 %v2762, 0.0
        %v2891 = vmin.f32 %v2763, 0.0
        %v2892 = vmin.f32 %v2764, 0.0
        %v2893 = vmul.f32 %v2829, 1.442695
        %v2894 = vpow.pop %v2893
        %v2895 = vmul.f32 %v2830, 1.442695
        %v2896 = vpow.pop %v2895
        %v2897 = vmul.f32 %v2831, 1.442695
        %v2898 = vpow.pop %v2897
        %v2899 = vmul.f32 %v2832, 1.442695
        %v2900 = vpow.pop %v2899
        %v2901 = vmul.f32 %v2833, 1.442695
        %v2902 = vpow.pop %v2901
        %v2903 = vmul.f32 %v2834, 1.442695
        %v2904 = vpow.pop %v2903
        %v2905 = vmul.f32 %v2835, 1.442695
        %v2906 = vpow.pop %v2905
        %v2907 = vmul.f32 %v2836, 1.442695
        %v2908 = vpow.pop %v2907
        %v2909 = vmul.f32 %v2837, 1.442695
        %v2910 = vpow.pop %v2909
        %v2911 = vmul.f32 %v2838, 1.442695
        %v2912 = vpow.pop %v2911
        %v2913 = vmul.f32 %v2839, 1.442695
        %v2914 = vpow.pop %v2913
        %v2915 = vmul.f32 %v2840, 1.442695
        %v2916 = vpow.pop %v2915
        %v2917 = vmul.f32 %v2841, 1.442695
        %v2918 = vpow.pop %v2917
        %v2919 = vmul.f32 %v2842, 1.442695
        %v2920 = vpow.pop %v2919
        %v2921 = vmul.f32 %v2843, 1.442695
        %v2922 = vpow.pop %v2921
        %v2923 = vmul.f32 %v2844, 1.442695
        %v2924 = vpow.pop %v2923
        %v2925 = vmul.f32 %v2845, 1.442695
        %v2926 = vpow.pop %v2925
        %v2927 = vmul.f32 %v2846, 1.442695
        %v2928 = vpow.pop %v2927
        %v2929 = vmul.f32 %v2847, 1.442695
        %v2930 = vpow.pop %v2929
        %v2931 = vmul.f32 %v2848, 1.442695
        %v2932 = vpow.pop %v2931
        %v2933 = vmul.f32 %v2849, 1.442695
        %v2934 = vpow.pop %v2933
        %v2935 = vmul.f32 %v2850, 1.442695
        %v2936 = vpow.pop %v2935
        %v2937 = vmul.f32 %v2851, 1.442695
        %v2938 = vpow.pop %v2937
        %v2939 = vmul.f32 %v2852, 1.442695
        %v2940 = vpow.pop %v2939
        %v2941 = vmul.f32 %v2853, 1.442695
        %v2942 = vpow.pop %v2941
        %v2943 = vmul.f32 %v2854, 1.442695
        %v2944 = vpow.pop %v2943
        %v2945 = vmul.f32 %v2855, 1.442695
        %v2946 = vpow.pop %v2945
        %v2947 = vmul.f32 %v2856, 1.442695
        %v2948 = vpow.pop %v2947
        %v2949 = vmul.f32 %v2857, 1.442695
        %v2950 = vpow.pop %v2949
        %v2951 = vmul.f32 %v2858, 1.442695
        %v2952 = vpow.pop %v2951
        %v2953 = vmul.f32 %v2859, 1.442695
        %v2954 = vpow.pop %v2953
        %v2955 = vmul.f32 %v2860, 1.442695
        %v2956 = vpow.pop %v2955
        %v2957 = vmul.f32 %v2861, 1.442695
        %v2958 = vpow.pop %v2957
        %v2959 = vmul.f32 %v2862, 1.442695
        %v2960 = vpow.pop %v2959
        %v2961 = vmul.f32 %v2863, 1.442695
        %v2962 = vpow.pop %v2961
        %v2963 = vmul.f32 %v2864, 1.442695
        %v2964 = vpow.pop %v2963
        %v2965 = vmul.f32 %v2865, 1.442695
        %v2966 = vpow.pop %v2965
        %v2967 = vmul.f32 %v2866, 1.442695
        %v2968 = vpow.pop %v2967
        %v2969 = vmul.f32 %v2867, 1.442695
        %v2970 = vpow.pop %v2969
        %v2971 = vmul.f32 %v2868, 1.442695
        %v2972 = vpow.pop %v2971
        %v2973 = vmul.f32 %v2869, 1.442695
        %v2974 = vpow.pop %v2973
        %v2975 = vmul.f32 %v2870, 1.442695
        %v2976 = vpow.pop %v2975
        %v2977 = vmul.f32 %v2871, 1.442695
        %v2978 = vpow.pop %v2977
        %v2979 = vmul.f32 %v2872, 1.442695
        %v2980 = vpow.pop %v2979
        %v2981 = vmul.f32 %v2873, 1.442695
        %v2982 = vpow.pop %v2981
        %v2983 = vmul.f32 %v2874, 1.442695
        %v2984 = vpow.pop %v2983
        %v2985 = vmul.f32 %v2875, 1.442695
        %v2986 = vpow.pop %v2985
        %v2987 = vmul.f32 %v2876, 1.442695
        %v2988 = vpow.pop %v2987
        %v2989 = vmul.f32 %v2877, 1.442695
        %v2990 = vpow.pop %v2989
        %v2991 = vmul.f32 %v2878, 1.442695
        %v2992 = vpow.pop %v2991
        %v2993 = vmul.f32 %v2879, 1.442695
        %v2994 = vpow.pop %v2993
        %v2995 = vmul.f32 %v2880, 1.442695
        %v2996 = vpow.pop %v2995
        %v2997 = vmul.f32 %v2881, 1.442695
        %v2998 = vpow.pop %v2997
        %v2999 = vmul.f32 %v2882, 1.442695
        %v3000 = vpow.pop %v2999
        %v3001 = vmul.f32 %v2883, 1.442695
        %v3002 = vpow.pop %v3001
        %v3003 = vmul.f32 %v2884, 1.442695
        %v3004 = vpow.pop %v3003
        %v3005 = vmul.f32 %v2885, 1.442695
        %v3006 = vpow.pop %v3005
        %v3007 = vmul.f32 %v2886, 1.442695
        %v3008 = vpow.pop %v3007
        %v3009 = vmul.f32 %v2887, 1.442695
        %v3010 = vpow.pop %v3009
        %v3011 = vmul.f32 %v2888, 1.442695
        %v3012 = vpow.pop %v3011
        %v3013 = vmul.f32 %v2889, 1.442695
        %v3014 = vpow.pop %v3013
        %v3015 = vmul.f32 %v2890, 1.442695
        %v3016 = vpow.pop %v3015
        %v3017 = vmul.f32 %v2891, 1.442695
        %v3018 = vpow.pop %v3017
        %v3019 = vmul.f32 %v2892, 1.442695
        %v3020 = vpow.pop %v3019
        %v3021 = vsub.f32 %v2894, 1.0
        %v3022 = vsub.f32 %v2896, 1.0
        %v3023 = vsub.f32 %v2898, 1.0
        %v3024 = vsub.f32 %v2900, 1.0
        %v3025 = vsub.f32 %v2902, 1.0
        %v3026 = vsub.f32 %v2904, 1.0
        %v3027 = vsub.f32 %v2906, 1.0
        %v3028 = vsub.f32 %v2908, 1.0
        %v3029 = vsub.f32 %v2910, 1.0
        %v3030 = vsub.f32 %v2912, 1.0
        %v3031 = vsub.f32 %v2914, 1.0
        %v3032 = vsub.f32 %v2916, 1.0
        %v3033 = vsub.f32 %v2918, 1.0
        %v3034 = vsub.f32 %v2920, 1.0
        %v3035 = vsub.f32 %v2922, 1.0
        %v3036 = vsub.f32 %v2924, 1.0
        %v3037 = vsub.f32 %v2926, 1.0
        %v3038 = vsub.f32 %v2928, 1.0
        %v3039 = vsub.f32 %v2930, 1.0
        %v3040 = vsub.f32 %v2932, 1.0
        %v3041 = vsub.f32 %v2934, 1.0
        %v3042 = vsub.f32 %v2936, 1.0
        %v3043 = vsub.f32 %v2938, 1.0
        %v3044 = vsub.f32 %v2940, 1.0
        %v3045 = vsub.f32 %v2942, 1.0
        %v3046 = vsub.f32 %v2944, 1.0
        %v3047 = vsub.f32 %v2946, 1.0
        %v3048 = vsub.f32 %v2948, 1.0
        %v3049 = vsub.f32 %v2950, 1.0
        %v3050 = vsub.f32 %v2952, 1.0
        %v3051 = vsub.f32 %v2954, 1.0
        %v3052 = vsub.f32 %v2956, 1.0
        %v3053 = vsub.f32 %v2958, 1.0
        %v3054 = vsub.f32 %v2960, 1.0
        %v3055 = vsub.f32 %v2962, 1.0
        %v3056 = vsub.f32 %v2964, 1.0
        %v3057 = vsub.f32 %v2966, 1.0
        %v3058 = vsub.f32 %v2968, 1.0
        %v3059 = vsub.f32 %v2970, 1.0
        %v3060 = vsub.f32 %v2972, 1.0
        %v3061 = vsub.f32 %v2974, 1.0
        %v3062 = vsub.f32 %v2976, 1.0
        %v3063 = vsub.f32 %v2978, 1.0
        %v3064 = vsub.f32 %v2980, 1.0
        %v3065 = vsub.f32 %v2982, 1.0
        %v3066 = vsub.f32 %v2984, 1.0
        %v3067 = vsub.f32 %v2986, 1.0
        %v3068 = vsub.f32 %v2988, 1.0
        %v3069 = vsub.f32 %v2990, 1.0
        %v3070 = vsub.f32 %v2992, 1.0
        %v3071 = vsub.f32 %v2994, 1.0
        %v3072 = vsub.f32 %v2996, 1.0
        %v3073 = vsub.f32 %v2998, 1.0
        %v3074 = vsub.f32 %v3000, 1.0
        %v3075 = vsub.f32 %v3002, 1.0
        %v3076 = vsub.f32 %v3004, 1.0
        %v3077 = vsub.f32 %v3006, 1.0
        %v3078 = vsub.f32 %v3008, 1.0
        %v3079 = vsub.f32 %v3010, 1.0
        %v3080 = vsub.f32 %v3012, 1.0
        %v3081 = vsub.f32 %v3014, 1.0
        %v3082 = vsub.f32 %v3016, 1.0
        %v3083 = vsub.f32 %v3018, 1.0
        %v3084 = vsub.f32 %v3020, 1.0
        %v3085 = vsel %vm2765, %v2701, %v3021
        %v3086 = vsel %vm2766, %v2702, %v3022
        %v3087 = vsel %vm2767, %v2703, %v3023
        %v3088 = vsel %vm2768, %v2704, %v3024
        %v3089 = vsel %vm2769, %v2705, %v3025
        %v3090 = vsel %vm2770, %v2706, %v3026
        %v3091 = vsel %vm2771, %v2707, %v3027
        %v3092 = vsel %vm2772, %v2708, %v3028
        %v3093 = vsel %vm2773, %v2709, %v3029
        %v3094 = vsel %vm2774, %v2710, %v3030
        %v3095 = vsel %vm2775, %v2711, %v3031
        %v3096 = vsel %vm2776, %v2712, %v3032
        %v3097 = vsel %vm2777, %v2713, %v3033
        %v3098 = vsel %vm2778, %v2714, %v3034
        %v3099 = vsel %vm2779, %v2715, %v3035
        %v3100 = vsel %vm2780, %v2716, %v3036
        %v3101 = vsel %vm2781, %v2717, %v3037
        %v3102 = vsel %vm2782, %v2718, %v3038
        %v3103 = vsel %vm2783, %v2719, %v3039
        %v3104 = vsel %vm2784, %v2720, %v3040
        %v3105 = vsel %vm2785, %v2721, %v3041
        %v3106 = vsel %vm2786, %v2722, %v3042
        %v3107 = vsel %vm2787, %v2723, %v3043
        %v3108 = vsel %vm2788, %v2724, %v3044
        %v3109 = vsel %vm2789, %v2725, %v3045
        %v3110 = vsel %vm2790, %v2726, %v3046
        %v3111 = vsel %vm2791, %v2727, %v3047
        %v3112 = vsel %vm2792, %v2728, %v3048
        %v3113 = vsel %vm2793, %v2729, %v3049
        %v3114 = vsel %vm2794, %v2730, %v3050
        %v3115 = vsel %vm2795, %v2731, %v3051
        %v3116 = vsel %vm2796, %v2732, %v3052
        %v3117 = vsel %vm2797, %v2733, %v3053
        %v3118 = vsel %vm2798, %v2734, %v3054
        %v3119 = vsel %vm2799, %v2735, %v3055
        %v3120 = vsel %vm2800, %v2736, %v3056
        %v3121 = vsel %vm2801, %v2737, %v3057
        %v3122 = vsel %vm2802, %v2738, %v3058
        %v3123 = vsel %vm2803, %v2739, %v3059
        %v3124 = vsel %vm2804, %v2740, %v3060
        %v3125 = vsel %vm2805, %v2741, %v3061
        %v3126 = vsel %vm2806, %v2742, %v3062
        %v3127 = vsel %vm2807, %v2743, %v3063
        %v3128 = vsel %vm2808, %v2744, %v3064
        %v3129 = vsel %vm2809, %v2745, %v3065
        %v3130 = vsel %vm2810, %v2746, %v3066
        %v3131 = vsel %vm2811, %v2747, %v3067
        %v3132 = vsel %vm2812, %v2748, %v3068
        %v3133 = vsel %vm2813, %v2749, %v3069
        %v3134 = vsel %vm2814, %v2750, %v3070
        %v3135 = vsel %vm2815, %v2751, %v3071
        %v3136 = vsel %vm2816, %v2752, %v3072
        %v3137 = vsel %vm2817, %v2753, %v3073
        %v3138 = vsel %vm2818, %v2754, %v3074
        %v3139 = vsel %vm2819, %v2755, %v3075
        %v3140 = vsel %vm2820, %v2756, %v3076
        %v3141 = vsel %vm2821, %v2757, %v3077
        %v3142 = vsel %vm2822, %v2758, %v3078
        %v3143 = vsel %vm2823, %v2759, %v3079
        %v3144 = vsel %vm2824, %v2760, %v3080
        %v3145 = vsel %vm2825, %v2761, %v3081
        %v3146 = vsel %vm2826, %v2762, %v3082
        %v3147 = vsel %vm2827, %v2763, %v3083
        %v3148 = vsel %vm2828, %v2764, %v3084
        %3149 = vst [vmem:[%s216] sm:$0xff] %v3085
        %3150 = vst [vmem:[%s216 + $0x8] sm:$0xff] %v3086
        %3151 = vst [vmem:[%s216 + $0x10] sm:$0xff] %v3087
        %3152 = vst [vmem:[%s216 + $0x18] sm:$0xff] %v3088
        %3153 = vst [vmem:[%s216 + $0x20] sm:$0xff] %v3089
        %3154 = vst [vmem:[%s216 + $0x28] sm:$0xff] %v3090
        %3155 = vst [vmem:[%s216 + $0x30] sm:$0xff] %v3091
        %3156 = vst [vmem:[%s216 + $0x38] sm:$0xff] %v3092
        %3157 = vst [vmem:[%s216 + $0x40] sm:$0xff] %v3093
        %3158 = vst [vmem:[%s216 + $0x48] sm:$0xff] %v3094
        %3159 = vst [vmem:[%s216 + $0x50] sm:$0xff] %v3095
        %3160 = vst [vmem:[%s216 + $0x58] sm:$0xff] %v3096
        %3161 = vst [vmem:[%s216 + $0x60] sm:$0xff] %v3097
        %3162 = vst [vmem:[%s216 + $0x68] sm:$0xff] %v3098
        %3163 = vst [vmem:[%s216 + $0x70] sm:$0xff] %v3099
        %3164 = vst [vmem:[%s216 + $0x78] sm:$0xff] %v3100
        %3165 = vst [vmem:[%s216 + $0x80] sm:$0xff] %v3101
        %3166 = vst [vmem:[%s216 + $0x88] sm:$0xff] %v3102
        %3167 = vst [vmem:[%s216 + $0x90] sm:$0xff] %v3103
        %3168 = vst [vmem:[%s216 + $0x98] sm:$0xff] %v3104
        %3169 = vst [vmem:[%s216 + $0xa0] sm:$0xff] %v3105
        %3170 = vst [vmem:[%s216 + $0xa8] sm:$0xff] %v3106
        %3171 = vst [vmem:[%s216 + $0xb0] sm:$0xff] %v3107
        %3172 = vst [vmem:[%s216 + $0xb8] sm:$0xff] %v3108
        %3173 = vst [vmem:[%s216 + $0xc0] sm:$0xff] %v3109
        %3174 = vst [vmem:[%s216 + $0xc8] sm:$0xff] %v3110
        %3175 = vst [vmem:[%s216 + $0xd0] sm:$0xff] %v3111
        %3176 = vst [vmem:[%s216 + $0xd8] sm:$0xff] %v3112
        %3177 = vst [vmem:[%s216 + $0xe0] sm:$0xff] %v3113
        %3178 = vst [vmem:[%s216 + $0xe8] sm:$0xff] %v3114
        %3179 = vst [vmem:[%s216 + $0xf0] sm:$0xff] %v3115
        %3180 = vst [vmem:[%s216 + $0xf8] sm:$0xff] %v3116
        %3181 = vst [vmem:[%s216 + $0x100] sm:$0xff] %v3117
        %3182 = vst [vmem:[%s216 + $0x108] sm:$0xff] %v3118
        %3183 = vst [vmem:[%s216 + $0x110] sm:$0xff] %v3119
        %3184 = vst [vmem:[%s216 + $0x118] sm:$0xff] %v3120
        %3185 = vst [vmem:[%s216 + $0x120] sm:$0xff] %v3121
        %3186 = vst [vmem:[%s216 + $0x128] sm:$0xff] %v3122
        %3187 = vst [vmem:[%s216 + $0x130] sm:$0xff] %v3123
        %3188 = vst [vmem:[%s216 + $0x138] sm:$0xff] %v3124
        %3189 = vst [vmem:[%s216 + $0x140] sm:$0xff] %v3125
        %3190 = vst [vmem:[%s216 + $0x148] sm:$0xff] %v3126
        %3191 = vst [vmem:[%s216 + $0x150] sm:$0xff] %v3127
        %3192 = vst [vmem:[%s216 + $0x158] sm:$0xff] %v3128
        %3193 = vst [vmem:[%s216 + $0x160] sm:$0xff] %v3129
        %3194 = vst [vmem:[%s216 + $0x168] sm:$0xff] %v3130
        %3195 = vst [vmem:[%s216 + $0x170] sm:$0xff] %v3131
        %3196 = vst [vmem:[%s216 + $0x178] sm:$0xff] %v3132
        %3197 = vst [vmem:[%s216 + $0x180] sm:$0xff] %v3133
        %3198 = vst [vmem:[%s216 + $0x188] sm:$0xff] %v3134
        %3199 = vst [vmem:[%s216 + $0x190] sm:$0xff] %v3135
        %3200 = vst [vmem:[%s216 + $0x198] sm:$0xff] %v3136
        %3201 = vst [vmem:[%s216 + $0x1a0] sm:$0xff] %v3137
        %3202 = vst [vmem:[%s216 + $0x1a8] sm:$0xff] %v3138
        %3203 = vst [vmem:[%s216 + $0x1b0] sm:$0xff] %v3139
        %3204 = vst [vmem:[%s216 + $0x1b8] sm:$0xff] %v3140
        %3205 = vst [vmem:[%s216 + $0x1c0] sm:$0xff] %v3141
        %3206 = vst [vmem:[%s216 + $0x1c8] sm:$0xff] %v3142
        %3207 = vst [vmem:[%s216 + $0x1d0] sm:$0xff] %v3143
        %3208 = vst [vmem:[%s216 + $0x1d8] sm:$0xff] %v3144
        %3209 = vst [vmem:[%s216 + $0x1e0] sm:$0xff] %v3145
        %3210 = vst [vmem:[%s216 + $0x1e8] sm:$0xff] %v3146
        %3211 = vst [vmem:[%s216 + $0x1f0] sm:$0xff] %v3147
        %3212 = vst [vmem:[%s216 + $0x1f8] sm:$0xff] %v3148
        %s3213 = sand.u32 %s118, 1
        %s3214 = scalar_lea.sflag [#allocation4], %s3213
        %s3215 = sand.u32 %s118, 1
        %s3216 = smul.addr %s3215, 512
        %s3217 = scalar_lea.vmem [#allocation5], %s3216
        // Predicated region
        $region41: #{cnn3d_forward.7} parent=35 // pred_check
          %p3218 = pneg %p128
        $region42: #{cnn3d_forward.7} parent=35 // pred_check_branch
          %3220 = sbr.rel (%p3218) target = $region44
        $region43: #{cnn3d_forward.7} parent=35 // pred_region
          %s3221 = smul.u32 64, %s21
          %s3223 = ssub.s32 8192, 8192
          %3224 = vsyncadd %s3214, %s3223
          %s3225 = smul.addr %s3221, 128
          %s3226 = scalar_lea.hbm %s4, %s3225
          %s3227 = sshll.u32 %s3217, 4
          %s3228 = int_to_ptr.vmem [resolvable:$true] %s3227
          %3233 = dma.vmem_to_hbm [thread:$0]  %s3228, 8192, %s3226, %s3214, 128, 128, 8
        $region44: #{cnn3d_forward.7} parent=35 // pred_fallthru
          _
      $region36: #{cnn3d_forward.7} parent=5 // pred_fallthru
        _
      %p3234 = scmp.le.s32.totalorder 2, %s16
      // Predicated region
      $region45: #{cnn3d_forward.7} parent=5 // pred_check
        %p3235 = pneg %p3234
      $region46: #{cnn3d_forward.7} parent=5 // pred_check_branch
        %3237 = sbr.rel (%p3235) target = $region48
      $region47: #{cnn3d_forward.7} parent=5 // pred_region
        %s3238 = ssub.s32 %s16, 2
        // Predicated region
        $region49: #{cnn3d_forward.7} parent=47 // pred_check
          %p3239 = pneg %p134
        $region50: #{cnn3d_forward.7} parent=47 // pred_check_branch
          %3241 = sbr.rel (%p3239) target = $region52
        $region51: #{cnn3d_forward.7} parent=47 // pred_region
          %s3242 = sand.u32 %s119, 1
          %s3243 = scalar_lea.sflag [#allocation4], %s3242
          %s3244 = sand.u32 %s119, 1
          %s3245 = smul.addr %s3244, 512
          %s3246 = scalar_lea.vmem [#allocation5], %s3245
          %3247 = dma.done %s3243, 8192
        $region52: #{cnn3d_forward.7} parent=47 // pred_fallthru
          _
      $region48: #{cnn3d_forward.7} parent=5 // pred_fallthru
        _
    $region6: #{cnn3d_forward.7} parent=1 // loop_footer
      %s20 = sadd.s32 1, %s16
    $region7: #{cnn3d_forward.7} parent=1 // loop_footer_branch
      %15 = sbr.rel target = $region3
    $region8: #{cnn3d_forward.7} parent=1 // loop_exit
      _
    %3248 = vsyncpa [#allocation3], 1
    %s3249 = scalar_lea.sflag [#allocation3], 1
    %3250 = vsyncpa %s3249, 1
    %3251 = vsyncpa [#allocation4], 1
    %s3252 = scalar_lea.sflag [#allocation4], 1
    %3253 = vsyncpa %s3252, 1

// kernel: cnn3d_forward.8
$region0: #{cnn3d_forward.8}
  #allocation0 [shape = 'u32[]', space=smem, size = 0x4, offset = 0x4, fixed_abs, tag = 'smem constant byte address 0x4 - core index']
  #allocation1 [shape = 'u32[144,128]{1,0:T(1,128)}', space=vmem, size = 0x12000, scoped, tag = 'internal scratch']
  %s0 = inlined_call_operand.vmem [shape: bf16[1024,384], index: 0, kind: input, shape index: {}]
  %s1 = inlined_call_operand.vmem [shape: bf16[384,128], index: 1, kind: input, shape index: {}]
  %s2 = inlined_call_operand.vmem [shape: f32[1,128], index: 2, kind: input, shape index: {}]
  %s3 = inlined_call_operand.vmem [shape: f32[1,128], index: 3, kind: input, shape index: {}]
  %s4 = inlined_call_operand.vmem [shape: f32[1024,128], index: 4, kind: output, shape index: {}]
  %s5 = sld [smem:[#allocation0]]
  $region49: #{cnn3d_forward.8} parent=0
    _
  %s7 = ssub.s32 1, %s5
  %s8 = scalar_select 0, %s7, %s5
  loop: start=0, step=1, limit=4
  $region2: #{cnn3d_forward.8} parent=0 // loop_pre_header
    _
  $region3: #{cnn3d_forward.8} parent=0 // loop_header
    %s10 = sphi 0, %s14
    %p11 = scmp.ge.s32.totalorder %s10, 4
    %s20 = sphi 0, %s22
    %s23 = sphi 0, %s20
    %s24 = sphi 0, %s23
    %s40 = sphi 0, %s24
    %s44 = sphi 0, %s44
    %s46 = sphi 0, %s44
    %s47 = sphi 0, %s46
    %s61 = sphi 0, %s47
    %s65 = sphi 0, %s65
    %s67 = sphi 0, %s65
    %s68 = sphi 0, %s67
    %s82 = sphi 0, %s68
    %s86 = sphi 0, %s86
    %s88 = sphi 0, %s86
    %s89 = sphi 0, %s88
    %s103 = sphi 0, %s89
    %s109 = sphi 0, %s111
    %s112 = sphi 0, %s109
    %s113 = sphi 0, %s112
    %s129 = sphi 0, %s113
  $region4: #{cnn3d_forward.8} parent=0 // loop_header_branch
    %13 = sbr.rel (%p11) target = $region8
  $region5: #{cnn3d_forward.8} parent=0 // loop_body
    %s15 = ssub.s32 %s10, 1
    %s16 = ssub.s32 %s10, 2
    %s17 = sadd.s32 %s10, 1
    %s18 = ssub.s32 %s10, %s17
    %p19 = scmp.eq.s32.totalorder %s18, 0
    %s21 = sadd.s32 %s20, 1
    %s22 = scalar_select %p19, %s20, %s21
    %p25 = pneg %p19
    %p26 = scmp.eq.s32.totalorder %s10, 1
    %p27 = por %p25, %p26
    %p28 = scmp.ne.s32.totalorder %s20, %s23
    %p29 = scmp.eq.s32.totalorder %s10, 0
    %p30 = por %p28, %p29
    %p31 = scmp.ne.s32.totalorder %s20, %s23
    %p32 = scmp.eq.s32.totalorder %s15, 1
    %p33 = por %p31, %p32
    %p34 = scmp.ne.s32.totalorder %s23, %s24
    %p35 = scmp.eq.s32.totalorder %s15, 0
    %p36 = por %p34, %p35
    %p37 = scmp.ne.s32.totalorder %s23, %s24
    %p38 = scmp.eq.s32.totalorder %s16, 1
    %p39 = por %p37, %p38
    %p41 = scmp.ne.s32.totalorder %s24, %s40
    %p42 = scmp.eq.s32.totalorder %s16, 0
    %p43 = por %p41, %p42
    %s45 = sadd.s32 %s44, 1
    %p48 = scmp.eq.s32.totalorder %s10, 1
    %p49 = scmp.ne.s32.totalorder %s44, %s46
    %p50 = scmp.eq.s32.totalorder %s10, 0
    %p51 = por %p49, %p50
    %p52 = scmp.ne.s32.totalorder %s44, %s46
    %p53 = scmp.eq.s32.totalorder %s15, 1
    %p54 = por %p52, %p53
    %p55 = scmp.ne.s32.totalorder %s46, %s47
    %p56 = scmp.eq.s32.totalorder %s15, 0
    %p57 = por %p55, %p56
    %p58 = scmp.ne.s32.totalorder %s46, %s47
    %p59 = scmp.eq.s32.totalorder %s16, 1
    %p60 = por %p58, %p59
    %p62 = scmp.ne.s32.totalorder %s47, %s61
    %p63 = scmp.eq.s32.totalorder %s16, 0
    %p64 = por %p62, %p63
    %s66 = sadd.s32 %s65, 1
    %p69 = scmp.eq.s32.totalorder %s10, 1
    %p70 = scmp.ne.s32.totalorder %s65, %s67
    %p71 = scmp.eq.s32.totalorder %s10, 0
    %p72 = por %p70, %p71
    %p73 = scmp.ne.s32.totalorder %s65, %s67
    %p74 = scmp.eq.s32.totalorder %s15, 1
    %p75 = por %p73, %p74
    %p76 = scmp.ne.s32.totalorder %s67, %s68
    %p77 = scmp.eq.s32.totalorder %s15, 0
    %p78 = por %p76, %p77
    %p79 = scmp.ne.s32.totalorder %s67, %s68
    %p80 = scmp.eq.s32.totalorder %s16, 1
    %p81 = por %p79, %p80
    %p83 = scmp.ne.s32.totalorder %s68, %s82
    %p84 = scmp.eq.s32.totalorder %s16, 0
    %p85 = por %p83, %p84
    %s87 = sadd.s32 %s86, 1
    %p90 = scmp.eq.s32.totalorder %s10, 1
    %p91 = scmp.ne.s32.totalorder %s86, %s88
    %p92 = scmp.eq.s32.totalorder %s10, 0
    %p93 = por %p91, %p92
    %p94 = scmp.ne.s32.totalorder %s86, %s88
    %p95 = scmp.eq.s32.totalorder %s15, 1
    %p96 = por %p94, %p95
    %p97 = scmp.ne.s32.totalorder %s88, %s89
    %p98 = scmp.eq.s32.totalorder %s15, 0
    %p99 = por %p97, %p98
    %p100 = scmp.ne.s32.totalorder %s88, %s89
    %p101 = scmp.eq.s32.totalorder %s16, 1
    %p102 = por %p100, %p101
    %p104 = scmp.ne.s32.totalorder %s89, %s103
    %p105 = scmp.eq.s32.totalorder %s16, 0
    %p106 = por %p104, %p105
    %s107 = ssub.s32 %s10, %s17
    %p108 = scmp.eq.s32.totalorder %s107, 0
    %s110 = sadd.s32 %s109, 1
    %s111 = scalar_select %p108, %s109, %s110
    %p114 = pneg %p108
    %p115 = scmp.eq.s32.totalorder %s10, 1
    %p116 = por %p114, %p115
    %p117 = scmp.ne.s32.totalorder %s109, %s112
    %p118 = scmp.eq.s32.totalorder %s10, 0
    %p119 = por %p117, %p118
    %p120 = scmp.ne.s32.totalorder %s109, %s112
    %p121 = scmp.eq.s32.totalorder %s15, 1
    %p122 = por %p120, %p121
    %p123 = scmp.ne.s32.totalorder %s112, %s113
    %p124 = scmp.eq.s32.totalorder %s15, 0
    %p125 = por %p123, %p124
    %p126 = scmp.ne.s32.totalorder %s112, %s113
    %p127 = scmp.eq.s32.totalorder %s16, 1
    %p128 = por %p126, %p127
    %p130 = scmp.ne.s32.totalorder %s113, %s129
    %p131 = scmp.eq.s32.totalorder %s16, 0
    %p132 = por %p130, %p131
    %p133 = scmp.le.s32.totalorder 1, %s10
    %p134 = scmp.lt.s32.totalorder %s10, 3
    %p135 = pnand %p133, %p134
    %p136 = pneg %p135
    // Predicated region
    $region9: #{cnn3d_forward.8} parent=5 // pred_check
      _
    $region10: #{cnn3d_forward.8} parent=5 // pred_check_branch
      %138 = sbr.rel (%p135) target = $region12
    $region11: #{cnn3d_forward.8} parent=5 // pred_region
      %s139 = ssub.s32 %s10, 1
      // Predicated region
      $region13: #{cnn3d_forward.8} parent=11 // pred_check
        %p140 = pneg %p57
      $region14: #{cnn3d_forward.8} parent=11 // pred_check_branch
        %142 = sbr.rel (%p140) target = $region16
      $region15: #{cnn3d_forward.8} parent=11 // pred_region
        _
      $region16: #{cnn3d_forward.8} parent=11 // pred_fallthru
        _
      // Predicated region
      $region17: #{cnn3d_forward.8} parent=11 // pred_check
        %p143 = pneg %p78
      $region18: #{cnn3d_forward.8} parent=11 // pred_check_branch
        %145 = sbr.rel (%p143) target = $region20
      $region19: #{cnn3d_forward.8} parent=11 // pred_region
        _
      $region20: #{cnn3d_forward.8} parent=11 // pred_fallthru
        _
      // Predicated region
      $region21: #{cnn3d_forward.8} parent=11 // pred_check
        %p146 = pneg %p99
      $region22: #{cnn3d_forward.8} parent=11 // pred_check_branch
        %148 = sbr.rel (%p146) target = $region24
      $region23: #{cnn3d_forward.8} parent=11 // pred_region
        _
      $region24: #{cnn3d_forward.8} parent=11 // pred_fallthru
        _
    $region12: #{cnn3d_forward.8} parent=5 // pred_fallthru
      _
    %p149 = scmp.lt.s32.totalorder %s10, 2
    // Predicated region
    $region25: #{cnn3d_forward.8} parent=5 // pred_check
      %p150 = pneg %p149
    $region26: #{cnn3d_forward.8} parent=5 // pred_check_branch
      %152 = sbr.rel (%p150) target = $region28
    $region27: #{cnn3d_forward.8} parent=5 // pred_region
      // Predicated region
      $region29: #{cnn3d_forward.8} parent=27 // pred_check
        %p153 = pneg %p30
      $region30: #{cnn3d_forward.8} parent=27 // pred_check_branch
        %155 = sbr.rel (%p153) target = $region32
      $region31: #{cnn3d_forward.8} parent=27 // pred_region
        %s156 = smul.u32 64, %s10
        %p157 = scmp.lt.s32.totalorder %s156, 127
        %s158 = scalar_select %p157, %s156, 127
        %s159 = smul.addr %s158, 3
        %s160 = smul.addr %s159, 4
        %s161 = scalar_lea.vmem %s0, %s160
        %s162 = smul.u32 64, %s10
      $region32: #{cnn3d_forward.8} parent=27 // pred_fallthru
        _
    $region28: #{cnn3d_forward.8} parent=5 // pred_fallthru
      _
    %p163 = scmp.le.s32.totalorder 1, %s10
    %p164 = scmp.lt.s32.totalorder %s10, 3
    %p165 = pnand %p163, %p164
    %p166 = pneg %p165
    // Predicated region
    $region33: #{cnn3d_forward.8} parent=5 // pred_check
      _
    $region34: #{cnn3d_forward.8} parent=5 // pred_check_branch
      %168 = sbr.rel (%p165) target = $region36
    $region35: #{cnn3d_forward.8} parent=5 // pred_region
      %s169 = ssub.s32 %s10, 1
      %s170 = smul.u32 64, %s15
      %p171 = scmp.lt.s32.totalorder %s170, 127
      %s172 = scalar_select %p171, %s170, 127
      %s173 = smul.addr %s172, 3
      %s174 = smul.addr %s173, 4
      %s175 = scalar_lea.vmem %s0, %s174
      %p176 = pneg %p36
      %p177 = pneg %p33
      %p178 = pneg %p57
      %p179 = pneg %p54
      %p180 = pneg %p78
      %p181 = pneg %p75
      %p182 = pneg %p99
      %p183 = pneg %p96
      %p184 = pneg %p125
      %p185 = pneg %p122
      %s186 = smul.u32 64, %s15
      %p187 = scmp.lt.s32.totalorder %s186, 127
      %s188 = scalar_select %p187, %s186, 127
      %s189 = smul.addr %s188, 8
      %s190 = scalar_lea.vmem %s4, %s189
      %s191 = smul.u32 64, %s15
      %p192 = scmp.lt.s32.totalorder %s191, 127
      %s193 = scalar_select %p192, %s191, 127
      %s194 = smul.addr %s193, 3
      %s195 = smul.addr %s194, 4
      %s196 = scalar_lea.vmem %s0, %s195
      %s197 = smul.u32 64, %s15
      %s198 = smul.u32 64, %s15
      %p199 = scmp.lt.s32.totalorder %s198, 127
      %s200 = scalar_select %p199, %s198, 127
      %s201 = smul.addr %s200, 8
      %s202 = scalar_lea.vmem %s4, %s201
      %s203 = smul.u32 64, %s15
      %v205 = vld [vmem:[%s196] sm:$0xff]
      %v206 = vld [vmem:[%s196 + $0x8] sm:$0xf]
      %v207 = vld [vmem:[%s196 + $0xc] sm:$0xff]
      %v208 = vld [vmem:[%s196 + $0x14] sm:$0xf]
      %v209 = vld [vmem:[%s196 + $0x18] sm:$0xff]
      %v210 = vld [vmem:[%s196 + $0x20] sm:$0xf]
      %v211 = vld [vmem:[%s196 + $0x24] sm:$0xff]
      %v212 = vld [vmem:[%s196 + $0x2c] sm:$0xf]
      %v213 = vld [vmem:[%s196 + $0x30] sm:$0xff]
      %v214 = vld [vmem:[%s196 + $0x38] sm:$0xf]
      %v215 = vld [vmem:[%s196 + $0x3c] sm:$0xff]
      %v216 = vld [vmem:[%s196 + $0x44] sm:$0xf]
      %v217 = vld [vmem:[%s196 + $0x48] sm:$0xff]
      %v218 = vld [vmem:[%s196 + $0x50] sm:$0xf]
      %v219 = vld [vmem:[%s196 + $0x54] sm:$0xff]
      %v220 = vld [vmem:[%s196 + $0x5c] sm:$0xf]
      %v221 = vld [vmem:[%s196 + $0x60] sm:$0xff]
      %v222 = vld [vmem:[%s196 + $0x68] sm:$0xf]
      %v223 = vld [vmem:[%s196 + $0x6c] sm:$0xff]
      %v224 = vld [vmem:[%s196 + $0x74] sm:$0xf]
      %v225 = vld [vmem:[%s196 + $0x78] sm:$0xff]
      %v226 = vld [vmem:[%s196 + $0x80] sm:$0xf]
      %v227 = vld [vmem:[%s196 + $0x84] sm:$0xff]
      %v228 = vld [vmem:[%s196 + $0x8c] sm:$0xf]
      %v229 = vld [vmem:[%s196 + $0x90] sm:$0xff]
      %v230 = vld [vmem:[%s196 + $0x98] sm:$0xf]
      %v231 = vld [vmem:[%s196 + $0x9c] sm:$0xff]
      %v232 = vld [vmem:[%s196 + $0xa4] sm:$0xf]
      %v233 = vld [vmem:[%s196 + $0xa8] sm:$0xff]
      %v234 = vld [vmem:[%s196 + $0xb0] sm:$0xf]
      %v235 = vld [vmem:[%s196 + $0xb4] sm:$0xff]
      %v236 = vld [vmem:[%s196 + $0xbc] sm:$0xf]
      %v237 = vld [vmem:[%s196 + $0xc0] sm:$0xff]
      %v238 = vld [vmem:[%s196 + $0xc8] sm:$0xf]
      %v239 = vld [vmem:[%s196 + $0xcc] sm:$0xff]
      %v240 = vld [vmem:[%s196 + $0xd4] sm:$0xf]
      %v241 = vld [vmem:[%s196 + $0xd8] sm:$0xff]
      %v242 = vld [vmem:[%s196 + $0xe0] sm:$0xf]
      %v243 = vld [vmem:[%s196 + $0xe4] sm:$0xff]
      %v244 = vld [vmem:[%s196 + $0xec] sm:$0xf]
      %v245 = vld [vmem:[%s196 + $0xf0] sm:$0xff]
      %v246 = vld [vmem:[%s196 + $0xf8] sm:$0xf]
      %v247 = vld [vmem:[%s196 + $0xfc] sm:$0xff]
      %v248 = vld [vmem:[%s196 + $0x104] sm:$0xf]
      %v249 = vld [vmem:[%s196 + $0x108] sm:$0xff]
      %v250 = vld [vmem:[%s196 + $0x110] sm:$0xf]
      %v251 = vld [vmem:[%s196 + $0x114] sm:$0xff]
      %v252 = vld [vmem:[%s196 + $0x11c] sm:$0xf]
      %v253 = vld [vmem:[%s196 + $0x120] sm:$0xff]
      %v254 = vld [vmem:[%s196 + $0x128] sm:$0xf]
      %v255 = vld [vmem:[%s196 + $0x12c] sm:$0xff]
      %v256 = vld [vmem:[%s196 + $0x134] sm:$0xf]
      %v257 = vld [vmem:[%s196 + $0x138] sm:$0xff]
      %v258 = vld [vmem:[%s196 + $0x140] sm:$0xf]
      %v259 = vld [vmem:[%s196 + $0x144] sm:$0xff]
      %v260 = vld [vmem:[%s196 + $0x14c] sm:$0xf]
      %v261 = vld [vmem:[%s196 + $0x150] sm:$0xff]
      %v262 = vld [vmem:[%s196 + $0x158] sm:$0xf]
      %v263 = vld [vmem:[%s196 + $0x15c] sm:$0xff]
      %v264 = vld [vmem:[%s196 + $0x164] sm:$0xf]
      %v265 = vld [vmem:[%s196 + $0x168] sm:$0xff]
      %v266 = vld [vmem:[%s196 + $0x170] sm:$0xf]
      %v267 = vld [vmem:[%s196 + $0x174] sm:$0xff]
      %v268 = vld [vmem:[%s196 + $0x17c] sm:$0xf]
      %v269 = vld [vmem:[%s196 + $0x180] sm:$0xff]
      %v270 = vld [vmem:[%s196 + $0x188] sm:$0xf]
      %v271 = vld [vmem:[%s196 + $0x18c] sm:$0xff]
      %v272 = vld [vmem:[%s196 + $0x194] sm:$0xf]
      %v273 = vld [vmem:[%s196 + $0x198] sm:$0xff]
      %v274 = vld [vmem:[%s196 + $0x1a0] sm:$0xf]
      %v275 = vld [vmem:[%s196 + $0x1a4] sm:$0xff]
      %v276 = vld [vmem:[%s196 + $0x1ac] sm:$0xf]
      %v277 = vld [vmem:[%s196 + $0x1b0] sm:$0xff]
      %v278 = vld [vmem:[%s196 + $0x1b8] sm:$0xf]
      %v279 = vld [vmem:[%s196 + $0x1bc] sm:$0xff]
      %v280 = vld [vmem:[%s196 + $0x1c4] sm:$0xf]
      %v281 = vld [vmem:[%s196 + $0x1c8] sm:$0xff]
      %v282 = vld [vmem:[%s196 + $0x1d0] sm:$0xf]
      %v283 = vld [vmem:[%s196 + $0x1d4] sm:$0xff]
      %v284 = vld [vmem:[%s196 + $0x1dc] sm:$0xf]
      %v285 = vld [vmem:[%s196 + $0x1e0] sm:$0xff]
      %v286 = vld [vmem:[%s196 + $0x1e8] sm:$0xf]
      %v287 = vld [vmem:[%s196 + $0x1ec] sm:$0xff]
      %v288 = vld [vmem:[%s196 + $0x1f4] sm:$0xf]
      %v289 = vld [vmem:[%s196 + $0x1f8] sm:$0xff]
      %v290 = vld [vmem:[%s196 + $0x200] sm:$0xf]
      %v291 = vld [vmem:[%s196 + $0x204] sm:$0xff]
      %v292 = vld [vmem:[%s196 + $0x20c] sm:$0xf]
      %v293 = vld [vmem:[%s196 + $0x210] sm:$0xff]
      %v294 = vld [vmem:[%s196 + $0x218] sm:$0xf]
      %v295 = vld [vmem:[%s196 + $0x21c] sm:$0xff]
      %v296 = vld [vmem:[%s196 + $0x224] sm:$0xf]
      %v297 = vld [vmem:[%s196 + $0x228] sm:$0xff]
      %v298 = vld [vmem:[%s196 + $0x230] sm:$0xf]
      %v299 = vld [vmem:[%s196 + $0x234] sm:$0xff]
      %v300 = vld [vmem:[%s196 + $0x23c] sm:$0xf]
      %v301 = vld [vmem:[%s196 + $0x240] sm:$0xff]
      %v302 = vld [vmem:[%s196 + $0x248] sm:$0xf]
      %v303 = vld [vmem:[%s196 + $0x24c] sm:$0xff]
      %v304 = vld [vmem:[%s196 + $0x254] sm:$0xf]
      %v305 = vld [vmem:[%s196 + $0x258] sm:$0xff]
      %v306 = vld [vmem:[%s196 + $0x260] sm:$0xf]
      %v307 = vld [vmem:[%s196 + $0x264] sm:$0xff]
      %v308 = vld [vmem:[%s196 + $0x26c] sm:$0xf]
      %v309 = vld [vmem:[%s196 + $0x270] sm:$0xff]
      %v310 = vld [vmem:[%s196 + $0x278] sm:$0xf]
      %v311 = vld [vmem:[%s196 + $0x27c] sm:$0xff]
      %v312 = vld [vmem:[%s196 + $0x284] sm:$0xf]
      %v313 = vld [vmem:[%s196 + $0x288] sm:$0xff]
      %v314 = vld [vmem:[%s196 + $0x290] sm:$0xf]
      %v315 = vld [vmem:[%s196 + $0x294] sm:$0xff]
      %v316 = vld [vmem:[%s196 + $0x29c] sm:$0xf]
      %v317 = vld [vmem:[%s196 + $0x2a0] sm:$0xff]
      %v318 = vld [vmem:[%s196 + $0x2a8] sm:$0xf]
      %v319 = vld [vmem:[%s196 + $0x2ac] sm:$0xff]
      %v320 = vld [vmem:[%s196 + $0x2b4] sm:$0xf]
      %v321 = vld [vmem:[%s196 + $0x2b8] sm:$0xff]
      %v322 = vld [vmem:[%s196 + $0x2c0] sm:$0xf]
      %v323 = vld [vmem:[%s196 + $0x2c4] sm:$0xff]
      %v324 = vld [vmem:[%s196 + $0x2cc] sm:$0xf]
      %v325 = vld [vmem:[%s196 + $0x2d0] sm:$0xff]
      %v326 = vld [vmem:[%s196 + $0x2d8] sm:$0xf]
      %v327 = vld [vmem:[%s196 + $0x2dc] sm:$0xff]
      %v328 = vld [vmem:[%s196 + $0x2e4] sm:$0xf]
      %v329 = vld [vmem:[%s196 + $0x2e8] sm:$0xff]
      %v330 = vld [vmem:[%s196 + $0x2f0] sm:$0xf]
      %v331 = vld [vmem:[%s196 + $0x2f4] sm:$0xff]
      %v332 = vld [vmem:[%s196 + $0x2fc] sm:$0xf]
      %v333 = vld [vmem:[%s1] sm:$0xf]
      %v334 = vld [vmem:[%s1 + $0x4] sm:$0xf]
      %v335 = vld [vmem:[%s1 + $0x8] sm:$0xf]
      %v336 = vld [vmem:[%s1 + $0xc] sm:$0xf]
      %v337 = vld [vmem:[%s1 + $0x10] sm:$0xf]
      %v338 = vld [vmem:[%s1 + $0x14] sm:$0xf]
      %v339 = vld [vmem:[%s1 + $0x18] sm:$0xf]
      %v340 = vld [vmem:[%s1 + $0x1c] sm:$0xf]
      %v341 = vld [vmem:[%s1 + $0x20] sm:$0xf]
      %v342 = vld [vmem:[%s1 + $0x24] sm:$0xf]
      %v343 = vld [vmem:[%s1 + $0x28] sm:$0xf]
      %v344 = vld [vmem:[%s1 + $0x2c] sm:$0xf]
      %v345 = vld [vmem:[%s1 + $0x30] sm:$0xf]
      %v346 = vld [vmem:[%s1 + $0x34] sm:$0xf]
      %v347 = vld [vmem:[%s1 + $0x38] sm:$0xf]
      %v348 = vld [vmem:[%s1 + $0x3c] sm:$0xf]
      %v349 = vld [vmem:[%s1 + $0x40] sm:$0xf]
      %v350 = vld [vmem:[%s1 + $0x44] sm:$0xf]
      %v351 = vld [vmem:[%s1 + $0x48] sm:$0xf]
      %v352 = vld [vmem:[%s1 + $0x4c] sm:$0xf]
      %v353 = vld [vmem:[%s1 + $0x50] sm:$0xf]
      %v354 = vld [vmem:[%s1 + $0x54] sm:$0xf]
      %v355 = vld [vmem:[%s1 + $0x58] sm:$0xf]
      %v356 = vld [vmem:[%s1 + $0x5c] sm:$0xf]
      %v357 = vld [vmem:[%s1 + $0x60] sm:$0xf]
      %v358 = vld [vmem:[%s1 + $0x64] sm:$0xf]
      %v359 = vld [vmem:[%s1 + $0x68] sm:$0xf]
      %v360 = vld [vmem:[%s1 + $0x6c] sm:$0xf]
      %v361 = vld [vmem:[%s1 + $0x70] sm:$0xf]
      %v362 = vld [vmem:[%s1 + $0x74] sm:$0xf]
      %v363 = vld [vmem:[%s1 + $0x78] sm:$0xf]
      %v364 = vld [vmem:[%s1 + $0x7c] sm:$0xf]
      %v365 = vld [vmem:[%s1 + $0x80] sm:$0xf]
      %v366 = vld [vmem:[%s1 + $0x84] sm:$0xf]
      %v367 = vld [vmem:[%s1 + $0x88] sm:$0xf]
      %v368 = vld [vmem:[%s1 + $0x8c] sm:$0xf]
      %v369 = vld [vmem:[%s1 + $0x90] sm:$0xf]
      %v370 = vld [vmem:[%s1 + $0x94] sm:$0xf]
      %v371 = vld [vmem:[%s1 + $0x98] sm:$0xf]
      %v372 = vld [vmem:[%s1 + $0x9c] sm:$0xf]
      %v373 = vld [vmem:[%s1 + $0xa0] sm:$0xf]
      %v374 = vld [vmem:[%s1 + $0xa4] sm:$0xf]
      %v375 = vld [vmem:[%s1 + $0xa8] sm:$0xf]
      %v376 = vld [vmem:[%s1 + $0xac] sm:$0xf]
      %v377 = vld [vmem:[%s1 + $0xb0] sm:$0xf]
      %v378 = vld [vmem:[%s1 + $0xb4] sm:$0xf]
      %v379 = vld [vmem:[%s1 + $0xb8] sm:$0xf]
      %v380 = vld [vmem:[%s1 + $0xbc] sm:$0xf]
      %v509 = vunpack.c.l.b16 %v205
      %v510 = vunpack.c.h.b16 %v205
      %v511 = vunpack.c.l.b16 %v206
      %v512 = vunpack.c.l.b16 %v207
      %v513 = vunpack.c.h.b16 %v207
      %v514 = vunpack.c.l.b16 %v208
      %v515 = vunpack.c.l.b16 %v209
      %v516 = vunpack.c.h.b16 %v209
      %v517 = vunpack.c.l.b16 %v210
      %v518 = vunpack.c.l.b16 %v211
      %v519 = vunpack.c.h.b16 %v211
      %v520 = vunpack.c.l.b16 %v212
      %v521 = vunpack.c.l.b16 %v213
      %v522 = vunpack.c.h.b16 %v213
      %v523 = vunpack.c.l.b16 %v214
      %v524 = vunpack.c.l.b16 %v215
      %v525 = vunpack.c.h.b16 %v215
      %v526 = vunpack.c.l.b16 %v216
      %v527 = vunpack.c.l.b16 %v217
      %v528 = vunpack.c.h.b16 %v217
      %v529 = vunpack.c.l.b16 %v218
      %v530 = vunpack.c.l.b16 %v219
      %v531 = vunpack.c.h.b16 %v219
      %v532 = vunpack.c.l.b16 %v220
      %v533 = vunpack.c.l.b16 %v221
      %v534 = vunpack.c.h.b16 %v221
      %v535 = vunpack.c.l.b16 %v222
      %v536 = vunpack.c.l.b16 %v223
      %v537 = vunpack.c.h.b16 %v223
      %v538 = vunpack.c.l.b16 %v224
      %v539 = vunpack.c.l.b16 %v225
      %v540 = vunpack.c.h.b16 %v225
      %v541 = vunpack.c.l.b16 %v226
      %v542 = vunpack.c.l.b16 %v227
      %v543 = vunpack.c.h.b16 %v227
      %v544 = vunpack.c.l.b16 %v228
      %v545 = vunpack.c.l.b16 %v229
      %v546 = vunpack.c.h.b16 %v229
      %v547 = vunpack.c.l.b16 %v230
      %v548 = vunpack.c.l.b16 %v231
      %v549 = vunpack.c.h.b16 %v231
      %v550 = vunpack.c.l.b16 %v232
      %v551 = vunpack.c.l.b16 %v233
      %v552 = vunpack.c.h.b16 %v233
      %v553 = vunpack.c.l.b16 %v234
      %v554 = vunpack.c.l.b16 %v235
      %v555 = vunpack.c.h.b16 %v235
      %v556 = vunpack.c.l.b16 %v236
      %v557 = vunpack.c.l.b16 %v237
      %v558 = vunpack.c.h.b16 %v237
      %v559 = vunpack.c.l.b16 %v238
      %v560 = vunpack.c.l.b16 %v239
      %v561 = vunpack.c.h.b16 %v239
      %v562 = vunpack.c.l.b16 %v240
      %v563 = vunpack.c.l.b16 %v241
      %v564 = vunpack.c.h.b16 %v241
      %v565 = vunpack.c.l.b16 %v242
      %v566 = vunpack.c.l.b16 %v243
      %v567 = vunpack.c.h.b16 %v243
      %v568 = vunpack.c.l.b16 %v244
      %v569 = vunpack.c.l.b16 %v245
      %v570 = vunpack.c.h.b16 %v245
      %v571 = vunpack.c.l.b16 %v246
      %v572 = vunpack.c.l.b16 %v247
      %v573 = vunpack.c.h.b16 %v247
      %v574 = vunpack.c.l.b16 %v248
      %v575 = vunpack.c.l.b16 %v249
      %v576 = vunpack.c.h.b16 %v249
      %v577 = vunpack.c.l.b16 %v250
      %v578 = vunpack.c.l.b16 %v251
      %v579 = vunpack.c.h.b16 %v251
      %v580 = vunpack.c.l.b16 %v252
      %v581 = vunpack.c.l.b16 %v253
      %v582 = vunpack.c.h.b16 %v253
      %v583 = vunpack.c.l.b16 %v254
      %v584 = vunpack.c.l.b16 %v255
      %v585 = vunpack.c.h.b16 %v255
      %v586 = vunpack.c.l.b16 %v256
      %v587 = vunpack.c.l.b16 %v257
      %v588 = vunpack.c.h.b16 %v257
      %v589 = vunpack.c.l.b16 %v258
      %v590 = vunpack.c.l.b16 %v259
      %v591 = vunpack.c.h.b16 %v259
      %v592 = vunpack.c.l.b16 %v260
      %v593 = vunpack.c.l.b16 %v261
      %v594 = vunpack.c.h.b16 %v261
      %v595 = vunpack.c.l.b16 %v262
      %v596 = vunpack.c.l.b16 %v263
      %v597 = vunpack.c.h.b16 %v263
      %v598 = vunpack.c.l.b16 %v264
      %v599 = vunpack.c.l.b16 %v265
      %v600 = vunpack.c.h.b16 %v265
      %v601 = vunpack.c.l.b16 %v266
      %v602 = vunpack.c.l.b16 %v267
      %v603 = vunpack.c.h.b16 %v267
      %v604 = vunpack.c.l.b16 %v268
      %v605 = vunpack.c.l.b16 %v269
      %v606 = vunpack.c.h.b16 %v269
      %v607 = vunpack.c.l.b16 %v270
      %v608 = vunpack.c.l.b16 %v271
      %v609 = vunpack.c.h.b16 %v271
      %v610 = vunpack.c.l.b16 %v272
      %v611 = vunpack.c.l.b16 %v273
      %v612 = vunpack.c.h.b16 %v273
      %v613 = vunpack.c.l.b16 %v274
      %v614 = vunpack.c.l.b16 %v275
      %v615 = vunpack.c.h.b16 %v275
      %v616 = vunpack.c.l.b16 %v276
      %v617 = vunpack.c.l.b16 %v277
      %v618 = vunpack.c.h.b16 %v277
      %v619 = vunpack.c.l.b16 %v278
      %v620 = vunpack.c.l.b16 %v279
      %v621 = vunpack.c.h.b16 %v279
      %v622 = vunpack.c.l.b16 %v280
      %v623 = vunpack.c.l.b16 %v281
      %v624 = vunpack.c.h.b16 %v281
      %v625 = vunpack.c.l.b16 %v282
      %v626 = vunpack.c.l.b16 %v283
      %v627 = vunpack.c.h.b16 %v283
      %v628 = vunpack.c.l.b16 %v284
      %v629 = vunpack.c.l.b16 %v285
      %v630 = vunpack.c.h.b16 %v285
      %v631 = vunpack.c.l.b16 %v286
      %v632 = vunpack.c.l.b16 %v287
      %v633 = vunpack.c.h.b16 %v287
      %v634 = vunpack.c.l.b16 %v288
      %v635 = vunpack.c.l.b16 %v289
      %v636 = vunpack.c.h.b16 %v289
      %v637 = vunpack.c.l.b16 %v290
      %v638 = vunpack.c.l.b16 %v291
      %v639 = vunpack.c.h.b16 %v291
      %v640 = vunpack.c.l.b16 %v292
      %v641 = vunpack.c.l.b16 %v293
      %v642 = vunpack.c.h.b16 %v293
      %v643 = vunpack.c.l.b16 %v294
      %v644 = vunpack.c.l.b16 %v295
      %v645 = vunpack.c.h.b16 %v295
      %v646 = vunpack.c.l.b16 %v296
      %v647 = vunpack.c.l.b16 %v297
      %v648 = vunpack.c.h.b16 %v297
      %v649 = vunpack.c.l.b16 %v298
      %v650 = vunpack.c.l.b16 %v299
      %v651 = vunpack.c.h.b16 %v299
      %v652 = vunpack.c.l.b16 %v300
      %v653 = vunpack.c.l.b16 %v301
      %v654 = vunpack.c.h.b16 %v301
      %v655 = vunpack.c.l.b16 %v302
      %v656 = vunpack.c.l.b16 %v303
      %v657 = vunpack.c.h.b16 %v303
      %v658 = vunpack.c.l.b16 %v304
      %v659 = vunpack.c.l.b16 %v305
      %v660 = vunpack.c.h.b16 %v305
      %v661 = vunpack.c.l.b16 %v306
      %v662 = vunpack.c.l.b16 %v307
      %v663 = vunpack.c.h.b16 %v307
      %v664 = vunpack.c.l.b16 %v308
      %v665 = vunpack.c.l.b16 %v309
      %v666 = vunpack.c.h.b16 %v309
      %v667 = vunpack.c.l.b16 %v310
      %v668 = vunpack.c.l.b16 %v311
      %v669 = vunpack.c.h.b16 %v311
      %v670 = vunpack.c.l.b16 %v312
      %v671 = vunpack.c.l.b16 %v313
      %v672 = vunpack.c.h.b16 %v313
      %v673 = vunpack.c.l.b16 %v314
      %v674 = vunpack.c.l.b16 %v315
      %v675 = vunpack.c.h.b16 %v315
      %v676 = vunpack.c.l.b16 %v316
      %v677 = vunpack.c.l.b16 %v317
      %v678 = vunpack.c.h.b16 %v317
      %v679 = vunpack.c.l.b16 %v318
      %v680 = vunpack.c.l.b16 %v319
      %v681 = vunpack.c.h.b16 %v319
      %v682 = vunpack.c.l.b16 %v320
      %v683 = vunpack.c.l.b16 %v321
      %v684 = vunpack.c.h.b16 %v321
      %v685 = vunpack.c.l.b16 %v322
      %v686 = vunpack.c.l.b16 %v323
      %v687 = vunpack.c.h.b16 %v323
      %v688 = vunpack.c.l.b16 %v324
      %v689 = vunpack.c.l.b16 %v325
      %v690 = vunpack.c.h.b16 %v325
      %v691 = vunpack.c.l.b16 %v326
      %v692 = vunpack.c.l.b16 %v327
      %v693 = vunpack.c.h.b16 %v327
      %v694 = vunpack.c.l.b16 %v328
      %v695 = vunpack.c.l.b16 %v329
      %v696 = vunpack.c.h.b16 %v329
      %v697 = vunpack.c.l.b16 %v330
      %v698 = vunpack.c.l.b16 %v331
      %v699 = vunpack.c.h.b16 %v331
      %v700 = vunpack.c.l.b16 %v332
      %v701 = vpack.c.b16 %v512, %v509
      %v702 = vpack.c.b16 %v513, %v510
      %v703 = vpack.c.b16 %v514, %v511
      %v704 = vpack.c.b16 %v518, %v515
      %v705 = vpack.c.b16 %v519, %v516
      %v706 = vpack.c.b16 %v520, %v517
      %v707 = vpack.c.b16 %v524, %v521
      %v708 = vpack.c.b16 %v525, %v522
      %v709 = vpack.c.b16 %v526, %v523
      %v710 = vpack.c.b16 %v530, %v527
      %v711 = vpack.c.b16 %v531, %v528
      %v712 = vpack.c.b16 %v532, %v529
      %v713 = vpack.c.b16 %v536, %v533
      %v714 = vpack.c.b16 %v537, %v534
      %v715 = vpack.c.b16 %v538, %v535
      %v716 = vpack.c.b16 %v542, %v539
      %v717 = vpack.c.b16 %v543, %v540
      %v718 = vpack.c.b16 %v544, %v541
      %v719 = vpack.c.b16 %v548, %v545
      %v720 = vpack.c.b16 %v549, %v546
      %v721 = vpack.c.b16 %v550, %v547
      %v722 = vpack.c.b16 %v554, %v551
      %v723 = vpack.c.b16 %v555, %v552
      %v724 = vpack.c.b16 %v556, %v553
      %v725 = vpack.c.b16 %v560, %v557
      %v726 = vpack.c.b16 %v561, %v558
      %v727 = vpack.c.b16 %v562, %v559
      %v728 = vpack.c.b16 %v566, %v563
      %v729 = vpack.c.b16 %v567, %v564
      %v730 = vpack.c.b16 %v568, %v565
      %v731 = vpack.c.b16 %v572, %v569
      %v732 = vpack.c.b16 %v573, %v570
      %v733 = vpack.c.b16 %v574, %v571
      %v734 = vpack.c.b16 %v578, %v575
      %v735 = vpack.c.b16 %v579, %v576
      %v736 = vpack.c.b16 %v580, %v577
      %v737 = vpack.c.b16 %v584, %v581
      %v738 = vpack.c.b16 %v585, %v582
      %v739 = vpack.c.b16 %v586, %v583
      %v740 = vpack.c.b16 %v590, %v587
      %v741 = vpack.c.b16 %v591, %v588
      %v742 = vpack.c.b16 %v592, %v589
      %v743 = vpack.c.b16 %v596, %v593
      %v744 = vpack.c.b16 %v597, %v594
      %v745 = vpack.c.b16 %v598, %v595
      %v746 = vpack.c.b16 %v602, %v599
      %v747 = vpack.c.b16 %v603, %v600
      %v748 = vpack.c.b16 %v604, %v601
      %v749 = vpack.c.b16 %v608, %v605
      %v750 = vpack.c.b16 %v609, %v606
      %v751 = vpack.c.b16 %v610, %v607
      %v752 = vpack.c.b16 %v614, %v611
      %v753 = vpack.c.b16 %v615, %v612
      %v754 = vpack.c.b16 %v616, %v613
      %v755 = vpack.c.b16 %v620, %v617
      %v756 = vpack.c.b16 %v621, %v618
      %v757 = vpack.c.b16 %v622, %v619
      %v758 = vpack.c.b16 %v626, %v623
      %v759 = vpack.c.b16 %v627, %v624
      %v760 = vpack.c.b16 %v628, %v625
      %v761 = vpack.c.b16 %v632, %v629
      %v762 = vpack.c.b16 %v633, %v630
      %v763 = vpack.c.b16 %v634, %v631
      %v764 = vpack.c.b16 %v638, %v635
      %v765 = vpack.c.b16 %v639, %v636
      %v766 = vpack.c.b16 %v640, %v637
      %v767 = vpack.c.b16 %v644, %v641
      %v768 = vpack.c.b16 %v645, %v642
      %v769 = vpack.c.b16 %v646, %v643
      %v770 = vpack.c.b16 %v650, %v647
      %v771 = vpack.c.b16 %v651, %v648
      %v772 = vpack.c.b16 %v652, %v649
      %v773 = vpack.c.b16 %v656, %v653
      %v774 = vpack.c.b16 %v657, %v654
      %v775 = vpack.c.b16 %v658, %v655
      %v776 = vpack.c.b16 %v662, %v659
      %v777 = vpack.c.b16 %v663, %v660
      %v778 = vpack.c.b16 %v664, %v661
      %v779 = vpack.c.b16 %v668, %v665
      %v780 = vpack.c.b16 %v669, %v666
      %v781 = vpack.c.b16 %v670, %v667
      %v782 = vpack.c.b16 %v674, %v671
      %v783 = vpack.c.b16 %v675, %v672
      %v784 = vpack.c.b16 %v676, %v673
      %v785 = vpack.c.b16 %v680, %v677
      %v786 = vpack.c.b16 %v681, %v678
      %v787 = vpack.c.b16 %v682, %v679
      %v788 = vpack.c.b16 %v686, %v683
      %v789 = vpack.c.b16 %v687, %v684
      %v790 = vpack.c.b16 %v688, %v685
      %v791 = vpack.c.b16 %v692, %v689
      %v792 = vpack.c.b16 %v693, %v690
      %v793 = vpack.c.b16 %v694, %v691
      %v794 = vpack.c.b16 %v698, %v695
      %v795 = vpack.c.b16 %v699, %v696
      %v796 = vpack.c.b16 %v700, %v697
      %v941 = vunpack.c.l.b16 %v333
      %v942 = vunpack.c.l.b16 %v334
      %v943 = vunpack.c.l.b16 %v335
      %v944 = vunpack.c.l.b16 %v336
      %v945 = vunpack.c.l.b16 %v337
      %v946 = vunpack.c.l.b16 %v338
      %v947 = vunpack.c.l.b16 %v339
      %v948 = vunpack.c.l.b16 %v340
      %v949 = vunpack.c.l.b16 %v341
      %v950 = vunpack.c.l.b16 %v342
      %v951 = vunpack.c.l.b16 %v343
      %v952 = vunpack.c.l.b16 %v344
      %v953 = vunpack.c.l.b16 %v345
      %v954 = vunpack.c.l.b16 %v346
      %v955 = vunpack.c.l.b16 %v347
      %v956 = vunpack.c.l.b16 %v348
      %v957 = vunpack.c.l.b16 %v349
      %v958 = vunpack.c.l.b16 %v350
      %v959 = vunpack.c.l.b16 %v351
      %v960 = vunpack.c.l.b16 %v352
      %v961 = vunpack.c.l.b16 %v353
      %v962 = vunpack.c.l.b16 %v354
      %v963 = vunpack.c.l.b16 %v355
      %v964 = vunpack.c.l.b16 %v356
      %v965 = vunpack.c.l.b16 %v357
      %v966 = vunpack.c.l.b16 %v358
      %v967 = vunpack.c.l.b16 %v359
      %v968 = vunpack.c.l.b16 %v360
      %v969 = vunpack.c.l.b16 %v361
      %v970 = vunpack.c.l.b16 %v362
      %v971 = vunpack.c.l.b16 %v363
      %v972 = vunpack.c.l.b16 %v364
      %v973 = vunpack.c.l.b16 %v365
      %v974 = vunpack.c.l.b16 %v366
      %v975 = vunpack.c.l.b16 %v367
      %v976 = vunpack.c.l.b16 %v368
      %v977 = vunpack.c.l.b16 %v369
      %v978 = vunpack.c.l.b16 %v370
      %v979 = vunpack.c.l.b16 %v371
      %v980 = vunpack.c.l.b16 %v372
      %v981 = vunpack.c.l.b16 %v373
      %v982 = vunpack.c.l.b16 %v374
      %v983 = vunpack.c.l.b16 %v375
      %v984 = vunpack.c.l.b16 %v376
      %v985 = vunpack.c.l.b16 %v377
      %v986 = vunpack.c.l.b16 %v378
      %v987 = vunpack.c.l.b16 %v379
      %v988 = vunpack.c.l.b16 %v380
      %v989 = vpack.c.b16 %v942, %v941
      %v990 = vpack.c.b16 %v944, %v943
      %v991 = vpack.c.b16 %v946, %v945
      %v992 = vpack.c.b16 %v948, %v947
      %v993 = vpack.c.b16 %v950, %v949
      %v994 = vpack.c.b16 %v952, %v951
      %v995 = vpack.c.b16 %v954, %v953
      %v996 = vpack.c.b16 %v956, %v955
      %v997 = vpack.c.b16 %v958, %v957
      %v998 = vpack.c.b16 %v960, %v959
      %v999 = vpack.c.b16 %v962, %v961
      %v1000 = vpack.c.b16 %v964, %v963
      %v1001 = vpack.c.b16 %v966, %v965
      %v1002 = vpack.c.b16 %v968, %v967
      %v1003 = vpack.c.b16 %v970, %v969
      %v1004 = vpack.c.b16 %v972, %v971
      %v1005 = vpack.c.b16 %v974, %v973
      %v1006 = vpack.c.b16 %v976, %v975
      %v1007 = vpack.c.b16 %v978, %v977
      %v1008 = vpack.c.b16 %v980, %v979
      %v1009 = vpack.c.b16 %v982, %v981
      %v1010 = vpack.c.b16 %v984, %v983
      %v1011 = vpack.c.b16 %v986, %v985
      %v1012 = vpack.c.b16 %v988, %v987
      %1037 = vmatprep.subr.bf16.mxu0 0
      %1038 = vmatpush1.bf16.msra.mxu0 %v989
      %1039 = vmatprep.subr.bf16.mxu0 0
      %1040 = vmatpush1.bf16.msra.mxu0 %v990
      %1041 = vmatprep.subr.bf16.mxu0 0
      %1042 = vmatpush1.bf16.msra.mxu0 %v991
      %1043 = vmatprep.subr.bf16.mxu0 0
      %1044 = vmatpush1.bf16.msra.mxu0 %v992
      %1045 = vmatprep.subr.bf16.mxu0 0
      %1046 = vmatpush1.bf16.msra.mxu0 %v993
      %1047 = vmatprep.subr.bf16.mxu0 0
      %1048 = vmatpush1.bf16.msra.mxu0 %v994
      %1049 = vmatprep.subr.bf16.mxu0 0
      %1050 = vmatpush1.bf16.msra.mxu0 %v995
      %1051 = vmatprep.subr.bf16.mxu0 0
      %1052 = vmatpush1.bf16.msra.mxu0 %v996
      %1053 = vmatprep.subr.bf16.mxu0 0
      %1054 = vmatpush1.bf16.msra.mxu0 %v997
      %1055 = vmatprep.subr.bf16.mxu0 0
      %1056 = vmatpush1.bf16.msra.mxu0 %v998
      %1057 = vmatprep.subr.bf16.mxu0 0
      %1058 = vmatpush1.bf16.msra.mxu0 %v999
      %1059 = vmatprep.subr.bf16.mxu0 0
      %1060 = vmatpush1.bf16.msra.mxu0 %v1000
      %1061 = vmatprep.subr.bf16.mxu0 0
      %1062 = vmatpush1.bf16.msra.mxu0 %v1001
      %1063 = vmatprep.subr.bf16.mxu0 0
      %1064 = vmatpush1.bf16.msra.mxu0 %v1002
      %1065 = vmatprep.subr.bf16.mxu0 0
      %1066 = vmatpush1.bf16.msra.mxu0 %v1003
      %1067 = vmatprep.subr.bf16.mxu0 0
      %1068 = vmatpush1.bf16.msra.mxu0 %v1004
      %1069 = vmatprep.mubr.bf16.mxu0 %v702
      %1070 = vmatmul.mubr.bf16.gmra.mrb[0].mxu0 %v701
      %v1071 = vpop.f32.mrb[0].mxu0
      %v1072 = vadd.f32 0.0, %v1071
      %v1073 = vpop.f32.mrb[0].mxu0
      %v1074 = vpop.f32.mrb[0].mxu0
      %v1075 = vadd.f32 0.0, %v1074
      %v1076 = vpop.f32.mrb[0].mxu0
      %1077 = vmatprep.mubr.bf16.mxu0 %v705
      %1078 = vmatmul.mubr.bf16.gmra.mrb[0].mxu0 %v704
      %v1079 = vpop.f32.mrb[0].mxu0
      %v1080 = vadd.f32 0.0, %v1079
      %v1081 = vpop.f32.mrb[0].mxu0
      %v1082 = vpop.f32.mrb[0].mxu0
      %v1083 = vadd.f32 0.0, %v1082
      %v1084 = vpop.f32.mrb[0].mxu0
      %1085 = vmatprep.mubr.bf16.mxu0 %v708
      %1086 = vmatmul.mubr.bf16.gmra.mrb[0].mxu0 %v707
      %v1087 = vpop.f32.mrb[0].mxu0
      %v1088 = vadd.f32 0.0, %v1087
      %v1089 = vpop.f32.mrb[0].mxu0
      %v1090 = vpop.f32.mrb[0].mxu0
      %v1091 = vadd.f32 0.0, %v1090
      %v1092 = vpop.f32.mrb[0].mxu0
      %1093 = vmatprep.mubr.bf16.mxu0 %v711
      %1094 = vmatmul.mubr.bf16.gmra.mrb[0].mxu0 %v710
      %v1095 = vpop.f32.mrb[0].mxu0
      %v1096 = vadd.f32 0.0, %v1095
      %v1097 = vpop.f32.mrb[0].mxu0
      %v1098 = vpop.f32.mrb[0].mxu0
      %v1099 = vadd.f32 0.0, %v1098
      %v1100 = vpop.f32.mrb[0].mxu0
      %1101 = vmatprep.mubr.bf16.mxu0 %v714
      %1102 = vmatmul.mubr.bf16.gmra.mrb[0].mxu0 %v713
      %v1103 = vpop.f32.mrb[0].mxu0
      %v1104 = vadd.f32 0.0, %v1103
      %v1105 = vpop.f32.mrb[0].mxu0
      %v1106 = vpop.f32.mrb[0].mxu0
      %v1107 = vadd.f32 0.0, %v1106
      %v1108 = vpop.f32.mrb[0].mxu0
      %1109 = vmatprep.mubr.bf16.mxu0 %v717
      %1110 = vmatmul.mubr.bf16.gmra.mrb[0].mxu0 %v716
      %v1111 = vpop.f32.mrb[0].mxu0
      %v1112 = vadd.f32 0.0, %v1111
      %v1113 = vpop.f32.mrb[0].mxu0
      %v1114 = vpop.f32.mrb[0].mxu0
      %v1115 = vadd.f32 0.0, %v1114
      %v1116 = vpop.f32.mrb[0].mxu0
      %1117 = vmatprep.mubr.bf16.mxu0 %v720
      %1118 = vmatmul.mubr.bf16.gmra.mrb[0].mxu0 %v719
      %v1119 = vpop.f32.mrb[0].mxu0
      %v1120 = vadd.f32 0.0, %v1119
      %v1121 = vpop.f32.mrb[0].mxu0
      %v1122 = vpop.f32.mrb[0].mxu0
      %v1123 = vadd.f32 0.0, %v1122
      %v1124 = vpop.f32.mrb[0].mxu0
      %1125 = vmatprep.mubr.bf16.mxu0 %v723
      %1126 = vmatmul.mubr.bf16.gmra.mrb[0].mxu0 %v722
      %v1127 = vpop.f32.mrb[0].mxu0
      %v1128 = vadd.f32 0.0, %v1127
      %v1129 = vpop.f32.mrb[0].mxu0
      %v1130 = vpop.f32.mrb[0].mxu0
      %v1131 = vadd.f32 0.0, %v1130
      %v1132 = vpop.f32.mrb[0].mxu0
      %1133 = vmatprep.mubr.bf16.mxu0 %v726
      %1134 = vmatmul.mubr.bf16.gmra.mrb[0].mxu0 %v725
      %v1135 = vpop.f32.mrb[0].mxu0
      %v1136 = vadd.f32 0.0, %v1135
      %v1137 = vpop.f32.mrb[0].mxu0
      %v1138 = vpop.f32.mrb[0].mxu0
      %v1139 = vadd.f32 0.0, %v1138
      %v1140 = vpop.f32.mrb[0].mxu0
      %1141 = vmatprep.mubr.bf16.mxu0 %v729
      %1142 = vmatmul.mubr.bf16.gmra.mrb[0].mxu0 %v728
      %v1143 = vpop.f32.mrb[0].mxu0
      %v1144 = vadd.f32 0.0, %v1143
      %v1145 = vpop.f32.mrb[0].mxu0
      %v1146 = vpop.f32.mrb[0].mxu0
      %v1147 = vadd.f32 0.0, %v1146
      %v1148 = vpop.f32.mrb[0].mxu0
      %1149 = vmatprep.mubr.bf16.mxu0 %v732
      %1150 = vmatmul.mubr.bf16.gmra.mrb[0].mxu0 %v731
      %v1151 = vpop.f32.mrb[0].mxu0
      %v1152 = vadd.f32 0.0, %v1151
      %v1153 = vpop.f32.mrb[0].mxu0
      %v1154 = vpop.f32.mrb[0].mxu0
      %v1155 = vadd.f32 0.0, %v1154
      %v1156 = vpop.f32.mrb[0].mxu0
      %1157 = vmatprep.mubr.bf16.mxu0 %v735
      %1158 = vmatmul.mubr.bf16.gmra.mrb[0].mxu0 %v734
      %v1159 = vpop.f32.mrb[0].mxu0
      %v1160 = vadd.f32 0.0, %v1159
      %v1161 = vpop.f32.mrb[0].mxu0
      %v1162 = vpop.f32.mrb[0].mxu0
      %v1163 = vadd.f32 0.0, %v1162
      %v1164 = vpop.f32.mrb[0].mxu0
      %1165 = vmatprep.mubr.bf16.mxu0 %v738
      %1166 = vmatmul.mubr.bf16.gmra.mrb[0].mxu0 %v737
      %v1167 = vpop.f32.mrb[0].mxu0
      %v1168 = vadd.f32 0.0, %v1167
      %v1169 = vpop.f32.mrb[0].mxu0
      %v1170 = vpop.f32.mrb[0].mxu0
      %v1171 = vadd.f32 0.0, %v1170
      %v1172 = vpop.f32.mrb[0].mxu0
      %1173 = vmatprep.mubr.bf16.mxu0 %v741
      %1174 = vmatmul.mubr.bf16.gmra.mrb[0].mxu0 %v740
      %v1175 = vpop.f32.mrb[0].mxu0
      %v1176 = vadd.f32 0.0, %v1175
      %v1177 = vpop.f32.mrb[0].mxu0
      %v1178 = vpop.f32.mrb[0].mxu0
      %v1179 = vadd.f32 0.0, %v1178
      %v1180 = vpop.f32.mrb[0].mxu0
      %1181 = vmatprep.mubr.bf16.mxu0 %v744
      %1182 = vmatmul.mubr.bf16.gmra.mrb[0].mxu0 %v743
      %v1183 = vpop.f32.mrb[0].mxu0
      %v1184 = vadd.f32 0.0, %v1183
      %v1185 = vpop.f32.mrb[0].mxu0
      %v1186 = vpop.f32.mrb[0].mxu0
      %v1187 = vadd.f32 0.0, %v1186
      %v1188 = vpop.f32.mrb[0].mxu0
      %1189 = vmatprep.mubr.bf16.mxu0 %v747
      %1190 = vmatmul.mubr.bf16.gmra.mrb[0].mxu0 %v746
      %v1191 = vpop.f32.mrb[0].mxu0
      %v1192 = vadd.f32 0.0, %v1191
      %v1193 = vpop.f32.mrb[0].mxu0
      %v1194 = vpop.f32.mrb[0].mxu0
      %v1195 = vadd.f32 0.0, %v1194
      %v1196 = vpop.f32.mrb[0].mxu0
      %1197 = vmatprep.mubr.bf16.mxu0 %v750
      %1198 = vmatmul.mubr.bf16.gmra.mrb[0].mxu0 %v749
      %v1199 = vpop.f32.mrb[0].mxu0
      %v1200 = vadd.f32 0.0, %v1199
      %v1201 = vpop.f32.mrb[0].mxu0
      %v1202 = vpop.f32.mrb[0].mxu0
      %v1203 = vadd.f32 0.0, %v1202
      %v1204 = vpop.f32.mrb[0].mxu0
      %1205 = vmatprep.mubr.bf16.mxu0 %v753
      %1206 = vmatmul.mubr.bf16.gmra.mrb[0].mxu0 %v752
      %v1207 = vpop.f32.mrb[0].mxu0
      %v1208 = vadd.f32 0.0, %v1207
      %v1209 = vpop.f32.mrb[0].mxu0
      %v1210 = vpop.f32.mrb[0].mxu0
      %v1211 = vadd.f32 0.0, %v1210
      %v1212 = vpop.f32.mrb[0].mxu0
      %1213 = vmatprep.mubr.bf16.mxu0 %v756
      %1214 = vmatmul.mubr.bf16.gmra.mrb[0].mxu0 %v755
      %v1215 = vpop.f32.mrb[0].mxu0
      %v1216 = vadd.f32 0.0, %v1215
      %v1217 = vpop.f32.mrb[0].mxu0
      %v1218 = vpop.f32.mrb[0].mxu0
      %v1219 = vadd.f32 0.0, %v1218
      %v1220 = vpop.f32.mrb[0].mxu0
      %1221 = vmatprep.mubr.bf16.mxu0 %v759
      %1222 = vmatmul.mubr.bf16.gmra.mrb[0].mxu0 %v758
      %v1223 = vpop.f32.mrb[0].mxu0
      %v1224 = vadd.f32 0.0, %v1223
      %v1225 = vpop.f32.mrb[0].mxu0
      %v1226 = vpop.f32.mrb[0].mxu0
      %v1227 = vadd.f32 0.0, %v1226
      %v1228 = vpop.f32.mrb[0].mxu0
      %1229 = vmatprep.mubr.bf16.mxu0 %v762
      %1230 = vmatmul.mubr.bf16.gmra.mrb[0].mxu0 %v761
      %v1231 = vpop.f32.mrb[0].mxu0
      %v1232 = vadd.f32 0.0, %v1231
      %v1233 = vpop.f32.mrb[0].mxu0
      %v1234 = vpop.f32.mrb[0].mxu0
      %v1235 = vadd.f32 0.0, %v1234
      %v1236 = vpop.f32.mrb[0].mxu0
      %1237 = vmatprep.mubr.bf16.mxu0 %v765
      %1238 = vmatmul.mubr.bf16.gmra.mrb[0].mxu0 %v764
      %v1239 = vpop.f32.mrb[0].mxu0
      %v1240 = vadd.f32 0.0, %v1239
      %v1241 = vpop.f32.mrb[0].mxu0
      %v1242 = vpop.f32.mrb[0].mxu0
      %v1243 = vadd.f32 0.0, %v1242
      %v1244 = vpop.f32.mrb[0].mxu0
      %1245 = vmatprep.mubr.bf16.mxu0 %v768
      %1246 = vmatmul.mubr.bf16.gmra.mrb[0].mxu0 %v767
      %v1247 = vpop.f32.mrb[0].mxu0
      %v1248 = vadd.f32 0.0, %v1247
      %v1249 = vpop.f32.mrb[0].mxu0
      %v1250 = vpop.f32.mrb[0].mxu0
      %v1251 = vadd.f32 0.0, %v1250
      %v1252 = vpop.f32.mrb[0].mxu0
      %1253 = vmatprep.mubr.bf16.mxu0 %v771
      %1254 = vmatmul.mubr.bf16.gmra.mrb[0].mxu0 %v770
      %v1255 = vpop.f32.mrb[0].mxu0
      %v1256 = vadd.f32 0.0, %v1255
      %v1257 = vpop.f32.mrb[0].mxu0
      %v1258 = vpop.f32.mrb[0].mxu0
      %v1259 = vadd.f32 0.0, %v1258
      %v1260 = vpop.f32.mrb[0].mxu0
      %1261 = vmatprep.mubr.bf16.mxu0 %v774
      %1262 = vmatmul.mubr.bf16.gmra.mrb[0].mxu0 %v773
      %v1263 = vpop.f32.mrb[0].mxu0
      %v1264 = vadd.f32 0.0, %v1263
      %v1265 = vpop.f32.mrb[0].mxu0
      %v1266 = vpop.f32.mrb[0].mxu0
      %v1267 = vadd.f32 0.0, %v1266
      %v1268 = vpop.f32.mrb[0].mxu0
      %1269 = vmatprep.mubr.bf16.mxu0 %v777
      %1270 = vmatmul.mubr.bf16.gmra.mrb[0].mxu0 %v776
      %v1271 = vpop.f32.mrb[0].mxu0
      %v1272 = vadd.f32 0.0, %v1271
      %v1273 = vpop.f32.mrb[0].mxu0
      %v1274 = vpop.f32.mrb[0].mxu0
      %v1275 = vadd.f32 0.0, %v1274
      %v1276 = vpop.f32.mrb[0].mxu0
      %1277 = vmatprep.mubr.bf16.mxu0 %v780
      %1278 = vmatmul.mubr.bf16.gmra.mrb[0].mxu0 %v779
      %v1279 = vpop.f32.mrb[0].mxu0
      %v1280 = vadd.f32 0.0, %v1279
      %v1281 = vpop.f32.mrb[0].mxu0
      %v1282 = vpop.f32.mrb[0].mxu0
      %v1283 = vadd.f32 0.0, %v1282
      %v1284 = vpop.f32.mrb[0].mxu0
      %1285 = vmatprep.mubr.bf16.mxu0 %v783
      %1286 = vmatmul.mubr.bf16.gmra.mrb[0].mxu0 %v782
      %v1287 = vpop.f32.mrb[0].mxu0
      %v1288 = vadd.f32 0.0, %v1287
      %v1289 = vpop.f32.mrb[0].mxu0
      %v1290 = vpop.f32.mrb[0].mxu0
      %v1291 = vadd.f32 0.0, %v1290
      %v1292 = vpop.f32.mrb[0].mxu0
      %1293 = vmatprep.mubr.bf16.mxu0 %v786
      %1294 = vmatmul.mubr.bf16.gmra.mrb[0].mxu0 %v785
      %v1295 = vpop.f32.mrb[0].mxu0
      %v1296 = vadd.f32 0.0, %v1295
      %v1297 = vpop.f32.mrb[0].mxu0
      %v1298 = vpop.f32.mrb[0].mxu0
      %v1299 = vadd.f32 0.0, %v1298
      %v1300 = vpop.f32.mrb[0].mxu0
      %1301 = vmatprep.mubr.bf16.mxu0 %v789
      %1302 = vmatmul.mubr.bf16.gmra.mrb[0].mxu0 %v788
      %v1303 = vpop.f32.mrb[0].mxu0
      %v1304 = vadd.f32 0.0, %v1303
      %v1305 = vpop.f32.mrb[0].mxu0
      %v1306 = vpop.f32.mrb[0].mxu0
      %v1307 = vadd.f32 0.0, %v1306
      %v1308 = vpop.f32.mrb[0].mxu0
      %1309 = vmatprep.mubr.bf16.mxu0 %v792
      %1310 = vmatmul.mubr.bf16.gmra.mrb[0].mxu0 %v791
      %v1311 = vpop.f32.mrb[0].mxu0
      %v1312 = vadd.f32 0.0, %v1311
      %v1313 = vpop.f32.mrb[0].mxu0
      %v1314 = vpop.f32.mrb[0].mxu0
      %v1315 = vadd.f32 0.0, %v1314
      %v1316 = vpop.f32.mrb[0].mxu0
      %1317 = vmatprep.mubr.bf16.mxu0 %v795
      %1318 = vmatmul.mubr.bf16.gmra.mrb[0].mxu0 %v794
      %v1319 = vpop.f32.mrb[0].mxu0
      %v1320 = vadd.f32 0.0, %v1319
      %v1321 = vpop.f32.mrb[0].mxu0
      %v1322 = vpop.f32.mrb[0].mxu0
      %v1323 = vadd.f32 0.0, %v1322
      %v1324 = vpop.f32.mrb[0].mxu0
      %1325 = vdwg.mxu0
      %1326 = vmatprep.subr.bf16.mxu0 0
      %1327 = vmatpush1.bf16.msra.mxu0 %v1005
      %1328 = vmatprep.subr.bf16.mxu0 0
      %1329 = vmatpush1.bf16.msra.mxu0 %v1006
      %1330 = vmatprep.subr.bf16.mxu0 0
      %1331 = vmatpush1.bf16.msra.mxu0 %v1007
      %1332 = vmatprep.subr.bf16.mxu0 0
      %1333 = vmatpush1.bf16.msra.mxu0 %v1008
      %1334 = vmatprep.subr.bf16.mxu0 0
      %1335 = vmatpush1.bf16.msra.mxu0 %v1009
      %1336 = vmatprep.subr.bf16.mxu0 0
      %1337 = vmatpush1.bf16.msra.mxu0 %v1010
      %1338 = vmatprep.subr.bf16.mxu0 0
      %1339 = vmatpush1.bf16.msra.mxu0 %v1011
      %1340 = vmatprep.subr.bf16.mxu0 0
      %1341 = vmatpush1.bf16.msra.mxu0 %v1012
      %1342 = vmatprep.subr.bf16.mxu0 0
      %1343 = vmatpush1.bf16.msra.mxu0 0
      %1344 = vmatprep.subr.bf16.mxu0 0
      %1345 = vmatpush1.bf16.msra.mxu0 0
      %1346 = vmatprep.subr.bf16.mxu0 0
      %1347 = vmatpush1.bf16.msra.mxu0 0
      %1348 = vmatprep.subr.bf16.mxu0 0
      %1349 = vmatpush1.bf16.msra.mxu0 0
      %1350 = vmatprep.subr.bf16.mxu0 0
      %1351 = vmatpush1.bf16.msra.mxu0 0
      %1352 = vmatprep.subr.bf16.mxu0 0
      %1353 = vmatpush1.bf16.msra.mxu0 0
      %1354 = vmatprep.subr.bf16.mxu0 0
      %1355 = vmatpush1.bf16.msra.mxu0 0
      %1356 = vmatprep.subr.bf16.mxu0 0
      %1357 = vmatpush1.bf16.msra.mxu0 0
      %1358 = vmatprep.mubr.bf16.mxu0 0
      %1359 = vmatmul.mubr.bf16.gmra.mrb[0].mxu0 %v703
      %v1360 = vpop.f32.mrb[0].mxu0
      %v1361 = vadd.f32 %v1072, %v1360
      %v1362 = vpop.f32.mrb[0].mxu0
      %v1363 = vpop.f32.mrb[0].mxu0
      %v1364 = vadd.f32 %v1075, %v1363
      %v1365 = vpop.f32.mrb[0].mxu0
      %1366 = vmatprep.mubr.bf16.mxu0 0
      %1367 = vmatmul.mubr.bf16.gmra.mrb[0].mxu0 %v706
      %v1368 = vpop.f32.mrb[0].mxu0
      %v1369 = vadd.f32 %v1080, %v1368
      %v1370 = vpop.f32.mrb[0].mxu0
      %v1371 = vpop.f32.mrb[0].mxu0
      %v1372 = vadd.f32 %v1083, %v1371
      %v1373 = vpop.f32.mrb[0].mxu0
      %1374 = vmatprep.mubr.bf16.mxu0 0
      %1375 = vmatmul.mubr.bf16.gmra.mrb[0].mxu0 %v709
      %v1376 = vpop.f32.mrb[0].mxu0
      %v1377 = vadd.f32 %v1088, %v1376
      %v1378 = vpop.f32.mrb[0].mxu0
      %v1379 = vpop.f32.mrb[0].mxu0
      %v1380 = vadd.f32 %v1091, %v1379
      %v1381 = vpop.f32.mrb[0].mxu0
      %1382 = vmatprep.mubr.bf16.mxu0 0
      %1383 = vmatmul.mubr.bf16.gmra.mrb[0].mxu0 %v712
      %v1384 = vpop.f32.mrb[0].mxu0
      %v1385 = vadd.f32 %v1096, %v1384
      %v1386 = vpop.f32.mrb[0].mxu0
      %v1387 = vpop.f32.mrb[0].mxu0
      %v1388 = vadd.f32 %v1099, %v1387
      %v1389 = vpop.f32.mrb[0].mxu0
      %1390 = vmatprep.mubr.bf16.mxu0 0
      %1391 = vmatmul.mubr.bf16.gmra.mrb[0].mxu0 %v715
      %v1392 = vpop.f32.mrb[0].mxu0
      %v1393 = vadd.f32 %v1104, %v1392
      %v1394 = vpop.f32.mrb[0].mxu0
      %v1395 = vpop.f32.mrb[0].mxu0
      %v1396 = vadd.f32 %v1107, %v1395
      %v1397 = vpop.f32.mrb[0].mxu0
      %1398 = vmatprep.mubr.bf16.mxu0 0
      %1399 = vmatmul.mubr.bf16.gmra.mrb[0].mxu0 %v718
      %v1400 = vpop.f32.mrb[0].mxu0
      %v1401 = vadd.f32 %v1112, %v1400
      %v1402 = vpop.f32.mrb[0].mxu0
      %v1403 = vpop.f32.mrb[0].mxu0
      %v1404 = vadd.f32 %v1115, %v1403
      %v1405 = vpop.f32.mrb[0].mxu0
      %1406 = vmatprep.mubr.bf16.mxu0 0
      %1407 = vmatmul.mubr.bf16.gmra.mrb[0].mxu0 %v721
      %v1408 = vpop.f32.mrb[0].mxu0
      %v1409 = vadd.f32 %v1120, %v1408
      %v1410 = vpop.f32.mrb[0].mxu0
      %v1411 = vpop.f32.mrb[0].mxu0
      %v1412 = vadd.f32 %v1123, %v1411
      %v1413 = vpop.f32.mrb[0].mxu0
      %1414 = vmatprep.mubr.bf16.mxu0 0
      %1415 = vmatmul.mubr.bf16.gmra.mrb[0].mxu0 %v724
      %v1416 = vpop.f32.mrb[0].mxu0
      %v1417 = vadd.f32 %v1128, %v1416
      %v1418 = vpop.f32.mrb[0].mxu0
      %v1419 = vpop.f32.mrb[0].mxu0
      %v1420 = vadd.f32 %v1131, %v1419
      %v1421 = vpop.f32.mrb[0].mxu0
      %1422 = vmatprep.mubr.bf16.mxu0 0
      %1423 = vmatmul.mubr.bf16.gmra.mrb[0].mxu0 %v727
      %v1424 = vpop.f32.mrb[0].mxu0
      %v1425 = vadd.f32 %v1136, %v1424
      %v1426 = vpop.f32.mrb[0].mxu0
      %v1427 = vpop.f32.mrb[0].mxu0
      %v1428 = vadd.f32 %v1139, %v1427
      %v1429 = vpop.f32.mrb[0].mxu0
      %1430 = vmatprep.mubr.bf16.mxu0 0
      %1431 = vmatmul.mubr.bf16.gmra.mrb[0].mxu0 %v730
      %v1432 = vpop.f32.mrb[0].mxu0
      %v1433 = vadd.f32 %v1144, %v1432
      %v1434 = vpop.f32.mrb[0].mxu0
      %v1435 = vpop.f32.mrb[0].mxu0
      %v1436 = vadd.f32 %v1147, %v1435
      %v1437 = vpop.f32.mrb[0].mxu0
      %1438 = vmatprep.mubr.bf16.mxu0 0
      %1439 = vmatmul.mubr.bf16.gmra.mrb[0].mxu0 %v733
      %v1440 = vpop.f32.mrb[0].mxu0
      %v1441 = vadd.f32 %v1152, %v1440
      %v1442 = vpop.f32.mrb[0].mxu0
      %v1443 = vpop.f32.mrb[0].mxu0
      %v1444 = vadd.f32 %v1155, %v1443
      %v1445 = vpop.f32.mrb[0].mxu0
      %1446 = vmatprep.mubr.bf16.mxu0 0
      %1447 = vmatmul.mubr.bf16.gmra.mrb[0].mxu0 %v736
      %v1448 = vpop.f32.mrb[0].mxu0
      %v1449 = vadd.f32 %v1160, %v1448
      %v1450 = vpop.f32.mrb[0].mxu0
      %v1451 = vpop.f32.mrb[0].mxu0
      %v1452 = vadd.f32 %v1163, %v1451
      %v1453 = vpop.f32.mrb[0].mxu0
      %1454 = vmatprep.mubr.bf16.mxu0 0
      %1455 = vmatmul.mubr.bf16.gmra.mrb[0].mxu0 %v739
      %v1456 = vpop.f32.mrb[0].mxu0
      %v1457 = vadd.f32 %v1168, %v1456
      %v1458 = vpop.f32.mrb[0].mxu0
      %v1459 = vpop.f32.mrb[0].mxu0
      %v1460 = vadd.f32 %v1171, %v1459
      %v1461 = vpop.f32.mrb[0].mxu0
      %1462 = vmatprep.mubr.bf16.mxu0 0
      %1463 = vmatmul.mubr.bf16.gmra.mrb[0].mxu0 %v742
      %v1464 = vpop.f32.mrb[0].mxu0
      %v1465 = vadd.f32 %v1176, %v1464
      %v1466 = vpop.f32.mrb[0].mxu0
      %v1467 = vpop.f32.mrb[0].mxu0
      %v1468 = vadd.f32 %v1179, %v1467
      %v1469 = vpop.f32.mrb[0].mxu0
      %1470 = vmatprep.mubr.bf16.mxu0 0
      %1471 = vmatmul.mubr.bf16.gmra.mrb[0].mxu0 %v745
      %v1472 = vpop.f32.mrb[0].mxu0
      %v1473 = vadd.f32 %v1184, %v1472
      %v1474 = vpop.f32.mrb[0].mxu0
      %v1475 = vpop.f32.mrb[0].mxu0
      %v1476 = vadd.f32 %v1187, %v1475
      %v1477 = vpop.f32.mrb[0].mxu0
      %1478 = vmatprep.mubr.bf16.mxu0 0
      %1479 = vmatmul.mubr.bf16.gmra.mrb[0].mxu0 %v748
      %v1480 = vpop.f32.mrb[0].mxu0
      %v1481 = vadd.f32 %v1192, %v1480
      %v1482 = vpop.f32.mrb[0].mxu0
      %v1483 = vpop.f32.mrb[0].mxu0
      %v1484 = vadd.f32 %v1195, %v1483
      %v1485 = vpop.f32.mrb[0].mxu0
      %1486 = vmatprep.mubr.bf16.mxu0 0
      %1487 = vmatmul.mubr.bf16.gmra.mrb[0].mxu0 %v751
      %v1488 = vpop.f32.mrb[0].mxu0
      %v1489 = vadd.f32 %v1200, %v1488
      %v1490 = vpop.f32.mrb[0].mxu0
      %v1491 = vpop.f32.mrb[0].mxu0
      %v1492 = vadd.f32 %v1203, %v1491
      %v1493 = vpop.f32.mrb[0].mxu0
      %1494 = vmatprep.mubr.bf16.mxu0 0
      %1495 = vmatmul.mubr.bf16.gmra.mrb[0].mxu0 %v754
      %v1496 = vpop.f32.mrb[0].mxu0
      %v1497 = vadd.f32 %v1208, %v1496
      %v1498 = vpop.f32.mrb[0].mxu0
      %v1499 = vpop.f32.mrb[0].mxu0
      %v1500 = vadd.f32 %v1211, %v1499
      %v1501 = vpop.f32.mrb[0].mxu0
      %1502 = vmatprep.mubr.bf16.mxu0 0
      %1503 = vmatmul.mubr.bf16.gmra.mrb[0].mxu0 %v757
      %v1504 = vpop.f32.mrb[0].mxu0
      %v1505 = vadd.f32 %v1216, %v1504
      %v1506 = vpop.f32.mrb[0].mxu0
      %v1507 = vpop.f32.mrb[0].mxu0
      %v1508 = vadd.f32 %v1219, %v1507
      %v1509 = vpop.f32.mrb[0].mxu0
      %1510 = vmatprep.mubr.bf16.mxu0 0
      %1511 = vmatmul.mubr.bf16.gmra.mrb[0].mxu0 %v760
      %v1512 = vpop.f32.mrb[0].mxu0
      %v1513 = vadd.f32 %v1224, %v1512
      %v1514 = vpop.f32.mrb[0].mxu0
      %v1515 = vpop.f32.mrb[0].mxu0
      %v1516 = vadd.f32 %v1227, %v1515
      %v1517 = vpop.f32.mrb[0].mxu0
      %1518 = vmatprep.mubr.bf16.mxu0 0
      %1519 = vmatmul.mubr.bf16.gmra.mrb[0].mxu0 %v763
      %v1520 = vpop.f32.mrb[0].mxu0
      %v1521 = vadd.f32 %v1232, %v1520
      %v1522 = vpop.f32.mrb[0].mxu0
      %v1523 = vpop.f32.mrb[0].mxu0
      %v1524 = vadd.f32 %v1235, %v1523
      %v1525 = vpop.f32.mrb[0].mxu0
      %1526 = vmatprep.mubr.bf16.mxu0 0
      %1527 = vmatmul.mubr.bf16.gmra.mrb[0].mxu0 %v766
      %v1528 = vpop.f32.mrb[0].mxu0
      %v1529 = vadd.f32 %v1240, %v1528
      %v1530 = vpop.f32.mrb[0].mxu0
      %v1531 = vpop.f32.mrb[0].mxu0
      %v1532 = vadd.f32 %v1243, %v1531
      %v1533 = vpop.f32.mrb[0].mxu0
      %1534 = vmatprep.mubr.bf16.mxu0 0
      %1535 = vmatmul.mubr.bf16.gmra.mrb[0].mxu0 %v769
      %v1536 = vpop.f32.mrb[0].mxu0
      %v1537 = vadd.f32 %v1248, %v1536
      %v1538 = vpop.f32.mrb[0].mxu0
      %v1539 = vpop.f32.mrb[0].mxu0
      %v1540 = vadd.f32 %v1251, %v1539
      %v1541 = vpop.f32.mrb[0].mxu0
      %1542 = vmatprep.mubr.bf16.mxu0 0
      %1543 = vmatmul.mubr.bf16.gmra.mrb[0].mxu0 %v772
      %v1544 = vpop.f32.mrb[0].mxu0
      %v1545 = vadd.f32 %v1256, %v1544
      %v1546 = vpop.f32.mrb[0].mxu0
      %v1547 = vpop.f32.mrb[0].mxu0
      %v1548 = vadd.f32 %v1259, %v1547
      %v1549 = vpop.f32.mrb[0].mxu0
      %1550 = vmatprep.mubr.bf16.mxu0 0
      %1551 = vmatmul.mubr.bf16.gmra.mrb[0].mxu0 %v775
      %v1552 = vpop.f32.mrb[0].mxu0
      %v1553 = vadd.f32 %v1264, %v1552
      %v1554 = vpop.f32.mrb[0].mxu0
      %v1555 = vpop.f32.mrb[0].mxu0
      %v1556 = vadd.f32 %v1267, %v1555
      %v1557 = vpop.f32.mrb[0].mxu0
      %1558 = vmatprep.mubr.bf16.mxu0 0
      %1559 = vmatmul.mubr.bf16.gmra.mrb[0].mxu0 %v778
      %v1560 = vpop.f32.mrb[0].mxu0
      %v1561 = vadd.f32 %v1272, %v1560
      %v1562 = vpop.f32.mrb[0].mxu0
      %v1563 = vpop.f32.mrb[0].mxu0
      %v1564 = vadd.f32 %v1275, %v1563
      %v1565 = vpop.f32.mrb[0].mxu0
      %1566 = vmatprep.mubr.bf16.mxu0 0
      %1567 = vmatmul.mubr.bf16.gmra.mrb[0].mxu0 %v781
      %v1568 = vpop.f32.mrb[0].mxu0
      %v1569 = vadd.f32 %v1280, %v1568
      %v1570 = vpop.f32.mrb[0].mxu0
      %v1571 = vpop.f32.mrb[0].mxu0
      %v1572 = vadd.f32 %v1283, %v1571
      %v1573 = vpop.f32.mrb[0].mxu0
      %1574 = vmatprep.mubr.bf16.mxu0 0
      %1575 = vmatmul.mubr.bf16.gmra.mrb[0].mxu0 %v784
      %v1576 = vpop.f32.mrb[0].mxu0
      %v1577 = vadd.f32 %v1288, %v1576
      %v1578 = vpop.f32.mrb[0].mxu0
      %v1579 = vpop.f32.mrb[0].mxu0
      %v1580 = vadd.f32 %v1291, %v1579
      %v1581 = vpop.f32.mrb[0].mxu0
      %1582 = vmatprep.mubr.bf16.mxu0 0
      %1583 = vmatmul.mubr.bf16.gmra.mrb[0].mxu0 %v787
      %v1584 = vpop.f32.mrb[0].mxu0
      %v1585 = vadd.f32 %v1296, %v1584
      %v1586 = vpop.f32.mrb[0].mxu0
      %v1587 = vpop.f32.mrb[0].mxu0
      %v1588 = vadd.f32 %v1299, %v1587
      %v1589 = vpop.f32.mrb[0].mxu0
      %1590 = vmatprep.mubr.bf16.mxu0 0
      %1591 = vmatmul.mubr.bf16.gmra.mrb[0].mxu0 %v790
      %v1592 = vpop.f32.mrb[0].mxu0
      %v1593 = vadd.f32 %v1304, %v1592
      %v1594 = vpop.f32.mrb[0].mxu0
      %v1595 = vpop.f32.mrb[0].mxu0
      %v1596 = vadd.f32 %v1307, %v1595
      %v1597 = vpop.f32.mrb[0].mxu0
      %1598 = vmatprep.mubr.bf16.mxu0 0
      %1599 = vmatmul.mubr.bf16.gmra.mrb[0].mxu0 %v793
      %v1600 = vpop.f32.mrb[0].mxu0
      %v1601 = vadd.f32 %v1312, %v1600
      %v1602 = vpop.f32.mrb[0].mxu0
      %v1603 = vpop.f32.mrb[0].mxu0
      %v1604 = vadd.f32 %v1315, %v1603
      %v1605 = vpop.f32.mrb[0].mxu0
      %1606 = vmatprep.mubr.bf16.mxu0 0
      %1607 = vmatmul.mubr.bf16.gmra.mrb[0].mxu0 %v796
      %v1608 = vpop.f32.mrb[0].mxu0
      %v1609 = vadd.f32 %v1320, %v1608
      %v1610 = vpop.f32.mrb[0].mxu0
      %v1611 = vpop.f32.mrb[0].mxu0
      %v1612 = vadd.f32 %v1323, %v1611
      %v1613 = vpop.f32.mrb[0].mxu0
      %1614 = vdwg.mxu0
      %v1615 = vld [vmem:[%s2] sm:$0x1]
      %v1617 = vlaneseq
      %v1618 = vshrl.u32 %v1617, 7
      %v1619 = vsub.s32 0, %v1618
      %v1620 = vrot.slane %v1615, %v1619
      %v1622 = vmul.f32 %v1361, %v1620
      %v1623 = vmul.f32 %v1364, %v1620
      %v1624 = vmul.f32 %v1369, %v1620
      %v1625 = vmul.f32 %v1372, %v1620
      %v1626 = vmul.f32 %v1377, %v1620
      %v1627 = vmul.f32 %v1380, %v1620
      %v1628 = vmul.f32 %v1385, %v1620
      %v1629 = vmul.f32 %v1388, %v1620
      %v1630 = vmul.f32 %v1393, %v1620
      %v1631 = vmul.f32 %v1396, %v1620
      %v1632 = vmul.f32 %v1401, %v1620
      %v1633 = vmul.f32 %v1404, %v1620
      %v1634 = vmul.f32 %v1409, %v1620
      %v1635 = vmul.f32 %v1412, %v1620
      %v1636 = vmul.f32 %v1417, %v1620
      %v1637 = vmul.f32 %v1420, %v1620
      %v1638 = vmul.f32 %v1425, %v1620
      %v1639 = vmul.f32 %v1428, %v1620
      %v1640 = vmul.f32 %v1433, %v1620
      %v1641 = vmul.f32 %v1436, %v1620
      %v1642 = vmul.f32 %v1441, %v1620
      %v1643 = vmul.f32 %v1444, %v1620
      %v1644 = vmul.f32 %v1449, %v1620
      %v1645 = vmul.f32 %v1452, %v1620
      %v1646 = vmul.f32 %v1457, %v1620
      %v1647 = vmul.f32 %v1460, %v1620
      %v1648 = vmul.f32 %v1465, %v1620
      %v1649 = vmul.f32 %v1468, %v1620
      %v1650 = vmul.f32 %v1473, %v1620
      %v1651 = vmul.f32 %v1476, %v1620
      %v1652 = vmul.f32 %v1481, %v1620
      %v1653 = vmul.f32 %v1484, %v1620
      %v1654 = vmul.f32 %v1489, %v1620
      %v1655 = vmul.f32 %v1492, %v1620
      %v1656 = vmul.f32 %v1497, %v1620
      %v1657 = vmul.f32 %v1500, %v1620
      %v1658 = vmul.f32 %v1505, %v1620
      %v1659 = vmul.f32 %v1508, %v1620
      %v1660 = vmul.f32 %v1513, %v1620
      %v1661 = vmul.f32 %v1516, %v1620
      %v1662 = vmul.f32 %v1521, %v1620
      %v1663 = vmul.f32 %v1524, %v1620
      %v1664 = vmul.f32 %v1529, %v1620
      %v1665 = vmul.f32 %v1532, %v1620
      %v1666 = vmul.f32 %v1537, %v1620
      %v1667 = vmul.f32 %v1540, %v1620
      %v1668 = vmul.f32 %v1545, %v1620
      %v1669 = vmul.f32 %v1548, %v1620
      %v1670 = vmul.f32 %v1553, %v1620
      %v1671 = vmul.f32 %v1556, %v1620
      %v1672 = vmul.f32 %v1561, %v1620
      %v1673 = vmul.f32 %v1564, %v1620
      %v1674 = vmul.f32 %v1569, %v1620
      %v1675 = vmul.f32 %v1572, %v1620
      %v1676 = vmul.f32 %v1577, %v1620
      %v1677 = vmul.f32 %v1580, %v1620
      %v1678 = vmul.f32 %v1585, %v1620
      %v1679 = vmul.f32 %v1588, %v1620
      %v1680 = vmul.f32 %v1593, %v1620
      %v1681 = vmul.f32 %v1596, %v1620
      %v1682 = vmul.f32 %v1601, %v1620
      %v1683 = vmul.f32 %v1604, %v1620
      %v1684 = vmul.f32 %v1609, %v1620
      %v1685 = vmul.f32 %v1612, %v1620
      %v1686 = vld [vmem:[%s3] sm:$0x1]
      %v1688 = vlaneseq
      %v1689 = vshrl.u32 %v1688, 7
      %v1690 = vsub.s32 0, %v1689
      %v1691 = vrot.slane %v1686, %v1690
      %v1693 = vadd.f32 %v1622, %v1691
      %v1694 = vadd.f32 %v1623, %v1691
      %v1695 = vadd.f32 %v1624, %v1691
      %v1696 = vadd.f32 %v1625, %v1691
      %v1697 = vadd.f32 %v1626, %v1691
      %v1698 = vadd.f32 %v1627, %v1691
      %v1699 = vadd.f32 %v1628, %v1691
      %v1700 = vadd.f32 %v1629, %v1691
      %v1701 = vadd.f32 %v1630, %v1691
      %v1702 = vadd.f32 %v1631, %v1691
      %v1703 = vadd.f32 %v1632, %v1691
      %v1704 = vadd.f32 %v1633, %v1691
      %v1705 = vadd.f32 %v1634, %v1691
      %v1706 = vadd.f32 %v1635, %v1691
      %v1707 = vadd.f32 %v1636, %v1691
      %v1708 = vadd.f32 %v1637, %v1691
      %v1709 = vadd.f32 %v1638, %v1691
      %v1710 = vadd.f32 %v1639, %v1691
      %v1711 = vadd.f32 %v1640, %v1691
      %v1712 = vadd.f32 %v1641, %v1691
      %v1713 = vadd.f32 %v1642, %v1691
      %v1714 = vadd.f32 %v1643, %v1691
      %v1715 = vadd.f32 %v1644, %v1691
      %v1716 = vadd.f32 %v1645, %v1691
      %v1717 = vadd.f32 %v1646, %v1691
      %v1718 = vadd.f32 %v1647, %v1691
      %v1719 = vadd.f32 %v1648, %v1691
      %v1720 = vadd.f32 %v1649, %v1691
      %v1721 = vadd.f32 %v1650, %v1691
      %v1722 = vadd.f32 %v1651, %v1691
      %v1723 = vadd.f32 %v1652, %v1691
      %v1724 = vadd.f32 %v1653, %v1691
      %v1725 = vadd.f32 %v1654, %v1691
      %v1726 = vadd.f32 %v1655, %v1691
      %v1727 = vadd.f32 %v1656, %v1691
      %v1728 = vadd.f32 %v1657, %v1691
      %v1729 = vadd.f32 %v1658, %v1691
      %v1730 = vadd.f32 %v1659, %v1691
      %v1731 = vadd.f32 %v1660, %v1691
      %v1732 = vadd.f32 %v1661, %v1691
      %v1733 = vadd.f32 %v1662, %v1691
      %v1734 = vadd.f32 %v1663, %v1691
      %v1735 = vadd.f32 %v1664, %v1691
      %v1736 = vadd.f32 %v1665, %v1691
      %v1737 = vadd.f32 %v1666, %v1691
      %v1738 = vadd.f32 %v1667, %v1691
      %v1739 = vadd.f32 %v1668, %v1691
      %v1740 = vadd.f32 %v1669, %v1691
      %v1741 = vadd.f32 %v1670, %v1691
      %v1742 = vadd.f32 %v1671, %v1691
      %v1743 = vadd.f32 %v1672, %v1691
      %v1744 = vadd.f32 %v1673, %v1691
      %v1745 = vadd.f32 %v1674, %v1691
      %v1746 = vadd.f32 %v1675, %v1691
      %v1747 = vadd.f32 %v1676, %v1691
      %v1748 = vadd.f32 %v1677, %v1691
      %v1749 = vadd.f32 %v1678, %v1691
      %v1750 = vadd.f32 %v1679, %v1691
      %v1751 = vadd.f32 %v1680, %v1691
      %v1752 = vadd.f32 %v1681, %v1691
      %v1753 = vadd.f32 %v1682, %v1691
      %v1754 = vadd.f32 %v1683, %v1691
      %v1755 = vadd.f32 %v1684, %v1691
      %v1756 = vadd.f32 %v1685, %v1691
      %vm1757 = vcmp.gt.f32.partialorder %v1693, 0.0
      %vm1758 = vcmp.gt.f32.partialorder %v1694, 0.0
      %vm1759 = vcmp.gt.f32.partialorder %v1695, 0.0
      %vm1760 = vcmp.gt.f32.partialorder %v1696, 0.0
      %vm1761 = vcmp.gt.f32.partialorder %v1697, 0.0
      %vm1762 = vcmp.gt.f32.partialorder %v1698, 0.0
      %vm1763 = vcmp.gt.f32.partialorder %v1699, 0.0
      %vm1764 = vcmp.gt.f32.partialorder %v1700, 0.0
      %vm1765 = vcmp.gt.f32.partialorder %v1701, 0.0
      %vm1766 = vcmp.gt.f32.partialorder %v1702, 0.0
      %vm1767 = vcmp.gt.f32.partialorder %v1703, 0.0
      %vm1768 = vcmp.gt.f32.partialorder %v1704, 0.0
      %vm1769 = vcmp.gt.f32.partialorder %v1705, 0.0
      %vm1770 = vcmp.gt.f32.partialorder %v1706, 0.0
      %vm1771 = vcmp.gt.f32.partialorder %v1707, 0.0
      %vm1772 = vcmp.gt.f32.partialorder %v1708, 0.0
      %vm1773 = vcmp.gt.f32.partialorder %v1709, 0.0
      %vm1774 = vcmp.gt.f32.partialorder %v1710, 0.0
      %vm1775 = vcmp.gt.f32.partialorder %v1711, 0.0
      %vm1776 = vcmp.gt.f32.partialorder %v1712, 0.0
      %vm1777 = vcmp.gt.f32.partialorder %v1713, 0.0
      %vm1778 = vcmp.gt.f32.partialorder %v1714, 0.0
      %vm1779 = vcmp.gt.f32.partialorder %v1715, 0.0
      %vm1780 = vcmp.gt.f32.partialorder %v1716, 0.0
      %vm1781 = vcmp.gt.f32.partialorder %v1717, 0.0
      %vm1782 = vcmp.gt.f32.partialorder %v1718, 0.0
      %vm1783 = vcmp.gt.f32.partialorder %v1719, 0.0
      %vm1784 = vcmp.gt.f32.partialorder %v1720, 0.0
      %vm1785 = vcmp.gt.f32.partialorder %v1721, 0.0
      %vm1786 = vcmp.gt.f32.partialorder %v1722, 0.0
      %vm1787 = vcmp.gt.f32.partialorder %v1723, 0.0
      %vm1788 = vcmp.gt.f32.partialorder %v1724, 0.0
      %vm1789 = vcmp.gt.f32.partialorder %v1725, 0.0
      %vm1790 = vcmp.gt.f32.partialorder %v1726, 0.0
      %vm1791 = vcmp.gt.f32.partialorder %v1727, 0.0
      %vm1792 = vcmp.gt.f32.partialorder %v1728, 0.0
      %vm1793 = vcmp.gt.f32.partialorder %v1729, 0.0
      %vm1794 = vcmp.gt.f32.partialorder %v1730, 0.0
      %vm1795 = vcmp.gt.f32.partialorder %v1731, 0.0
      %vm1796 = vcmp.gt.f32.partialorder %v1732, 0.0
      %vm1797 = vcmp.gt.f32.partialorder %v1733, 0.0
      %vm1798 = vcmp.gt.f32.partialorder %v1734, 0.0
      %vm1799 = vcmp.gt.f32.partialorder %v1735, 0.0
      %vm1800 = vcmp.gt.f32.partialorder %v1736, 0.0
      %vm1801 = vcmp.gt.f32.partialorder %v1737, 0.0
      %vm1802 = vcmp.gt.f32.partialorder %v1738, 0.0
      %vm1803 = vcmp.gt.f32.partialorder %v1739, 0.0
      %vm1804 = vcmp.gt.f32.partialorder %v1740, 0.0
      %vm1805 = vcmp.gt.f32.partialorder %v1741, 0.0
      %vm1806 = vcmp.gt.f32.partialorder %v1742, 0.0
      %vm1807 = vcmp.gt.f32.partialorder %v1743, 0.0
      %vm1808 = vcmp.gt.f32.partialorder %v1744, 0.0
      %vm1809 = vcmp.gt.f32.partialorder %v1745, 0.0
      %vm1810 = vcmp.gt.f32.partialorder %v1746, 0.0
      %vm1811 = vcmp.gt.f32.partialorder %v1747, 0.0
      %vm1812 = vcmp.gt.f32.partialorder %v1748, 0.0
      %vm1813 = vcmp.gt.f32.partialorder %v1749, 0.0
      %vm1814 = vcmp.gt.f32.partialorder %v1750, 0.0
      %vm1815 = vcmp.gt.f32.partialorder %v1751, 0.0
      %vm1816 = vcmp.gt.f32.partialorder %v1752, 0.0
      %vm1817 = vcmp.gt.f32.partialorder %v1753, 0.0
      %vm1818 = vcmp.gt.f32.partialorder %v1754, 0.0
      %vm1819 = vcmp.gt.f32.partialorder %v1755, 0.0
      %vm1820 = vcmp.gt.f32.partialorder %v1756, 0.0
      %v1821 = vmin.f32 %v1693, 0.0
      %v1822 = vmin.f32 %v1694, 0.0
      %v1823 = vmin.f32 %v1695, 0.0
      %v1824 = vmin.f32 %v1696, 0.0
      %v1825 = vmin.f32 %v1697, 0.0
      %v1826 = vmin.f32 %v1698, 0.0
      %v1827 = vmin.f32 %v1699, 0.0
      %v1828 = vmin.f32 %v1700, 0.0
      %v1829 = vmin.f32 %v1701, 0.0
      %v1830 = vmin.f32 %v1702, 0.0
      %v1831 = vmin.f32 %v1703, 0.0
      %v1832 = vmin.f32 %v1704, 0.0
      %v1833 = vmin.f32 %v1705, 0.0
      %v1834 = vmin.f32 %v1706, 0.0
      %v1835 = vmin.f32 %v1707, 0.0
      %v1836 = vmin.f32 %v1708, 0.0
      %v1837 = vmin.f32 %v1709, 0.0
      %v1838 = vmin.f32 %v1710, 0.0
      %v1839 = vmin.f32 %v1711, 0.0
      %v1840 = vmin.f32 %v1712, 0.0
      %v1841 = vmin.f32 %v1713, 0.0
      %v1842 = vmin.f32 %v1714, 0.0
      %v1843 = vmin.f32 %v1715, 0.0
      %v1844 = vmin.f32 %v1716, 0.0
      %v1845 = vmin.f32 %v1717, 0.0
      %v1846 = vmin.f32 %v1718, 0.0
      %v1847 = vmin.f32 %v1719, 0.0
      %v1848 = vmin.f32 %v1720, 0.0
      %v1849 = vmin.f32 %v1721, 0.0
      %v1850 = vmin.f32 %v1722, 0.0
      %v1851 = vmin.f32 %v1723, 0.0
      %v1852 = vmin.f32 %v1724, 0.0
      %v1853 = vmin.f32 %v1725, 0.0
      %v1854 = vmin.f32 %v1726, 0.0
      %v1855 = vmin.f32 %v1727, 0.0
      %v1856 = vmin.f32 %v1728, 0.0
      %v1857 = vmin.f32 %v1729, 0.0
      %v1858 = vmin.f32 %v1730, 0.0
      %v1859 = vmin.f32 %v1731, 0.0
      %v1860 = vmin.f32 %v1732, 0.0
      %v1861 = vmin.f32 %v1733, 0.0
      %v1862 = vmin.f32 %v1734, 0.0
      %v1863 = vmin.f32 %v1735, 0.0
      %v1864 = vmin.f32 %v1736, 0.0
      %v1865 = vmin.f32 %v1737, 0.0
      %v1866 = vmin.f32 %v1738, 0.0
      %v1867 = vmin.f32 %v1739, 0.0
      %v1868 = vmin.f32 %v1740, 0.0
      %v1869 = vmin.f32 %v1741, 0.0
      %v1870 = vmin.f32 %v1742, 0.0
      %v1871 = vmin.f32 %v1743, 0.0
      %v1872 = vmin.f32 %v1744, 0.0
      %v1873 = vmin.f32 %v1745, 0.0
      %v1874 = vmin.f32 %v1746, 0.0
      %v1875 = vmin.f32 %v1747, 0.0
      %v1876 = vmin.f32 %v1748, 0.0
      %v1877 = vmin.f32 %v1749, 0.0
      %v1878 = vmin.f32 %v1750, 0.0
      %v1879 = vmin.f32 %v1751, 0.0
      %v1880 = vmin.f32 %v1752, 0.0
      %v1881 = vmin.f32 %v1753, 0.0
      %v1882 = vmin.f32 %v1754, 0.0
      %v1883 = vmin.f32 %v1755, 0.0
      %v1884 = vmin.f32 %v1756, 0.0
      %v1885 = vmul.f32 %v1821, 1.442695
      %v1886 = vpow.pop %v1885
      %v1887 = vmul.f32 %v1822, 1.442695
      %v1888 = vpow.pop %v1887
      %v1889 = vmul.f32 %v1823, 1.442695
      %v1890 = vpow.pop %v1889
      %v1891 = vmul.f32 %v1824, 1.442695
      %v1892 = vpow.pop %v1891
      %v1893 = vmul.f32 %v1825, 1.442695
      %v1894 = vpow.pop %v1893
      %v1895 = vmul.f32 %v1826, 1.442695
      %v1896 = vpow.pop %v1895
      %v1897 = vmul.f32 %v1827, 1.442695
      %v1898 = vpow.pop %v1897
      %v1899 = vmul.f32 %v1828, 1.442695
      %v1900 = vpow.pop %v1899
      %v1901 = vmul.f32 %v1829, 1.442695
      %v1902 = vpow.pop %v1901
      %v1903 = vmul.f32 %v1830, 1.442695
      %v1904 = vpow.pop %v1903
      %v1905 = vmul.f32 %v1831, 1.442695
      %v1906 = vpow.pop %v1905
      %v1907 = vmul.f32 %v1832, 1.442695
      %v1908 = vpow.pop %v1907
      %v1909 = vmul.f32 %v1833, 1.442695
      %v1910 = vpow.pop %v1909
      %v1911 = vmul.f32 %v1834, 1.442695
      %v1912 = vpow.pop %v1911
      %v1913 = vmul.f32 %v1835, 1.442695
      %v1914 = vpow.pop %v1913
      %v1915 = vmul.f32 %v1836, 1.442695
      %v1916 = vpow.pop %v1915
      %v1917 = vmul.f32 %v1837, 1.442695
      %v1918 = vpow.pop %v1917
      %v1919 = vmul.f32 %v1838, 1.442695
      %v1920 = vpow.pop %v1919
      %v1921 = vmul.f32 %v1839, 1.442695
      %v1922 = vpow.pop %v1921
      %v1923 = vmul.f32 %v1840, 1.442695
      %v1924 = vpow.pop %v1923
      %v1925 = vmul.f32 %v1841, 1.442695
      %v1926 = vpow.pop %v1925
      %v1927 = vmul.f32 %v1842, 1.442695
      %v1928 = vpow.pop %v1927
      %v1929 = vmul.f32 %v1843, 1.442695
      %v1930 = vpow.pop %v1929
      %v1931 = vmul.f32 %v1844, 1.442695
      %v1932 = vpow.pop %v1931
      %v1933 = vmul.f32 %v1845, 1.442695
      %v1934 = vpow.pop %v1933
      %v1935 = vmul.f32 %v1846, 1.442695
      %v1936 = vpow.pop %v1935
      %v1937 = vmul.f32 %v1847, 1.442695
      %v1938 = vpow.pop %v1937
      %v1939 = vmul.f32 %v1848, 1.442695
      %v1940 = vpow.pop %v1939
      %v1941 = vmul.f32 %v1849, 1.442695
      %v1942 = vpow.pop %v1941
      %v1943 = vmul.f32 %v1850, 1.442695
      %v1944 = vpow.pop %v1943
      %v1945 = vmul.f32 %v1851, 1.442695
      %v1946 = vpow.pop %v1945
      %v1947 = vmul.f32 %v1852, 1.442695
      %v1948 = vpow.pop %v1947
      %v1949 = vmul.f32 %v1853, 1.442695
      %v1950 = vpow.pop %v1949
      %v1951 = vmul.f32 %v1854, 1.442695
      %v1952 = vpow.pop %v1951
      %v1953 = vmul.f32 %v1855, 1.442695
      %v1954 = vpow.pop %v1953
      %v1955 = vmul.f32 %v1856, 1.442695
      %v1956 = vpow.pop %v1955
      %v1957 = vmul.f32 %v1857, 1.442695
      %v1958 = vpow.pop %v1957
      %v1959 = vmul.f32 %v1858, 1.442695
      %v1960 = vpow.pop %v1959
      %v1961 = vmul.f32 %v1859, 1.442695
      %v1962 = vpow.pop %v1961
      %v1963 = vmul.f32 %v1860, 1.442695
      %v1964 = vpow.pop %v1963
      %v1965 = vmul.f32 %v1861, 1.442695
      %v1966 = vpow.pop %v1965
      %v1967 = vmul.f32 %v1862, 1.442695
      %v1968 = vpow.pop %v1967
      %v1969 = vmul.f32 %v1863, 1.442695
      %v1970 = vpow.pop %v1969
      %v1971 = vmul.f32 %v1864, 1.442695
      %v1972 = vpow.pop %v1971
      %v1973 = vmul.f32 %v1865, 1.442695
      %v1974 = vpow.pop %v1973
      %v1975 = vmul.f32 %v1866, 1.442695
      %v1976 = vpow.pop %v1975
      %v1977 = vmul.f32 %v1867, 1.442695
      %v1978 = vpow.pop %v1977
      %v1979 = vmul.f32 %v1868, 1.442695
      %v1980 = vpow.pop %v1979
      %v1981 = vmul.f32 %v1869, 1.442695
      %v1982 = vpow.pop %v1981
      %v1983 = vmul.f32 %v1870, 1.442695
      %v1984 = vpow.pop %v1983
      %v1985 = vmul.f32 %v1871, 1.442695
      %v1986 = vpow.pop %v1985
      %v1987 = vmul.f32 %v1872, 1.442695
      %v1988 = vpow.pop %v1987
      %v1989 = vmul.f32 %v1873, 1.442695
      %v1990 = vpow.pop %v1989
      %v1991 = vmul.f32 %v1874, 1.442695
      %v1992 = vpow.pop %v1991
      %v1993 = vmul.f32 %v1875, 1.442695
      %v1994 = vpow.pop %v1993
      %v1995 = vmul.f32 %v1876, 1.442695
      %v1996 = vpow.pop %v1995
      %v1997 = vmul.f32 %v1877, 1.442695
      %v1998 = vpow.pop %v1997
      %v1999 = vmul.f32 %v1878, 1.442695
      %v2000 = vpow.pop %v1999
      %v2001 = vmul.f32 %v1879, 1.442695
      %v2002 = vpow.pop %v2001
      %v2003 = vmul.f32 %v1880, 1.442695
      %v2004 = vpow.pop %v2003
      %v2005 = vmul.f32 %v1881, 1.442695
      %v2006 = vpow.pop %v2005
      %v2007 = vmul.f32 %v1882, 1.442695
      %v2008 = vpow.pop %v2007
      %v2009 = vmul.f32 %v1883, 1.442695
      %v2010 = vpow.pop %v2009
      %v2011 = vmul.f32 %v1884, 1.442695
      %v2012 = vpow.pop %v2011
      %v2013 = vsub.f32 %v1886, 1.0
      %v2014 = vsub.f32 %v1888, 1.0
      %v2015 = vsub.f32 %v1890, 1.0
      %v2016 = vsub.f32 %v1892, 1.0
      %v2017 = vsub.f32 %v1894, 1.0
      %v2018 = vsub.f32 %v1896, 1.0
      %v2019 = vsub.f32 %v1898, 1.0
      %v2020 = vsub.f32 %v1900, 1.0
      %v2021 = vsub.f32 %v1902, 1.0
      %v2022 = vsub.f32 %v1904, 1.0
      %v2023 = vsub.f32 %v1906, 1.0
      %v2024 = vsub.f32 %v1908, 1.0
      %v2025 = vsub.f32 %v1910, 1.0
      %v2026 = vsub.f32 %v1912, 1.0
      %v2027 = vsub.f32 %v1914, 1.0
      %v2028 = vsub.f32 %v1916, 1.0
      %v2029 = vsub.f32 %v1918, 1.0
      %v2030 = vsub.f32 %v1920, 1.0
      %v2031 = vsub.f32 %v1922, 1.0
      %v2032 = vsub.f32 %v1924, 1.0
      %v2033 = vsub.f32 %v1926, 1.0
      %v2034 = vsub.f32 %v1928, 1.0
      %v2035 = vsub.f32 %v1930, 1.0
      %v2036 = vsub.f32 %v1932, 1.0
      %v2037 = vsub.f32 %v1934, 1.0
      %v2038 = vsub.f32 %v1936, 1.0
      %v2039 = vsub.f32 %v1938, 1.0
      %v2040 = vsub.f32 %v1940, 1.0
      %v2041 = vsub.f32 %v1942, 1.0
      %v2042 = vsub.f32 %v1944, 1.0
      %v2043 = vsub.f32 %v1946, 1.0
      %v2044 = vsub.f32 %v1948, 1.0
      %v2045 = vsub.f32 %v1950, 1.0
      %v2046 = vsub.f32 %v1952, 1.0
      %v2047 = vsub.f32 %v1954, 1.0
      %v2048 = vsub.f32 %v1956, 1.0
      %v2049 = vsub.f32 %v1958, 1.0
      %v2050 = vsub.f32 %v1960, 1.0
      %v2051 = vsub.f32 %v1962, 1.0
      %v2052 = vsub.f32 %v1964, 1.0
      %v2053 = vsub.f32 %v1966, 1.0
      %v2054 = vsub.f32 %v1968, 1.0
      %v2055 = vsub.f32 %v1970, 1.0
      %v2056 = vsub.f32 %v1972, 1.0
      %v2057 = vsub.f32 %v1974, 1.0
      %v2058 = vsub.f32 %v1976, 1.0
      %v2059 = vsub.f32 %v1978, 1.0
      %v2060 = vsub.f32 %v1980, 1.0
      %v2061 = vsub.f32 %v1982, 1.0
      %v2062 = vsub.f32 %v1984, 1.0
      %v2063 = vsub.f32 %v1986, 1.0
      %v2064 = vsub.f32 %v1988, 1.0
      %v2065 = vsub.f32 %v1990, 1.0
      %v2066 = vsub.f32 %v1992, 1.0
      %v2067 = vsub.f32 %v1994, 1.0
      %v2068 = vsub.f32 %v1996, 1.0
      %v2069 = vsub.f32 %v1998, 1.0
      %v2070 = vsub.f32 %v2000, 1.0
      %v2071 = vsub.f32 %v2002, 1.0
      %v2072 = vsub.f32 %v2004, 1.0
      %v2073 = vsub.f32 %v2006, 1.0
      %v2074 = vsub.f32 %v2008, 1.0
      %v2075 = vsub.f32 %v2010, 1.0
      %v2076 = vsub.f32 %v2012, 1.0
      %v2077 = vsel %vm1757, %v1693, %v2013
      %v2078 = vsel %vm1758, %v1694, %v2014
      %v2079 = vsel %vm1759, %v1695, %v2015
      %v2080 = vsel %vm1760, %v1696, %v2016
      %v2081 = vsel %vm1761, %v1697, %v2017
      %v2082 = vsel %vm1762, %v1698, %v2018
      %v2083 = vsel %vm1763, %v1699, %v2019
      %v2084 = vsel %vm1764, %v1700, %v2020
      %v2085 = vsel %vm1765, %v1701, %v2021
      %v2086 = vsel %vm1766, %v1702, %v2022
      %v2087 = vsel %vm1767, %v1703, %v2023
      %v2088 = vsel %vm1768, %v1704, %v2024
      %v2089 = vsel %vm1769, %v1705, %v2025
      %v2090 = vsel %vm1770, %v1706, %v2026
      %v2091 = vsel %vm1771, %v1707, %v2027
      %v2092 = vsel %vm1772, %v1708, %v2028
      %v2093 = vsel %vm1773, %v1709, %v2029
      %v2094 = vsel %vm1774, %v1710, %v2030
      %v2095 = vsel %vm1775, %v1711, %v2031
      %v2096 = vsel %vm1776, %v1712, %v2032
      %v2097 = vsel %vm1777, %v1713, %v2033
      %v2098 = vsel %vm1778, %v1714, %v2034
      %v2099 = vsel %vm1779, %v1715, %v2035
      %v2100 = vsel %vm1780, %v1716, %v2036
      %v2101 = vsel %vm1781, %v1717, %v2037
      %v2102 = vsel %vm1782, %v1718, %v2038
      %v2103 = vsel %vm1783, %v1719, %v2039
      %v2104 = vsel %vm1784, %v1720, %v2040
      %v2105 = vsel %vm1785, %v1721, %v2041
      %v2106 = vsel %vm1786, %v1722, %v2042
      %v2107 = vsel %vm1787, %v1723, %v2043
      %v2108 = vsel %vm1788, %v1724, %v2044
      %v2109 = vsel %vm1789, %v1725, %v2045
      %v2110 = vsel %vm1790, %v1726, %v2046
      %v2111 = vsel %vm1791, %v1727, %v2047
      %v2112 = vsel %vm1792, %v1728, %v2048
      %v2113 = vsel %vm1793, %v1729, %v2049
      %v2114 = vsel %vm1794, %v1730, %v2050
      %v2115 = vsel %vm1795, %v1731, %v2051
      %v2116 = vsel %vm1796, %v1732, %v2052
      %v2117 = vsel %vm1797, %v1733, %v2053
      %v2118 = vsel %vm1798, %v1734, %v2054
      %v2119 = vsel %vm1799, %v1735, %v2055
      %v2120 = vsel %vm1800, %v1736, %v2056
      %v2121 = vsel %vm1801, %v1737, %v2057
      %v2122 = vsel %vm1802, %v1738, %v2058
      %v2123 = vsel %vm1803, %v1739, %v2059
      %v2124 = vsel %vm1804, %v1740, %v2060
      %v2125 = vsel %vm1805, %v1741, %v2061
      %v2126 = vsel %vm1806, %v1742, %v2062
      %v2127 = vsel %vm1807, %v1743, %v2063
      %v2128 = vsel %vm1808, %v1744, %v2064
      %v2129 = vsel %vm1809, %v1745, %v2065
      %v2130 = vsel %vm1810, %v1746, %v2066
      %v2131 = vsel %vm1811, %v1747, %v2067
      %v2132 = vsel %vm1812, %v1748, %v2068
      %v2133 = vsel %vm1813, %v1749, %v2069
      %v2134 = vsel %vm1814, %v1750, %v2070
      %v2135 = vsel %vm1815, %v1751, %v2071
      %v2136 = vsel %vm1816, %v1752, %v2072
      %v2137 = vsel %vm1817, %v1753, %v2073
      %v2138 = vsel %vm1818, %v1754, %v2074
      %v2139 = vsel %vm1819, %v1755, %v2075
      %v2140 = vsel %vm1820, %v1756, %v2076
      %2141 = vst [vmem:[%s202] sm:$0xff] %v2077
      %2142 = vst [vmem:[%s202 + $0x8] sm:$0xff] %v2078
      %2143 = vst [vmem:[%s202 + $0x10] sm:$0xff] %v2079
      %2144 = vst [vmem:[%s202 + $0x18] sm:$0xff] %v2080
      %2145 = vst [vmem:[%s202 + $0x20] sm:$0xff] %v2081
      %2146 = vst [vmem:[%s202 + $0x28] sm:$0xff] %v2082
      %2147 = vst [vmem:[%s202 + $0x30] sm:$0xff] %v2083
      %2148 = vst [vmem:[%s202 + $0x38] sm:$0xff] %v2084
      %2149 = vst [vmem:[%s202 + $0x40] sm:$0xff] %v2085
      %2150 = vst [vmem:[%s202 + $0x48] sm:$0xff] %v2086
      %2151 = vst [vmem:[%s202 + $0x50] sm:$0xff] %v2087
      %2152 = vst [vmem:[%s202 + $0x58] sm:$0xff] %v2088
      %2153 = vst [vmem:[%s202 + $0x60] sm:$0xff] %v2089
      %2154 = vst [vmem:[%s202 + $0x68] sm:$0xff] %v2090
      %2155 = vst [vmem:[%s202 + $0x70] sm:$0xff] %v2091
      %2156 = vst [vmem:[%s202 + $0x78] sm:$0xff] %v2092
      %2157 = vst [vmem:[%s202 + $0x80] sm:$0xff] %v2093
      %2158 = vst [vmem:[%s202 + $0x88] sm:$0xff] %v2094
      %2159 = vst [vmem:[%s202 + $0x90] sm:$0xff] %v2095
      %2160 = vst [vmem:[%s202 + $0x98] sm:$0xff] %v2096
      %2161 = vst [vmem:[%s202 + $0xa0] sm:$0xff] %v2097
      %2162 = vst [vmem:[%s202 + $0xa8] sm:$0xff] %v2098
      %2163 = vst [vmem:[%s202 + $0xb0] sm:$0xff] %v2099
      %2164 = vst [vmem:[%s202 + $0xb8] sm:$0xff] %v2100
      %2165 = vst [vmem:[%s202 + $0xc0] sm:$0xff] %v2101
      %2166 = vst [vmem:[%s202 + $0xc8] sm:$0xff] %v2102
      %2167 = vst [vmem:[%s202 + $0xd0] sm:$0xff] %v2103
      %2168 = vst [vmem:[%s202 + $0xd8] sm:$0xff] %v2104
      %2169 = vst [vmem:[%s202 + $0xe0] sm:$0xff] %v2105
      %2170 = vst [vmem:[%s202 + $0xe8] sm:$0xff] %v2106
      %2171 = vst [vmem:[%s202 + $0xf0] sm:$0xff] %v2107
      %2172 = vst [vmem:[%s202 + $0xf8] sm:$0xff] %v2108
      %2173 = vst [vmem:[%s202 + $0x100] sm:$0xff] %v2109
      %2174 = vst [vmem:[%s202 + $0x108] sm:$0xff] %v2110
      %2175 = vst [vmem:[%s202 + $0x110] sm:$0xff] %v2111
      %2176 = vst [vmem:[%s202 + $0x118] sm:$0xff] %v2112
      %2177 = vst [vmem:[%s202 + $0x120] sm:$0xff] %v2113
      %2178 = vst [vmem:[%s202 + $0x128] sm:$0xff] %v2114
      %2179 = vst [vmem:[%s202 + $0x130] sm:$0xff] %v2115
      %2180 = vst [vmem:[%s202 + $0x138] sm:$0xff] %v2116
      %2181 = vst [vmem:[%s202 + $0x140] sm:$0xff] %v2117
      %2182 = vst [vmem:[%s202 + $0x148] sm:$0xff] %v2118
      %2183 = vst [vmem:[%s202 + $0x150] sm:$0xff] %v2119
      %2184 = vst [vmem:[%s202 + $0x158] sm:$0xff] %v2120
      %2185 = vst [vmem:[%s202 + $0x160] sm:$0xff] %v2121
      %2186 = vst [vmem:[%s202 + $0x168] sm:$0xff] %v2122
      %2187 = vst [vmem:[%s202 + $0x170] sm:$0xff] %v2123
      %2188 = vst [vmem:[%s202 + $0x178] sm:$0xff] %v2124
      %2189 = vst [vmem:[%s202 + $0x180] sm:$0xff] %v2125
      %2190 = vst [vmem:[%s202 + $0x188] sm:$0xff] %v2126
      %2191 = vst [vmem:[%s202 + $0x190] sm:$0xff] %v2127
      %2192 = vst [vmem:[%s202 + $0x198] sm:$0xff] %v2128
      %2193 = vst [vmem:[%s202 + $0x1a0] sm:$0xff] %v2129
      %2194 = vst [vmem:[%s202 + $0x1a8] sm:$0xff] %v2130
      %2195 = vst [vmem:[%s202 + $0x1b0] sm:$0xff] %v2131
      %2196 = vst [vmem:[%s202 + $0x1b8] sm:$0xff] %v2132
      %2197 = vst [vmem:[%s202 + $0x1c0] sm:$0xff] %v2133
      %2198 = vst [vmem:[%s202 + $0x1c8] sm:$0xff] %v2134
      %2199 = vst [vmem:[%s202 + $0x1d0] sm:$0xff] %v2135
      %2200 = vst [vmem:[%s202 + $0x1d8] sm:$0xff] %v2136
      %2201 = vst [vmem:[%s202 + $0x1e0] sm:$0xff] %v2137
      %2202 = vst [vmem:[%s202 + $0x1e8] sm:$0xff] %v2138
      %2203 = vst [vmem:[%s202 + $0x1f0] sm:$0xff] %v2139
      %2204 = vst [vmem:[%s202 + $0x1f8] sm:$0xff] %v2140
      %s2205 = smul.u32 64, %s15
      %p2206 = scmp.lt.s32.totalorder %s2205, 127
      %s2207 = scalar_select %p2206, %s2205, 127
      %s2208 = smul.addr %s2207, 8
      %s2209 = scalar_lea.vmem %s4, %s2208
      // Predicated region
      $region37: #{cnn3d_forward.8} parent=35 // pred_check
        %p2210 = pneg %p122
      $region38: #{cnn3d_forward.8} parent=35 // pred_check_branch
        %2212 = sbr.rel (%p2210) target = $region40
      $region39: #{cnn3d_forward.8} parent=35 // pred_region
        %s2213 = smul.u32 64, %s15
      $region40: #{cnn3d_forward.8} parent=35 // pred_fallthru
        _
    $region36: #{cnn3d_forward.8} parent=5 // pred_fallthru
      _
    %p2214 = scmp.le.s32.totalorder 2, %s10
    // Predicated region
    $region41: #{cnn3d_forward.8} parent=5 // pred_check
      %p2215 = pneg %p2214
    $region42: #{cnn3d_forward.8} parent=5 // pred_check_branch
      %2217 = sbr.rel (%p2215) target = $region44
    $region43: #{cnn3d_forward.8} parent=5 // pred_region
      %s2218 = ssub.s32 %s10, 2
      // Predicated region
      $region45: #{cnn3d_forward.8} parent=43 // pred_check
        %p2219 = pneg %p128
      $region46: #{cnn3d_forward.8} parent=43 // pred_check_branch
        %2221 = sbr.rel (%p2219) target = $region48
      $region47: #{cnn3d_forward.8} parent=43 // pred_region
        %s2222 = smul.u32 64, %s16
        %p2223 = scmp.lt.s32.totalorder %s2222, 127
        %s2224 = scalar_select %p2223, %s2222, 127
        %s2225 = smul.addr %s2224, 8
        %s2226 = scalar_lea.vmem %s4, %s2225
      $region48: #{cnn3d_forward.8} parent=43 // pred_fallthru
        _
    $region44: #{cnn3d_forward.8} parent=5 // pred_fallthru
      _
  $region6: #{cnn3d_forward.8} parent=0 // loop_footer
    %s14 = sadd.s32 1, %s10
  $region7: #{cnn3d_forward.8} parent=0 // loop_footer_branch
    %9 = sbr.rel target = $region3
  $region8: #{cnn3d_forward.8} parent=0 // loop_exit
    _

// kernel: cnn3d_forward.9
$region0: #{cnn3d_forward.9}
  #allocation0 [shape = 'u32[]', space=smem, size = 0x4, offset = 0x4, fixed_abs, tag = 'smem constant byte address 0x4 - core index']
  #allocation1 [shape = 'u32[144,128]{1,0:T(1,128)}', space=vmem, size = 0x12000, scoped, tag = 'internal scratch']
  %s0 = inlined_call_operand.vmem [shape: bf16[56,768], index: 0, kind: input, shape index: {}]
  %s1 = inlined_call_operand.vmem [shape: bf16[768,128], index: 1, kind: input, shape index: {}]
  %s2 = inlined_call_operand.vmem [shape: f32[1,128], index: 2, kind: input, shape index: {}]
  %s3 = inlined_call_operand.vmem [shape: f32[1,128], index: 3, kind: input, shape index: {}]
  %s4 = inlined_call_operand.vmem [shape: f32[56,128], index: 4, kind: output, shape index: {}]
  %s5 = sld [smem:[#allocation0]]
  $region26: #{cnn3d_forward.9} parent=0
    _
  %s7 = ssub.s32 1, %s5
  %s8 = scalar_select 0, %s7, %s5
  // Predicated region
  $region2: #{cnn3d_forward.9} parent=0 // pred_check
    _
  $region3: #{cnn3d_forward.9} parent=0 // pred_check_branch
    %10 = sbr.rel (0) target = $region5
  $region4: #{cnn3d_forward.9} parent=0 // pred_region
    _
  $region5: #{cnn3d_forward.9} parent=0 // pred_fallthru
    _
  // Predicated region
  $region6: #{cnn3d_forward.9} parent=0 // pred_check
    _
  $region7: #{cnn3d_forward.9} parent=0 // pred_check_branch
    %12 = sbr.rel (0) target = $region9
  $region8: #{cnn3d_forward.9} parent=0 // pred_region
    _
  $region9: #{cnn3d_forward.9} parent=0 // pred_fallthru
    _
  // Predicated region
  $region10: #{cnn3d_forward.9} parent=0 // pred_check
    _
  $region11: #{cnn3d_forward.9} parent=0 // pred_check_branch
    %14 = sbr.rel (0) target = $region13
  $region12: #{cnn3d_forward.9} parent=0 // pred_region
    _
  $region13: #{cnn3d_forward.9} parent=0 // pred_fallthru
    _
  // Predicated region
  $region14: #{cnn3d_forward.9} parent=0 // pred_check
    _
  $region15: #{cnn3d_forward.9} parent=0 // pred_check_branch
    %16 = sbr.rel (0) target = $region17
  $region16: #{cnn3d_forward.9} parent=0 // pred_region
    _
  $region17: #{cnn3d_forward.9} parent=0 // pred_fallthru
    _
  %v18 = vld [vmem:[%s0] sm:$0xff]
  %v19 = vld [vmem:[%s0 + $0x8] sm:$0xff]
  %v20 = vld [vmem:[%s0 + $0x10] sm:$0xff]
  %v21 = vld [vmem:[%s0 + $0x18] sm:$0xff]
  %v22 = vld [vmem:[%s0 + $0x20] sm:$0xff]
  %v23 = vld [vmem:[%s0 + $0x28] sm:$0xff]
  %v24 = vld [vmem:[%s0 + $0x30] sm:$0xff]
  %v25 = vld [vmem:[%s0 + $0x38] sm:$0xff]
  %v26 = vld [vmem:[%s0 + $0x40] sm:$0xff]
  %v27 = vld [vmem:[%s0 + $0x48] sm:$0xff]
  %v28 = vld [vmem:[%s0 + $0x50] sm:$0xff]
  %v29 = vld [vmem:[%s0 + $0x58] sm:$0xff]
  %v30 = vld [vmem:[%s0 + $0x60] sm:$0xff]
  %v31 = vld [vmem:[%s0 + $0x68] sm:$0xff]
  %v32 = vld [vmem:[%s0 + $0x70] sm:$0xff]
  %v33 = vld [vmem:[%s0 + $0x78] sm:$0xff]
  %v34 = vld [vmem:[%s0 + $0x80] sm:$0xff]
  %v35 = vld [vmem:[%s0 + $0x88] sm:$0xff]
  %v36 = vld [vmem:[%s0 + $0x90] sm:$0xff]
  %v37 = vld [vmem:[%s0 + $0x98] sm:$0xff]
  %v38 = vld [vmem:[%s0 + $0xa0] sm:$0xff]
  %v39 = vld [vmem:[%s1] sm:$0xf]
  %v40 = vld [vmem:[%s1 + $0x4] sm:$0xf]
  %v41 = vld [vmem:[%s1 + $0x8] sm:$0xf]
  %v42 = vld [vmem:[%s1 + $0xc] sm:$0xf]
  %v43 = vld [vmem:[%s1 + $0x10] sm:$0xf]
  %v44 = vld [vmem:[%s1 + $0x14] sm:$0xf]
  %v45 = vld [vmem:[%s1 + $0x18] sm:$0xf]
  %v46 = vld [vmem:[%s1 + $0x1c] sm:$0xf]
  %v47 = vld [vmem:[%s1 + $0x20] sm:$0xf]
  %v48 = vld [vmem:[%s1 + $0x24] sm:$0xf]
  %v49 = vld [vmem:[%s1 + $0x28] sm:$0xf]
  %v50 = vld [vmem:[%s1 + $0x2c] sm:$0xf]
  %v51 = vld [vmem:[%s1 + $0x30] sm:$0xf]
  %v52 = vld [vmem:[%s1 + $0x34] sm:$0xf]
  %v53 = vld [vmem:[%s1 + $0x38] sm:$0xf]
  %v54 = vld [vmem:[%s1 + $0x3c] sm:$0xf]
  %v55 = vld [vmem:[%s1 + $0x40] sm:$0xf]
  %v56 = vld [vmem:[%s1 + $0x44] sm:$0xf]
  %v57 = vld [vmem:[%s1 + $0x48] sm:$0xf]
  %v58 = vld [vmem:[%s1 + $0x4c] sm:$0xf]
  %v59 = vld [vmem:[%s1 + $0x50] sm:$0xf]
  %v60 = vld [vmem:[%s1 + $0x54] sm:$0xf]
  %v61 = vld [vmem:[%s1 + $0x58] sm:$0xf]
  %v62 = vld [vmem:[%s1 + $0x5c] sm:$0xf]
  %v63 = vld [vmem:[%s1 + $0x60] sm:$0xf]
  %v64 = vld [vmem:[%s1 + $0x64] sm:$0xf]
  %v65 = vld [vmem:[%s1 + $0x68] sm:$0xf]
  %v66 = vld [vmem:[%s1 + $0x6c] sm:$0xf]
  %v67 = vld [vmem:[%s1 + $0x70] sm:$0xf]
  %v68 = vld [vmem:[%s1 + $0x74] sm:$0xf]
  %v69 = vld [vmem:[%s1 + $0x78] sm:$0xf]
  %v70 = vld [vmem:[%s1 + $0x7c] sm:$0xf]
  %v71 = vld [vmem:[%s1 + $0x80] sm:$0xf]
  %v72 = vld [vmem:[%s1 + $0x84] sm:$0xf]
  %v73 = vld [vmem:[%s1 + $0x88] sm:$0xf]
  %v74 = vld [vmem:[%s1 + $0x8c] sm:$0xf]
  %v75 = vld [vmem:[%s1 + $0x90] sm:$0xf]
  %v76 = vld [vmem:[%s1 + $0x94] sm:$0xf]
  %v77 = vld [vmem:[%s1 + $0x98] sm:$0xf]
  %v78 = vld [vmem:[%s1 + $0x9c] sm:$0xf]
  %v79 = vld [vmem:[%s1 + $0xa0] sm:$0xf]
  %v80 = vld [vmem:[%s1 + $0xa4] sm:$0xf]
  %v81 = vld [vmem:[%s1 + $0xa8] sm:$0xf]
  %v82 = vld [vmem:[%s1 + $0xac] sm:$0xf]
  %v83 = vld [vmem:[%s1 + $0xb0] sm:$0xf]
  %v84 = vld [vmem:[%s1 + $0xb4] sm:$0xf]
  %v85 = vld [vmem:[%s1 + $0xb8] sm:$0xf]
  %v86 = vld [vmem:[%s1 + $0xbc] sm:$0xf]
  %v87 = vld [vmem:[%s1 + $0xc0] sm:$0xf]
  %v88 = vld [vmem:[%s1 + $0xc4] sm:$0xf]
  %v89 = vld [vmem:[%s1 + $0xc8] sm:$0xf]
  %v90 = vld [vmem:[%s1 + $0xcc] sm:$0xf]
  %v91 = vld [vmem:[%s1 + $0xd0] sm:$0xf]
  %v92 = vld [vmem:[%s1 + $0xd4] sm:$0xf]
  %v93 = vld [vmem:[%s1 + $0xd8] sm:$0xf]
  %v94 = vld [vmem:[%s1 + $0xdc] sm:$0xf]
  %v95 = vld [vmem:[%s1 + $0xe0] sm:$0xf]
  %v96 = vld [vmem:[%s1 + $0xe4] sm:$0xf]
  %v97 = vld [vmem:[%s1 + $0xe8] sm:$0xf]
  %v98 = vld [vmem:[%s1 + $0xec] sm:$0xf]
  %v99 = vld [vmem:[%s1 + $0xf0] sm:$0xf]
  %v100 = vld [vmem:[%s1 + $0xf4] sm:$0xf]
  %v101 = vld [vmem:[%s1 + $0xf8] sm:$0xf]
  %v102 = vld [vmem:[%s1 + $0xfc] sm:$0xf]
  %v103 = vld [vmem:[%s1 + $0x100] sm:$0xf]
  %v104 = vld [vmem:[%s1 + $0x104] sm:$0xf]
  %v105 = vld [vmem:[%s1 + $0x108] sm:$0xf]
  %v106 = vld [vmem:[%s1 + $0x10c] sm:$0xf]
  %v107 = vld [vmem:[%s1 + $0x110] sm:$0xf]
  %v108 = vld [vmem:[%s1 + $0x114] sm:$0xf]
  %v109 = vld [vmem:[%s1 + $0x118] sm:$0xf]
  %v110 = vld [vmem:[%s1 + $0x11c] sm:$0xf]
  %v111 = vld [vmem:[%s1 + $0x120] sm:$0xf]
  %v112 = vld [vmem:[%s1 + $0x124] sm:$0xf]
  %v113 = vld [vmem:[%s1 + $0x128] sm:$0xf]
  %v114 = vld [vmem:[%s1 + $0x12c] sm:$0xf]
  %v115 = vld [vmem:[%s1 + $0x130] sm:$0xf]
  %v116 = vld [vmem:[%s1 + $0x134] sm:$0xf]
  %v117 = vld [vmem:[%s1 + $0x138] sm:$0xf]
  %v118 = vld [vmem:[%s1 + $0x13c] sm:$0xf]
  %v119 = vld [vmem:[%s1 + $0x140] sm:$0xf]
  %v120 = vld [vmem:[%s1 + $0x144] sm:$0xf]
  %v121 = vld [vmem:[%s1 + $0x148] sm:$0xf]
  %v122 = vld [vmem:[%s1 + $0x14c] sm:$0xf]
  %v123 = vld [vmem:[%s1 + $0x150] sm:$0xf]
  %v124 = vld [vmem:[%s1 + $0x154] sm:$0xf]
  %v125 = vld [vmem:[%s1 + $0x158] sm:$0xf]
  %v126 = vld [vmem:[%s1 + $0x15c] sm:$0xf]
  %v127 = vld [vmem:[%s1 + $0x160] sm:$0xf]
  %v128 = vld [vmem:[%s1 + $0x164] sm:$0xf]
  %v129 = vld [vmem:[%s1 + $0x168] sm:$0xf]
  %v130 = vld [vmem:[%s1 + $0x16c] sm:$0xf]
  %v131 = vld [vmem:[%s1 + $0x170] sm:$0xf]
  %v132 = vld [vmem:[%s1 + $0x174] sm:$0xf]
  %v133 = vld [vmem:[%s1 + $0x178] sm:$0xf]
  %v134 = vld [vmem:[%s1 + $0x17c] sm:$0xf]
  %v156 = vunpack.c.l.b16 %v18
  %v157 = vunpack.c.h.b16 %v18
  %v158 = vunpack.c.l.b16 %v19
  %v159 = vunpack.c.h.b16 %v19
  %v160 = vunpack.c.l.b16 %v20
  %v161 = vunpack.c.h.b16 %v20
  %v162 = vunpack.c.l.b16 %v21
  %v163 = vunpack.c.h.b16 %v21
  %v164 = vunpack.c.l.b16 %v22
  %v165 = vunpack.c.h.b16 %v22
  %v166 = vunpack.c.l.b16 %v23
  %v167 = vunpack.c.h.b16 %v23
  %v168 = vunpack.c.l.b16 %v24
  %v169 = vunpack.c.h.b16 %v24
  %v170 = vunpack.c.l.b16 %v25
  %v171 = vunpack.c.h.b16 %v25
  %v172 = vunpack.c.l.b16 %v26
  %v173 = vunpack.c.h.b16 %v26
  %v174 = vunpack.c.l.b16 %v27
  %v175 = vunpack.c.h.b16 %v27
  %v176 = vunpack.c.l.b16 %v28
  %v177 = vunpack.c.h.b16 %v28
  %v178 = vunpack.c.l.b16 %v29
  %v179 = vunpack.c.h.b16 %v29
  %v180 = vunpack.c.l.b16 %v30
  %v181 = vunpack.c.h.b16 %v30
  %v182 = vunpack.c.l.b16 %v31
  %v183 = vunpack.c.h.b16 %v31
  %v184 = vunpack.c.l.b16 %v32
  %v185 = vunpack.c.h.b16 %v32
  %v186 = vunpack.c.l.b16 %v33
  %v187 = vunpack.c.h.b16 %v33
  %v188 = vunpack.c.l.b16 %v34
  %v189 = vunpack.c.h.b16 %v34
  %v190 = vunpack.c.l.b16 %v35
  %v191 = vunpack.c.h.b16 %v35
  %v192 = vunpack.c.l.b16 %v36
  %v193 = vunpack.c.h.b16 %v36
  %v194 = vunpack.c.l.b16 %v37
  %v195 = vunpack.c.h.b16 %v37
  %v196 = vunpack.c.l.b16 %v38
  %v197 = vunpack.c.h.b16 %v38
  %v198 = vpack.c.b16 %v162, %v156
  %v199 = vpack.c.b16 %v163, %v157
  %v200 = vpack.c.b16 %v164, %v158
  %v201 = vpack.c.b16 %v165, %v159
  %v202 = vpack.c.b16 %v166, %v160
  %v203 = vpack.c.b16 %v167, %v161
  %v204 = vpack.c.b16 %v174, %v168
  %v205 = vpack.c.b16 %v175, %v169
  %v206 = vpack.c.b16 %v176, %v170
  %v207 = vpack.c.b16 %v177, %v171
  %v208 = vpack.c.b16 %v178, %v172
  %v209 = vpack.c.b16 %v179, %v173
  %v210 = vpack.c.b16 %v186, %v180
  %v211 = vpack.c.b16 %v187, %v181
  %v212 = vpack.c.b16 %v188, %v182
  %v213 = vpack.c.b16 %v189, %v183
  %v214 = vpack.c.b16 %v190, %v184
  %v215 = vpack.c.b16 %v191, %v185
  %v216 = vpack.c.b16 %v192, %v192
  %v217 = vpack.c.b16 %v193, %v193
  %v218 = vpack.c.b16 %v194, %v194
  %v219 = vpack.c.b16 %v195, %v195
  %v220 = vpack.c.b16 %v196, %v196
  %v221 = vpack.c.b16 %v197, %v197
  %v342 = vunpack.c.l.b16 %v39
  %v343 = vunpack.c.l.b16 %v40
  %v344 = vunpack.c.l.b16 %v41
  %v345 = vunpack.c.l.b16 %v42
  %v346 = vunpack.c.l.b16 %v43
  %v347 = vunpack.c.l.b16 %v44
  %v348 = vunpack.c.l.b16 %v45
  %v349 = vunpack.c.l.b16 %v46
  %v350 = vunpack.c.l.b16 %v47
  %v351 = vunpack.c.l.b16 %v48
  %v352 = vunpack.c.l.b16 %v49
  %v353 = vunpack.c.l.b16 %v50
  %v354 = vunpack.c.l.b16 %v51
  %v355 = vunpack.c.l.b16 %v52
  %v356 = vunpack.c.l.b16 %v53
  %v357 = vunpack.c.l.b16 %v54
  %v358 = vunpack.c.l.b16 %v55
  %v359 = vunpack.c.l.b16 %v56
  %v360 = vunpack.c.l.b16 %v57
  %v361 = vunpack.c.l.b16 %v58
  %v362 = vunpack.c.l.b16 %v59
  %v363 = vunpack.c.l.b16 %v60
  %v364 = vunpack.c.l.b16 %v61
  %v365 = vunpack.c.l.b16 %v62
  %v366 = vunpack.c.l.b16 %v63
  %v367 = vunpack.c.l.b16 %v64
  %v368 = vunpack.c.l.b16 %v65
  %v369 = vunpack.c.l.b16 %v66
  %v370 = vunpack.c.l.b16 %v67
  %v371 = vunpack.c.l.b16 %v68
  %v372 = vunpack.c.l.b16 %v69
  %v373 = vunpack.c.l.b16 %v70
  %v374 = vunpack.c.l.b16 %v71
  %v375 = vunpack.c.l.b16 %v72
  %v376 = vunpack.c.l.b16 %v73
  %v377 = vunpack.c.l.b16 %v74
  %v378 = vunpack.c.l.b16 %v75
  %v379 = vunpack.c.l.b16 %v76
  %v380 = vunpack.c.l.b16 %v77
  %v381 = vunpack.c.l.b16 %v78
  %v382 = vunpack.c.l.b16 %v79
  %v383 = vunpack.c.l.b16 %v80
  %v384 = vunpack.c.l.b16 %v81
  %v385 = vunpack.c.l.b16 %v82
  %v386 = vunpack.c.l.b16 %v83
  %v387 = vunpack.c.l.b16 %v84
  %v388 = vunpack.c.l.b16 %v85
  %v389 = vunpack.c.l.b16 %v86
  %v390 = vunpack.c.l.b16 %v87
  %v391 = vunpack.c.l.b16 %v88
  %v392 = vunpack.c.l.b16 %v89
  %v393 = vunpack.c.l.b16 %v90
  %v394 = vunpack.c.l.b16 %v91
  %v395 = vunpack.c.l.b16 %v92
  %v396 = vunpack.c.l.b16 %v93
  %v397 = vunpack.c.l.b16 %v94
  %v398 = vunpack.c.l.b16 %v95
  %v399 = vunpack.c.l.b16 %v96
  %v400 = vunpack.c.l.b16 %v97
  %v401 = vunpack.c.l.b16 %v98
  %v402 = vunpack.c.l.b16 %v99
  %v403 = vunpack.c.l.b16 %v100
  %v404 = vunpack.c.l.b16 %v101
  %v405 = vunpack.c.l.b16 %v102
  %v406 = vunpack.c.l.b16 %v103
  %v407 = vunpack.c.l.b16 %v104
  %v408 = vunpack.c.l.b16 %v105
  %v409 = vunpack.c.l.b16 %v106
  %v410 = vunpack.c.l.b16 %v107
  %v411 = vunpack.c.l.b16 %v108
  %v412 = vunpack.c.l.b16 %v109
  %v413 = vunpack.c.l.b16 %v110
  %v414 = vunpack.c.l.b16 %v111
  %v415 = vunpack.c.l.b16 %v112
  %v416 = vunpack.c.l.b16 %v113
  %v417 = vunpack.c.l.b16 %v114
  %v418 = vunpack.c.l.b16 %v115
  %v419 = vunpack.c.l.b16 %v116
  %v420 = vunpack.c.l.b16 %v117
  %v421 = vunpack.c.l.b16 %v118
  %v422 = vunpack.c.l.b16 %v119
  %v423 = vunpack.c.l.b16 %v120
  %v424 = vunpack.c.l.b16 %v121
  %v425 = vunpack.c.l.b16 %v122
  %v426 = vunpack.c.l.b16 %v123
  %v427 = vunpack.c.l.b16 %v124
  %v428 = vunpack.c.l.b16 %v125
  %v429 = vunpack.c.l.b16 %v126
  %v430 = vunpack.c.l.b16 %v127
  %v431 = vunpack.c.l.b16 %v128
  %v432 = vunpack.c.l.b16 %v129
  %v433 = vunpack.c.l.b16 %v130
  %v434 = vunpack.c.l.b16 %v131
  %v435 = vunpack.c.l.b16 %v132
  %v436 = vunpack.c.l.b16 %v133
  %v437 = vunpack.c.l.b16 %v134
  %v438 = vpack.c.b16 %v343, %v342
  %v439 = vpack.c.b16 %v345, %v344
  %v440 = vpack.c.b16 %v347, %v346
  %v441 = vpack.c.b16 %v349, %v348
  %v442 = vpack.c.b16 %v351, %v350
  %v443 = vpack.c.b16 %v353, %v352
  %v444 = vpack.c.b16 %v355, %v354
  %v445 = vpack.c.b16 %v357, %v356
  %v446 = vpack.c.b16 %v359, %v358
  %v447 = vpack.c.b16 %v361, %v360
  %v448 = vpack.c.b16 %v363, %v362
  %v449 = vpack.c.b16 %v365, %v364
  %v450 = vpack.c.b16 %v367, %v366
  %v451 = vpack.c.b16 %v369, %v368
  %v452 = vpack.c.b16 %v371, %v370
  %v453 = vpack.c.b16 %v373, %v372
  %v454 = vpack.c.b16 %v375, %v374
  %v455 = vpack.c.b16 %v377, %v376
  %v456 = vpack.c.b16 %v379, %v378
  %v457 = vpack.c.b16 %v381, %v380
  %v458 = vpack.c.b16 %v383, %v382
  %v459 = vpack.c.b16 %v385, %v384
  %v460 = vpack.c.b16 %v387, %v386
  %v461 = vpack.c.b16 %v389, %v388
  %v462 = vpack.c.b16 %v391, %v390
  %v463 = vpack.c.b16 %v393, %v392
  %v464 = vpack.c.b16 %v395, %v394
  %v465 = vpack.c.b16 %v397, %v396
  %v466 = vpack.c.b16 %v399, %v398
  %v467 = vpack.c.b16 %v401, %v400
  %v468 = vpack.c.b16 %v403, %v402
  %v469 = vpack.c.b16 %v405, %v404
  %v470 = vpack.c.b16 %v407, %v406
  %v471 = vpack.c.b16 %v409, %v408
  %v472 = vpack.c.b16 %v411, %v410
  %v473 = vpack.c.b16 %v413, %v412
  %v474 = vpack.c.b16 %v415, %v414
  %v475 = vpack.c.b16 %v417, %v416
  %v476 = vpack.c.b16 %v419, %v418
  %v477 = vpack.c.b16 %v421, %v420
  %v478 = vpack.c.b16 %v423, %v422
  %v479 = vpack.c.b16 %v425, %v424
  %v480 = vpack.c.b16 %v427, %v426
  %v481 = vpack.c.b16 %v429, %v428
  %v482 = vpack.c.b16 %v431, %v430
  %v483 = vpack.c.b16 %v433, %v432
  %v484 = vpack.c.b16 %v435, %v434
  %v485 = vpack.c.b16 %v437, %v436
  %534 = vmatprep.subr.bf16.mxu0 0
  %535 = vmatpush1.bf16.msra.mxu0 %v438
  %536 = vmatprep.subr.bf16.mxu0 0
  %537 = vmatpush1.bf16.msra.mxu0 %v439
  %538 = vmatprep.subr.bf16.mxu0 0
  %539 = vmatpush1.bf16.msra.mxu0 %v440
  %540 = vmatprep.subr.bf16.mxu0 0
  %541 = vmatpush1.bf16.msra.mxu0 %v441
  %542 = vmatprep.subr.bf16.mxu0 0
  %543 = vmatpush1.bf16.msra.mxu0 %v442
  %544 = vmatprep.subr.bf16.mxu0 0
  %545 = vmatpush1.bf16.msra.mxu0 %v443
  %546 = vmatprep.subr.bf16.mxu0 0
  %547 = vmatpush1.bf16.msra.mxu0 %v444
  %548 = vmatprep.subr.bf16.mxu0 0
  %549 = vmatpush1.bf16.msra.mxu0 %v445
  %550 = vmatprep.subr.bf16.mxu0 0
  %551 = vmatpush1.bf16.msra.mxu0 %v446
  %552 = vmatprep.subr.bf16.mxu0 0
  %553 = vmatpush1.bf16.msra.mxu0 %v447
  %554 = vmatprep.subr.bf16.mxu0 0
  %555 = vmatpush1.bf16.msra.mxu0 %v448
  %556 = vmatprep.subr.bf16.mxu0 0
  %557 = vmatpush1.bf16.msra.mxu0 %v449
  %558 = vmatprep.subr.bf16.mxu0 0
  %559 = vmatpush1.bf16.msra.mxu0 %v450
  %560 = vmatprep.subr.bf16.mxu0 0
  %561 = vmatpush1.bf16.msra.mxu0 %v451
  %562 = vmatprep.subr.bf16.mxu0 0
  %563 = vmatpush1.bf16.msra.mxu0 %v452
  %564 = vmatprep.subr.bf16.mxu0 0
  %565 = vmatpush1.bf16.msra.mxu0 %v453
  %566 = vmatprep.mubr.bf16.mxu0 %v199
  %567 = vmatmul.mubr.bf16.gmra.mrb[0].mxu0 %v198
  %v568 = vpop.f32.mrb[0].mxu0
  %v569 = vadd.f32 0.0, %v568
  %v570 = vpop.f32.mrb[0].mxu0
  %v571 = vpop.f32.mrb[0].mxu0
  %v572 = vadd.f32 0.0, %v571
  %v573 = vpop.f32.mrb[0].mxu0
  %574 = vmatprep.mubr.bf16.mxu0 %v205
  %575 = vmatmul.mubr.bf16.gmra.mrb[0].mxu0 %v204
  %v576 = vpop.f32.mrb[0].mxu0
  %v577 = vadd.f32 0.0, %v576
  %v578 = vpop.f32.mrb[0].mxu0
  %v579 = vpop.f32.mrb[0].mxu0
  %v580 = vadd.f32 0.0, %v579
  %v581 = vpop.f32.mrb[0].mxu0
  %582 = vmatprep.mubr.bf16.mxu0 %v211
  %583 = vmatmul.mubr.bf16.gmra.mrb[0].mxu0 %v210
  %v584 = vpop.f32.mrb[0].mxu0
  %v585 = vadd.f32 0.0, %v584
  %v586 = vpop.f32.mrb[0].mxu0
  %v587 = vpop.f32.mrb[0].mxu0
  %v588 = vadd.f32 0.0, %v587
  %v589 = vpop.f32.mrb[0].mxu0
  %590 = vmatprep.mubr.bf16.mxu0 %v217
  %591 = vmatmul.mubr.bf16.gmra.mrb[0].mxu0 %v216
  %v592 = vpop.f32.mrb[0].mxu0
  %v593 = vadd.f32 0.0, %v592
  %v594 = vpop.f32.mrb[0].mxu0
  %v595 = vpop.f32.mrb[0].mxu0
  %v596 = vpop.f32.mrb[0].mxu0
  %597 = vdwg.mxu0
  %598 = vmatprep.subr.bf16.mxu0 0
  %599 = vmatpush1.bf16.msra.mxu0 %v454
  %600 = vmatprep.subr.bf16.mxu0 0
  %601 = vmatpush1.bf16.msra.mxu0 %v455
  %602 = vmatprep.subr.bf16.mxu0 0
  %603 = vmatpush1.bf16.msra.mxu0 %v456
  %604 = vmatprep.subr.bf16.mxu0 0
  %605 = vmatpush1.bf16.msra.mxu0 %v457
  %606 = vmatprep.subr.bf16.mxu0 0
  %607 = vmatpush1.bf16.msra.mxu0 %v458
  %608 = vmatprep.subr.bf16.mxu0 0
  %609 = vmatpush1.bf16.msra.mxu0 %v459
  %610 = vmatprep.subr.bf16.mxu0 0
  %611 = vmatpush1.bf16.msra.mxu0 %v460
  %612 = vmatprep.subr.bf16.mxu0 0
  %613 = vmatpush1.bf16.msra.mxu0 %v461
  %614 = vmatprep.subr.bf16.mxu0 0
  %615 = vmatpush1.bf16.msra.mxu0 %v462
  %616 = vmatprep.subr.bf16.mxu0 0
  %617 = vmatpush1.bf16.msra.mxu0 %v463
  %618 = vmatprep.subr.bf16.mxu0 0
  %619 = vmatpush1.bf16.msra.mxu0 %v464
  %620 = vmatprep.subr.bf16.mxu0 0
  %621 = vmatpush1.bf16.msra.mxu0 %v465
  %622 = vmatprep.subr.bf16.mxu0 0
  %623 = vmatpush1.bf16.msra.mxu0 %v466
  %624 = vmatprep.subr.bf16.mxu0 0
  %625 = vmatpush1.bf16.msra.mxu0 %v467
  %626 = vmatprep.subr.bf16.mxu0 0
  %627 = vmatpush1.bf16.msra.mxu0 %v468
  %628 = vmatprep.subr.bf16.mxu0 0
  %629 = vmatpush1.bf16.msra.mxu0 %v469
  %630 = vmatprep.mubr.bf16.mxu0 %v201
  %631 = vmatmul.mubr.bf16.gmra.mrb[0].mxu0 %v200
  %v632 = vpop.f32.mrb[0].mxu0
  %v633 = vadd.f32 %v569, %v632
  %v634 = vpop.f32.mrb[0].mxu0
  %v635 = vpop.f32.mrb[0].mxu0
  %v636 = vadd.f32 %v572, %v635
  %v637 = vpop.f32.mrb[0].mxu0
  %638 = vmatprep.mubr.bf16.mxu0 %v207
  %639 = vmatmul.mubr.bf16.gmra.mrb[0].mxu0 %v206
  %v640 = vpop.f32.mrb[0].mxu0
  %v641 = vadd.f32 %v577, %v640
  %v642 = vpop.f32.mrb[0].mxu0
  %v643 = vpop.f32.mrb[0].mxu0
  %v644 = vadd.f32 %v580, %v643
  %v645 = vpop.f32.mrb[0].mxu0
  %646 = vmatprep.mubr.bf16.mxu0 %v213
  %647 = vmatmul.mubr.bf16.gmra.mrb[0].mxu0 %v212
  %v648 = vpop.f32.mrb[0].mxu0
  %v649 = vadd.f32 %v585, %v648
  %v650 = vpop.f32.mrb[0].mxu0
  %v651 = vpop.f32.mrb[0].mxu0
  %v652 = vadd.f32 %v588, %v651
  %v653 = vpop.f32.mrb[0].mxu0
  %654 = vmatprep.mubr.bf16.mxu0 %v219
  %655 = vmatmul.mubr.bf16.gmra.mrb[0].mxu0 %v218
  %v656 = vpop.f32.mrb[0].mxu0
  %v657 = vadd.f32 %v593, %v656
  %v658 = vpop.f32.mrb[0].mxu0
  %v659 = vpop.f32.mrb[0].mxu0
  %v660 = vpop.f32.mrb[0].mxu0
  %661 = vdwg.mxu0
  %662 = vmatprep.subr.bf16.mxu0 0
  %663 = vmatpush1.bf16.msra.mxu0 %v470
  %664 = vmatprep.subr.bf16.mxu0 0
  %665 = vmatpush1.bf16.msra.mxu0 %v471
  %666 = vmatprep.subr.bf16.mxu0 0
  %667 = vmatpush1.bf16.msra.mxu0 %v472
  %668 = vmatprep.subr.bf16.mxu0 0
  %669 = vmatpush1.bf16.msra.mxu0 %v473
  %670 = vmatprep.subr.bf16.mxu0 0
  %671 = vmatpush1.bf16.msra.mxu0 %v474
  %672 = vmatprep.subr.bf16.mxu0 0
  %673 = vmatpush1.bf16.msra.mxu0 %v475
  %674 = vmatprep.subr.bf16.mxu0 0
  %675 = vmatpush1.bf16.msra.mxu0 %v476
  %676 = vmatprep.subr.bf16.mxu0 0
  %677 = vmatpush1.bf16.msra.mxu0 %v477
  %678 = vmatprep.subr.bf16.mxu0 0
  %679 = vmatpush1.bf16.msra.mxu0 %v478
  %680 = vmatprep.subr.bf16.mxu0 0
  %681 = vmatpush1.bf16.msra.mxu0 %v479
  %682 = vmatprep.subr.bf16.mxu0 0
  %683 = vmatpush1.bf16.msra.mxu0 %v480
  %684 = vmatprep.subr.bf16.mxu0 0
  %685 = vmatpush1.bf16.msra.mxu0 %v481
  %686 = vmatprep.subr.bf16.mxu0 0
  %687 = vmatpush1.bf16.msra.mxu0 %v482
  %688 = vmatprep.subr.bf16.mxu0 0
  %689 = vmatpush1.bf16.msra.mxu0 %v483
  %690 = vmatprep.subr.bf16.mxu0 0
  %691 = vmatpush1.bf16.msra.mxu0 %v484
  %692 = vmatprep.subr.bf16.mxu0 0
  %693 = vmatpush1.bf16.msra.mxu0 %v485
  %694 = vmatprep.mubr.bf16.mxu0 %v203
  %695 = vmatmul.mubr.bf16.gmra.mrb[0].mxu0 %v202
  %v696 = vpop.f32.mrb[0].mxu0
  %v697 = vadd.f32 %v633, %v696
  %v698 = vpop.f32.mrb[0].mxu0
  %v699 = vpop.f32.mrb[0].mxu0
  %v700 = vadd.f32 %v636, %v699
  %v701 = vpop.f32.mrb[0].mxu0
  %702 = vmatprep.mubr.bf16.mxu0 %v209
  %703 = vmatmul.mubr.bf16.gmra.mrb[0].mxu0 %v208
  %v704 = vpop.f32.mrb[0].mxu0
  %v705 = vadd.f32 %v641, %v704
  %v706 = vpop.f32.mrb[0].mxu0
  %v707 = vpop.f32.mrb[0].mxu0
  %v708 = vadd.f32 %v644, %v707
  %v709 = vpop.f32.mrb[0].mxu0
  %710 = vmatprep.mubr.bf16.mxu0 %v215
  %711 = vmatmul.mubr.bf16.gmra.mrb[0].mxu0 %v214
  %v712 = vpop.f32.mrb[0].mxu0
  %v713 = vadd.f32 %v649, %v712
  %v714 = vpop.f32.mrb[0].mxu0
  %v715 = vpop.f32.mrb[0].mxu0
  %v716 = vadd.f32 %v652, %v715
  %v717 = vpop.f32.mrb[0].mxu0
  %718 = vmatprep.mubr.bf16.mxu0 %v221
  %719 = vmatmul.mubr.bf16.gmra.mrb[0].mxu0 %v220
  %v720 = vpop.f32.mrb[0].mxu0
  %v721 = vadd.f32 %v657, %v720
  %v722 = vpop.f32.mrb[0].mxu0
  %v723 = vpop.f32.mrb[0].mxu0
  %v724 = vpop.f32.mrb[0].mxu0
  %725 = vdwg.mxu0
  %v726 = vld [vmem:[%s2] sm:$0x1]
  %v728 = vlaneseq
  %v729 = vshrl.u32 %v728, 7
  %v730 = vsub.s32 0, %v729
  %v731 = vrot.slane %v726, %v730
  %v733 = vmul.f32 %v697, %v731
  %v734 = vmul.f32 %v700, %v731
  %v735 = vmul.f32 %v705, %v731
  %v736 = vmul.f32 %v708, %v731
  %v737 = vmul.f32 %v713, %v731
  %v738 = vmul.f32 %v716, %v731
  %v739 = vmul.f32 %v721, %v731
  %v740 = vld [vmem:[%s3] sm:$0x1]
  %v742 = vlaneseq
  %v743 = vshrl.u32 %v742, 7
  %v744 = vsub.s32 0, %v743
  %v745 = vrot.slane %v740, %v744
  %v747 = vadd.f32 %v733, %v745
  %v748 = vadd.f32 %v734, %v745
  %v749 = vadd.f32 %v735, %v745
  %v750 = vadd.f32 %v736, %v745
  %v751 = vadd.f32 %v737, %v745
  %v752 = vadd.f32 %v738, %v745
  %v753 = vadd.f32 %v739, %v745
  %vm754 = vcmp.gt.f32.partialorder %v747, 0.0
  %vm755 = vcmp.gt.f32.partialorder %v748, 0.0
  %vm756 = vcmp.gt.f32.partialorder %v749, 0.0
  %vm757 = vcmp.gt.f32.partialorder %v750, 0.0
  %vm758 = vcmp.gt.f32.partialorder %v751, 0.0
  %vm759 = vcmp.gt.f32.partialorder %v752, 0.0
  %vm760 = vcmp.gt.f32.partialorder %v753, 0.0
  %v761 = vmin.f32 %v747, 0.0
  %v762 = vmin.f32 %v748, 0.0
  %v763 = vmin.f32 %v749, 0.0
  %v764 = vmin.f32 %v750, 0.0
  %v765 = vmin.f32 %v751, 0.0
  %v766 = vmin.f32 %v752, 0.0
  %v767 = vmin.f32 %v753, 0.0
  %v768 = vmul.f32 %v761, 1.442695
  %v769 = vpow.pop %v768
  %v770 = vmul.f32 %v762, 1.442695
  %v771 = vpow.pop %v770
  %v772 = vmul.f32 %v763, 1.442695
  %v773 = vpow.pop %v772
  %v774 = vmul.f32 %v764, 1.442695
  %v775 = vpow.pop %v774
  %v776 = vmul.f32 %v765, 1.442695
  %v777 = vpow.pop %v776
  %v778 = vmul.f32 %v766, 1.442695
  %v779 = vpow.pop %v778
  %v780 = vmul.f32 %v767, 1.442695
  %v781 = vpow.pop %v780
  %v782 = vsub.f32 %v769, 1.0
  %v783 = vsub.f32 %v771, 1.0
  %v784 = vsub.f32 %v773, 1.0
  %v785 = vsub.f32 %v775, 1.0
  %v786 = vsub.f32 %v777, 1.0
  %v787 = vsub.f32 %v779, 1.0
  %v788 = vsub.f32 %v781, 1.0
  %v789 = vsel %vm754, %v747, %v782
  %v790 = vsel %vm755, %v748, %v783
  %v791 = vsel %vm756, %v749, %v784
  %v792 = vsel %vm757, %v750, %v785
  %v793 = vsel %vm758, %v751, %v786
  %v794 = vsel %vm759, %v752, %v787
  %v795 = vsel %vm760, %v753, %v788
  %796 = vst [vmem:[%s4] sm:$0xff] %v789
  %797 = vst [vmem:[%s4 + $0x8] sm:$0xff] %v790
  %798 = vst [vmem:[%s4 + $0x10] sm:$0xff] %v791
  %799 = vst [vmem:[%s4 + $0x18] sm:$0xff] %v792
  %800 = vst [vmem:[%s4 + $0x20] sm:$0xff] %v793
  %801 = vst [vmem:[%s4 + $0x28] sm:$0xff] %v794
  %802 = vst [vmem:[%s4 + $0x30] sm:$0xff] %v795
  // Predicated region
  $region18: #{cnn3d_forward.9} parent=0 // pred_check
    _
  $region19: #{cnn3d_forward.9} parent=0 // pred_check_branch
    %804 = sbr.rel (0) target = $region21
  $region20: #{cnn3d_forward.9} parent=0 // pred_region
    _
  $region21: #{cnn3d_forward.9} parent=0 // pred_fallthru
    _
  // Predicated region
  $region22: #{cnn3d_forward.9} parent=0 // pred_check
    _
  $region23: #{cnn3d_forward.9} parent=0 // pred_check_branch
    %806 = sbr.rel (0) target = $region25
  $region24: #{cnn3d_forward.9} parent=0 // pred_region
    _
  $region25: #{cnn3d_forward.9} parent=0 // pred_fallthru
    _

// kernel: cnn3d_forward.10
$region0: #{cnn3d_forward.10}
  #allocation0 [shape = 'u32[]', space=smem, size = 0x4, offset = 0x4, fixed_abs, tag = 'smem constant byte address 0x4 - core index']
  #allocation1 [shape = 'u32[144,128]{1,0:T(1,128)}', space=vmem, size = 0x12000, scoped, tag = 'internal scratch']
  %s0 = inlined_call_operand.vmem [shape: bf16[56,1024], index: 0, kind: input, shape index: {}]
  %s1 = inlined_call_operand.vmem [shape: bf16[1024,128], index: 1, kind: input, shape index: {}]
  %s2 = inlined_call_operand.vmem [shape: f32[1,128], index: 2, kind: input, shape index: {}]
  %s3 = inlined_call_operand.vmem [shape: f32[1,128], index: 3, kind: input, shape index: {}]
  %s4 = inlined_call_operand.vmem [shape: f32[56,128], index: 4, kind: output, shape index: {}]
  %s5 = sld [smem:[#allocation0]]
  $region26: #{cnn3d_forward.10} parent=0
    _
  %s7 = ssub.s32 1, %s5
  %s8 = scalar_select 0, %s7, %s5
  // Predicated region
  $region2: #{cnn3d_forward.10} parent=0 // pred_check
    _
  $region3: #{cnn3d_forward.10} parent=0 // pred_check_branch
    %10 = sbr.rel (0) target = $region5
  $region4: #{cnn3d_forward.10} parent=0 // pred_region
    _
  $region5: #{cnn3d_forward.10} parent=0 // pred_fallthru
    _
  // Predicated region
  $region6: #{cnn3d_forward.10} parent=0 // pred_check
    _
  $region7: #{cnn3d_forward.10} parent=0 // pred_check_branch
    %12 = sbr.rel (0) target = $region9
  $region8: #{cnn3d_forward.10} parent=0 // pred_region
    _
  $region9: #{cnn3d_forward.10} parent=0 // pred_fallthru
    _
  // Predicated region
  $region10: #{cnn3d_forward.10} parent=0 // pred_check
    _
  $region11: #{cnn3d_forward.10} parent=0 // pred_check_branch
    %14 = sbr.rel (0) target = $region13
  $region12: #{cnn3d_forward.10} parent=0 // pred_region
    _
  $region13: #{cnn3d_forward.10} parent=0 // pred_fallthru
    _
  // Predicated region
  $region14: #{cnn3d_forward.10} parent=0 // pred_check
    _
  $region15: #{cnn3d_forward.10} parent=0 // pred_check_branch
    %16 = sbr.rel (0) target = $region17
  $region16: #{cnn3d_forward.10} parent=0 // pred_region
    _
  $region17: #{cnn3d_forward.10} parent=0 // pred_fallthru
    _
  %v18 = vld [vmem:[%s0] sm:$0xff]
  %v19 = vld [vmem:[%s0 + $0x8] sm:$0xff]
  %v20 = vld [vmem:[%s0 + $0x10] sm:$0xff]
  %v21 = vld [vmem:[%s0 + $0x18] sm:$0xff]
  %v22 = vld [vmem:[%s0 + $0x20] sm:$0xff]
  %v23 = vld [vmem:[%s0 + $0x28] sm:$0xff]
  %v24 = vld [vmem:[%s0 + $0x30] sm:$0xff]
  %v25 = vld [vmem:[%s0 + $0x38] sm:$0xff]
  %v26 = vld [vmem:[%s0 + $0x40] sm:$0xff]
  %v27 = vld [vmem:[%s0 + $0x48] sm:$0xff]
  %v28 = vld [vmem:[%s0 + $0x50] sm:$0xff]
  %v29 = vld [vmem:[%s0 + $0x58] sm:$0xff]
  %v30 = vld [vmem:[%s0 + $0x60] sm:$0xff]
  %v31 = vld [vmem:[%s0 + $0x68] sm:$0xff]
  %v32 = vld [vmem:[%s0 + $0x70] sm:$0xff]
  %v33 = vld [vmem:[%s0 + $0x78] sm:$0xff]
  %v34 = vld [vmem:[%s0 + $0x80] sm:$0xff]
  %v35 = vld [vmem:[%s0 + $0x88] sm:$0xff]
  %v36 = vld [vmem:[%s0 + $0x90] sm:$0xff]
  %v37 = vld [vmem:[%s0 + $0x98] sm:$0xff]
  %v38 = vld [vmem:[%s0 + $0xa0] sm:$0xff]
  %v39 = vld [vmem:[%s0 + $0xa8] sm:$0xff]
  %v40 = vld [vmem:[%s0 + $0xb0] sm:$0xff]
  %v41 = vld [vmem:[%s0 + $0xb8] sm:$0xff]
  %v42 = vld [vmem:[%s0 + $0xc0] sm:$0xff]
  %v43 = vld [vmem:[%s0 + $0xc8] sm:$0xff]
  %v44 = vld [vmem:[%s0 + $0xd0] sm:$0xff]
  %v45 = vld [vmem:[%s0 + $0xd8] sm:$0xff]
  %v46 = vld [vmem:[%s1] sm:$0xf]
  %v47 = vld [vmem:[%s1 + $0x4] sm:$0xf]
  %v48 = vld [vmem:[%s1 + $0x8] sm:$0xf]
  %v49 = vld [vmem:[%s1 + $0xc] sm:$0xf]
  %v50 = vld [vmem:[%s1 + $0x10] sm:$0xf]
  %v51 = vld [vmem:[%s1 + $0x14] sm:$0xf]
  %v52 = vld [vmem:[%s1 + $0x18] sm:$0xf]
  %v53 = vld [vmem:[%s1 + $0x1c] sm:$0xf]
  %v54 = vld [vmem:[%s1 + $0x20] sm:$0xf]
  %v55 = vld [vmem:[%s1 + $0x24] sm:$0xf]
  %v56 = vld [vmem:[%s1 + $0x28] sm:$0xf]
  %v57 = vld [vmem:[%s1 + $0x2c] sm:$0xf]
  %v58 = vld [vmem:[%s1 + $0x30] sm:$0xf]
  %v59 = vld [vmem:[%s1 + $0x34] sm:$0xf]
  %v60 = vld [vmem:[%s1 + $0x38] sm:$0xf]
  %v61 = vld [vmem:[%s1 + $0x3c] sm:$0xf]
  %v62 = vld [vmem:[%s1 + $0x40] sm:$0xf]
  %v63 = vld [vmem:[%s1 + $0x44] sm:$0xf]
  %v64 = vld [vmem:[%s1 + $0x48] sm:$0xf]
  %v65 = vld [vmem:[%s1 + $0x4c] sm:$0xf]
  %v66 = vld [vmem:[%s1 + $0x50] sm:$0xf]
  %v67 = vld [vmem:[%s1 + $0x54] sm:$0xf]
  %v68 = vld [vmem:[%s1 + $0x58] sm:$0xf]
  %v69 = vld [vmem:[%s1 + $0x5c] sm:$0xf]
  %v70 = vld [vmem:[%s1 + $0x60] sm:$0xf]
  %v71 = vld [vmem:[%s1 + $0x64] sm:$0xf]
  %v72 = vld [vmem:[%s1 + $0x68] sm:$0xf]
  %v73 = vld [vmem:[%s1 + $0x6c] sm:$0xf]
  %v74 = vld [vmem:[%s1 + $0x70] sm:$0xf]
  %v75 = vld [vmem:[%s1 + $0x74] sm:$0xf]
  %v76 = vld [vmem:[%s1 + $0x78] sm:$0xf]
  %v77 = vld [vmem:[%s1 + $0x7c] sm:$0xf]
  %v78 = vld [vmem:[%s1 + $0x80] sm:$0xf]
  %v79 = vld [vmem:[%s1 + $0x84] sm:$0xf]
  %v80 = vld [vmem:[%s1 + $0x88] sm:$0xf]
  %v81 = vld [vmem:[%s1 + $0x8c] sm:$0xf]
  %v82 = vld [vmem:[%s1 + $0x90] sm:$0xf]
  %v83 = vld [vmem:[%s1 + $0x94] sm:$0xf]
  %v84 = vld [vmem:[%s1 + $0x98] sm:$0xf]
  %v85 = vld [vmem:[%s1 + $0x9c] sm:$0xf]
  %v86 = vld [vmem:[%s1 + $0xa0] sm:$0xf]
  %v87 = vld [vmem:[%s1 + $0xa4] sm:$0xf]
  %v88 = vld [vmem:[%s1 + $0xa8] sm:$0xf]
  %v89 = vld [vmem:[%s1 + $0xac] sm:$0xf]
  %v90 = vld [vmem:[%s1 + $0xb0] sm:$0xf]
  %v91 = vld [vmem:[%s1 + $0xb4] sm:$0xf]
  %v92 = vld [vmem:[%s1 + $0xb8] sm:$0xf]
  %v93 = vld [vmem:[%s1 + $0xbc] sm:$0xf]
  %v94 = vld [vmem:[%s1 + $0xc0] sm:$0xf]
  %v95 = vld [vmem:[%s1 + $0xc4] sm:$0xf]
  %v96 = vld [vmem:[%s1 + $0xc8] sm:$0xf]
  %v97 = vld [vmem:[%s1 + $0xcc] sm:$0xf]
  %v98 = vld [vmem:[%s1 + $0xd0] sm:$0xf]
  %v99 = vld [vmem:[%s1 + $0xd4] sm:$0xf]
  %v100 = vld [vmem:[%s1 + $0xd8] sm:$0xf]
  %v101 = vld [vmem:[%s1 + $0xdc] sm:$0xf]
  %v102 = vld [vmem:[%s1 + $0xe0] sm:$0xf]
  %v103 = vld [vmem:[%s1 + $0xe4] sm:$0xf]
  %v104 = vld [vmem:[%s1 + $0xe8] sm:$0xf]
  %v105 = vld [vmem:[%s1 + $0xec] sm:$0xf]
  %v106 = vld [vmem:[%s1 + $0xf0] sm:$0xf]
  %v107 = vld [vmem:[%s1 + $0xf4] sm:$0xf]
  %v108 = vld [vmem:[%s1 + $0xf8] sm:$0xf]
  %v109 = vld [vmem:[%s1 + $0xfc] sm:$0xf]
  %v110 = vld [vmem:[%s1 + $0x100] sm:$0xf]
  %v111 = vld [vmem:[%s1 + $0x104] sm:$0xf]
  %v112 = vld [vmem:[%s1 + $0x108] sm:$0xf]
  %v113 = vld [vmem:[%s1 + $0x10c] sm:$0xf]
  %v114 = vld [vmem:[%s1 + $0x110] sm:$0xf]
  %v115 = vld [vmem:[%s1 + $0x114] sm:$0xf]
  %v116 = vld [vmem:[%s1 + $0x118] sm:$0xf]
  %v117 = vld [vmem:[%s1 + $0x11c] sm:$0xf]
  %v118 = vld [vmem:[%s1 + $0x120] sm:$0xf]
  %v119 = vld [vmem:[%s1 + $0x124] sm:$0xf]
  %v120 = vld [vmem:[%s1 + $0x128] sm:$0xf]
  %v121 = vld [vmem:[%s1 + $0x12c] sm:$0xf]
  %v122 = vld [vmem:[%s1 + $0x130] sm:$0xf]
  %v123 = vld [vmem:[%s1 + $0x134] sm:$0xf]
  %v124 = vld [vmem:[%s1 + $0x138] sm:$0xf]
  %v125 = vld [vmem:[%s1 + $0x13c] sm:$0xf]
  %v126 = vld [vmem:[%s1 + $0x140] sm:$0xf]
  %v127 = vld [vmem:[%s1 + $0x144] sm:$0xf]
  %v128 = vld [vmem:[%s1 + $0x148] sm:$0xf]
  %v129 = vld [vmem:[%s1 + $0x14c] sm:$0xf]
  %v130 = vld [vmem:[%s1 + $0x150] sm:$0xf]
  %v131 = vld [vmem:[%s1 + $0x154] sm:$0xf]
  %v132 = vld [vmem:[%s1 + $0x158] sm:$0xf]
  %v133 = vld [vmem:[%s1 + $0x15c] sm:$0xf]
  %v134 = vld [vmem:[%s1 + $0x160] sm:$0xf]
  %v135 = vld [vmem:[%s1 + $0x164] sm:$0xf]
  %v136 = vld [vmem:[%s1 + $0x168] sm:$0xf]
  %v137 = vld [vmem:[%s1 + $0x16c] sm:$0xf]
  %v138 = vld [vmem:[%s1 + $0x170] sm:$0xf]
  %v139 = vld [vmem:[%s1 + $0x174] sm:$0xf]
  %v140 = vld [vmem:[%s1 + $0x178] sm:$0xf]
  %v141 = vld [vmem:[%s1 + $0x17c] sm:$0xf]
  %v142 = vld [vmem:[%s1 + $0x180] sm:$0xf]
  %v143 = vld [vmem:[%s1 + $0x184] sm:$0xf]
  %v144 = vld [vmem:[%s1 + $0x188] sm:$0xf]
  %v145 = vld [vmem:[%s1 + $0x18c] sm:$0xf]
  %v146 = vld [vmem:[%s1 + $0x190] sm:$0xf]
  %v147 = vld [vmem:[%s1 + $0x194] sm:$0xf]
  %v148 = vld [vmem:[%s1 + $0x198] sm:$0xf]
  %v149 = vld [vmem:[%s1 + $0x19c] sm:$0xf]
  %v150 = vld [vmem:[%s1 + $0x1a0] sm:$0xf]
  %v151 = vld [vmem:[%s1 + $0x1a4] sm:$0xf]
  %v152 = vld [vmem:[%s1 + $0x1a8] sm:$0xf]
  %v153 = vld [vmem:[%s1 + $0x1ac] sm:$0xf]
  %v154 = vld [vmem:[%s1 + $0x1b0] sm:$0xf]
  %v155 = vld [vmem:[%s1 + $0x1b4] sm:$0xf]
  %v156 = vld [vmem:[%s1 + $0x1b8] sm:$0xf]
  %v157 = vld [vmem:[%s1 + $0x1bc] sm:$0xf]
  %v158 = vld [vmem:[%s1 + $0x1c0] sm:$0xf]
  %v159 = vld [vmem:[%s1 + $0x1c4] sm:$0xf]
  %v160 = vld [vmem:[%s1 + $0x1c8] sm:$0xf]
  %v161 = vld [vmem:[%s1 + $0x1cc] sm:$0xf]
  %v162 = vld [vmem:[%s1 + $0x1d0] sm:$0xf]
  %v163 = vld [vmem:[%s1 + $0x1d4] sm:$0xf]
  %v164 = vld [vmem:[%s1 + $0x1d8] sm:$0xf]
  %v165 = vld [vmem:[%s1 + $0x1dc] sm:$0xf]
  %v166 = vld [vmem:[%s1 + $0x1e0] sm:$0xf]
  %v167 = vld [vmem:[%s1 + $0x1e4] sm:$0xf]
  %v168 = vld [vmem:[%s1 + $0x1e8] sm:$0xf]
  %v169 = vld [vmem:[%s1 + $0x1ec] sm:$0xf]
  %v170 = vld [vmem:[%s1 + $0x1f0] sm:$0xf]
  %v171 = vld [vmem:[%s1 + $0x1f4] sm:$0xf]
  %v172 = vld [vmem:[%s1 + $0x1f8] sm:$0xf]
  %v173 = vld [vmem:[%s1 + $0x1fc] sm:$0xf]
  %v202 = vunpack.c.l.b16 %v18
  %v203 = vunpack.c.h.b16 %v18
  %v204 = vunpack.c.l.b16 %v19
  %v205 = vunpack.c.h.b16 %v19
  %v206 = vunpack.c.l.b16 %v20
  %v207 = vunpack.c.h.b16 %v20
  %v208 = vunpack.c.l.b16 %v21
  %v209 = vunpack.c.h.b16 %v21
  %v210 = vunpack.c.l.b16 %v22
  %v211 = vunpack.c.h.b16 %v22
  %v212 = vunpack.c.l.b16 %v23
  %v213 = vunpack.c.h.b16 %v23
  %v214 = vunpack.c.l.b16 %v24
  %v215 = vunpack.c.h.b16 %v24
  %v216 = vunpack.c.l.b16 %v25
  %v217 = vunpack.c.h.b16 %v25
  %v218 = vunpack.c.l.b16 %v26
  %v219 = vunpack.c.h.b16 %v26
  %v220 = vunpack.c.l.b16 %v27
  %v221 = vunpack.c.h.b16 %v27
  %v222 = vunpack.c.l.b16 %v28
  %v223 = vunpack.c.h.b16 %v28
  %v224 = vunpack.c.l.b16 %v29
  %v225 = vunpack.c.h.b16 %v29
  %v226 = vunpack.c.l.b16 %v30
  %v227 = vunpack.c.h.b16 %v30
  %v228 = vunpack.c.l.b16 %v31
  %v229 = vunpack.c.h.b16 %v31
  %v230 = vunpack.c.l.b16 %v32
  %v231 = vunpack.c.h.b16 %v32
  %v232 = vunpack.c.l.b16 %v33
  %v233 = vunpack.c.h.b16 %v33
  %v234 = vunpack.c.l.b16 %v34
  %v235 = vunpack.c.h.b16 %v34
  %v236 = vunpack.c.l.b16 %v35
  %v237 = vunpack.c.h.b16 %v35
  %v238 = vunpack.c.l.b16 %v36
  %v239 = vunpack.c.h.b16 %v36
  %v240 = vunpack.c.l.b16 %v37
  %v241 = vunpack.c.h.b16 %v37
  %v242 = vunpack.c.l.b16 %v38
  %v243 = vunpack.c.h.b16 %v38
  %v244 = vunpack.c.l.b16 %v39
  %v245 = vunpack.c.h.b16 %v39
  %v246 = vunpack.c.l.b16 %v40
  %v247 = vunpack.c.h.b16 %v40
  %v248 = vunpack.c.l.b16 %v41
  %v249 = vunpack.c.h.b16 %v41
  %v250 = vunpack.c.l.b16 %v42
  %v251 = vunpack.c.h.b16 %v42
  %v252 = vunpack.c.l.b16 %v43
  %v253 = vunpack.c.h.b16 %v43
  %v254 = vunpack.c.l.b16 %v44
  %v255 = vunpack.c.h.b16 %v44
  %v256 = vunpack.c.l.b16 %v45
  %v257 = vunpack.c.h.b16 %v45
  %v258 = vpack.c.b16 %v210, %v202
  %v259 = vpack.c.b16 %v211, %v203
  %v260 = vpack.c.b16 %v212, %v204
  %v261 = vpack.c.b16 %v213, %v205
  %v262 = vpack.c.b16 %v214, %v206
  %v263 = vpack.c.b16 %v215, %v207
  %v264 = vpack.c.b16 %v216, %v208
  %v265 = vpack.c.b16 %v217, %v209
  %v266 = vpack.c.b16 %v226, %v218
  %v267 = vpack.c.b16 %v227, %v219
  %v268 = vpack.c.b16 %v228, %v220
  %v269 = vpack.c.b16 %v229, %v221
  %v270 = vpack.c.b16 %v230, %v222
  %v271 = vpack.c.b16 %v231, %v223
  %v272 = vpack.c.b16 %v232, %v224
  %v273 = vpack.c.b16 %v233, %v225
  %v274 = vpack.c.b16 %v242, %v234
  %v275 = vpack.c.b16 %v243, %v235
  %v276 = vpack.c.b16 %v244, %v236
  %v277 = vpack.c.b16 %v245, %v237
  %v278 = vpack.c.b16 %v246, %v238
  %v279 = vpack.c.b16 %v247, %v239
  %v280 = vpack.c.b16 %v248, %v240
  %v281 = vpack.c.b16 %v249, %v241
  %v282 = vpack.c.b16 %v250, %v250
  %v283 = vpack.c.b16 %v251, %v251
  %v284 = vpack.c.b16 %v252, %v252
  %v285 = vpack.c.b16 %v253, %v253
  %v286 = vpack.c.b16 %v254, %v254
  %v287 = vpack.c.b16 %v255, %v255
  %v288 = vpack.c.b16 %v256, %v256
  %v289 = vpack.c.b16 %v257, %v257
  %v450 = vunpack.c.l.b16 %v46
  %v451 = vunpack.c.l.b16 %v47
  %v452 = vunpack.c.l.b16 %v48
  %v453 = vunpack.c.l.b16 %v49
  %v454 = vunpack.c.l.b16 %v50
  %v455 = vunpack.c.l.b16 %v51
  %v456 = vunpack.c.l.b16 %v52
  %v457 = vunpack.c.l.b16 %v53
  %v458 = vunpack.c.l.b16 %v54
  %v459 = vunpack.c.l.b16 %v55
  %v460 = vunpack.c.l.b16 %v56
  %v461 = vunpack.c.l.b16 %v57
  %v462 = vunpack.c.l.b16 %v58
  %v463 = vunpack.c.l.b16 %v59
  %v464 = vunpack.c.l.b16 %v60
  %v465 = vunpack.c.l.b16 %v61
  %v466 = vunpack.c.l.b16 %v62
  %v467 = vunpack.c.l.b16 %v63
  %v468 = vunpack.c.l.b16 %v64
  %v469 = vunpack.c.l.b16 %v65
  %v470 = vunpack.c.l.b16 %v66
  %v471 = vunpack.c.l.b16 %v67
  %v472 = vunpack.c.l.b16 %v68
  %v473 = vunpack.c.l.b16 %v69
  %v474 = vunpack.c.l.b16 %v70
  %v475 = vunpack.c.l.b16 %v71
  %v476 = vunpack.c.l.b16 %v72
  %v477 = vunpack.c.l.b16 %v73
  %v478 = vunpack.c.l.b16 %v74
  %v479 = vunpack.c.l.b16 %v75
  %v480 = vunpack.c.l.b16 %v76
  %v481 = vunpack.c.l.b16 %v77
  %v482 = vunpack.c.l.b16 %v78
  %v483 = vunpack.c.l.b16 %v79
  %v484 = vunpack.c.l.b16 %v80
  %v485 = vunpack.c.l.b16 %v81
  %v486 = vunpack.c.l.b16 %v82
  %v487 = vunpack.c.l.b16 %v83
  %v488 = vunpack.c.l.b16 %v84
  %v489 = vunpack.c.l.b16 %v85
  %v490 = vunpack.c.l.b16 %v86
  %v491 = vunpack.c.l.b16 %v87
  %v492 = vunpack.c.l.b16 %v88
  %v493 = vunpack.c.l.b16 %v89
  %v494 = vunpack.c.l.b16 %v90
  %v495 = vunpack.c.l.b16 %v91
  %v496 = vunpack.c.l.b16 %v92
  %v497 = vunpack.c.l.b16 %v93
  %v498 = vunpack.c.l.b16 %v94
  %v499 = vunpack.c.l.b16 %v95
  %v500 = vunpack.c.l.b16 %v96
  %v501 = vunpack.c.l.b16 %v97
  %v502 = vunpack.c.l.b16 %v98
  %v503 = vunpack.c.l.b16 %v99
  %v504 = vunpack.c.l.b16 %v100
  %v505 = vunpack.c.l.b16 %v101
  %v506 = vunpack.c.l.b16 %v102
  %v507 = vunpack.c.l.b16 %v103
  %v508 = vunpack.c.l.b16 %v104
  %v509 = vunpack.c.l.b16 %v105
  %v510 = vunpack.c.l.b16 %v106
  %v511 = vunpack.c.l.b16 %v107
  %v512 = vunpack.c.l.b16 %v108
  %v513 = vunpack.c.l.b16 %v109
  %v514 = vunpack.c.l.b16 %v110
  %v515 = vunpack.c.l.b16 %v111
  %v516 = vunpack.c.l.b16 %v112
  %v517 = vunpack.c.l.b16 %v113
  %v518 = vunpack.c.l.b16 %v114
  %v519 = vunpack.c.l.b16 %v115
  %v520 = vunpack.c.l.b16 %v116
  %v521 = vunpack.c.l.b16 %v117
  %v522 = vunpack.c.l.b16 %v118
  %v523 = vunpack.c.l.b16 %v119
  %v524 = vunpack.c.l.b16 %v120
  %v525 = vunpack.c.l.b16 %v121
  %v526 = vunpack.c.l.b16 %v122
  %v527 = vunpack.c.l.b16 %v123
  %v528 = vunpack.c.l.b16 %v124
  %v529 = vunpack.c.l.b16 %v125
  %v530 = vunpack.c.l.b16 %v126
  %v531 = vunpack.c.l.b16 %v127
  %v532 = vunpack.c.l.b16 %v128
  %v533 = vunpack.c.l.b16 %v129
  %v534 = vunpack.c.l.b16 %v130
  %v535 = vunpack.c.l.b16 %v131
  %v536 = vunpack.c.l.b16 %v132
  %v537 = vunpack.c.l.b16 %v133
  %v538 = vunpack.c.l.b16 %v134
  %v539 = vunpack.c.l.b16 %v135
  %v540 = vunpack.c.l.b16 %v136
  %v541 = vunpack.c.l.b16 %v137
  %v542 = vunpack.c.l.b16 %v138
  %v543 = vunpack.c.l.b16 %v139
  %v544 = vunpack.c.l.b16 %v140
  %v545 = vunpack.c.l.b16 %v141
  %v546 = vunpack.c.l.b16 %v142
  %v547 = vunpack.c.l.b16 %v143
  %v548 = vunpack.c.l.b16 %v144
  %v549 = vunpack.c.l.b16 %v145
  %v550 = vunpack.c.l.b16 %v146
  %v551 = vunpack.c.l.b16 %v147
  %v552 = vunpack.c.l.b16 %v148
  %v553 = vunpack.c.l.b16 %v149
  %v554 = vunpack.c.l.b16 %v150
  %v555 = vunpack.c.l.b16 %v151
  %v556 = vunpack.c.l.b16 %v152
  %v557 = vunpack.c.l.b16 %v153
  %v558 = vunpack.c.l.b16 %v154
  %v559 = vunpack.c.l.b16 %v155
  %v560 = vunpack.c.l.b16 %v156
  %v561 = vunpack.c.l.b16 %v157
  %v562 = vunpack.c.l.b16 %v158
  %v563 = vunpack.c.l.b16 %v159
  %v564 = vunpack.c.l.b16 %v160
  %v565 = vunpack.c.l.b16 %v161
  %v566 = vunpack.c.l.b16 %v162
  %v567 = vunpack.c.l.b16 %v163
  %v568 = vunpack.c.l.b16 %v164
  %v569 = vunpack.c.l.b16 %v165
  %v570 = vunpack.c.l.b16 %v166
  %v571 = vunpack.c.l.b16 %v167
  %v572 = vunpack.c.l.b16 %v168
  %v573 = vunpack.c.l.b16 %v169
  %v574 = vunpack.c.l.b16 %v170
  %v575 = vunpack.c.l.b16 %v171
  %v576 = vunpack.c.l.b16 %v172
  %v577 = vunpack.c.l.b16 %v173
  %v578 = vpack.c.b16 %v451, %v450
  %v579 = vpack.c.b16 %v453, %v452
  %v580 = vpack.c.b16 %v455, %v454
  %v581 = vpack.c.b16 %v457, %v456
  %v582 = vpack.c.b16 %v459, %v458
  %v583 = vpack.c.b16 %v461, %v460
  %v584 = vpack.c.b16 %v463, %v462
  %v585 = vpack.c.b16 %v465, %v464
  %v586 = vpack.c.b16 %v467, %v466
  %v587 = vpack.c.b16 %v469, %v468
  %v588 = vpack.c.b16 %v471, %v470
  %v589 = vpack.c.b16 %v473, %v472
  %v590 = vpack.c.b16 %v475, %v474
  %v591 = vpack.c.b16 %v477, %v476
  %v592 = vpack.c.b16 %v479, %v478
  %v593 = vpack.c.b16 %v481, %v480
  %v594 = vpack.c.b16 %v483, %v482
  %v595 = vpack.c.b16 %v485, %v484
  %v596 = vpack.c.b16 %v487, %v486
  %v597 = vpack.c.b16 %v489, %v488
  %v598 = vpack.c.b16 %v491, %v490
  %v599 = vpack.c.b16 %v493, %v492
  %v600 = vpack.c.b16 %v495, %v494
  %v601 = vpack.c.b16 %v497, %v496
  %v602 = vpack.c.b16 %v499, %v498
  %v603 = vpack.c.b16 %v501, %v500
  %v604 = vpack.c.b16 %v503, %v502
  %v605 = vpack.c.b16 %v505, %v504
  %v606 = vpack.c.b16 %v507, %v506
  %v607 = vpack.c.b16 %v509, %v508
  %v608 = vpack.c.b16 %v511, %v510
  %v609 = vpack.c.b16 %v513, %v512
  %v610 = vpack.c.b16 %v515, %v514
  %v611 = vpack.c.b16 %v517, %v516
  %v612 = vpack.c.b16 %v519, %v518
  %v613 = vpack.c.b16 %v521, %v520
  %v614 = vpack.c.b16 %v523, %v522
  %v615 = vpack.c.b16 %v525, %v524
  %v616 = vpack.c.b16 %v527, %v526
  %v617 = vpack.c.b16 %v529, %v528
  %v618 = vpack.c.b16 %v531, %v530
  %v619 = vpack.c.b16 %v533, %v532
  %v620 = vpack.c.b16 %v535, %v534
  %v621 = vpack.c.b16 %v537, %v536
  %v622 = vpack.c.b16 %v539, %v538
  %v623 = vpack.c.b16 %v541, %v540
  %v624 = vpack.c.b16 %v543, %v542
  %v625 = vpack.c.b16 %v545, %v544
  %v626 = vpack.c.b16 %v547, %v546
  %v627 = vpack.c.b16 %v549, %v548
  %v628 = vpack.c.b16 %v551, %v550
  %v629 = vpack.c.b16 %v553, %v552
  %v630 = vpack.c.b16 %v555, %v554
  %v631 = vpack.c.b16 %v557, %v556
  %v632 = vpack.c.b16 %v559, %v558
  %v633 = vpack.c.b16 %v561, %v560
  %v634 = vpack.c.b16 %v563, %v562
  %v635 = vpack.c.b16 %v565, %v564
  %v636 = vpack.c.b16 %v567, %v566
  %v637 = vpack.c.b16 %v569, %v568
  %v638 = vpack.c.b16 %v571, %v570
  %v639 = vpack.c.b16 %v573, %v572
  %v640 = vpack.c.b16 %v575, %v574
  %v641 = vpack.c.b16 %v577, %v576
  %706 = vmatprep.subr.bf16.mxu0 0
  %707 = vmatpush1.bf16.msra.mxu0 %v578
  %708 = vmatprep.subr.bf16.mxu0 0
  %709 = vmatpush1.bf16.msra.mxu0 %v579
  %710 = vmatprep.subr.bf16.mxu0 0
  %711 = vmatpush1.bf16.msra.mxu0 %v580
  %712 = vmatprep.subr.bf16.mxu0 0
  %713 = vmatpush1.bf16.msra.mxu0 %v581
  %714 = vmatprep.subr.bf16.mxu0 0
  %715 = vmatpush1.bf16.msra.mxu0 %v582
  %716 = vmatprep.subr.bf16.mxu0 0
  %717 = vmatpush1.bf16.msra.mxu0 %v583
  %718 = vmatprep.subr.bf16.mxu0 0
  %719 = vmatpush1.bf16.msra.mxu0 %v584
  %720 = vmatprep.subr.bf16.mxu0 0
  %721 = vmatpush1.bf16.msra.mxu0 %v585
  %722 = vmatprep.subr.bf16.mxu0 0
  %723 = vmatpush1.bf16.msra.mxu0 %v586
  %724 = vmatprep.subr.bf16.mxu0 0
  %725 = vmatpush1.bf16.msra.mxu0 %v587
  %726 = vmatprep.subr.bf16.mxu0 0
  %727 = vmatpush1.bf16.msra.mxu0 %v588
  %728 = vmatprep.subr.bf16.mxu0 0
  %729 = vmatpush1.bf16.msra.mxu0 %v589
  %730 = vmatprep.subr.bf16.mxu0 0
  %731 = vmatpush1.bf16.msra.mxu0 %v590
  %732 = vmatprep.subr.bf16.mxu0 0
  %733 = vmatpush1.bf16.msra.mxu0 %v591
  %734 = vmatprep.subr.bf16.mxu0 0
  %735 = vmatpush1.bf16.msra.mxu0 %v592
  %736 = vmatprep.subr.bf16.mxu0 0
  %737 = vmatpush1.bf16.msra.mxu0 %v593
  %738 = vmatprep.mubr.bf16.mxu0 %v259
  %739 = vmatmul.mubr.bf16.gmra.mrb[0].mxu0 %v258
  %v740 = vpop.f32.mrb[0].mxu0
  %v741 = vadd.f32 0.0, %v740
  %v742 = vpop.f32.mrb[0].mxu0
  %v743 = vpop.f32.mrb[0].mxu0
  %v744 = vadd.f32 0.0, %v743
  %v745 = vpop.f32.mrb[0].mxu0
  %746 = vmatprep.mubr.bf16.mxu0 %v267
  %747 = vmatmul.mubr.bf16.gmra.mrb[0].mxu0 %v266
  %v748 = vpop.f32.mrb[0].mxu0
  %v749 = vadd.f32 0.0, %v748
  %v750 = vpop.f32.mrb[0].mxu0
  %v751 = vpop.f32.mrb[0].mxu0
  %v752 = vadd.f32 0.0, %v751
  %v753 = vpop.f32.mrb[0].mxu0
  %754 = vmatprep.mubr.bf16.mxu0 %v275
  %755 = vmatmul.mubr.bf16.gmra.mrb[0].mxu0 %v274
  %v756 = vpop.f32.mrb[0].mxu0
  %v757 = vadd.f32 0.0, %v756
  %v758 = vpop.f32.mrb[0].mxu0
  %v759 = vpop.f32.mrb[0].mxu0
  %v760 = vadd.f32 0.0, %v759
  %v761 = vpop.f32.mrb[0].mxu0
  %762 = vmatprep.mubr.bf16.mxu0 %v283
  %763 = vmatmul.mubr.bf16.gmra.mrb[0].mxu0 %v282
  %v764 = vpop.f32.mrb[0].mxu0
  %v765 = vadd.f32 0.0, %v764
  %v766 = vpop.f32.mrb[0].mxu0
  %v767 = vpop.f32.mrb[0].mxu0
  %v768 = vpop.f32.mrb[0].mxu0
  %769 = vdwg.mxu0
  %770 = vmatprep.subr.bf16.mxu0 0
  %771 = vmatpush1.bf16.msra.mxu0 %v594
  %772 = vmatprep.subr.bf16.mxu0 0
  %773 = vmatpush1.bf16.msra.mxu0 %v595
  %774 = vmatprep.subr.bf16.mxu0 0
  %775 = vmatpush1.bf16.msra.mxu0 %v596
  %776 = vmatprep.subr.bf16.mxu0 0
  %777 = vmatpush1.bf16.msra.mxu0 %v597
  %778 = vmatprep.subr.bf16.mxu0 0
  %779 = vmatpush1.bf16.msra.mxu0 %v598
  %780 = vmatprep.subr.bf16.mxu0 0
  %781 = vmatpush1.bf16.msra.mxu0 %v599
  %782 = vmatprep.subr.bf16.mxu0 0
  %783 = vmatpush1.bf16.msra.mxu0 %v600
  %784 = vmatprep.subr.bf16.mxu0 0
  %785 = vmatpush1.bf16.msra.mxu0 %v601
  %786 = vmatprep.subr.bf16.mxu0 0
  %787 = vmatpush1.bf16.msra.mxu0 %v602
  %788 = vmatprep.subr.bf16.mxu0 0
  %789 = vmatpush1.bf16.msra.mxu0 %v603
  %790 = vmatprep.subr.bf16.mxu0 0
  %791 = vmatpush1.bf16.msra.mxu0 %v604
  %792 = vmatprep.subr.bf16.mxu0 0
  %793 = vmatpush1.bf16.msra.mxu0 %v605
  %794 = vmatprep.subr.bf16.mxu0 0
  %795 = vmatpush1.bf16.msra.mxu0 %v606
  %796 = vmatprep.subr.bf16.mxu0 0
  %797 = vmatpush1.bf16.msra.mxu0 %v607
  %798 = vmatprep.subr.bf16.mxu0 0
  %799 = vmatpush1.bf16.msra.mxu0 %v608
  %800 = vmatprep.subr.bf16.mxu0 0
  %801 = vmatpush1.bf16.msra.mxu0 %v609
  %802 = vmatprep.mubr.bf16.mxu0 %v261
  %803 = vmatmul.mubr.bf16.gmra.mrb[0].mxu0 %v260
  %v804 = vpop.f32.mrb[0].mxu0
  %v805 = vadd.f32 %v741, %v804
  %v806 = vpop.f32.mrb[0].mxu0
  %v807 = vpop.f32.mrb[0].mxu0
  %v808 = vadd.f32 %v744, %v807
  %v809 = vpop.f32.mrb[0].mxu0
  %810 = vmatprep.mubr.bf16.mxu0 %v269
  %811 = vmatmul.mubr.bf16.gmra.mrb[0].mxu0 %v268
  %v812 = vpop.f32.mrb[0].mxu0
  %v813 = vadd.f32 %v749, %v812
  %v814 = vpop.f32.mrb[0].mxu0
  %v815 = vpop.f32.mrb[0].mxu0
  %v816 = vadd.f32 %v752, %v815
  %v817 = vpop.f32.mrb[0].mxu0
  %818 = vmatprep.mubr.bf16.mxu0 %v277
  %819 = vmatmul.mubr.bf16.gmra.mrb[0].mxu0 %v276
  %v820 = vpop.f32.mrb[0].mxu0
  %v821 = vadd.f32 %v757, %v820
  %v822 = vpop.f32.mrb[0].mxu0
  %v823 = vpop.f32.mrb[0].mxu0
  %v824 = vadd.f32 %v760, %v823
  %v825 = vpop.f32.mrb[0].mxu0
  %826 = vmatprep.mubr.bf16.mxu0 %v285
  %827 = vmatmul.mubr.bf16.gmra.mrb[0].mxu0 %v284
  %v828 = vpop.f32.mrb[0].mxu0
  %v829 = vadd.f32 %v765, %v828
  %v830 = vpop.f32.mrb[0].mxu0
  %v831 = vpop.f32.mrb[0].mxu0
  %v832 = vpop.f32.mrb[0].mxu0
  %833 = vdwg.mxu0
  %834 = vmatprep.subr.bf16.mxu0 0
  %835 = vmatpush1.bf16.msra.mxu0 %v610
  %836 = vmatprep.subr.bf16.mxu0 0
  %837 = vmatpush1.bf16.msra.mxu0 %v611
  %838 = vmatprep.subr.bf16.mxu0 0
  %839 = vmatpush1.bf16.msra.mxu0 %v612
  %840 = vmatprep.subr.bf16.mxu0 0
  %841 = vmatpush1.bf16.msra.mxu0 %v613
  %842 = vmatprep.subr.bf16.mxu0 0
  %843 = vmatpush1.bf16.msra.mxu0 %v614
  %844 = vmatprep.subr.bf16.mxu0 0
  %845 = vmatpush1.bf16.msra.mxu0 %v615
  %846 = vmatprep.subr.bf16.mxu0 0
  %847 = vmatpush1.bf16.msra.mxu0 %v616
  %848 = vmatprep.subr.bf16.mxu0 0
  %849 = vmatpush1.bf16.msra.mxu0 %v617
  %850 = vmatprep.subr.bf16.mxu0 0
  %851 = vmatpush1.bf16.msra.mxu0 %v618
  %852 = vmatprep.subr.bf16.mxu0 0
  %853 = vmatpush1.bf16.msra.mxu0 %v619
  %854 = vmatprep.subr.bf16.mxu0 0
  %855 = vmatpush1.bf16.msra.mxu0 %v620
  %856 = vmatprep.subr.bf16.mxu0 0
  %857 = vmatpush1.bf16.msra.mxu0 %v621
  %858 = vmatprep.subr.bf16.mxu0 0
  %859 = vmatpush1.bf16.msra.mxu0 %v622
  %860 = vmatprep.subr.bf16.mxu0 0
  %861 = vmatpush1.bf16.msra.mxu0 %v623
  %862 = vmatprep.subr.bf16.mxu0 0
  %863 = vmatpush1.bf16.msra.mxu0 %v624
  %864 = vmatprep.subr.bf16.mxu0 0
  %865 = vmatpush1.bf16.msra.mxu0 %v625
  %866 = vmatprep.mubr.bf16.mxu0 %v263
  %867 = vmatmul.mubr.bf16.gmra.mrb[0].mxu0 %v262
  %v868 = vpop.f32.mrb[0].mxu0
  %v869 = vadd.f32 %v805, %v868
  %v870 = vpop.f32.mrb[0].mxu0
  %v871 = vpop.f32.mrb[0].mxu0
  %v872 = vadd.f32 %v808, %v871
  %v873 = vpop.f32.mrb[0].mxu0
  %874 = vmatprep.mubr.bf16.mxu0 %v271
  %875 = vmatmul.mubr.bf16.gmra.mrb[0].mxu0 %v270
  %v876 = vpop.f32.mrb[0].mxu0
  %v877 = vadd.f32 %v813, %v876
  %v878 = vpop.f32.mrb[0].mxu0
  %v879 = vpop.f32.mrb[0].mxu0
  %v880 = vadd.f32 %v816, %v879
  %v881 = vpop.f32.mrb[0].mxu0
  %882 = vmatprep.mubr.bf16.mxu0 %v279
  %883 = vmatmul.mubr.bf16.gmra.mrb[0].mxu0 %v278
  %v884 = vpop.f32.mrb[0].mxu0
  %v885 = vadd.f32 %v821, %v884
  %v886 = vpop.f32.mrb[0].mxu0
  %v887 = vpop.f32.mrb[0].mxu0
  %v888 = vadd.f32 %v824, %v887
  %v889 = vpop.f32.mrb[0].mxu0
  %890 = vmatprep.mubr.bf16.mxu0 %v287
  %891 = vmatmul.mubr.bf16.gmra.mrb[0].mxu0 %v286
  %v892 = vpop.f32.mrb[0].mxu0
  %v893 = vadd.f32 %v829, %v892
  %v894 = vpop.f32.mrb[0].mxu0
  %v895 = vpop.f32.mrb[0].mxu0
  %v896 = vpop.f32.mrb[0].mxu0
  %897 = vdwg.mxu0
  %898 = vmatprep.subr.bf16.mxu0 0
  %899 = vmatpush1.bf16.msra.mxu0 %v626
  %900 = vmatprep.subr.bf16.mxu0 0
  %901 = vmatpush1.bf16.msra.mxu0 %v627
  %902 = vmatprep.subr.bf16.mxu0 0
  %903 = vmatpush1.bf16.msra.mxu0 %v628
  %904 = vmatprep.subr.bf16.mxu0 0
  %905 = vmatpush1.bf16.msra.mxu0 %v629
  %906 = vmatprep.subr.bf16.mxu0 0
  %907 = vmatpush1.bf16.msra.mxu0 %v630
  %908 = vmatprep.subr.bf16.mxu0 0
  %909 = vmatpush1.bf16.msra.mxu0 %v631
  %910 = vmatprep.subr.bf16.mxu0 0
  %911 = vmatpush1.bf16.msra.mxu0 %v632
  %912 = vmatprep.subr.bf16.mxu0 0
  %913 = vmatpush1.bf16.msra.mxu0 %v633
  %914 = vmatprep.subr.bf16.mxu0 0
  %915 = vmatpush1.bf16.msra.mxu0 %v634
  %916 = vmatprep.subr.bf16.mxu0 0
  %917 = vmatpush1.bf16.msra.mxu0 %v635
  %918 = vmatprep.subr.bf16.mxu0 0
  %919 = vmatpush1.bf16.msra.mxu0 %v636
  %920 = vmatprep.subr.bf16.mxu0 0
  %921 = vmatpush1.bf16.msra.mxu0 %v637
  %922 = vmatprep.subr.bf16.mxu0 0
  %923 = vmatpush1.bf16.msra.mxu0 %v638
  %924 = vmatprep.subr.bf16.mxu0 0
  %925 = vmatpush1.bf16.msra.mxu0 %v639
  %926 = vmatprep.subr.bf16.mxu0 0
  %927 = vmatpush1.bf16.msra.mxu0 %v640
  %928 = vmatprep.subr.bf16.mxu0 0
  %929 = vmatpush1.bf16.msra.mxu0 %v641
  %930 = vmatprep.mubr.bf16.mxu0 %v265
  %931 = vmatmul.mubr.bf16.gmra.mrb[0].mxu0 %v264
  %v932 = vpop.f32.mrb[0].mxu0
  %v933 = vadd.f32 %v869, %v932
  %v934 = vpop.f32.mrb[0].mxu0
  %v935 = vpop.f32.mrb[0].mxu0
  %v936 = vadd.f32 %v872, %v935
  %v937 = vpop.f32.mrb[0].mxu0
  %938 = vmatprep.mubr.bf16.mxu0 %v273
  %939 = vmatmul.mubr.bf16.gmra.mrb[0].mxu0 %v272
  %v940 = vpop.f32.mrb[0].mxu0
  %v941 = vadd.f32 %v877, %v940
  %v942 = vpop.f32.mrb[0].mxu0
  %v943 = vpop.f32.mrb[0].mxu0
  %v944 = vadd.f32 %v880, %v943
  %v945 = vpop.f32.mrb[0].mxu0
  %946 = vmatprep.mubr.bf16.mxu0 %v281
  %947 = vmatmul.mubr.bf16.gmra.mrb[0].mxu0 %v280
  %v948 = vpop.f32.mrb[0].mxu0
  %v949 = vadd.f32 %v885, %v948
  %v950 = vpop.f32.mrb[0].mxu0
  %v951 = vpop.f32.mrb[0].mxu0
  %v952 = vadd.f32 %v888, %v951
  %v953 = vpop.f32.mrb[0].mxu0
  %954 = vmatprep.mubr.bf16.mxu0 %v289
  %955 = vmatmul.mubr.bf16.gmra.mrb[0].mxu0 %v288
  %v956 = vpop.f32.mrb[0].mxu0
  %v957 = vadd.f32 %v893, %v956
  %v958 = vpop.f32.mrb[0].mxu0
  %v959 = vpop.f32.mrb[0].mxu0
  %v960 = vpop.f32.mrb[0].mxu0
  %961 = vdwg.mxu0
  %v962 = vld [vmem:[%s2] sm:$0x1]
  %v964 = vlaneseq
  %v965 = vshrl.u32 %v964, 7
  %v966 = vsub.s32 0, %v965
  %v967 = vrot.slane %v962, %v966
  %v969 = vmul.f32 %v933, %v967
  %v970 = vmul.f32 %v936, %v967
  %v971 = vmul.f32 %v941, %v967
  %v972 = vmul.f32 %v944, %v967
  %v973 = vmul.f32 %v949, %v967
  %v974 = vmul.f32 %v952, %v967
  %v975 = vmul.f32 %v957, %v967
  %v976 = vld [vmem:[%s3] sm:$0x1]
  %v978 = vlaneseq
  %v979 = vshrl.u32 %v978, 7
  %v980 = vsub.s32 0, %v979
  %v981 = vrot.slane %v976, %v980
  %v983 = vadd.f32 %v969, %v981
  %v984 = vadd.f32 %v970, %v981
  %v985 = vadd.f32 %v971, %v981
  %v986 = vadd.f32 %v972, %v981
  %v987 = vadd.f32 %v973, %v981
  %v988 = vadd.f32 %v974, %v981
  %v989 = vadd.f32 %v975, %v981
  %vm990 = vcmp.gt.f32.partialorder %v983, 0.0
  %vm991 = vcmp.gt.f32.partialorder %v984, 0.0
  %vm992 = vcmp.gt.f32.partialorder %v985, 0.0
  %vm993 = vcmp.gt.f32.partialorder %v986, 0.0
  %vm994 = vcmp.gt.f32.partialorder %v987, 0.0
  %vm995 = vcmp.gt.f32.partialorder %v988, 0.0
  %vm996 = vcmp.gt.f32.partialorder %v989, 0.0
  %v997 = vmin.f32 %v983, 0.0
  %v998 = vmin.f32 %v984, 0.0
  %v999 = vmin.f32 %v985, 0.0
  %v1000 = vmin.f32 %v986, 0.0
  %v1001 = vmin.f32 %v987, 0.0
  %v1002 = vmin.f32 %v988, 0.0
  %v1003 = vmin.f32 %v989, 0.0
  %v1004 = vmul.f32 %v997, 1.442695
  %v1005 = vpow.pop %v1004
  %v1006 = vmul.f32 %v998, 1.442695
  %v1007 = vpow.pop %v1006
  %v1008 = vmul.f32 %v999, 1.442695
  %v1009 = vpow.pop %v1008
  %v1010 = vmul.f32 %v1000, 1.442695
  %v1011 = vpow.pop %v1010
  %v1012 = vmul.f32 %v1001, 1.442695
  %v1013 = vpow.pop %v1012
  %v1014 = vmul.f32 %v1002, 1.442695
  %v1015 = vpow.pop %v1014
  %v1016 = vmul.f32 %v1003, 1.442695
  %v1017 = vpow.pop %v1016
  %v1018 = vsub.f32 %v1005, 1.0
  %v1019 = vsub.f32 %v1007, 1.0
  %v1020 = vsub.f32 %v1009, 1.0
  %v1021 = vsub.f32 %v1011, 1.0
  %v1022 = vsub.f32 %v1013, 1.0
  %v1023 = vsub.f32 %v1015, 1.0
  %v1024 = vsub.f32 %v1017, 1.0
  %v1025 = vsel %vm990, %v983, %v1018
  %v1026 = vsel %vm991, %v984, %v1019
  %v1027 = vsel %vm992, %v985, %v1020
  %v1028 = vsel %vm993, %v986, %v1021
  %v1029 = vsel %vm994, %v987, %v1022
  %v1030 = vsel %vm995, %v988, %v1023
  %v1031 = vsel %vm996, %v989, %v1024
  %1032 = vst [vmem:[%s4] sm:$0xff] %v1025
  %1033 = vst [vmem:[%s4 + $0x8] sm:$0xff] %v1026
  %1034 = vst [vmem:[%s4 + $0x10] sm:$0xff] %v1027
  %1035 = vst [vmem:[%s4 + $0x18] sm:$0xff] %v1028
  %1036 = vst [vmem:[%s4 + $0x20] sm:$0xff] %v1029
  %1037 = vst [vmem:[%s4 + $0x28] sm:$0xff] %v1030
  %1038 = vst [vmem:[%s4 + $0x30] sm:$0xff] %v1031
  // Predicated region
  $region18: #{cnn3d_forward.10} parent=0 // pred_check
    _
  $region19: #{cnn3d_forward.10} parent=0 // pred_check_branch
    %1040 = sbr.rel (0) target = $region21
  $region20: #{cnn3d_forward.10} parent=0 // pred_region
    _
  $region21: #{cnn3d_forward.10} parent=0 // pred_fallthru
    _
  // Predicated region
  $region22: #{cnn3d_forward.10} parent=0 // pred_check
    _
  $region23: #{cnn3d_forward.10} parent=0 // pred_check_branch
    %1042 = sbr.rel (0) target = $region25
  $region24: #{cnn3d_forward.10} parent=0 // pred_region
    _
  $region25: #{cnn3d_forward.10} parent=0 // pred_fallthru
    _

// kernel: cnn3d_forward.11
$region0: #{cnn3d_forward.11}
  #allocation0 [shape = 'u32[]', space=smem, size = 0x4, offset = 0x4, fixed_abs, tag = 'smem constant byte address 0x4 - core index']
  #allocation1 [shape = 'u32[144,128]{1,0:T(1,128)}', space=vmem, size = 0x12000, scoped, tag = 'internal scratch']
  %s0 = inlined_call_operand.vmem [shape: f32[8,128], index: 0, kind: input, shape index: {}]
  %s1 = inlined_call_operand.vmem [shape: bf16[128,128], index: 1, kind: input, shape index: {}]
  %s2 = inlined_call_operand.vmem [shape: f32[1,128], index: 2, kind: input, shape index: {}]
  %s3 = inlined_call_operand.vmem [shape: f32[1,128], index: 3, kind: input, shape index: {}]
  %s4 = inlined_call_operand.vmem [shape: f32[1,128], index: 4, kind: input, shape index: {}]
  %s5 = inlined_call_operand.vmem [shape: bf16[128,128], index: 5, kind: input, shape index: {}]
  %s6 = inlined_call_operand.vmem [shape: f32[1,128], index: 6, kind: input, shape index: {}]
  %s7 = inlined_call_operand.vmem [shape: f32[8,128], index: 7, kind: output, shape index: {}]
  %s8 = sld [smem:[#allocation0]]
  $region38: #{cnn3d_forward.11} parent=0
    _
  %s10 = ssub.s32 1, %s8
  %s11 = scalar_select 0, %s10, %s8
  // Predicated region
  $region2: #{cnn3d_forward.11} parent=0 // pred_check
    _
  $region3: #{cnn3d_forward.11} parent=0 // pred_check_branch
    %13 = sbr.rel (0) target = $region5
  $region4: #{cnn3d_forward.11} parent=0 // pred_region
    _
  $region5: #{cnn3d_forward.11} parent=0 // pred_fallthru
    _
  // Predicated region
  $region6: #{cnn3d_forward.11} parent=0 // pred_check
    _
  $region7: #{cnn3d_forward.11} parent=0 // pred_check_branch
    %15 = sbr.rel (0) target = $region9
  $region8: #{cnn3d_forward.11} parent=0 // pred_region
    _
  $region9: #{cnn3d_forward.11} parent=0 // pred_fallthru
    _
  // Predicated region
  $region10: #{cnn3d_forward.11} parent=0 // pred_check
    _
  $region11: #{cnn3d_forward.11} parent=0 // pred_check_branch
    %17 = sbr.rel (0) target = $region13
  $region12: #{cnn3d_forward.11} parent=0 // pred_region
    _
  $region13: #{cnn3d_forward.11} parent=0 // pred_fallthru
    _
  // Predicated region
  $region14: #{cnn3d_forward.11} parent=0 // pred_check
    _
  $region15: #{cnn3d_forward.11} parent=0 // pred_check_branch
    %19 = sbr.rel (0) target = $region17
  $region16: #{cnn3d_forward.11} parent=0 // pred_region
    _
  $region17: #{cnn3d_forward.11} parent=0 // pred_fallthru
    _
  // Predicated region
  $region18: #{cnn3d_forward.11} parent=0 // pred_check
    _
  $region19: #{cnn3d_forward.11} parent=0 // pred_check_branch
    %21 = sbr.rel (0) target = $region21
  $region20: #{cnn3d_forward.11} parent=0 // pred_region
    _
  $region21: #{cnn3d_forward.11} parent=0 // pred_fallthru
    _
  // Predicated region
  $region22: #{cnn3d_forward.11} parent=0 // pred_check
    _
  $region23: #{cnn3d_forward.11} parent=0 // pred_check_branch
    %23 = sbr.rel (0) target = $region25
  $region24: #{cnn3d_forward.11} parent=0 // pred_region
    _
  $region25: #{cnn3d_forward.11} parent=0 // pred_fallthru
    _
  // Predicated region
  $region26: #{cnn3d_forward.11} parent=0 // pred_check
    _
  $region27: #{cnn3d_forward.11} parent=0 // pred_check_branch
    %25 = sbr.rel (0) target = $region29
  $region28: #{cnn3d_forward.11} parent=0 // pred_region
    _
  $region29: #{cnn3d_forward.11} parent=0 // pred_fallthru
    _
  %v27 = vld [vmem:[%s0] sm:$0xff]
  %v28 = vpack.c.bf16 %v27, %v27
  %v29 = vld [vmem:[%s1] sm:$0xf]
  %v30 = vld [vmem:[%s1 + $0x4] sm:$0xf]
  %v31 = vld [vmem:[%s1 + $0x8] sm:$0xf]
  %v32 = vld [vmem:[%s1 + $0xc] sm:$0xf]
  %v33 = vld [vmem:[%s1 + $0x10] sm:$0xf]
  %v34 = vld [vmem:[%s1 + $0x14] sm:$0xf]
  %v35 = vld [vmem:[%s1 + $0x18] sm:$0xf]
  %v36 = vld [vmem:[%s1 + $0x1c] sm:$0xf]
  %v37 = vld [vmem:[%s1 + $0x20] sm:$0xf]
  %v38 = vld [vmem:[%s1 + $0x24] sm:$0xf]
  %v39 = vld [vmem:[%s1 + $0x28] sm:$0xf]
  %v40 = vld [vmem:[%s1 + $0x2c] sm:$0xf]
  %v41 = vld [vmem:[%s1 + $0x30] sm:$0xf]
  %v42 = vld [vmem:[%s1 + $0x34] sm:$0xf]
  %v43 = vld [vmem:[%s1 + $0x38] sm:$0xf]
  %v44 = vld [vmem:[%s1 + $0x3c] sm:$0xf]
  %v45 = vld [vmem:[%s2] sm:$0x1]
  %v47 = vlaneseq
  %v48 = vshrl.u32 %v47, 7
  %v49 = vsub.s32 0, %v48
  %v50 = vrot.slane %v45, %v49
  %v68 = vunpack.c.l.b16 %v29
  %v69 = vunpack.c.l.b16 %v30
  %v70 = vunpack.c.l.b16 %v31
  %v71 = vunpack.c.l.b16 %v32
  %v72 = vunpack.c.l.b16 %v33
  %v73 = vunpack.c.l.b16 %v34
  %v74 = vunpack.c.l.b16 %v35
  %v75 = vunpack.c.l.b16 %v36
  %v76 = vunpack.c.l.b16 %v37
  %v77 = vunpack.c.l.b16 %v38
  %v78 = vunpack.c.l.b16 %v39
  %v79 = vunpack.c.l.b16 %v40
  %v80 = vunpack.c.l.b16 %v41
  %v81 = vunpack.c.l.b16 %v42
  %v82 = vunpack.c.l.b16 %v43
  %v83 = vunpack.c.l.b16 %v44
  %v84 = vpack.c.b16 %v69, %v68
  %v85 = vpack.c.b16 %v71, %v70
  %v86 = vpack.c.b16 %v73, %v72
  %v87 = vpack.c.b16 %v75, %v74
  %v88 = vpack.c.b16 %v77, %v76
  %v89 = vpack.c.b16 %v79, %v78
  %v90 = vpack.c.b16 %v81, %v80
  %v91 = vpack.c.b16 %v83, %v82
  %100 = vmatprep.subr.bf16.mxu0 0
  %101 = vmatpush1.bf16.msra.mxu0 %v84
  %102 = vmatprep.subr.bf16.mxu0 0
  %103 = vmatpush1.bf16.msra.mxu0 %v85
  %104 = vmatprep.subr.bf16.mxu0 0
  %105 = vmatpush1.bf16.msra.mxu0 %v86
  %106 = vmatprep.subr.bf16.mxu0 0
  %107 = vmatpush1.bf16.msra.mxu0 %v87
  %108 = vmatprep.subr.bf16.mxu0 0
  %109 = vmatpush1.bf16.msra.mxu0 %v88
  %110 = vmatprep.subr.bf16.mxu0 0
  %111 = vmatpush1.bf16.msra.mxu0 %v89
  %112 = vmatprep.subr.bf16.mxu0 0
  %113 = vmatpush1.bf16.msra.mxu0 %v90
  %114 = vmatprep.subr.bf16.mxu0 0
  %115 = vmatpush1.bf16.msra.mxu0 %v91
  %116 = vmatprep.subr.bf16.mxu0 0
  %117 = vmatpush1.bf16.msra.mxu0 0
  %118 = vmatprep.subr.bf16.mxu0 0
  %119 = vmatpush1.bf16.msra.mxu0 0
  %120 = vmatprep.subr.bf16.mxu0 0
  %121 = vmatpush1.bf16.msra.mxu0 0
  %122 = vmatprep.subr.bf16.mxu0 0
  %123 = vmatpush1.bf16.msra.mxu0 0
  %124 = vmatprep.subr.bf16.mxu0 0
  %125 = vmatpush1.bf16.msra.mxu0 0
  %126 = vmatprep.subr.bf16.mxu0 0
  %127 = vmatpush1.bf16.msra.mxu0 0
  %128 = vmatprep.subr.bf16.mxu0 0
  %129 = vmatpush1.bf16.msra.mxu0 0
  %130 = vmatprep.subr.bf16.mxu0 0
  %131 = vmatpush1.bf16.msra.mxu0 0
  %132 = vmatprep.mubr.bf16.mxu0 0
  %133 = vmatmul.mubr.bf16.gmra.mrb[0].mxu0 %v28
  %v134 = vpop.f32.mrb[0].mxu0
  %v135 = vadd.f32 %v50, %v134
  %v136 = vpop.f32.mrb[0].mxu0
  %v137 = vpop.f32.mrb[0].mxu0
  %v138 = vpop.f32.mrb[0].mxu0
  %139 = vdwg.mxu0
  %v140 = vld [vmem:[%s3] sm:$0x1]
  %v142 = vlaneseq
  %v143 = vshrl.u32 %v142, 7
  %v144 = vsub.s32 0, %v143
  %v145 = vrot.slane %v140, %v144
  %v147 = vmul.f32 %v135, %v145
  %v148 = vld [vmem:[%s4] sm:$0x1]
  %v150 = vlaneseq
  %v151 = vshrl.u32 %v150, 7
  %v152 = vsub.s32 0, %v151
  %v153 = vrot.slane %v148, %v152
  %v155 = vadd.f32 %v147, %v153
  %vm156 = vcmp.gt.f32.partialorder %v155, 0.0
  %v157 = vmin.f32 %v155, 0.0
  %v158 = vmul.f32 %v157, 1.442695
  %v159 = vpow.pop %v158
  %v160 = vsub.f32 %v159, 1.0
  %v161 = vsel %vm156, %v155, %v160
  %v162 = vpack.c.bf16 %v161, %v161
  %v163 = vld [vmem:[%s5] sm:$0xf]
  %v164 = vld [vmem:[%s5 + $0x4] sm:$0xf]
  %v165 = vld [vmem:[%s5 + $0x8] sm:$0xf]
  %v166 = vld [vmem:[%s5 + $0xc] sm:$0xf]
  %v167 = vld [vmem:[%s5 + $0x10] sm:$0xf]
  %v168 = vld [vmem:[%s5 + $0x14] sm:$0xf]
  %v169 = vld [vmem:[%s5 + $0x18] sm:$0xf]
  %v170 = vld [vmem:[%s5 + $0x1c] sm:$0xf]
  %v171 = vld [vmem:[%s5 + $0x20] sm:$0xf]
  %v172 = vld [vmem:[%s5 + $0x24] sm:$0xf]
  %v173 = vld [vmem:[%s5 + $0x28] sm:$0xf]
  %v174 = vld [vmem:[%s5 + $0x2c] sm:$0xf]
  %v175 = vld [vmem:[%s5 + $0x30] sm:$0xf]
  %v176 = vld [vmem:[%s5 + $0x34] sm:$0xf]
  %v177 = vld [vmem:[%s5 + $0x38] sm:$0xf]
  %v178 = vld [vmem:[%s5 + $0x3c] sm:$0xf]
  %v179 = vld [vmem:[%s6] sm:$0x1]
  %v181 = vlaneseq
  %v182 = vshrl.u32 %v181, 7
  %v183 = vsub.s32 0, %v182
  %v184 = vrot.slane %v179, %v183
  %v202 = vunpack.c.l.b16 %v163
  %v203 = vunpack.c.l.b16 %v164
  %v204 = vunpack.c.l.b16 %v165
  %v205 = vunpack.c.l.b16 %v166
  %v206 = vunpack.c.l.b16 %v167
  %v207 = vunpack.c.l.b16 %v168
  %v208 = vunpack.c.l.b16 %v169
  %v209 = vunpack.c.l.b16 %v170
  %v210 = vunpack.c.l.b16 %v171
  %v211 = vunpack.c.l.b16 %v172
  %v212 = vunpack.c.l.b16 %v173
  %v213 = vunpack.c.l.b16 %v174
  %v214 = vunpack.c.l.b16 %v175
  %v215 = vunpack.c.l.b16 %v176
  %v216 = vunpack.c.l.b16 %v177
  %v217 = vunpack.c.l.b16 %v178
  %v218 = vpack.c.b16 %v203, %v202
  %v219 = vpack.c.b16 %v205, %v204
  %v220 = vpack.c.b16 %v207, %v206
  %v221 = vpack.c.b16 %v209, %v208
  %v222 = vpack.c.b16 %v211, %v210
  %v223 = vpack.c.b16 %v213, %v212
  %v224 = vpack.c.b16 %v215, %v214
  %v225 = vpack.c.b16 %v217, %v216
  %234 = vmatprep.subr.bf16.mxu0 0
  %235 = vmatpush1.bf16.msra.mxu0 %v218
  %236 = vmatprep.subr.bf16.mxu0 0
  %237 = vmatpush1.bf16.msra.mxu0 %v219
  %238 = vmatprep.subr.bf16.mxu0 0
  %239 = vmatpush1.bf16.msra.mxu0 %v220
  %240 = vmatprep.subr.bf16.mxu0 0
  %241 = vmatpush1.bf16.msra.mxu0 %v221
  %242 = vmatprep.subr.bf16.mxu0 0
  %243 = vmatpush1.bf16.msra.mxu0 %v222
  %244 = vmatprep.subr.bf16.mxu0 0
  %245 = vmatpush1.bf16.msra.mxu0 %v223
  %246 = vmatprep.subr.bf16.mxu0 0
  %247 = vmatpush1.bf16.msra.mxu0 %v224
  %248 = vmatprep.subr.bf16.mxu0 0
  %249 = vmatpush1.bf16.msra.mxu0 %v225
  %250 = vmatprep.subr.bf16.mxu0 0
  %251 = vmatpush1.bf16.msra.mxu0 0
  %252 = vmatprep.subr.bf16.mxu0 0
  %253 = vmatpush1.bf16.msra.mxu0 0
  %254 = vmatprep.subr.bf16.mxu0 0
  %255 = vmatpush1.bf16.msra.mxu0 0
  %256 = vmatprep.subr.bf16.mxu0 0
  %257 = vmatpush1.bf16.msra.mxu0 0
  %258 = vmatprep.subr.bf16.mxu0 0
  %259 = vmatpush1.bf16.msra.mxu0 0
  %260 = vmatprep.subr.bf16.mxu0 0
  %261 = vmatpush1.bf16.msra.mxu0 0
  %262 = vmatprep.subr.bf16.mxu0 0
  %263 = vmatpush1.bf16.msra.mxu0 0
  %264 = vmatprep.subr.bf16.mxu0 0
  %265 = vmatpush1.bf16.msra.mxu0 0
  %266 = vmatprep.mubr.bf16.mxu0 0
  %267 = vmatmul.mubr.bf16.gmra.mrb[0].mxu0 %v162
  %v268 = vpop.f32.mrb[0].mxu0
  %v269 = vadd.f32 %v184, %v268
  %v270 = vpop.f32.mrb[0].mxu0
  %v271 = vpop.f32.mrb[0].mxu0
  %v272 = vpop.f32.mrb[0].mxu0
  %273 = vdwg.mxu0
  %274 = vst [vmem:[%s7] sm:$0xff] %v269
  // Predicated region
  $region30: #{cnn3d_forward.11} parent=0 // pred_check
    _
  $region31: #{cnn3d_forward.11} parent=0 // pred_check_branch
    %276 = sbr.rel (0) target = $region33
  $region32: #{cnn3d_forward.11} parent=0 // pred_region
    _
  $region33: #{cnn3d_forward.11} parent=0 // pred_fallthru
    _
  // Predicated region
  $region34: #{cnn3d_forward.11} parent=0 // pred_check
    _
  $region35: #{cnn3d_forward.11} parent=0 // pred_check_branch
    %278 = sbr.rel (0) target = $region37
  $region36: #{cnn3d_forward.11} parent=0 // pred_region
    _
  $region37: #{cnn3d_forward.11} parent=0 // pred_fallthru
    _

</llo_original>
